<compile_context>
chip_gen: v7x
topology: tpu7x:2x2x1
jax: 0.10.0
libtpu: 0.0.40
codegen_flags: <defaults>
</compile_context>

<pallas_src>
import functools

import jax
import jax.numpy as jnp
from jax.experimental import pallas as pl
from jax.experimental.pallas import tpu as pltpu

F32 = jnp.float32
BF16 = jnp.bfloat16

# 48 MiB: above the 16/32 MiB scoped defaults on v5e/v6e, below v7x's 64 MiB/TC physical.
_VMEM_LIMIT = 48 * 1024 * 1024


def _round_up(x, m):
    return (x + m - 1) // m * m


def _pick_tile(n, pref=2048, lo=256):
    """Largest power-of-two tile <= pref that still yields >= 4 grid steps when possible."""
    t = pref
    while t > lo and n < 4 * t:
        t //= 2
    return t


# ---------------------------------------------------------------------------
# Pallas kernels
# ---------------------------------------------------------------------------
def _make_conv_kernel(tap_offsets, tn, slab_w):
    """3x3x3 conv over the padded-flat voxel space via in-kernel im2col.

    For output tile j (columns [j*tn, j*tn+tn) of the padded-flat grid), one halo slab
    [Cin, tn + 2*apron] is DMA'd from HBM, and each of the 27 taps is a statically
    shifted [Cin, tn] slice of that slab contracted against its [Cout, Cin] weight.
    """
    def kernel(w_ref, x_hbm, o_ref, slab_ref, sem_ref):
        j = pl.program_id(0)
        start = pl.multiple_of(j * tn, tn)
        cp = pltpu.make_async_copy(x_hbm.at[:, pl.ds(start, slab_w)], slab_ref, sem_ref)
        cp.start()
        cp.wait()
        acc = jnp.zeros(o_ref.shape, F32)
        for t, off in enumerate(tap_offsets):            # 27 taps, unrolled, static offsets
            acc = acc + jnp.dot(w_ref[t], slab_ref[:, pl.ds(off, tn)],
                                preferred_element_type=F32)
        o_ref[...] = acc.astype(o_ref.dtype)              # bf16 lane-dense store
    return kernel


def sparse_conv3d_cf(w_taps, xflat, *, np_pad, tn, apron, tap_offsets):
    """w_taps: [27, Coutp, Cinp] bf16; xflat: [Cinp, np_pad + 2*apron] bf16 (apron-shifted).

    Returns the conv output over the padded flat voxel space: [Coutp, np_pad] bf16.
    """
    n_taps, cout_p, cin_p = w_taps.shape
    slab_w = tn + 2 * apron
    n_tiles = np_pad // tn
    flops = 2 * n_taps * cout_p * cin_p * np_pad
    bytes_accessed = (cin_p * (np_pad + 2 * apron) * 2      # voxel feats (read ~once)
                      + n_taps * cout_p * cin_p * 2          # weights
                      + cout_p * np_pad * 2)                 # bf16 output
    kernel = _make_conv_kernel(tuple(int(o) for o in tap_offsets), tn, slab_w)
    return pl.pallas_call(
        kernel,
        out_shape=jax.ShapeDtypeStruct((cout_p, np_pad), BF16),
        grid=(n_tiles,),
        in_specs=[
            pl.BlockSpec((n_taps, cout_p, cin_p), lambda j: (0, 0, 0)),  # weights resident
            pl.BlockSpec(memory_space=pl.ANY),                            # voxels stay in HBM
        ],
        out_specs=pl.BlockSpec((cout_p, tn), lambda j: (0, j)),           # lane-dense tile
        scratch_shapes=[pltpu.VMEM((cin_p, slab_w), BF16),
                        pltpu.SemaphoreType.DMA(())],
        compiler_params=pltpu.CompilerParams(
            dimension_semantics=("parallel",),
            vmem_limit_bytes=_VMEM_LIMIT),
        cost_estimate=pl.CostEstimate(flops=int(flops), transcendentals=0,
                                      bytes_accessed=int(bytes_accessed)),
    )(w_taps, xflat)


def _point_fuse_kernel(w_ref, b_ref, zf_ref, it_ref, o_ref):
    """out[Cout, tp] = interp_bf16[Cout, tp] + W_T[Cout, Cin] @ zF_T[Cin, tp] + b[Cout, 1]."""
    lin = jnp.dot(w_ref[...], zf_ref[...], preferred_element_type=F32)
    o_ref[...] = it_ref[...].astype(F32) + lin + b_ref[...]


def point_fuse_gemm(w_t, b, zf_t, interp_cf, *, tp):
    """Fused point_transforms + residual add.  zf_t: [Cinp, Ppad] bf16, interp_cf: [Coutp, Ppad] bf16."""
    c_out, c_in = w_t.shape
    p_pad = zf_t.shape[1]
    flops = 2 * c_out * c_in * p_pad
    bytes_accessed = (c_in * p_pad * 2 + c_out * p_pad * 2
                      + c_out * c_in * 2 + c_out * p_pad * 4)
    return pl.pallas_call(
        _point_fuse_kernel,
        out_shape=jax.ShapeDtypeStruct((c_out, p_pad), F32),
        grid=(p_pad // tp,),
        in_specs=[
            pl.BlockSpec((c_out, c_in), lambda j: (0, 0)),
            pl.BlockSpec((c_out, 1), lambda j: (0, 0)),
            pl.BlockSpec((c_in, tp), lambda j: (0, j)),
            pl.BlockSpec((c_out, tp), lambda j: (0, j)),
        ],
        out_specs=pl.BlockSpec((c_out, tp), lambda j: (0, j)),
        compiler_params=pltpu.CompilerParams(
            dimension_semantics=("parallel",),
            vmem_limit_bytes=_VMEM_LIMIT),
        cost_estimate=pl.CostEstimate(flops=int(flops), transcendentals=0,
                                      bytes_accessed=int(bytes_accessed)),
    )(w_t, b, zf_t, interp_cf)


# ---------------------------------------------------------------------------
# Plain-JAX glue (data-dependent scatter / gather: left in XLA)
# ---------------------------------------------------------------------------
def voxelize_mean(vcoords, feats, grid_size):
    """initial_voxelize: scatter-mean of point features into a dense voxel grid."""
    # TODO(synk): torchsparse uses a coordinate hash map; dense-grid scatter-mean here.
    d, h, w = grid_size
    vidx = jnp.floor(vcoords).astype(jnp.int32)
    vidx = jnp.clip(vidx, jnp.zeros((3,), jnp.int32),
                    jnp.array([d - 1, h - 1, w - 1], jnp.int32))
    flat = (vidx[:, 0] * h + vidx[:, 1]) * w + vidx[:, 2]
    n = d * h * w
    sums = jnp.zeros((n, feats.shape[1]), F32).at[flat].add(feats.astype(F32))
    cnts = jnp.zeros((n, 1), F32).at[flat].add(1.0)
    return sums / jnp.maximum(cnts, 1.0)


def devoxelize_trilinear_cf(conv_cf_padded, coords, grid_size):
    """voxel_to_point(nearest=False): trilinear gather from the conv output.

    conv_cf_padded: [Coutp, Dp*Hp*Wp(+pad)] bf16, laid out over the zero-padded grid.
    Returns [Coutp, P] f32 (weighted-sum math kept in f32; cast to bf16 by the caller).
    """
    # TODO(synk): exact torchsparse calc_ti_weights corner convention not reproduced.
    d, h, w = grid_size
    hp, wp = h + 2, w + 2
    base = jnp.floor(coords)
    frac = coords - base
    base = base.astype(jnp.int32)
    interp = jnp.zeros((conv_cf_padded.shape[0], coords.shape[0]), F32)
    for dz in (0, 1):
        for dy in (0, 1):
            for dx in (0, 1):
                cz = base[:, 0] + dz
                cy = base[:, 1] + dy
                cx = base[:, 2] + dx
                wgt = ((frac[:, 0] if dz else 1.0 - frac[:, 0])
                       * (frac[:, 1] if dy else 1.0 - frac[:, 1])
                       * (frac[:, 2] if dx else 1.0 - frac[:, 2]))
                valid = ((cz >= 0) & (cz < d) & (cy >= 0) & (cy < h)
                         & (cx >= 0) & (cx < w)).astype(F32)
                # +1: corner coords -> padded-grid coords (conv output lives in padded space,
                # so interior entries are exact and the garbage border is never touched).
                flat = ((jnp.clip(cz, 0, d - 1) + 1) * hp
                        + (jnp.clip(cy, 0, h - 1) + 1)) * wp + (jnp.clip(cx, 0, w - 1) + 1)
                vals = jnp.take(conv_cf_padded, flat, axis=1).astype(F32)
                interp = interp + vals * (wgt * valid)[None, :]
    return interp


# ---------------------------------------------------------------------------
# SConv3d forward (bias-free spnn.Conv3d k=3 s=1; Linear point transform fused)
# ---------------------------------------------------------------------------
def sconv3d_forward(params, z_coords, z_feats, *, pres, vres, grid_size):
    d, h, w = grid_size
    dp, hp, wp = d + 2, h + 2, w + 2
    n_padded = dp * hp * wp
    p, inc = z_feats.shape
    outc = params["lin_w"].shape[1]
    cin_p = _round_up(inc, 16)        # bf16 sublane-friendly channel padding
    cout_p = _round_up(outc, 16)

    # --- weight prep (tiny; padded channel rows/cols are zero so they contribute nothing)
    w_taps = jnp.transpose(params["conv_w"].reshape(27, inc, outc), (0, 2, 1))
    w_taps = jnp.pad(w_taps, ((0, 0), (0, cout_p - outc), (0, cin_p - inc))).astype(BF16)
    lin_w_t = jnp.pad(jnp.transpose(params["lin_w"]),
                      ((0, cout_p - outc), (0, cin_p - inc))).astype(BF16)
    lin_b = jnp.pad(params["lin_b"], (0, cout_p - outc)).reshape(cout_p, 1).astype(F32)

    # --- initial_voxelize: point coords scaled from point resolution to voxel resolution
    vcoords = z_coords * (pres / vres)
    vox = voxelize_mean(vcoords, z_feats, grid_size)                      # [D*H*W, Cin] f32

    # --- channels-first, spatially zero-padded, apron-shifted flat voxel tensor (bf16)
    tn = _pick_tile(n_padded)
    apron = _round_up(hp * wp + wp + 1, 128)      # covers max |tap offset|; DMA-aligned
    np_pad = _round_up(n_padded, tn)
    vox_cf = jnp.transpose(vox.reshape(d, h, w, inc), (3, 0, 1, 2)).astype(BF16)
    vox_cf = jnp.pad(vox_cf, ((0, cin_p - inc), (1, 1), (1, 1), (1, 1)))  # [Cinp,Dp,Hp,Wp]
    xflat = jnp.pad(vox_cf.reshape(cin_p, n_padded),
                    ((0, 0), (apron, np_pad - n_padded + apron)))         # [Cinp, np_pad+2*apron]

    # static per-tap offsets inside the halo slab (tap (dz,dy,dx) reads column m + off)
    tap_offsets = [apron + (dz - 1) * hp * wp + (dy - 1) * wp + (dx - 1)
                   for dz in range(3) for dy in range(3) for dx in range(3)]

    # --- sparse conv (k=3, s=1, no bias) as an in-kernel-im2col GEMM, bf16 output
    conv_cf = sparse_conv3d_cf(w_taps, xflat, np_pad=np_pad, tn=tn, apron=apron,
                               tap_offsets=tap_offsets)                   # [Coutp, np_pad] bf16

    # --- voxel_to_point (nearest=False): trilinear gather (XLA), f32 math, bf16 handoff
    interp_cf = devoxelize_trilinear_cf(conv_cf, vcoords, grid_size)      # [Coutp, P] f32

    # --- point_transforms(z.F) + residual add, fused in one GEMM epilogue
    tp = _pick_tile(p)
    p_pad = _round_up(p, tp)
    zf_t = jnp.pad(jnp.transpose(z_feats).astype(BF16),
                   ((0, cin_p - inc), (0, p_pad - p)))
    it = jnp.pad(interp_cf.astype(BF16), ((0, 0), (0, p_pad - p)))
    out_cf = point_fuse_gemm(lin_w_t, lin_b, zf_t, it, tp=tp)             # [Coutp, Ppad] f32

    # NOTE: end-to-end wall time also includes the XLA scatter/gather glue above;
    # profile the whole jit, not only the two pallas_calls.
    return jnp.transpose(out_cf[:outc, :p])                               # [P, Cout] == out.F


def init_params(key, inc, outc):
    k_w, k_lw, k_lb = jax.random.split(key, 3)
    return {
        "conv_w": jax.random.normal(k_w, (3, 3, 3, inc, outc), F32) / jnp.sqrt(27.0 * inc),
        "lin_w": jax.random.normal(k_lw, (inc, outc), F32) / jnp.sqrt(float(inc)),
        "lin_b": 0.1 * jax.random.normal(k_lb, (outc,), F32),
    }


if __name__ == "__main__":
    key = jax.random.PRNGKey(0)
    k_p, k_c, k_f = jax.random.split(key, 3)

    INC, OUTC = 8, 16
    PRES, VRES = 1.0, 1.0
    S = 16                    # dense voxel grid side length
    P = 2048                  # number of input points

    params = init_params(k_p, INC, OUTC)
    z_coords = jax.random.uniform(k_c, (P, 3), F32, 0.0, float(S))   # point coords (z.C)
    z_feats = jax.random.normal(k_f, (P, INC), F32)                  # point feats  (z.F)

    fwd = jax.jit(functools.partial(sconv3d_forward, pres=PRES, vres=VRES,
                                    grid_size=(S, S, S)))
    out = jax.block_until_ready(fwd(params, z_coords, z_feats))

    assert out.shape == (P, OUTC)
    assert bool(jnp.all(jnp.isfinite(out)))
    print("KERNEL_OK")
</pallas_src>

<mosaic_0001>
module attributes {stable_mosaic.version = 11 : i64} {
  func.func private @main(%arg0: i32) attributes {dimension_semantics = [#tpu.dimension_semantics<core_parallel>], iteration_bounds = array<i64: 2>, tpu.core_type = #tpu.core_type<sc_scalar_subcore>, window_params = []} {
    return
  }
}

module attributes {stable_mosaic.version = 11 : i64} {
  func.func private @main(%arg0: i32) attributes {dimension_semantics = [#tpu.dimension_semantics<core_parallel>], iteration_bounds = array<i64: 2>, tpu.core_type = #tpu.core_type<sc_scalar_subcore>, window_params = []} {
    return
  }
}

module attributes {stable_mosaic.version = 11 : i64} {
  func.func @kernel(%arg0: i32, %arg1: memref<27x16x16xbf16, #tpu.memory_space<vmem>>, %arg2: memref<16x6912xbf16, #tpu.memory_space<any>>, %arg3: memref<16x1024xbf16, #tpu.memory_space<vmem>>, %arg4: memref<16x1792xbf16, #tpu.memory_space<vmem>>, %arg5: memref<!tpu.dma_semaphore, #tpu.memory_space<semaphore_mem>>) attributes {dimension_semantics = [#tpu.dimension_semantics<parallel>], iteration_bounds = array<i64: 6>, scalar_prefetch = 0 : i64, scratch_operands = 2 : i64, tpu.core_type = #tpu.core_type<tc>, window_params = [{pipeline_mode = #tpu.pipeline_mode<synchronous>, transform_indices = @transform_0, window_bounds = array<i64: 27, 16, 16>}, {}, {transform_indices = @transform_2, window_bounds = array<i64: 16, 1024>}]} {
    %c1024_i32 = arith.constant 1024 : i32
    %0 = arith.muli %arg0, %c1024_i32 : i32
    %1 = tpu.assume_multiple %0, 1024 : i32
    %c0_i32 = arith.constant 0 : i32
    %2 = tpu.memref_slice %arg2[%c0_i32, %1] : memref<16x6912xbf16, #tpu.memory_space<any>> -> memref<16x1792xbf16, #tpu.memory_space<any>>
    tpu.enqueue_dma source(%2 : memref<16x1792xbf16, #tpu.memory_space<any>>) target(%arg4 : memref<16x1792xbf16, #tpu.memory_space<vmem>>) target_semaphore(%arg5 : memref<!tpu.dma_semaphore, #tpu.memory_space<semaphore_mem>>)
    %c0_i32_0 = arith.constant 0 : i32
    %3 = tpu.memref_slice %arg2[%c0_i32_0, %1] : memref<16x6912xbf16, #tpu.memory_space<any>> -> memref<16x1792xbf16, #tpu.memory_space<any>>
    tpu.wait_dma2 semaphore(%arg5 : memref<!tpu.dma_semaphore, #tpu.memory_space<semaphore_mem>>) src(%3 : memref<16x1792xbf16, #tpu.memory_space<any>>) dst(%arg4 : memref<16x1792xbf16, #tpu.memory_space<vmem>>)
    %cst = arith.constant 0.000000e+00 : f32
    %4 = vector.broadcast %cst : f32 to vector<16x1024xf32>
    %c0 = arith.constant 0 : index
    %c0_1 = arith.constant 0 : index
    %c0_2 = arith.constant 0 : index
    %5 = vector.load %arg1[%c0, %c0_1, %c0_2] : memref<27x16x16xbf16, #tpu.memory_space<vmem>>, vector<1x16x16xbf16>
    %6 = vector.shape_cast %5 : vector<1x16x16xbf16> to vector<16x16xbf16>
    %c0_3 = arith.constant 0 : index
    %c41 = arith.constant 41 : index
    %7 = vector.load %arg4[%c0_3, %c41] : memref<16x1792xbf16, #tpu.memory_space<vmem>>, vector<16x1024xbf16>
    %cst_4 = arith.constant dense<0.000000e+00> : vector<16x1024xf32>
    %8 = tpu.matmul %6, %7, %cst_4 {dimension_numbers = #tpu.dot_dimension_numbers<[1], [0], [0], [1], [0, 0, 1, 1], [], []>} : vector<16x16xbf16>, vector<16x1024xbf16>, vector<16x1024xf32> -> vector<16x1024xf32>
    %9 = arith.addf %4, %8 : vector<16x1024xf32>
    %c1 = arith.constant 1 : index
    %c0_5 = arith.constant 0 : index
    %c0_6 = arith.constant 0 : index
    %10 = vector.load %arg1[%c1, %c0_5, %c0_6] : memref<27x16x16xbf16, #tpu.memory_space<vmem>>, vector<1x16x16xbf16>
    %11 = vector.shape_cast %10 : vector<1x16x16xbf16> to vector<16x16xbf16>
    %c0_7 = arith.constant 0 : index
    %c42 = arith.constant 42 : index
    %12 = vector.load %arg4[%c0_7, %c42] : memref<16x1792xbf16, #tpu.memory_space<vmem>>, vector<16x1024xbf16>
    %cst_8 = arith.constant dense<0.000000e+00> : vector<16x1024xf32>
    %13 = tpu.matmul %11, %12, %cst_8 {dimension_numbers = #tpu.dot_dimension_numbers<[1], [0], [0], [1], [0, 0, 1, 1], [], []>} : vector<16x16xbf16>, vector<16x1024xbf16>, vector<16x1024xf32> -> vector<16x1024xf32>
    %14 = arith.addf %9, %13 : vector<16x1024xf32>
    %c2 = arith.constant 2 : index
    %c0_9 = arith.constant 0 : index
    %c0_10 = arith.constant 0 : index
    %15 = vector.load %arg1[%c2, %c0_9, %c0_10] : memref<27x16x16xbf16, #tpu.memory_space<vmem>>, vector<1x16x16xbf16>
    %16 = vector.shape_cast %15 : vector<1x16x16xbf16> to vector<16x16xbf16>
    %c0_11 = arith.constant 0 : index
    %c43 = arith.constant 43 : index
    %17 = vector.load %arg4[%c0_11, %c43] : memref<16x1792xbf16, #tpu.memory_space<vmem>>, vector<16x1024xbf16>
    %cst_12 = arith.constant dense<0.000000e+00> : vector<16x1024xf32>
    %18 = tpu.matmul %16, %17, %cst_12 {dimension_numbers = #tpu.dot_dimension_numbers<[1], [0], [0], [1], [0, 0, 1, 1], [], []>} : vector<16x16xbf16>, vector<16x1024xbf16>, vector<16x1024xf32> -> vector<16x1024xf32>
    %19 = arith.addf %14, %18 : vector<16x1024xf32>
    %c3 = arith.constant 3 : index
    %c0_13 = arith.constant 0 : index
    %c0_14 = arith.constant 0 : index
    %20 = vector.load %arg1[%c3, %c0_13, %c0_14] : memref<27x16x16xbf16, #tpu.memory_space<vmem>>, vector<1x16x16xbf16>
    %21 = vector.shape_cast %20 : vector<1x16x16xbf16> to vector<16x16xbf16>
    %c0_15 = arith.constant 0 : index
    %c59 = arith.constant 59 : index
    %22 = vector.load %arg4[%c0_15, %c59] : memref<16x1792xbf16, #tpu.memory_space<vmem>>, vector<16x1024xbf16>
    %cst_16 = arith.constant dense<0.000000e+00> : vector<16x1024xf32>
    %23 = tpu.matmul %21, %22, %cst_16 {dimension_numbers = #tpu.dot_dimension_numbers<[1], [0], [0], [1], [0, 0, 1, 1], [], []>} : vector<16x16xbf16>, vector<16x1024xbf16>, vector<16x1024xf32> -> vector<16x1024xf32>
    %24 = arith.addf %19, %23 : vector<16x1024xf32>
    %c4 = arith.constant 4 : index
    %c0_17 = arith.constant 0 : index
    %c0_18 = arith.constant 0 : index
    %25 = vector.load %arg1[%c4, %c0_17, %c0_18] : memref<27x16x16xbf16, #tpu.memory_space<vmem>>, vector<1x16x16xbf16>
    %26 = vector.shape_cast %25 : vector<1x16x16xbf16> to vector<16x16xbf16>
    %c0_19 = arith.constant 0 : index
    %c60 = arith.constant 60 : index
    %27 = vector.load %arg4[%c0_19, %c60] : memref<16x1792xbf16, #tpu.memory_space<vmem>>, vector<16x1024xbf16>
    %cst_20 = arith.constant dense<0.000000e+00> : vector<16x1024xf32>
    %28 = tpu.matmul %26, %27, %cst_20 {dimension_numbers = #tpu.dot_dimension_numbers<[1], [0], [0], [1], [0, 0, 1, 1], [], []>} : vector<16x16xbf16>, vector<16x1024xbf16>, vector<16x1024xf32> -> vector<16x1024xf32>
    %29 = arith.addf %24, %28 : vector<16x1024xf32>
    %c5 = arith.constant 5 : index
    %c0_21 = arith.constant 0 : index
    %c0_22 = arith.constant 0 : index
    %30 = vector.load %arg1[%c5, %c0_21, %c0_22] : memref<27x16x16xbf16, #tpu.memory_space<vmem>>, vector<1x16x16xbf16>
    %31 = vector.shape_cast %30 : vector<1x16x16xbf16> to vector<16x16xbf16>
    %c0_23 = arith.constant 0 : index
    %c61 = arith.constant 61 : index
    %32 = vector.load %arg4[%c0_23, %c61] : memref<16x1792xbf16, #tpu.memory_space<vmem>>, vector<16x1024xbf16>
    %cst_24 = arith.constant dense<0.000000e+00> : vector<16x1024xf32>
    %33 = tpu.matmul %31, %32, %cst_24 {dimension_numbers = #tpu.dot_dimension_numbers<[1], [0], [0], [1], [0, 0, 1, 1], [], []>} : vector<16x16xbf16>, vector<16x1024xbf16>, vector<16x1024xf32> -> vector<16x1024xf32>
    %34 = arith.addf %29, %33 : vector<16x1024xf32>
    %c6 = arith.constant 6 : index
    %c0_25 = arith.constant 0 : index
    %c0_26 = arith.constant 0 : index
    %35 = vector.load %arg1[%c6, %c0_25, %c0_26] : memref<27x16x16xbf16, #tpu.memory_space<vmem>>, vector<1x16x16xbf16>
    %36 = vector.shape_cast %35 : vector<1x16x16xbf16> to vector<16x16xbf16>
    %c0_27 = arith.constant 0 : index
    %c77 = arith.constant 77 : index
    %37 = vector.load %arg4[%c0_27, %c77] : memref<16x1792xbf16, #tpu.memory_space<vmem>>, vector<16x1024xbf16>
    %cst_28 = arith.constant dense<0.000000e+00> : vector<16x1024xf32>
    %38 = tpu.matmul %36, %37, %cst_28 {dimension_numbers = #tpu.dot_dimension_numbers<[1], [0], [0], [1], [0, 0, 1, 1], [], []>} : vector<16x16xbf16>, vector<16x1024xbf16>, vector<16x1024xf32> -> vector<16x1024xf32>
    %39 = arith.addf %34, %38 : vector<16x1024xf32>
    %c7 = arith.constant 7 : index
    %c0_29 = arith.constant 0 : index
    %c0_30 = arith.constant 0 : index
    %40 = vector.load %arg1[%c7, %c0_29, %c0_30] : memref<27x16x16xbf16, #tpu.memory_space<vmem>>, vector<1x16x16xbf16>
    %41 = vector.shape_cast %40 : vector<1x16x16xbf16> to vector<16x16xbf16>
    %c0_31 = arith.constant 0 : index
    %c78 = arith.constant 78 : index
    %42 = vector.load %arg4[%c0_31, %c78] : memref<16x1792xbf16, #tpu.memory_space<vmem>>, vector<16x1024xbf16>
    %cst_32 = arith.constant dense<0.000000e+00> : vector<16x1024xf32>
    %43 = tpu.matmul %41, %42, %cst_32 {dimension_numbers = #tpu.dot_dimension_numbers<[1], [0], [0], [1], [0, 0, 1, 1], [], []>} : vector<16x16xbf16>, vector<16x1024xbf16>, vector<16x1024xf32> -> vector<16x1024xf32>
    %44 = arith.addf %39, %43 : vector<16x1024xf32>
    %c8 = arith.constant 8 : index
    %c0_33 = arith.constant 0 : index
    %c0_34 = arith.constant 0 : index
    %45 = vector.load %arg1[%c8, %c0_33, %c0_34] : memref<27x16x16xbf16, #tpu.memory_space<vmem>>, vector<1x16x16xbf16>
    %46 = vector.shape_cast %45 : vector<1x16x16xbf16> to vector<16x16xbf16>
    %c0_35 = arith.constant 0 : index
    %c79 = arith.constant 79 : index
    %47 = vector.load %arg4[%c0_35, %c79] : memref<16x1792xbf16, #tpu.memory_space<vmem>>, vector<16x1024xbf16>
    %cst_36 = arith.constant dense<0.000000e+00> : vector<16x1024xf32>
    %48 = tpu.matmul %46, %47, %cst_36 {dimension_numbers = #tpu.dot_dimension_numbers<[1], [0], [0], [1], [0, 0, 1, 1], [], []>} : vector<16x16xbf16>, vector<16x1024xbf16>, vector<16x1024xf32> -> vector<16x1024xf32>
    %49 = arith.addf %44, %48 : vector<16x1024xf32>
    %c9 = arith.constant 9 : index
    %c0_37 = arith.constant 0 : index
    %c0_38 = arith.constant 0 : index
    %50 = vector.load %arg1[%c9, %c0_37, %c0_38] : memref<27x16x16xbf16, #tpu.memory_space<vmem>>, vector<1x16x16xbf16>
    %51 = vector.shape_cast %50 : vector<1x16x16xbf16> to vector<16x16xbf16>
    %c0_39 = arith.constant 0 : index
    %c365 = arith.constant 365 : index
    %52 = vector.load %arg4[%c0_39, %c365] : memref<16x1792xbf16, #tpu.memory_space<vmem>>, vector<16x1024xbf16>
    %cst_40 = arith.constant dense<0.000000e+00> : vector<16x1024xf32>
    %53 = tpu.matmul %51, %52, %cst_40 {dimension_numbers = #tpu.dot_dimension_numbers<[1], [0], [0], [1], [0, 0, 1, 1], [], []>} : vector<16x16xbf16>, vector<16x1024xbf16>, vector<16x1024xf32> -> vector<16x1024xf32>
    %54 = arith.addf %49, %53 : vector<16x1024xf32>
    %c10 = arith.constant 10 : index
    %c0_41 = arith.constant 0 : index
    %c0_42 = arith.constant 0 : index
    %55 = vector.load %arg1[%c10, %c0_41, %c0_42] : memref<27x16x16xbf16, #tpu.memory_space<vmem>>, vector<1x16x16xbf16>
    %56 = vector.shape_cast %55 : vector<1x16x16xbf16> to vector<16x16xbf16>
    %c0_43 = arith.constant 0 : index
    %c366 = arith.constant 366 : index
    %57 = vector.load %arg4[%c0_43, %c366] : memref<16x1792xbf16, #tpu.memory_space<vmem>>, vector<16x1024xbf16>
    %cst_44 = arith.constant dense<0.000000e+00> : vector<16x1024xf32>
    %58 = tpu.matmul %56, %57, %cst_44 {dimension_numbers = #tpu.dot_dimension_numbers<[1], [0], [0], [1], [0, 0, 1, 1], [], []>} : vector<16x16xbf16>, vector<16x1024xbf16>, vector<16x1024xf32> -> vector<16x1024xf32>
    %59 = arith.addf %54, %58 : vector<16x1024xf32>
    %c11 = arith.constant 11 : index
    %c0_45 = arith.constant 0 : index
    %c0_46 = arith.constant 0 : index
    %60 = vector.load %arg1[%c11, %c0_45, %c0_46] : memref<27x16x16xbf16, #tpu.memory_space<vmem>>, vector<1x16x16xbf16>
    %61 = vector.shape_cast %60 : vector<1x16x16xbf16> to vector<16x16xbf16>
    %c0_47 = arith.constant 0 : index
    %c367 = arith.constant 367 : index
    %62 = vector.load %arg4[%c0_47, %c367] : memref<16x1792xbf16, #tpu.memory_space<vmem>>, vector<16x1024xbf16>
    %cst_48 = arith.constant dense<0.000000e+00> : vector<16x1024xf32>
    %63 = tpu.matmul %61, %62, %cst_48 {dimension_numbers = #tpu.dot_dimension_numbers<[1], [0], [0], [1], [0, 0, 1, 1], [], []>} : vector<16x16xbf16>, vector<16x1024xbf16>, vector<16x1024xf32> -> vector<16x1024xf32>
    %64 = arith.addf %59, %63 : vector<16x1024xf32>
    %c12 = arith.constant 12 : index
    %c0_49 = arith.constant 0 : index
    %c0_50 = arith.constant 0 : index
    %65 = vector.load %arg1[%c12, %c0_49, %c0_50] : memref<27x16x16xbf16, #tpu.memory_space<vmem>>, vector<1x16x16xbf16>
    %66 = vector.shape_cast %65 : vector<1x16x16xbf16> to vector<16x16xbf16>
    %c0_51 = arith.constant 0 : index
    %c383 = arith.constant 383 : index
    %67 = vector.load %arg4[%c0_51, %c383] : memref<16x1792xbf16, #tpu.memory_space<vmem>>, vector<16x1024xbf16>
    %cst_52 = arith.constant dense<0.000000e+00> : vector<16x1024xf32>
    %68 = tpu.matmul %66, %67, %cst_52 {dimension_numbers = #tpu.dot_dimension_numbers<[1], [0], [0], [1], [0, 0, 1, 1], [], []>} : vector<16x16xbf16>, vector<16x1024xbf16>, vector<16x1024xf32> -> vector<16x1024xf32>
    %69 = arith.addf %64, %68 : vector<16x1024xf32>
    %c13 = arith.constant 13 : index
    %c0_53 = arith.constant 0 : index
    %c0_54 = arith.constant 0 : index
    %70 = vector.load %arg1[%c13, %c0_53, %c0_54] : memref<27x16x16xbf16, #tpu.memory_space<vmem>>, vector<1x16x16xbf16>
    %71 = vector.shape_cast %70 : vector<1x16x16xbf16> to vector<16x16xbf16>
    %c0_55 = arith.constant 0 : index
    %c384 = arith.constant 384 : index
    %72 = vector.load %arg4[%c0_55, %c384] : memref<16x1792xbf16, #tpu.memory_space<vmem>>, vector<16x1024xbf16>
    %cst_56 = arith.constant dense<0.000000e+00> : vector<16x1024xf32>
    %73 = tpu.matmul %71, %72, %cst_56 {dimension_numbers = #tpu.dot_dimension_numbers<[1], [0], [0], [1], [0, 0, 1, 1], [], []>} : vector<16x16xbf16>, vector<16x1024xbf16>, vector<16x1024xf32> -> vector<16x1024xf32>
    %74 = arith.addf %69, %73 : vector<16x1024xf32>
    %c14 = arith.constant 14 : index
    %c0_57 = arith.constant 0 : index
    %c0_58 = arith.constant 0 : index
    %75 = vector.load %arg1[%c14, %c0_57, %c0_58] : memref<27x16x16xbf16, #tpu.memory_space<vmem>>, vector<1x16x16xbf16>
    %76 = vector.shape_cast %75 : vector<1x16x16xbf16> to vector<16x16xbf16>
    %c0_59 = arith.constant 0 : index
    %c385 = arith.constant 385 : index
    %77 = vector.load %arg4[%c0_59, %c385] : memref<16x1792xbf16, #tpu.memory_space<vmem>>, vector<16x1024xbf16>
    %cst_60 = arith.constant dense<0.000000e+00> : vector<16x1024xf32>
    %78 = tpu.matmul %76, %77, %cst_60 {dimension_numbers = #tpu.dot_dimension_numbers<[1], [0], [0], [1], [0, 0, 1, 1], [], []>} : vector<16x16xbf16>, vector<16x1024xbf16>, vector<16x1024xf32> -> vector<16x1024xf32>
    %79 = arith.addf %74, %78 : vector<16x1024xf32>
    %c15 = arith.constant 15 : index
    %c0_61 = arith.constant 0 : index
    %c0_62 = arith.constant 0 : index
    %80 = vector.load %arg1[%c15, %c0_61, %c0_62] : memref<27x16x16xbf16, #tpu.memory_space<vmem>>, vector<1x16x16xbf16>
    %81 = vector.shape_cast %80 : vector<1x16x16xbf16> to vector<16x16xbf16>
    %c0_63 = arith.constant 0 : index
    %c401 = arith.constant 401 : index
    %82 = vector.load %arg4[%c0_63, %c401] : memref<16x1792xbf16, #tpu.memory_space<vmem>>, vector<16x1024xbf16>
    %cst_64 = arith.constant dense<0.000000e+00> : vector<16x1024xf32>
    %83 = tpu.matmul %81, %82, %cst_64 {dimension_numbers = #tpu.dot_dimension_numbers<[1], [0], [0], [1], [0, 0, 1, 1], [], []>} : vector<16x16xbf16>, vector<16x1024xbf16>, vector<16x1024xf32> -> vector<16x1024xf32>
    %84 = arith.addf %79, %83 : vector<16x1024xf32>
    %c16 = arith.constant 16 : index
    %c0_65 = arith.constant 0 : index
    %c0_66 = arith.constant 0 : index
    %85 = vector.load %arg1[%c16, %c0_65, %c0_66] : memref<27x16x16xbf16, #tpu.memory_space<vmem>>, vector<1x16x16xbf16>
    %86 = vector.shape_cast %85 : vector<1x16x16xbf16> to vector<16x16xbf16>
    %c0_67 = arith.constant 0 : index
    %c402 = arith.constant 402 : index
    %87 = vector.load %arg4[%c0_67, %c402] : memref<16x1792xbf16, #tpu.memory_space<vmem>>, vector<16x1024xbf16>
    %cst_68 = arith.constant dense<0.000000e+00> : vector<16x1024xf32>
    %88 = tpu.matmul %86, %87, %cst_68 {dimension_numbers = #tpu.dot_dimension_numbers<[1], [0], [0], [1], [0, 0, 1, 1], [], []>} : vector<16x16xbf16>, vector<16x1024xbf16>, vector<16x1024xf32> -> vector<16x1024xf32>
    %89 = arith.addf %84, %88 : vector<16x1024xf32>
    %c17 = arith.constant 17 : index
    %c0_69 = arith.constant 0 : index
    %c0_70 = arith.constant 0 : index
    %90 = vector.load %arg1[%c17, %c0_69, %c0_70] : memref<27x16x16xbf16, #tpu.memory_space<vmem>>, vector<1x16x16xbf16>
    %91 = vector.shape_cast %90 : vector<1x16x16xbf16> to vector<16x16xbf16>
    %c0_71 = arith.constant 0 : index
    %c403 = arith.constant 403 : index
    %92 = vector.load %arg4[%c0_71, %c403] : memref<16x1792xbf16, #tpu.memory_space<vmem>>, vector<16x1024xbf16>
    %cst_72 = arith.constant dense<0.000000e+00> : vector<16x1024xf32>
    %93 = tpu.matmul %91, %92, %cst_72 {dimension_numbers = #tpu.dot_dimension_numbers<[1], [0], [0], [1], [0, 0, 1, 1], [], []>} : vector<16x16xbf16>, vector<16x1024xbf16>, vector<16x1024xf32> -> vector<16x1024xf32>
    %94 = arith.addf %89, %93 : vector<16x1024xf32>
    %c18 = arith.constant 18 : index
    %c0_73 = arith.constant 0 : index
    %c0_74 = arith.constant 0 : index
    %95 = vector.load %arg1[%c18, %c0_73, %c0_74] : memref<27x16x16xbf16, #tpu.memory_space<vmem>>, vector<1x16x16xbf16>
    %96 = vector.shape_cast %95 : vector<1x16x16xbf16> to vector<16x16xbf16>
    %c0_75 = arith.constant 0 : index
    %c689 = arith.constant 689 : index
    %97 = vector.load %arg4[%c0_75, %c689] : memref<16x1792xbf16, #tpu.memory_space<vmem>>, vector<16x1024xbf16>
    %cst_76 = arith.constant dense<0.000000e+00> : vector<16x1024xf32>
    %98 = tpu.matmul %96, %97, %cst_76 {dimension_numbers = #tpu.dot_dimension_numbers<[1], [0], [0], [1], [0, 0, 1, 1], [], []>} : vector<16x16xbf16>, vector<16x1024xbf16>, vector<16x1024xf32> -> vector<16x1024xf32>
    %99 = arith.addf %94, %98 : vector<16x1024xf32>
    %c19 = arith.constant 19 : index
    %c0_77 = arith.constant 0 : index
    %c0_78 = arith.constant 0 : index
    %100 = vector.load %arg1[%c19, %c0_77, %c0_78] : memref<27x16x16xbf16, #tpu.memory_space<vmem>>, vector<1x16x16xbf16>
    %101 = vector.shape_cast %100 : vector<1x16x16xbf16> to vector<16x16xbf16>
    %c0_79 = arith.constant 0 : index
    %c690 = arith.constant 690 : index
    %102 = vector.load %arg4[%c0_79, %c690] : memref<16x1792xbf16, #tpu.memory_space<vmem>>, vector<16x1024xbf16>
    %cst_80 = arith.constant dense<0.000000e+00> : vector<16x1024xf32>
    %103 = tpu.matmul %101, %102, %cst_80 {dimension_numbers = #tpu.dot_dimension_numbers<[1], [0], [0], [1], [0, 0, 1, 1], [], []>} : vector<16x16xbf16>, vector<16x1024xbf16>, vector<16x1024xf32> -> vector<16x1024xf32>
    %104 = arith.addf %99, %103 : vector<16x1024xf32>
    %c20 = arith.constant 20 : index
    %c0_81 = arith.constant 0 : index
    %c0_82 = arith.constant 0 : index
    %105 = vector.load %arg1[%c20, %c0_81, %c0_82] : memref<27x16x16xbf16, #tpu.memory_space<vmem>>, vector<1x16x16xbf16>
    %106 = vector.shape_cast %105 : vector<1x16x16xbf16> to vector<16x16xbf16>
    %c0_83 = arith.constant 0 : index
    %c691 = arith.constant 691 : index
    %107 = vector.load %arg4[%c0_83, %c691] : memref<16x1792xbf16, #tpu.memory_space<vmem>>, vector<16x1024xbf16>
    %cst_84 = arith.constant dense<0.000000e+00> : vector<16x1024xf32>
    %108 = tpu.matmul %106, %107, %cst_84 {dimension_numbers = #tpu.dot_dimension_numbers<[1], [0], [0], [1], [0, 0, 1, 1], [], []>} : vector<16x16xbf16>, vector<16x1024xbf16>, vector<16x1024xf32> -> vector<16x1024xf32>
    %109 = arith.addf %104, %108 : vector<16x1024xf32>
    %c21 = arith.constant 21 : index
    %c0_85 = arith.constant 0 : index
    %c0_86 = arith.constant 0 : index
    %110 = vector.load %arg1[%c21, %c0_85, %c0_86] : memref<27x16x16xbf16, #tpu.memory_space<vmem>>, vector<1x16x16xbf16>
    %111 = vector.shape_cast %110 : vector<1x16x16xbf16> to vector<16x16xbf16>
    %c0_87 = arith.constant 0 : index
    %c707 = arith.constant 707 : index
    %112 = vector.load %arg4[%c0_87, %c707] : memref<16x1792xbf16, #tpu.memory_space<vmem>>, vector<16x1024xbf16>
    %cst_88 = arith.constant dense<0.000000e+00> : vector<16x1024xf32>
    %113 = tpu.matmul %111, %112, %cst_88 {dimension_numbers = #tpu.dot_dimension_numbers<[1], [0], [0], [1], [0, 0, 1, 1], [], []>} : vector<16x16xbf16>, vector<16x1024xbf16>, vector<16x1024xf32> -> vector<16x1024xf32>
    %114 = arith.addf %109, %113 : vector<16x1024xf32>
    %c22 = arith.constant 22 : index
    %c0_89 = arith.constant 0 : index
    %c0_90 = arith.constant 0 : index
    %115 = vector.load %arg1[%c22, %c0_89, %c0_90] : memref<27x16x16xbf16, #tpu.memory_space<vmem>>, vector<1x16x16xbf16>
    %116 = vector.shape_cast %115 : vector<1x16x16xbf16> to vector<16x16xbf16>
    %c0_91 = arith.constant 0 : index
    %c708 = arith.constant 708 : index
    %117 = vector.load %arg4[%c0_91, %c708] : memref<16x1792xbf16, #tpu.memory_space<vmem>>, vector<16x1024xbf16>
    %cst_92 = arith.constant dense<0.000000e+00> : vector<16x1024xf32>
    %118 = tpu.matmul %116, %117, %cst_92 {dimension_numbers = #tpu.dot_dimension_numbers<[1], [0], [0], [1], [0, 0, 1, 1], [], []>} : vector<16x16xbf16>, vector<16x1024xbf16>, vector<16x1024xf32> -> vector<16x1024xf32>
    %119 = arith.addf %114, %118 : vector<16x1024xf32>
    %c23 = arith.constant 23 : index
    %c0_93 = arith.constant 0 : index
    %c0_94 = arith.constant 0 : index
    %120 = vector.load %arg1[%c23, %c0_93, %c0_94] : memref<27x16x16xbf16, #tpu.memory_space<vmem>>, vector<1x16x16xbf16>
    %121 = vector.shape_cast %120 : vector<1x16x16xbf16> to vector<16x16xbf16>
    %c0_95 = arith.constant 0 : index
    %c709 = arith.constant 709 : index
    %122 = vector.load %arg4[%c0_95, %c709] : memref<16x1792xbf16, #tpu.memory_space<vmem>>, vector<16x1024xbf16>
    %cst_96 = arith.constant dense<0.000000e+00> : vector<16x1024xf32>
    %123 = tpu.matmul %121, %122, %cst_96 {dimension_numbers = #tpu.dot_dimension_numbers<[1], [0], [0], [1], [0, 0, 1, 1], [], []>} : vector<16x16xbf16>, vector<16x1024xbf16>, vector<16x1024xf32> -> vector<16x1024xf32>
    %124 = arith.addf %119, %123 : vector<16x1024xf32>
    %c24 = arith.constant 24 : index
    %c0_97 = arith.constant 0 : index
    %c0_98 = arith.constant 0 : index
    %125 = vector.load %arg1[%c24, %c0_97, %c0_98] : memref<27x16x16xbf16, #tpu.memory_space<vmem>>, vector<1x16x16xbf16>
    %126 = vector.shape_cast %125 : vector<1x16x16xbf16> to vector<16x16xbf16>
    %c0_99 = arith.constant 0 : index
    %c725 = arith.constant 725 : index
    %127 = vector.load %arg4[%c0_99, %c725] : memref<16x1792xbf16, #tpu.memory_space<vmem>>, vector<16x1024xbf16>
    %cst_100 = arith.constant dense<0.000000e+00> : vector<16x1024xf32>
    %128 = tpu.matmul %126, %127, %cst_100 {dimension_numbers = #tpu.dot_dimension_numbers<[1], [0], [0], [1], [0, 0, 1, 1], [], []>} : vector<16x16xbf16>, vector<16x1024xbf16>, vector<16x1024xf32> -> vector<16x1024xf32>
    %129 = arith.addf %124, %128 : vector<16x1024xf32>
    %c25 = arith.constant 25 : index
    %c0_101 = arith.constant 0 : index
    %c0_102 = arith.constant 0 : index
    %130 = vector.load %arg1[%c25, %c0_101, %c0_102] : memref<27x16x16xbf16, #tpu.memory_space<vmem>>, vector<1x16x16xbf16>
    %131 = vector.shape_cast %130 : vector<1x16x16xbf16> to vector<16x16xbf16>
    %c0_103 = arith.constant 0 : index
    %c726 = arith.constant 726 : index
    %132 = vector.load %arg4[%c0_103, %c726] : memref<16x1792xbf16, #tpu.memory_space<vmem>>, vector<16x1024xbf16>
    %cst_104 = arith.constant dense<0.000000e+00> : vector<16x1024xf32>
    %133 = tpu.matmul %131, %132, %cst_104 {dimension_numbers = #tpu.dot_dimension_numbers<[1], [0], [0], [1], [0, 0, 1, 1], [], []>} : vector<16x16xbf16>, vector<16x1024xbf16>, vector<16x1024xf32> -> vector<16x1024xf32>
    %134 = arith.addf %129, %133 : vector<16x1024xf32>
    %c26 = arith.constant 26 : index
    %c0_105 = arith.constant 0 : index
    %c0_106 = arith.constant 0 : index
    %135 = vector.load %arg1[%c26, %c0_105, %c0_106] : memref<27x16x16xbf16, #tpu.memory_space<vmem>>, vector<1x16x16xbf16>
    %136 = vector.shape_cast %135 : vector<1x16x16xbf16> to vector<16x16xbf16>
    %c0_107 = arith.constant 0 : index
    %c727 = arith.constant 727 : index
    %137 = vector.load %arg4[%c0_107, %c727] : memref<16x1792xbf16, #tpu.memory_space<vmem>>, vector<16x1024xbf16>
    %cst_108 = arith.constant dense<0.000000e+00> : vector<16x1024xf32>
    %138 = tpu.matmul %136, %137, %cst_108 {dimension_numbers = #tpu.dot_dimension_numbers<[1], [0], [0], [1], [0, 0, 1, 1], [], []>} : vector<16x16xbf16>, vector<16x1024xbf16>, vector<16x1024xf32> -> vector<16x1024xf32>
    %139 = arith.addf %134, %138 : vector<16x1024xf32>
    %140 = arith.truncf %139 : vector<16x1024xf32> to vector<16x1024xbf16>
    %c0_109 = arith.constant 0 : index
    %c0_110 = arith.constant 0 : index
    %141 = vector.load %arg3[%c0_109, %c0_110] : memref<16x1024xbf16, #tpu.memory_space<vmem>>, vector<16x1024xbf16>
    tpu.vector_store %arg3[%c0_109, %c0_110], %140 {strides = array<i32>} : memref<16x1024xbf16, #tpu.memory_space<vmem>>, vector<16x1024xbf16>,
    return
  }
  func.func @transform_0(%arg0: i32) -> (i32, i32, i32) {
    %c0_i32 = arith.constant 0 : i32
    %c0_i32_0 = arith.constant 0 : i32
    %c0_i32_1 = arith.constant 0 : i32
    %c0_i32_2 = arith.constant 0 : i32
    return %c0_i32, %c0_i32_0, %c0_i32_1 : i32, i32, i32
  }
  func.func @transform_2(%arg0: i32) -> (i32, i32) {
    %c0_i32 = arith.constant 0 : i32
    %c0_i32_0 = arith.constant 0 : i32
    return %c0_i32, %arg0 : i32, i32
  }
}

module attributes {stable_mosaic.version = 11 : i64} {
  func.func @_point_fuse_kernel(%arg0: i32, %arg1: memref<16x16xbf16, #tpu.memory_space<vmem>>, %arg2: memref<16x1xf32, #tpu.memory_space<vmem>>, %arg3: memref<16x512xbf16, #tpu.memory_space<vmem>>, %arg4: memref<16x512xbf16, #tpu.memory_space<vmem>>, %arg5: memref<16x512xf32, #tpu.memory_space<vmem>>) attributes {dimension_semantics = [#tpu.dimension_semantics<parallel>], iteration_bounds = array<i64: 4>, scalar_prefetch = 0 : i64, scratch_operands = 0 : i64, tpu.core_type = #tpu.core_type<tc>, window_params = [{pipeline_mode = #tpu.pipeline_mode<synchronous>, transform_indices = @transform_0, window_bounds = array<i64: 16, 16>}, {pipeline_mode = #tpu.pipeline_mode<synchronous>, transform_indices = @transform_1, window_bounds = array<i64: 16, 1>}, {transform_indices = @transform_2, window_bounds = array<i64: 16, 512>}, {transform_indices = @transform_3, window_bounds = array<i64: 16, 512>}, {transform_indices = @transform_4, window_bounds = array<i64: 16, 512>}]} {
    %c0 = arith.constant 0 : index
    %c0_0 = arith.constant 0 : index
    %0 = vector.load %arg1[%c0, %c0_0] : memref<16x16xbf16, #tpu.memory_space<vmem>>, vector<16x16xbf16>
    %c0_1 = arith.constant 0 : index
    %c0_2 = arith.constant 0 : index
    %1 = vector.load %arg3[%c0_1, %c0_2] : memref<16x512xbf16, #tpu.memory_space<vmem>>, vector<16x512xbf16>
    %cst = arith.constant dense<0.000000e+00> : vector<16x512xf32>
    %2 = tpu.matmul %0, %1, %cst {dimension_numbers = #tpu.dot_dimension_numbers<[1], [0], [0], [1], [0, 0, 1, 1], [], []>} : vector<16x16xbf16>, vector<16x512xbf16>, vector<16x512xf32> -> vector<16x512xf32>
    %c0_3 = arith.constant 0 : index
    %c0_4 = arith.constant 0 : index
    %3 = vector.load %arg4[%c0_3, %c0_4] : memref<16x512xbf16, #tpu.memory_space<vmem>>, vector<16x512xbf16>
    %4 = arith.extf %3 : vector<16x512xbf16> to vector<16x512xf32>
    %5 = arith.addf %4, %2 : vector<16x512xf32>
    %c0_5 = arith.constant 0 : index
    %c0_6 = arith.constant 0 : index
    %6 = vector.load %arg2[%c0_5, %c0_6] : memref<16x1xf32, #tpu.memory_space<vmem>>, vector<16x1xf32>
    %7 = vector.broadcast %6 : vector<16x1xf32> to vector<16x512xf32>
    %8 = arith.addf %5, %7 : vector<16x512xf32>
    %c0_7 = arith.constant 0 : index
    %c0_8 = arith.constant 0 : index
    %9 = vector.load %arg5[%c0_7, %c0_8] : memref<16x512xf32, #tpu.memory_space<vmem>>, vector<16x512xf32>
    tpu.vector_store %arg5[%c0_7, %c0_8], %8 {strides = array<i32>} : memref<16x512xf32, #tpu.memory_space<vmem>>, vector<16x512xf32>,
    return
  }
  func.func @transform_0(%arg0: i32) -> (i32, i32) {
    %c0_i32 = arith.constant 0 : i32
    %c0_i32_0 = arith.constant 0 : i32
    %c0_i32_1 = arith.constant 0 : i32
    return %c0_i32, %c0_i32_0 : i32, i32
  }
  func.func @transform_1(%arg0: i32) -> (i32, i32) {
    %c0_i32 = arith.constant 0 : i32
    %c0_i32_0 = arith.constant 0 : i32
    %c0_i32_1 = arith.constant 0 : i32
    return %c0_i32, %c0_i32_0 : i32, i32
  }
  func.func @transform_2(%arg0: i32) -> (i32, i32) {
    %c0_i32 = arith.constant 0 : i32
    %c0_i32_0 = arith.constant 0 : i32
    return %c0_i32, %arg0 : i32, i32
  }
  func.func @transform_3(%arg0: i32) -> (i32, i32) {
    %c0_i32 = arith.constant 0 : i32
    %c0_i32_0 = arith.constant 0 : i32
    return %c0_i32, %arg0 : i32, i32
  }
  func.func @transform_4(%arg0: i32) -> (i32, i32) {
    %c0_i32 = arith.constant 0 : i32
    %c0_i32_0 = arith.constant 0 : i32
    return %c0_i32, %arg0 : i32, i32
  }
}

</mosaic_0001>

<llo_original>
// kernel: sconv3d_forward.2
$region0: #{sconv3d_forward.2}
  #allocation0 [shape = 'u32[]', space=smem, size = 0x4, offset = 0x4, fixed_abs, tag = 'smem constant byte address 0x4 - core index']
  #allocation1 [shape = 'u32[144,128]{1,0:T(1,128)}', space=vmem, size = 0x12000, scoped, tag = 'internal scratch']
  #allocation2 [shape = 'bf16[16,1792]{1,0:T(16,128)(2,1)}', space=vmem, size = 0xe000, scoped, tag = 'scratch operand']
  #allocation3 [shape = 's32[1]{0}', space=sflag, size = 0x4, scoped, tag = 'scratch operand']
  #allocation5 [shape = 's32[]', space=sflag, size = 0x4, offset = 0, fixed_abs, tag = 'sflag constant byte address 0x0 - dummy sync flag']
  %s0 = inlined_call_operand.vmem [shape: bf16[27,16,16], index: 0, kind: input, shape index: {}]
  %s1 = inlined_call_operand.vmem [shape: bf16[16,6912], index: 1, kind: input, shape index: {}]
  %s2 = inlined_call_operand.vmem [shape: bf16[16,6144], index: 2, kind: output, shape index: {}]
  %s3 = sld [smem:[#allocation0]]
  $region93: #{sconv3d_forward.2} parent=0
    _
  %s5 = ssub.s32 1, %s3
  %s6 = scalar_select 0, %s5, %s3
  $region1: #{sconv3d_forward.2} parent=0
    #allocation4 [shape = 'u8[65536]{0}', space=vmem, size = 0x10000, scoped, tag = 'output window, operand 0']
    loop: start=0, step=1, limit=8
    $region2: #{sconv3d_forward.2} parent=1 // loop_pre_header
      _
    $region3: #{sconv3d_forward.2} parent=1 // loop_header
      %s8 = sphi 0, %s12
      %p9 = scmp.ge.s32.totalorder %s8, 8
      %s16 = sphi 0, %s16
      %s18 = sphi 0, %s16
      %s19 = sphi 0, %s18
      %s33 = sphi 0, %s19
      %s39 = sphi 0, %s41
      %s42 = sphi 0, %s39
      %s43 = sphi 0, %s42
      %s59 = sphi 0, %s43
    $region4: #{sconv3d_forward.2} parent=1 // loop_header_branch
      %11 = sbr.rel (%p9) target = $region8
    $region5: #{sconv3d_forward.2} parent=1 // loop_body
      %s13 = ssub.s32 %s8, 1
      %s14 = ssub.s32 %s8, 2
      %s15 = sadd.s32 %s8, 1
      %s17 = sadd.s32 %s16, 1
      %p20 = scmp.eq.s32.totalorder %s8, 5
      %p21 = scmp.ne.s32.totalorder %s16, %s18
      %p22 = scmp.eq.s32.totalorder %s8, 0
      %p23 = por %p21, %p22
      %p24 = scmp.ne.s32.totalorder %s16, %s18
      %p25 = scmp.eq.s32.totalorder %s13, 5
      %p26 = por %p24, %p25
      %p27 = scmp.ne.s32.totalorder %s18, %s19
      %p28 = scmp.eq.s32.totalorder %s13, 0
      %p29 = por %p27, %p28
      %p30 = scmp.ne.s32.totalorder %s18, %s19
      %p31 = scmp.eq.s32.totalorder %s14, 5
      %p32 = por %p30, %p31
      %p34 = scmp.ne.s32.totalorder %s19, %s33
      %p35 = scmp.eq.s32.totalorder %s14, 0
      %p36 = por %p34, %p35
      %s37 = ssub.s32 %s8, %s15
      %p38 = scmp.eq.s32.totalorder %s37, 0
      %s40 = sadd.s32 %s39, 1
      %s41 = scalar_select %p38, %s39, %s40
      %p44 = pneg %p38
      %p45 = scmp.eq.s32.totalorder %s8, 5
      %p46 = por %p44, %p45
      %p47 = scmp.ne.s32.totalorder %s39, %s42
      %p48 = scmp.eq.s32.totalorder %s8, 0
      %p49 = por %p47, %p48
      %p50 = scmp.ne.s32.totalorder %s39, %s42
      %p51 = scmp.eq.s32.totalorder %s13, 5
      %p52 = por %p50, %p51
      %p53 = scmp.ne.s32.totalorder %s42, %s43
      %p54 = scmp.eq.s32.totalorder %s13, 0
      %p55 = por %p53, %p54
      %p56 = scmp.ne.s32.totalorder %s42, %s43
      %p57 = scmp.eq.s32.totalorder %s14, 5
      %p58 = por %p56, %p57
      %p60 = scmp.ne.s32.totalorder %s43, %s59
      %p61 = scmp.eq.s32.totalorder %s14, 0
      %p62 = por %p60, %p61
      %p63 = scmp.le.s32.totalorder 1, %s8
      %p64 = scmp.lt.s32.totalorder %s8, 7
      %p65 = pnand %p63, %p64
      %p66 = pneg %p65
      // Predicated region
      $region9: #{sconv3d_forward.2} parent=5 // pred_check
        _
      $region10: #{sconv3d_forward.2} parent=5 // pred_check_branch
        %68 = sbr.rel (%p65) target = $region12
      $region11: #{sconv3d_forward.2} parent=5 // pred_region
        %s69 = ssub.s32 %s8, 1
        // Predicated region
        $region13: #{sconv3d_forward.2} parent=11 // pred_check
          %p70 = pneg %p29
        $region14: #{sconv3d_forward.2} parent=11 // pred_check_branch
          %72 = sbr.rel (%p70) target = $region16
        $region15: #{sconv3d_forward.2} parent=11 // pred_region
          _
        $region16: #{sconv3d_forward.2} parent=11 // pred_fallthru
          _
      $region12: #{sconv3d_forward.2} parent=5 // pred_fallthru
        _
      %p73 = scmp.lt.s32.totalorder %s8, 6
      // Predicated region
      $region17: #{sconv3d_forward.2} parent=5 // pred_check
        %p74 = pneg %p73
      $region18: #{sconv3d_forward.2} parent=5 // pred_check_branch
        %76 = sbr.rel (%p74) target = $region20
      $region19: #{sconv3d_forward.2} parent=5 // pred_region
        _
      $region20: #{sconv3d_forward.2} parent=5 // pred_fallthru
        _
      %p77 = scmp.le.s32.totalorder 1, %s8
      %p78 = scmp.lt.s32.totalorder %s8, 7
      %p79 = pnand %p77, %p78
      %p80 = pneg %p79
      // Predicated region
      $region21: #{sconv3d_forward.2} parent=5 // pred_check
        _
      $region22: #{sconv3d_forward.2} parent=5 // pred_check_branch
        %82 = sbr.rel (%p79) target = $region24
      $region23: #{sconv3d_forward.2} parent=5 // pred_region
        %s83 = ssub.s32 %s8, 1
        %p84 = pneg %p29
        %p85 = pneg %p26
        %p86 = pneg %p55
        %p87 = pneg %p52
        %s88 = sand.u32 %s42, 1
        %s89 = sand.u32 %s42, 1
        %s90 = smul.addr %s89, 64
        %s91 = scalar_lea.vmem [#allocation4], %s90
        %s92 = smul.u32 8, %s13
        %s94 = smul.u32 %s13, 1024
        %s95 = sshra.s32 %s94, 7
        %s96 = sand.u32 %s94, 127
        %s97 = smul.addr %s95, 4
        %s98 = scalar_lea.vmem %s1, %s97
        %p100 = scmp.lt.u32.totalorder 4, 8
        %p101 = pneg %p100
        // Predicated region
        $region25: #{sconv3d_forward.2} parent=23 // pred_check
          _
        $region26: #{sconv3d_forward.2} parent=23 // pred_check_branch
          %103 = sbr.rel (%p100) target = $region28
        $region27: #{sconv3d_forward.2} parent=23 // pred_region
          %s172 = sand.u32 4, 7
          %p173 = scmp.eq.s32.totalorder %s172, 0
          %p174 = pneg %p173
          // Predicated region
          $region40: #{sconv3d_forward.2} parent=27 // pred_check
            _
          $region41: #{sconv3d_forward.2} parent=27 // pred_check_branch
            %176 = sbr.rel (%p173) target = $region43
          $region42: #{sconv3d_forward.2} parent=27 // pred_region
            %s177 = sand.u32 4, 7
            %s178 = ssub.s32 4, %s177
            %s179 = scalar_lea.vmem %s98, %s178
            %s180 = ssub.s32 4, %s177
            %s181 = scalar_lea.vmem [#allocation2], %s180
            loop: start=0, step=1, limit=1
            $region44: #{sconv3d_forward.2} parent=42 // loop_pre_header
              _
            $region45: #{sconv3d_forward.2} parent=42 // loop_header
              %s183 = sphi 0, %s187
              %p184 = scmp.ge.s32.totalorder %s183, 1
              %s188 = sphi %s98, %s98
              %s189 = sphi [#allocation2], [#allocation2]
            $region46: #{sconv3d_forward.2} parent=42 // loop_header_branch
              %186 = sbr.rel (%p184) target = $region50
            $region47: #{sconv3d_forward.2} parent=42 // loop_body
              _
            $region48: #{sconv3d_forward.2} parent=42 // loop_footer
              %s187 = sadd.s32 1, %s183
            $region49: #{sconv3d_forward.2} parent=42 // loop_footer_branch
              %182 = sbr.rel target = $region45
            $region50: #{sconv3d_forward.2} parent=42 // loop_exit
              _
            %s190 = sshllo.u32 0, %s177
            loop: start=0, step=1, limit=1
            $region51: #{sconv3d_forward.2} parent=42 // loop_pre_header
              _
            $region52: #{sconv3d_forward.2} parent=42 // loop_header
              %s192 = sphi 0, %s196
              %p193 = scmp.ge.s32.totalorder %s192, 1
              %s197 = sphi %s179, %s179
              %s198 = sphi %s181, %s181
            $region53: #{sconv3d_forward.2} parent=42 // loop_header_branch
              %195 = sbr.rel (%p193) target = $region57
            $region54: #{sconv3d_forward.2} parent=42 // loop_body
              %v199 = vld [vmem:[%s197] sm:%s190]
              %200 = vst [vmem:[%s198] sm:%s190] %v199
              %v201 = vld [vmem:[%s197 + $0xd8] sm:%s190]
              %202 = vst [vmem:[%s198 + $0x4] sm:%s190] %v201
              %v203 = vld [vmem:[%s197 + $0x4] sm:%s190]
              %204 = vst [vmem:[%s198 + $0x8] sm:%s190] %v203
              %v205 = vld [vmem:[%s197 + $0xdc] sm:%s190]
              %206 = vst [vmem:[%s198 + $0xc] sm:%s190] %v205
              %v207 = vld [vmem:[%s197 + $0x8] sm:%s190]
              %208 = vst [vmem:[%s198 + $0x10] sm:%s190] %v207
              %v209 = vld [vmem:[%s197 + $0xe0] sm:%s190]
              %210 = vst [vmem:[%s198 + $0x14] sm:%s190] %v209
              %v211 = vld [vmem:[%s197 + $0xc] sm:%s190]
              %212 = vst [vmem:[%s198 + $0x18] sm:%s190] %v211
              %v213 = vld [vmem:[%s197 + $0xe4] sm:%s190]
              %214 = vst [vmem:[%s198 + $0x1c] sm:%s190] %v213
              %v215 = vld [vmem:[%s197 + $0x10] sm:%s190]
              %216 = vst [vmem:[%s198 + $0x20] sm:%s190] %v215
              %v217 = vld [vmem:[%s197 + $0xe8] sm:%s190]
              %218 = vst [vmem:[%s198 + $0x24] sm:%s190] %v217
              %v219 = vld [vmem:[%s197 + $0x14] sm:%s190]
              %220 = vst [vmem:[%s198 + $0x28] sm:%s190] %v219
              %v221 = vld [vmem:[%s197 + $0xec] sm:%s190]
              %222 = vst [vmem:[%s198 + $0x2c] sm:%s190] %v221
              %v223 = vld [vmem:[%s197 + $0x18] sm:%s190]
              %224 = vst [vmem:[%s198 + $0x30] sm:%s190] %v223
              %v225 = vld [vmem:[%s197 + $0xf0] sm:%s190]
              %226 = vst [vmem:[%s198 + $0x34] sm:%s190] %v225
              %v227 = vld [vmem:[%s197 + $0x1c] sm:%s190]
              %228 = vst [vmem:[%s198 + $0x38] sm:%s190] %v227
              %v229 = vld [vmem:[%s197 + $0xf4] sm:%s190]
              %230 = vst [vmem:[%s198 + $0x3c] sm:%s190] %v229
              %v231 = vld [vmem:[%s197 + $0x20] sm:%s190]
              %232 = vst [vmem:[%s198 + $0x40] sm:%s190] %v231
              %v233 = vld [vmem:[%s197 + $0xf8] sm:%s190]
              %234 = vst [vmem:[%s198 + $0x44] sm:%s190] %v233
              %v235 = vld [vmem:[%s197 + $0x24] sm:%s190]
              %236 = vst [vmem:[%s198 + $0x48] sm:%s190] %v235
              %v237 = vld [vmem:[%s197 + $0xfc] sm:%s190]
              %238 = vst [vmem:[%s198 + $0x4c] sm:%s190] %v237
              %v239 = vld [vmem:[%s197 + $0x28] sm:%s190]
              %240 = vst [vmem:[%s198 + $0x50] sm:%s190] %v239
              %v241 = vld [vmem:[%s197 + $0x100] sm:%s190]
              %242 = vst [vmem:[%s198 + $0x54] sm:%s190] %v241
              %v243 = vld [vmem:[%s197 + $0x2c] sm:%s190]
              %244 = vst [vmem:[%s198 + $0x58] sm:%s190] %v243
              %v245 = vld [vmem:[%s197 + $0x104] sm:%s190]
              %246 = vst [vmem:[%s198 + $0x5c] sm:%s190] %v245
              %v247 = vld [vmem:[%s197 + $0x30] sm:%s190]
              %248 = vst [vmem:[%s198 + $0x60] sm:%s190] %v247
              %v249 = vld [vmem:[%s197 + $0x108] sm:%s190]
              %250 = vst [vmem:[%s198 + $0x64] sm:%s190] %v249
              %v251 = vld [vmem:[%s197 + $0x34] sm:%s190]
              %252 = vst [vmem:[%s198 + $0x68] sm:%s190] %v251
              %v253 = vld [vmem:[%s197 + $0x10c] sm:%s190]
              %254 = vst [vmem:[%s198 + $0x6c] sm:%s190] %v253
            $region55: #{sconv3d_forward.2} parent=42 // loop_footer
              %s196 = sadd.s32 1, %s192
            $region56: #{sconv3d_forward.2} parent=42 // loop_footer_branch
              %191 = sbr.rel target = $region52
            $region57: #{sconv3d_forward.2} parent=42 // loop_exit
              _
          $region43: #{sconv3d_forward.2} parent=27 // pred_fallthru
            _
        $region28: #{sconv3d_forward.2} parent=23 // pred_fallthru
          _
        // Predicated region
        $region29: #{sconv3d_forward.2} parent=23 // pred_check
          %p104 = pneg %p100
        $region30: #{sconv3d_forward.2} parent=23 // pred_check_branch
          %106 = sbr.rel (%p104) target = $region32
        $region31: #{sconv3d_forward.2} parent=23 // pred_region
          %s107 = sshllo.u32 0, 4
          loop: start=0, step=1, limit=1
          $region33: #{sconv3d_forward.2} parent=31 // loop_pre_header
            _
          $region34: #{sconv3d_forward.2} parent=31 // loop_header
            %s109 = sphi 0, %s113
            %p110 = scmp.ge.s32.totalorder %s109, 1
            %s114 = sphi %s98, %s98
            %s115 = sphi [#allocation2], [#allocation2]
          $region35: #{sconv3d_forward.2} parent=31 // loop_header_branch
            %112 = sbr.rel (%p110) target = $region39
          $region36: #{sconv3d_forward.2} parent=31 // loop_body
            %v116 = vld [vmem:[%s114] sm:%s107]
            %117 = vst [vmem:[%s115] sm:%s107] %v116
            %v118 = vld [vmem:[%s114 + $0xd8] sm:%s107]
            %119 = vst [vmem:[%s115 + $0x4] sm:%s107] %v118
            %v120 = vld [vmem:[%s114 + $0x4] sm:%s107]
            %121 = vst [vmem:[%s115 + $0x8] sm:%s107] %v120
            %v122 = vld [vmem:[%s114 + $0xdc] sm:%s107]
            %123 = vst [vmem:[%s115 + $0xc] sm:%s107] %v122
            %v124 = vld [vmem:[%s114 + $0x8] sm:%s107]
            %125 = vst [vmem:[%s115 + $0x10] sm:%s107] %v124
            %v126 = vld [vmem:[%s114 + $0xe0] sm:%s107]
            %127 = vst [vmem:[%s115 + $0x14] sm:%s107] %v126
            %v128 = vld [vmem:[%s114 + $0xc] sm:%s107]
            %129 = vst [vmem:[%s115 + $0x18] sm:%s107] %v128
            %v130 = vld [vmem:[%s114 + $0xe4] sm:%s107]
            %131 = vst [vmem:[%s115 + $0x1c] sm:%s107] %v130
            %v132 = vld [vmem:[%s114 + $0x10] sm:%s107]
            %133 = vst [vmem:[%s115 + $0x20] sm:%s107] %v132
            %v134 = vld [vmem:[%s114 + $0xe8] sm:%s107]
            %135 = vst [vmem:[%s115 + $0x24] sm:%s107] %v134
            %v136 = vld [vmem:[%s114 + $0x14] sm:%s107]
            %137 = vst [vmem:[%s115 + $0x28] sm:%s107] %v136
            %v138 = vld [vmem:[%s114 + $0xec] sm:%s107]
            %139 = vst [vmem:[%s115 + $0x2c] sm:%s107] %v138
            %v140 = vld [vmem:[%s114 + $0x18] sm:%s107]
            %141 = vst [vmem:[%s115 + $0x30] sm:%s107] %v140
            %v142 = vld [vmem:[%s114 + $0xf0] sm:%s107]
            %143 = vst [vmem:[%s115 + $0x34] sm:%s107] %v142
            %v144 = vld [vmem:[%s114 + $0x1c] sm:%s107]
            %145 = vst [vmem:[%s115 + $0x38] sm:%s107] %v144
            %v146 = vld [vmem:[%s114 + $0xf4] sm:%s107]
            %147 = vst [vmem:[%s115 + $0x3c] sm:%s107] %v146
            %v148 = vld [vmem:[%s114 + $0x20] sm:%s107]
            %149 = vst [vmem:[%s115 + $0x40] sm:%s107] %v148
            %v150 = vld [vmem:[%s114 + $0xf8] sm:%s107]
            %151 = vst [vmem:[%s115 + $0x44] sm:%s107] %v150
            %v152 = vld [vmem:[%s114 + $0x24] sm:%s107]
            %153 = vst [vmem:[%s115 + $0x48] sm:%s107] %v152
            %v154 = vld [vmem:[%s114 + $0xfc] sm:%s107]
            %155 = vst [vmem:[%s115 + $0x4c] sm:%s107] %v154
            %v156 = vld [vmem:[%s114 + $0x28] sm:%s107]
            %157 = vst [vmem:[%s115 + $0x50] sm:%s107] %v156
            %v158 = vld [vmem:[%s114 + $0x100] sm:%s107]
            %159 = vst [vmem:[%s115 + $0x54] sm:%s107] %v158
            %v160 = vld [vmem:[%s114 + $0x2c] sm:%s107]
            %161 = vst [vmem:[%s115 + $0x58] sm:%s107] %v160
            %v162 = vld [vmem:[%s114 + $0x104] sm:%s107]
            %163 = vst [vmem:[%s115 + $0x5c] sm:%s107] %v162
            %v164 = vld [vmem:[%s114 + $0x30] sm:%s107]
            %165 = vst [vmem:[%s115 + $0x60] sm:%s107] %v164
            %v166 = vld [vmem:[%s114 + $0x108] sm:%s107]
            %167 = vst [vmem:[%s115 + $0x64] sm:%s107] %v166
            %v168 = vld [vmem:[%s114 + $0x34] sm:%s107]
            %169 = vst [vmem:[%s115 + $0x68] sm:%s107] %v168
            %v170 = vld [vmem:[%s114 + $0x10c] sm:%s107]
            %171 = vst [vmem:[%s115 + $0x6c] sm:%s107] %v170
          $region37: #{sconv3d_forward.2} parent=31 // loop_footer
            %s113 = sadd.s32 1, %s109
          $region38: #{sconv3d_forward.2} parent=31 // loop_footer_branch
            %108 = sbr.rel target = $region34
          $region39: #{sconv3d_forward.2} parent=31 // loop_exit
            _
        $region32: #{sconv3d_forward.2} parent=23 // pred_fallthru
          _
        // Predicated region
        $region58: #{sconv3d_forward.2} parent=23 // pred_check
          _
        $region59: #{sconv3d_forward.2} parent=23 // pred_check_branch
          %257 = sbr.rel (0) target = $region61
        $region60: #{sconv3d_forward.2} parent=23 // pred_region
          %258 = vsyncadd [#allocation3], 1792
        $region61: #{sconv3d_forward.2} parent=23 // pred_fallthru
          _
        %s259 = smul.u32 4, 2
        %s260 = smul.u32 %s259, 14
        %s261 = sshll.u32 %s260, 4
        %262 = dma.done [#allocation3], %s261
        %v263 = vld [vmem:[%s0] sm:$0xf]
        %v264 = vld [vmem:[%s0 + $0x4] sm:$0xf]
        %v265 = vld [vmem:[#allocation2] sm:$0xff]
        %v266 = vld [vmem:[#allocation2 + $0x8] sm:$0xff]
        %v267 = vld [vmem:[#allocation2 + $0x10] sm:$0xff]
        %v268 = vld [vmem:[#allocation2 + $0x18] sm:$0xff]
        %v269 = vld [vmem:[#allocation2 + $0x20] sm:$0xff]
        %v270 = vld [vmem:[#allocation2 + $0x28] sm:$0xff]
        %v271 = vld [vmem:[#allocation2 + $0x30] sm:$0xff]
        %v272 = vld [vmem:[#allocation2 + $0x38] sm:$0xff]
        %v273 = vld [vmem:[#allocation2 + $0x40] sm:$0xff]
        %s274 = scalar_lea.vmem %s0, 8
        %v275 = vld [vmem:[%s274] sm:$0xf]
        %v276 = vld [vmem:[%s274 + $0x4] sm:$0xf]
        %v279 = vunpack.c.l.b16 %v275
        %v280 = vunpack.c.l.b16 %v276
        %v281 = vpack.c.b16 %v280, %v279
        %291 = vrot.lane.b32.xlu0 %v265, 86
        %v292 = vpop.permute.xlu0 %291
        %293 = vrot.lane.b32.xlu0 %v266, 86
        %v294 = vpop.permute.xlu0 %293
        %295 = vrot.lane.b32.xlu0 %v267, 86
        %v296 = vpop.permute.xlu0 %295
        %297 = vrot.lane.b32.xlu0 %v268, 86
        %v298 = vpop.permute.xlu0 %297
        %299 = vrot.lane.b32.xlu0 %v269, 86
        %v300 = vpop.permute.xlu0 %299
        %301 = vrot.lane.b32.xlu0 %v270, 86
        %v302 = vpop.permute.xlu0 %301
        %303 = vrot.lane.b32.xlu0 %v271, 86
        %v304 = vpop.permute.xlu0 %303
        %305 = vrot.lane.b32.xlu0 %v272, 86
        %v306 = vpop.permute.xlu0 %305
        %307 = vrot.lane.b32.xlu0 %v273, 86
        %v308 = vpop.permute.xlu0 %307
        %vm309 = vcmask 703488
        %v310 = vsel %vm309, %v292, %v294
        %v311 = vsel %vm309, %v294, %v296
        %v312 = vsel %vm309, %v296, %v298
        %v313 = vsel %vm309, %v298, %v300
        %v314 = vsel %vm309, %v300, %v302
        %v315 = vsel %vm309, %v302, %v304
        %v316 = vsel %vm309, %v304, %v306
        %v317 = vsel %vm309, %v306, %v308
        %vm326 = vcmask 130048
        %v328 = vsel %vm326, %v281, 0
        %330 = vmatprep.subr.bf16.mxu0 %v311
        %331 = vmatpush1.bf16.msra.mxu0 %v310
        %332 = vmatprep.subr.bf16.mxu0 0
        %333 = vmatpush1.bf16.msra.mxu0 0
        %334 = vmatprep.subr.bf16.mxu0 0
        %335 = vmatpush1.bf16.msra.mxu0 0
        %336 = vmatprep.subr.bf16.mxu0 0
        %337 = vmatpush1.bf16.msra.mxu0 0
        %338 = vmatprep.subr.bf16.mxu0 0
        %339 = vmatpush1.bf16.msra.mxu0 0
        %340 = vmatprep.subr.bf16.mxu0 0
        %341 = vmatpush1.bf16.msra.mxu0 0
        %342 = vmatprep.subr.bf16.mxu0 0
        %343 = vmatpush1.bf16.msra.mxu0 0
        %344 = vmatprep.subr.bf16.mxu0 0
        %345 = vmatpush1.bf16.msra.mxu0 0
        %346 = vmatprep.subr.bf16.mxu0 0
        %347 = vmatpush1.bf16.msra.mxu0 0
        %348 = vmatprep.subr.bf16.mxu0 0
        %349 = vmatpush1.bf16.msra.mxu0 0
        %350 = vmatprep.subr.bf16.mxu0 0
        %351 = vmatpush1.bf16.msra.mxu0 0
        %352 = vmatprep.subr.bf16.mxu0 0
        %353 = vmatpush1.bf16.msra.mxu0 0
        %354 = vmatprep.subr.bf16.mxu0 0
        %355 = vmatpush1.bf16.msra.mxu0 0
        %356 = vmatprep.subr.bf16.mxu0 0
        %357 = vmatpush1.bf16.msra.mxu0 0
        %358 = vmatprep.subr.bf16.mxu0 0
        %359 = vmatpush1.bf16.msra.mxu0 0
        %360 = vmatprep.subr.bf16.mxu0 0
        %361 = vmatpush1.bf16.msra.mxu0 0
        %362 = vmatprep.mubr.bf16.mxu0 0
        %363 = vmatmul.mubr.bf16.gmra.mrb[0].mxu0 %v328
        %v364 = vpop.f32.mrb[0].mxu0
        %v365 = vadd.f32 0.0, %v364
        %v366 = vpop.f32.mrb[0].mxu0
        %v367 = vadd.f32 0.0, %v366
        %v368 = vpop.f32.mrb[0].mxu0
        %v369 = vadd.f32 0.0, %v368
        %v370 = vpop.f32.mrb[0].mxu0
        %v371 = vadd.f32 0.0, %v370
        %372 = vdwg.mxu0
        %373 = vmatprep.subr.bf16.mxu0 %v313
        %374 = vmatpush1.bf16.msra.mxu0 %v312
        %375 = vmatprep.subr.bf16.mxu0 0
        %376 = vmatpush1.bf16.msra.mxu0 0
        %377 = vmatprep.subr.bf16.mxu0 0
        %378 = vmatpush1.bf16.msra.mxu0 0
        %379 = vmatprep.subr.bf16.mxu0 0
        %380 = vmatpush1.bf16.msra.mxu0 0
        %381 = vmatprep.subr.bf16.mxu0 0
        %382 = vmatpush1.bf16.msra.mxu0 0
        %383 = vmatprep.subr.bf16.mxu0 0
        %384 = vmatpush1.bf16.msra.mxu0 0
        %385 = vmatprep.subr.bf16.mxu0 0
        %386 = vmatpush1.bf16.msra.mxu0 0
        %387 = vmatprep.subr.bf16.mxu0 0
        %388 = vmatpush1.bf16.msra.mxu0 0
        %389 = vmatprep.subr.bf16.mxu0 0
        %390 = vmatpush1.bf16.msra.mxu0 0
        %391 = vmatprep.subr.bf16.mxu0 0
        %392 = vmatpush1.bf16.msra.mxu0 0
        %393 = vmatprep.subr.bf16.mxu0 0
        %394 = vmatpush1.bf16.msra.mxu0 0
        %395 = vmatprep.subr.bf16.mxu0 0
        %396 = vmatpush1.bf16.msra.mxu0 0
        %397 = vmatprep.subr.bf16.mxu0 0
        %398 = vmatpush1.bf16.msra.mxu0 0
        %399 = vmatprep.subr.bf16.mxu0 0
        %400 = vmatpush1.bf16.msra.mxu0 0
        %401 = vmatprep.subr.bf16.mxu0 0
        %402 = vmatpush1.bf16.msra.mxu0 0
        %403 = vmatprep.subr.bf16.mxu0 0
        %404 = vmatpush1.bf16.msra.mxu0 0
        %405 = vmatprep.mubr.bf16.mxu0 0
        %406 = vmatmul.mubr.bf16.gmra.mrb[0].mxu0 %v328
        %v407 = vpop.f32.mrb[0].mxu0
        %v408 = vadd.f32 0.0, %v407
        %v409 = vpop.f32.mrb[0].mxu0
        %v410 = vadd.f32 0.0, %v409
        %v411 = vpop.f32.mrb[0].mxu0
        %v412 = vadd.f32 0.0, %v411
        %v413 = vpop.f32.mrb[0].mxu0
        %v414 = vadd.f32 0.0, %v413
        %415 = vdwg.mxu0
        %416 = vmatprep.subr.bf16.mxu0 %v315
        %417 = vmatpush1.bf16.msra.mxu0 %v314
        %418 = vmatprep.subr.bf16.mxu0 0
        %419 = vmatpush1.bf16.msra.mxu0 0
        %420 = vmatprep.subr.bf16.mxu0 0
        %421 = vmatpush1.bf16.msra.mxu0 0
        %422 = vmatprep.subr.bf16.mxu0 0
        %423 = vmatpush1.bf16.msra.mxu0 0
        %424 = vmatprep.subr.bf16.mxu0 0
        %425 = vmatpush1.bf16.msra.mxu0 0
        %426 = vmatprep.subr.bf16.mxu0 0
        %427 = vmatpush1.bf16.msra.mxu0 0
        %428 = vmatprep.subr.bf16.mxu0 0
        %429 = vmatpush1.bf16.msra.mxu0 0
        %430 = vmatprep.subr.bf16.mxu0 0
        %431 = vmatpush1.bf16.msra.mxu0 0
        %432 = vmatprep.subr.bf16.mxu0 0
        %433 = vmatpush1.bf16.msra.mxu0 0
        %434 = vmatprep.subr.bf16.mxu0 0
        %435 = vmatpush1.bf16.msra.mxu0 0
        %436 = vmatprep.subr.bf16.mxu0 0
        %437 = vmatpush1.bf16.msra.mxu0 0
        %438 = vmatprep.subr.bf16.mxu0 0
        %439 = vmatpush1.bf16.msra.mxu0 0
        %440 = vmatprep.subr.bf16.mxu0 0
        %441 = vmatpush1.bf16.msra.mxu0 0
        %442 = vmatprep.subr.bf16.mxu0 0
        %443 = vmatpush1.bf16.msra.mxu0 0
        %444 = vmatprep.subr.bf16.mxu0 0
        %445 = vmatpush1.bf16.msra.mxu0 0
        %446 = vmatprep.subr.bf16.mxu0 0
        %447 = vmatpush1.bf16.msra.mxu0 0
        %448 = vmatprep.mubr.bf16.mxu0 0
        %449 = vmatmul.mubr.bf16.gmra.mrb[0].mxu0 %v328
        %v450 = vpop.f32.mrb[0].mxu0
        %v451 = vadd.f32 0.0, %v450
        %v452 = vpop.f32.mrb[0].mxu0
        %v453 = vadd.f32 0.0, %v452
        %v454 = vpop.f32.mrb[0].mxu0
        %v455 = vadd.f32 0.0, %v454
        %v456 = vpop.f32.mrb[0].mxu0
        %v457 = vadd.f32 0.0, %v456
        %458 = vdwg.mxu0
        %459 = vmatprep.subr.bf16.mxu0 %v317
        %460 = vmatpush1.bf16.msra.mxu0 %v316
        %461 = vmatprep.subr.bf16.mxu0 0
        %462 = vmatpush1.bf16.msra.mxu0 0
        %463 = vmatprep.subr.bf16.mxu0 0
        %464 = vmatpush1.bf16.msra.mxu0 0
        %465 = vmatprep.subr.bf16.mxu0 0
        %466 = vmatpush1.bf16.msra.mxu0 0
        %467 = vmatprep.subr.bf16.mxu0 0
        %468 = vmatpush1.bf16.msra.mxu0 0
        %469 = vmatprep.subr.bf16.mxu0 0
        %470 = vmatpush1.bf16.msra.mxu0 0
        %471 = vmatprep.subr.bf16.mxu0 0
        %472 = vmatpush1.bf16.msra.mxu0 0
        %473 = vmatprep.subr.bf16.mxu0 0
        %474 = vmatpush1.bf16.msra.mxu0 0
        %475 = vmatprep.subr.bf16.mxu0 0
        %476 = vmatpush1.bf16.msra.mxu0 0
        %477 = vmatprep.subr.bf16.mxu0 0
        %478 = vmatpush1.bf16.msra.mxu0 0
        %479 = vmatprep.subr.bf16.mxu0 0
        %480 = vmatpush1.bf16.msra.mxu0 0
        %481 = vmatprep.subr.bf16.mxu0 0
        %482 = vmatpush1.bf16.msra.mxu0 0
        %483 = vmatprep.subr.bf16.mxu0 0
        %484 = vmatpush1.bf16.msra.mxu0 0
        %485 = vmatprep.subr.bf16.mxu0 0
        %486 = vmatpush1.bf16.msra.mxu0 0
        %487 = vmatprep.subr.bf16.mxu0 0
        %488 = vmatpush1.bf16.msra.mxu0 0
        %489 = vmatprep.subr.bf16.mxu0 0
        %490 = vmatpush1.bf16.msra.mxu0 0
        %491 = vmatprep.mubr.bf16.mxu0 0
        %492 = vmatmul.mubr.bf16.gmra.mrb[0].mxu0 %v328
        %v493 = vpop.f32.mrb[0].mxu0
        %v494 = vadd.f32 0.0, %v493
        %v495 = vpop.f32.mrb[0].mxu0
        %v496 = vadd.f32 0.0, %v495
        %v497 = vpop.f32.mrb[0].mxu0
        %v498 = vadd.f32 0.0, %v497
        %v499 = vpop.f32.mrb[0].mxu0
        %v500 = vadd.f32 0.0, %v499
        %501 = vdwg.mxu0
        %v504 = vunpack.c.l.b16 %v263
        %v505 = vunpack.c.l.b16 %v264
        %v506 = vpack.c.b16 %v505, %v504
        %507 = vrot.lane.b32.xlu0 %v265, 87
        %v508 = vpop.permute.xlu0 %507
        %509 = vrot.lane.b32.xlu0 %v266, 87
        %v510 = vpop.permute.xlu0 %509
        %511 = vrot.lane.b32.xlu0 %v267, 87
        %v512 = vpop.permute.xlu0 %511
        %513 = vrot.lane.b32.xlu0 %v268, 87
        %v514 = vpop.permute.xlu0 %513
        %515 = vrot.lane.b32.xlu0 %v269, 87
        %v516 = vpop.permute.xlu0 %515
        %517 = vrot.lane.b32.xlu0 %v270, 87
        %v518 = vpop.permute.xlu0 %517
        %519 = vrot.lane.b32.xlu0 %v271, 87
        %v520 = vpop.permute.xlu0 %519
        %521 = vrot.lane.b32.xlu0 %v272, 87
        %v522 = vpop.permute.xlu0 %521
        %523 = vrot.lane.b32.xlu0 %v273, 87
        %v524 = vpop.permute.xlu0 %523
        %vm525 = vcmask 711680
        %v526 = vsel %vm525, %v508, %v510
        %v527 = vsel %vm525, %v510, %v512
        %v528 = vsel %vm525, %v512, %v514
        %v529 = vsel %vm525, %v514, %v516
        %v530 = vsel %vm525, %v516, %v518
        %v531 = vsel %vm525, %v518, %v520
        %v532 = vsel %vm525, %v520, %v522
        %v533 = vsel %vm525, %v522, %v524
        %v543 = vsel %vm326, %v506, 0
        %545 = vmatprep.subr.bf16.mxu0 %v527
        %546 = vmatpush1.bf16.msra.mxu0 %v526
        %547 = vmatprep.subr.bf16.mxu0 0
        %548 = vmatpush1.bf16.msra.mxu0 0
        %549 = vmatprep.subr.bf16.mxu0 0
        %550 = vmatpush1.bf16.msra.mxu0 0
        %551 = vmatprep.subr.bf16.mxu0 0
        %552 = vmatpush1.bf16.msra.mxu0 0
        %553 = vmatprep.subr.bf16.mxu0 0
        %554 = vmatpush1.bf16.msra.mxu0 0
        %555 = vmatprep.subr.bf16.mxu0 0
        %556 = vmatpush1.bf16.msra.mxu0 0
        %557 = vmatprep.subr.bf16.mxu0 0
        %558 = vmatpush1.bf16.msra.mxu0 0
        %559 = vmatprep.subr.bf16.mxu0 0
        %560 = vmatpush1.bf16.msra.mxu0 0
        %561 = vmatprep.subr.bf16.mxu0 0
        %562 = vmatpush1.bf16.msra.mxu0 0
        %563 = vmatprep.subr.bf16.mxu0 0
        %564 = vmatpush1.bf16.msra.mxu0 0
        %565 = vmatprep.subr.bf16.mxu0 0
        %566 = vmatpush1.bf16.msra.mxu0 0
        %567 = vmatprep.subr.bf16.mxu0 0
        %568 = vmatpush1.bf16.msra.mxu0 0
        %569 = vmatprep.subr.bf16.mxu0 0
        %570 = vmatpush1.bf16.msra.mxu0 0
        %571 = vmatprep.subr.bf16.mxu0 0
        %572 = vmatpush1.bf16.msra.mxu0 0
        %573 = vmatprep.subr.bf16.mxu0 0
        %574 = vmatpush1.bf16.msra.mxu0 0
        %575 = vmatprep.subr.bf16.mxu0 0
        %576 = vmatpush1.bf16.msra.mxu0 0
        %577 = vmatprep.mubr.bf16.mxu0 0
        %578 = vmatmul.mubr.bf16.gmra.mrb[0].mxu0 %v543
        %v579 = vpop.f32.mrb[0].mxu0
        %v580 = vadd.f32 %v365, %v579
        %v581 = vpop.f32.mrb[0].mxu0
        %v582 = vadd.f32 %v367, %v581
        %v583 = vpop.f32.mrb[0].mxu0
        %v584 = vadd.f32 %v369, %v583
        %v585 = vpop.f32.mrb[0].mxu0
        %v586 = vadd.f32 %v371, %v585
        %587 = vdwg.mxu0
        %588 = vmatprep.subr.bf16.mxu0 %v529
        %589 = vmatpush1.bf16.msra.mxu0 %v528
        %590 = vmatprep.subr.bf16.mxu0 0
        %591 = vmatpush1.bf16.msra.mxu0 0
        %592 = vmatprep.subr.bf16.mxu0 0
        %593 = vmatpush1.bf16.msra.mxu0 0
        %594 = vmatprep.subr.bf16.mxu0 0
        %595 = vmatpush1.bf16.msra.mxu0 0
        %596 = vmatprep.subr.bf16.mxu0 0
        %597 = vmatpush1.bf16.msra.mxu0 0
        %598 = vmatprep.subr.bf16.mxu0 0
        %599 = vmatpush1.bf16.msra.mxu0 0
        %600 = vmatprep.subr.bf16.mxu0 0
        %601 = vmatpush1.bf16.msra.mxu0 0
        %602 = vmatprep.subr.bf16.mxu0 0
        %603 = vmatpush1.bf16.msra.mxu0 0
        %604 = vmatprep.subr.bf16.mxu0 0
        %605 = vmatpush1.bf16.msra.mxu0 0
        %606 = vmatprep.subr.bf16.mxu0 0
        %607 = vmatpush1.bf16.msra.mxu0 0
        %608 = vmatprep.subr.bf16.mxu0 0
        %609 = vmatpush1.bf16.msra.mxu0 0
        %610 = vmatprep.subr.bf16.mxu0 0
        %611 = vmatpush1.bf16.msra.mxu0 0
        %612 = vmatprep.subr.bf16.mxu0 0
        %613 = vmatpush1.bf16.msra.mxu0 0
        %614 = vmatprep.subr.bf16.mxu0 0
        %615 = vmatpush1.bf16.msra.mxu0 0
        %616 = vmatprep.subr.bf16.mxu0 0
        %617 = vmatpush1.bf16.msra.mxu0 0
        %618 = vmatprep.subr.bf16.mxu0 0
        %619 = vmatpush1.bf16.msra.mxu0 0
        %620 = vmatprep.mubr.bf16.mxu0 0
        %621 = vmatmul.mubr.bf16.gmra.mrb[0].mxu0 %v543
        %v622 = vpop.f32.mrb[0].mxu0
        %v623 = vadd.f32 %v408, %v622
        %v624 = vpop.f32.mrb[0].mxu0
        %v625 = vadd.f32 %v410, %v624
        %v626 = vpop.f32.mrb[0].mxu0
        %v627 = vadd.f32 %v412, %v626
        %v628 = vpop.f32.mrb[0].mxu0
        %v629 = vadd.f32 %v414, %v628
        %630 = vdwg.mxu0
        %631 = vmatprep.subr.bf16.mxu0 %v531
        %632 = vmatpush1.bf16.msra.mxu0 %v530
        %633 = vmatprep.subr.bf16.mxu0 0
        %634 = vmatpush1.bf16.msra.mxu0 0
        %635 = vmatprep.subr.bf16.mxu0 0
        %636 = vmatpush1.bf16.msra.mxu0 0
        %637 = vmatprep.subr.bf16.mxu0 0
        %638 = vmatpush1.bf16.msra.mxu0 0
        %639 = vmatprep.subr.bf16.mxu0 0
        %640 = vmatpush1.bf16.msra.mxu0 0
        %641 = vmatprep.subr.bf16.mxu0 0
        %642 = vmatpush1.bf16.msra.mxu0 0
        %643 = vmatprep.subr.bf16.mxu0 0
        %644 = vmatpush1.bf16.msra.mxu0 0
        %645 = vmatprep.subr.bf16.mxu0 0
        %646 = vmatpush1.bf16.msra.mxu0 0
        %647 = vmatprep.subr.bf16.mxu0 0
        %648 = vmatpush1.bf16.msra.mxu0 0
        %649 = vmatprep.subr.bf16.mxu0 0
        %650 = vmatpush1.bf16.msra.mxu0 0
        %651 = vmatprep.subr.bf16.mxu0 0
        %652 = vmatpush1.bf16.msra.mxu0 0
        %653 = vmatprep.subr.bf16.mxu0 0
        %654 = vmatpush1.bf16.msra.mxu0 0
        %655 = vmatprep.subr.bf16.mxu0 0
        %656 = vmatpush1.bf16.msra.mxu0 0
        %657 = vmatprep.subr.bf16.mxu0 0
        %658 = vmatpush1.bf16.msra.mxu0 0
        %659 = vmatprep.subr.bf16.mxu0 0
        %660 = vmatpush1.bf16.msra.mxu0 0
        %661 = vmatprep.subr.bf16.mxu0 0
        %662 = vmatpush1.bf16.msra.mxu0 0
        %663 = vmatprep.mubr.bf16.mxu0 0
        %664 = vmatmul.mubr.bf16.gmra.mrb[0].mxu0 %v543
        %v665 = vpop.f32.mrb[0].mxu0
        %v666 = vadd.f32 %v451, %v665
        %v667 = vpop.f32.mrb[0].mxu0
        %v668 = vadd.f32 %v453, %v667
        %v669 = vpop.f32.mrb[0].mxu0
        %v670 = vadd.f32 %v455, %v669
        %v671 = vpop.f32.mrb[0].mxu0
        %v672 = vadd.f32 %v457, %v671
        %673 = vdwg.mxu0
        %674 = vmatprep.subr.bf16.mxu0 %v533
        %675 = vmatpush1.bf16.msra.mxu0 %v532
        %676 = vmatprep.subr.bf16.mxu0 0
        %677 = vmatpush1.bf16.msra.mxu0 0
        %678 = vmatprep.subr.bf16.mxu0 0
        %679 = vmatpush1.bf16.msra.mxu0 0
        %680 = vmatprep.subr.bf16.mxu0 0
        %681 = vmatpush1.bf16.msra.mxu0 0
        %682 = vmatprep.subr.bf16.mxu0 0
        %683 = vmatpush1.bf16.msra.mxu0 0
        %684 = vmatprep.subr.bf16.mxu0 0
        %685 = vmatpush1.bf16.msra.mxu0 0
        %686 = vmatprep.subr.bf16.mxu0 0
        %687 = vmatpush1.bf16.msra.mxu0 0
        %688 = vmatprep.subr.bf16.mxu0 0
        %689 = vmatpush1.bf16.msra.mxu0 0
        %690 = vmatprep.subr.bf16.mxu0 0
        %691 = vmatpush1.bf16.msra.mxu0 0
        %692 = vmatprep.subr.bf16.mxu0 0
        %693 = vmatpush1.bf16.msra.mxu0 0
        %694 = vmatprep.subr.bf16.mxu0 0
        %695 = vmatpush1.bf16.msra.mxu0 0
        %696 = vmatprep.subr.bf16.mxu0 0
        %697 = vmatpush1.bf16.msra.mxu0 0
        %698 = vmatprep.subr.bf16.mxu0 0
        %699 = vmatpush1.bf16.msra.mxu0 0
        %700 = vmatprep.subr.bf16.mxu0 0
        %701 = vmatpush1.bf16.msra.mxu0 0
        %702 = vmatprep.subr.bf16.mxu0 0
        %703 = vmatpush1.bf16.msra.mxu0 0
        %704 = vmatprep.subr.bf16.mxu0 0
        %705 = vmatpush1.bf16.msra.mxu0 0
        %706 = vmatprep.mubr.bf16.mxu0 0
        %707 = vmatmul.mubr.bf16.gmra.mrb[0].mxu0 %v543
        %v708 = vpop.f32.mrb[0].mxu0
        %v709 = vadd.f32 %v494, %v708
        %v710 = vpop.f32.mrb[0].mxu0
        %v711 = vadd.f32 %v496, %v710
        %v712 = vpop.f32.mrb[0].mxu0
        %v713 = vadd.f32 %v498, %v712
        %v714 = vpop.f32.mrb[0].mxu0
        %v715 = vadd.f32 %v500, %v714
        %716 = vdwg.mxu0
        %s717 = scalar_lea.vmem %s0, 16
        %v718 = vld [vmem:[%s717] sm:$0xf]
        %v719 = vld [vmem:[%s717 + $0x4] sm:$0xf]
        %v722 = vunpack.c.l.b16 %v718
        %v723 = vunpack.c.l.b16 %v719
        %v724 = vpack.c.b16 %v723, %v722
        %725 = vrot.lane.b32.xlu0 %v265, 85
        %v726 = vpop.permute.xlu0 %725
        %727 = vrot.lane.b32.xlu0 %v266, 85
        %v728 = vpop.permute.xlu0 %727
        %729 = vrot.lane.b32.xlu0 %v267, 85
        %v730 = vpop.permute.xlu0 %729
        %731 = vrot.lane.b32.xlu0 %v268, 85
        %v732 = vpop.permute.xlu0 %731
        %733 = vrot.lane.b32.xlu0 %v269, 85
        %v734 = vpop.permute.xlu0 %733
        %735 = vrot.lane.b32.xlu0 %v270, 85
        %v736 = vpop.permute.xlu0 %735
        %737 = vrot.lane.b32.xlu0 %v271, 85
        %v738 = vpop.permute.xlu0 %737
        %739 = vrot.lane.b32.xlu0 %v272, 85
        %v740 = vpop.permute.xlu0 %739
        %741 = vrot.lane.b32.xlu0 %v273, 85
        %v742 = vpop.permute.xlu0 %741
        %vm743 = vcmask 695296
        %v744 = vsel %vm743, %v726, %v728
        %v745 = vsel %vm743, %v728, %v730
        %v746 = vsel %vm743, %v730, %v732
        %v747 = vsel %vm743, %v732, %v734
        %v748 = vsel %vm743, %v734, %v736
        %v749 = vsel %vm743, %v736, %v738
        %v750 = vsel %vm743, %v738, %v740
        %v751 = vsel %vm743, %v740, %v742
        %v761 = vsel %vm326, %v724, 0
        %763 = vmatprep.subr.bf16.mxu0 %v745
        %764 = vmatpush1.bf16.msra.mxu0 %v744
        %765 = vmatprep.subr.bf16.mxu0 0
        %766 = vmatpush1.bf16.msra.mxu0 0
        %767 = vmatprep.subr.bf16.mxu0 0
        %768 = vmatpush1.bf16.msra.mxu0 0
        %769 = vmatprep.subr.bf16.mxu0 0
        %770 = vmatpush1.bf16.msra.mxu0 0
        %771 = vmatprep.subr.bf16.mxu0 0
        %772 = vmatpush1.bf16.msra.mxu0 0
        %773 = vmatprep.subr.bf16.mxu0 0
        %774 = vmatpush1.bf16.msra.mxu0 0
        %775 = vmatprep.subr.bf16.mxu0 0
        %776 = vmatpush1.bf16.msra.mxu0 0
        %777 = vmatprep.subr.bf16.mxu0 0
        %778 = vmatpush1.bf16.msra.mxu0 0
        %779 = vmatprep.subr.bf16.mxu0 0
        %780 = vmatpush1.bf16.msra.mxu0 0
        %781 = vmatprep.subr.bf16.mxu0 0
        %782 = vmatpush1.bf16.msra.mxu0 0
        %783 = vmatprep.subr.bf16.mxu0 0
        %784 = vmatpush1.bf16.msra.mxu0 0
        %785 = vmatprep.subr.bf16.mxu0 0
        %786 = vmatpush1.bf16.msra.mxu0 0
        %787 = vmatprep.subr.bf16.mxu0 0
        %788 = vmatpush1.bf16.msra.mxu0 0
        %789 = vmatprep.subr.bf16.mxu0 0
        %790 = vmatpush1.bf16.msra.mxu0 0
        %791 = vmatprep.subr.bf16.mxu0 0
        %792 = vmatpush1.bf16.msra.mxu0 0
        %793 = vmatprep.subr.bf16.mxu0 0
        %794 = vmatpush1.bf16.msra.mxu0 0
        %795 = vmatprep.mubr.bf16.mxu0 0
        %796 = vmatmul.mubr.bf16.gmra.mrb[0].mxu0 %v761
        %v797 = vpop.f32.mrb[0].mxu0
        %v798 = vadd.f32 0.0, %v797
        %v799 = vpop.f32.mrb[0].mxu0
        %v800 = vadd.f32 0.0, %v799
        %v801 = vpop.f32.mrb[0].mxu0
        %v802 = vadd.f32 0.0, %v801
        %v803 = vpop.f32.mrb[0].mxu0
        %v804 = vadd.f32 0.0, %v803
        %805 = vdwg.mxu0
        %806 = vmatprep.subr.bf16.mxu0 %v747
        %807 = vmatpush1.bf16.msra.mxu0 %v746
        %808 = vmatprep.subr.bf16.mxu0 0
        %809 = vmatpush1.bf16.msra.mxu0 0
        %810 = vmatprep.subr.bf16.mxu0 0
        %811 = vmatpush1.bf16.msra.mxu0 0
        %812 = vmatprep.subr.bf16.mxu0 0
        %813 = vmatpush1.bf16.msra.mxu0 0
        %814 = vmatprep.subr.bf16.mxu0 0
        %815 = vmatpush1.bf16.msra.mxu0 0
        %816 = vmatprep.subr.bf16.mxu0 0
        %817 = vmatpush1.bf16.msra.mxu0 0
        %818 = vmatprep.subr.bf16.mxu0 0
        %819 = vmatpush1.bf16.msra.mxu0 0
        %820 = vmatprep.subr.bf16.mxu0 0
        %821 = vmatpush1.bf16.msra.mxu0 0
        %822 = vmatprep.subr.bf16.mxu0 0
        %823 = vmatpush1.bf16.msra.mxu0 0
        %824 = vmatprep.subr.bf16.mxu0 0
        %825 = vmatpush1.bf16.msra.mxu0 0
        %826 = vmatprep.subr.bf16.mxu0 0
        %827 = vmatpush1.bf16.msra.mxu0 0
        %828 = vmatprep.subr.bf16.mxu0 0
        %829 = vmatpush1.bf16.msra.mxu0 0
        %830 = vmatprep.subr.bf16.mxu0 0
        %831 = vmatpush1.bf16.msra.mxu0 0
        %832 = vmatprep.subr.bf16.mxu0 0
        %833 = vmatpush1.bf16.msra.mxu0 0
        %834 = vmatprep.subr.bf16.mxu0 0
        %835 = vmatpush1.bf16.msra.mxu0 0
        %836 = vmatprep.subr.bf16.mxu0 0
        %837 = vmatpush1.bf16.msra.mxu0 0
        %838 = vmatprep.mubr.bf16.mxu0 0
        %839 = vmatmul.mubr.bf16.gmra.mrb[0].mxu0 %v761
        %v840 = vpop.f32.mrb[0].mxu0
        %v841 = vadd.f32 0.0, %v840
        %v842 = vpop.f32.mrb[0].mxu0
        %v843 = vadd.f32 0.0, %v842
        %v844 = vpop.f32.mrb[0].mxu0
        %v845 = vadd.f32 0.0, %v844
        %v846 = vpop.f32.mrb[0].mxu0
        %v847 = vadd.f32 0.0, %v846
        %848 = vdwg.mxu0
        %849 = vmatprep.subr.bf16.mxu0 %v749
        %850 = vmatpush1.bf16.msra.mxu0 %v748
        %851 = vmatprep.subr.bf16.mxu0 0
        %852 = vmatpush1.bf16.msra.mxu0 0
        %853 = vmatprep.subr.bf16.mxu0 0
        %854 = vmatpush1.bf16.msra.mxu0 0
        %855 = vmatprep.subr.bf16.mxu0 0
        %856 = vmatpush1.bf16.msra.mxu0 0
        %857 = vmatprep.subr.bf16.mxu0 0
        %858 = vmatpush1.bf16.msra.mxu0 0
        %859 = vmatprep.subr.bf16.mxu0 0
        %860 = vmatpush1.bf16.msra.mxu0 0
        %861 = vmatprep.subr.bf16.mxu0 0
        %862 = vmatpush1.bf16.msra.mxu0 0
        %863 = vmatprep.subr.bf16.mxu0 0
        %864 = vmatpush1.bf16.msra.mxu0 0
        %865 = vmatprep.subr.bf16.mxu0 0
        %866 = vmatpush1.bf16.msra.mxu0 0
        %867 = vmatprep.subr.bf16.mxu0 0
        %868 = vmatpush1.bf16.msra.mxu0 0
        %869 = vmatprep.subr.bf16.mxu0 0
        %870 = vmatpush1.bf16.msra.mxu0 0
        %871 = vmatprep.subr.bf16.mxu0 0
        %872 = vmatpush1.bf16.msra.mxu0 0
        %873 = vmatprep.subr.bf16.mxu0 0
        %874 = vmatpush1.bf16.msra.mxu0 0
        %875 = vmatprep.subr.bf16.mxu0 0
        %876 = vmatpush1.bf16.msra.mxu0 0
        %877 = vmatprep.subr.bf16.mxu0 0
        %878 = vmatpush1.bf16.msra.mxu0 0
        %879 = vmatprep.subr.bf16.mxu0 0
        %880 = vmatpush1.bf16.msra.mxu0 0
        %881 = vmatprep.mubr.bf16.mxu0 0
        %882 = vmatmul.mubr.bf16.gmra.mrb[0].mxu0 %v761
        %v883 = vpop.f32.mrb[0].mxu0
        %v884 = vadd.f32 0.0, %v883
        %v885 = vpop.f32.mrb[0].mxu0
        %v886 = vadd.f32 0.0, %v885
        %v887 = vpop.f32.mrb[0].mxu0
        %v888 = vadd.f32 0.0, %v887
        %v889 = vpop.f32.mrb[0].mxu0
        %v890 = vadd.f32 0.0, %v889
        %891 = vdwg.mxu0
        %892 = vmatprep.subr.bf16.mxu0 %v751
        %893 = vmatpush1.bf16.msra.mxu0 %v750
        %894 = vmatprep.subr.bf16.mxu0 0
        %895 = vmatpush1.bf16.msra.mxu0 0
        %896 = vmatprep.subr.bf16.mxu0 0
        %897 = vmatpush1.bf16.msra.mxu0 0
        %898 = vmatprep.subr.bf16.mxu0 0
        %899 = vmatpush1.bf16.msra.mxu0 0
        %900 = vmatprep.subr.bf16.mxu0 0
        %901 = vmatpush1.bf16.msra.mxu0 0
        %902 = vmatprep.subr.bf16.mxu0 0
        %903 = vmatpush1.bf16.msra.mxu0 0
        %904 = vmatprep.subr.bf16.mxu0 0
        %905 = vmatpush1.bf16.msra.mxu0 0
        %906 = vmatprep.subr.bf16.mxu0 0
        %907 = vmatpush1.bf16.msra.mxu0 0
        %908 = vmatprep.subr.bf16.mxu0 0
        %909 = vmatpush1.bf16.msra.mxu0 0
        %910 = vmatprep.subr.bf16.mxu0 0
        %911 = vmatpush1.bf16.msra.mxu0 0
        %912 = vmatprep.subr.bf16.mxu0 0
        %913 = vmatpush1.bf16.msra.mxu0 0
        %914 = vmatprep.subr.bf16.mxu0 0
        %915 = vmatpush1.bf16.msra.mxu0 0
        %916 = vmatprep.subr.bf16.mxu0 0
        %917 = vmatpush1.bf16.msra.mxu0 0
        %918 = vmatprep.subr.bf16.mxu0 0
        %919 = vmatpush1.bf16.msra.mxu0 0
        %920 = vmatprep.subr.bf16.mxu0 0
        %921 = vmatpush1.bf16.msra.mxu0 0
        %922 = vmatprep.subr.bf16.mxu0 0
        %923 = vmatpush1.bf16.msra.mxu0 0
        %924 = vmatprep.mubr.bf16.mxu0 0
        %925 = vmatmul.mubr.bf16.gmra.mrb[0].mxu0 %v761
        %v926 = vpop.f32.mrb[0].mxu0
        %v927 = vadd.f32 0.0, %v926
        %v928 = vpop.f32.mrb[0].mxu0
        %v929 = vadd.f32 0.0, %v928
        %v930 = vpop.f32.mrb[0].mxu0
        %v931 = vadd.f32 0.0, %v930
        %v932 = vpop.f32.mrb[0].mxu0
        %v933 = vadd.f32 0.0, %v932
        %934 = vdwg.mxu0
        %v935 = vadd.f32 %v580, %v798
        %v936 = vadd.f32 %v582, %v800
        %v937 = vadd.f32 %v623, %v841
        %v938 = vadd.f32 %v625, %v843
        %v939 = vadd.f32 %v666, %v884
        %v940 = vadd.f32 %v668, %v886
        %v941 = vadd.f32 %v709, %v927
        %v942 = vadd.f32 %v711, %v929
        %v943 = vadd.f32 %v584, %v802
        %v944 = vadd.f32 %v586, %v804
        %v945 = vadd.f32 %v627, %v845
        %v946 = vadd.f32 %v629, %v847
        %v947 = vadd.f32 %v670, %v888
        %v948 = vadd.f32 %v672, %v890
        %v949 = vadd.f32 %v713, %v931
        %v950 = vadd.f32 %v715, %v933
        %s951 = scalar_lea.vmem %s0, 24
        %v952 = vld [vmem:[%s951] sm:$0xf]
        %v953 = vld [vmem:[%s951 + $0x4] sm:$0xf]
        %v956 = vunpack.c.l.b16 %v952
        %v957 = vunpack.c.l.b16 %v953
        %v958 = vpack.c.b16 %v957, %v956
        %959 = vrot.lane.b32.xlu0 %v265, 69
        %v960 = vpop.permute.xlu0 %959
        %961 = vrot.lane.b32.xlu0 %v266, 69
        %v962 = vpop.permute.xlu0 %961
        %963 = vrot.lane.b32.xlu0 %v267, 69
        %v964 = vpop.permute.xlu0 %963
        %965 = vrot.lane.b32.xlu0 %v268, 69
        %v966 = vpop.permute.xlu0 %965
        %967 = vrot.lane.b32.xlu0 %v269, 69
        %v968 = vpop.permute.xlu0 %967
        %969 = vrot.lane.b32.xlu0 %v270, 69
        %v970 = vpop.permute.xlu0 %969
        %971 = vrot.lane.b32.xlu0 %v271, 69
        %v972 = vpop.permute.xlu0 %971
        %973 = vrot.lane.b32.xlu0 %v272, 69
        %v974 = vpop.permute.xlu0 %973
        %975 = vrot.lane.b32.xlu0 %v273, 69
        %v976 = vpop.permute.xlu0 %975
        %vm977 = vcmask 564224
        %v978 = vsel %vm977, %v960, %v962
        %v979 = vsel %vm977, %v962, %v964
        %v980 = vsel %vm977, %v964, %v966
        %v981 = vsel %vm977, %v966, %v968
        %v982 = vsel %vm977, %v968, %v970
        %v983 = vsel %vm977, %v970, %v972
        %v984 = vsel %vm977, %v972, %v974
        %v985 = vsel %vm977, %v974, %v976
        %v995 = vsel %vm326, %v958, 0
        %997 = vmatprep.subr.bf16.mxu0 %v979
        %998 = vmatpush1.bf16.msra.mxu0 %v978
        %999 = vmatprep.subr.bf16.mxu0 0
        %1000 = vmatpush1.bf16.msra.mxu0 0
        %1001 = vmatprep.subr.bf16.mxu0 0
        %1002 = vmatpush1.bf16.msra.mxu0 0
        %1003 = vmatprep.subr.bf16.mxu0 0
        %1004 = vmatpush1.bf16.msra.mxu0 0
        %1005 = vmatprep.subr.bf16.mxu0 0
        %1006 = vmatpush1.bf16.msra.mxu0 0
        %1007 = vmatprep.subr.bf16.mxu0 0
        %1008 = vmatpush1.bf16.msra.mxu0 0
        %1009 = vmatprep.subr.bf16.mxu0 0
        %1010 = vmatpush1.bf16.msra.mxu0 0
        %1011 = vmatprep.subr.bf16.mxu0 0
        %1012 = vmatpush1.bf16.msra.mxu0 0
        %1013 = vmatprep.subr.bf16.mxu0 0
        %1014 = vmatpush1.bf16.msra.mxu0 0
        %1015 = vmatprep.subr.bf16.mxu0 0
        %1016 = vmatpush1.bf16.msra.mxu0 0
        %1017 = vmatprep.subr.bf16.mxu0 0
        %1018 = vmatpush1.bf16.msra.mxu0 0
        %1019 = vmatprep.subr.bf16.mxu0 0
        %1020 = vmatpush1.bf16.msra.mxu0 0
        %1021 = vmatprep.subr.bf16.mxu0 0
        %1022 = vmatpush1.bf16.msra.mxu0 0
        %1023 = vmatprep.subr.bf16.mxu0 0
        %1024 = vmatpush1.bf16.msra.mxu0 0
        %1025 = vmatprep.subr.bf16.mxu0 0
        %1026 = vmatpush1.bf16.msra.mxu0 0
        %1027 = vmatprep.subr.bf16.mxu0 0
        %1028 = vmatpush1.bf16.msra.mxu0 0
        %1029 = vmatprep.mubr.bf16.mxu0 0
        %1030 = vmatmul.mubr.bf16.gmra.mrb[0].mxu0 %v995
        %v1031 = vpop.f32.mrb[0].mxu0
        %v1032 = vadd.f32 0.0, %v1031
        %v1033 = vpop.f32.mrb[0].mxu0
        %v1034 = vadd.f32 0.0, %v1033
        %v1035 = vpop.f32.mrb[0].mxu0
        %v1036 = vadd.f32 0.0, %v1035
        %v1037 = vpop.f32.mrb[0].mxu0
        %v1038 = vadd.f32 0.0, %v1037
        %1039 = vdwg.mxu0
        %1040 = vmatprep.subr.bf16.mxu0 %v981
        %1041 = vmatpush1.bf16.msra.mxu0 %v980
        %1042 = vmatprep.subr.bf16.mxu0 0
        %1043 = vmatpush1.bf16.msra.mxu0 0
        %1044 = vmatprep.subr.bf16.mxu0 0
        %1045 = vmatpush1.bf16.msra.mxu0 0
        %1046 = vmatprep.subr.bf16.mxu0 0
        %1047 = vmatpush1.bf16.msra.mxu0 0
        %1048 = vmatprep.subr.bf16.mxu0 0
        %1049 = vmatpush1.bf16.msra.mxu0 0
        %1050 = vmatprep.subr.bf16.mxu0 0
        %1051 = vmatpush1.bf16.msra.mxu0 0
        %1052 = vmatprep.subr.bf16.mxu0 0
        %1053 = vmatpush1.bf16.msra.mxu0 0
        %1054 = vmatprep.subr.bf16.mxu0 0
        %1055 = vmatpush1.bf16.msra.mxu0 0
        %1056 = vmatprep.subr.bf16.mxu0 0
        %1057 = vmatpush1.bf16.msra.mxu0 0
        %1058 = vmatprep.subr.bf16.mxu0 0
        %1059 = vmatpush1.bf16.msra.mxu0 0
        %1060 = vmatprep.subr.bf16.mxu0 0
        %1061 = vmatpush1.bf16.msra.mxu0 0
        %1062 = vmatprep.subr.bf16.mxu0 0
        %1063 = vmatpush1.bf16.msra.mxu0 0
        %1064 = vmatprep.subr.bf16.mxu0 0
        %1065 = vmatpush1.bf16.msra.mxu0 0
        %1066 = vmatprep.subr.bf16.mxu0 0
        %1067 = vmatpush1.bf16.msra.mxu0 0
        %1068 = vmatprep.subr.bf16.mxu0 0
        %1069 = vmatpush1.bf16.msra.mxu0 0
        %1070 = vmatprep.subr.bf16.mxu0 0
        %1071 = vmatpush1.bf16.msra.mxu0 0
        %1072 = vmatprep.mubr.bf16.mxu0 0
        %1073 = vmatmul.mubr.bf16.gmra.mrb[0].mxu0 %v995
        %v1074 = vpop.f32.mrb[0].mxu0
        %v1075 = vadd.f32 0.0, %v1074
        %v1076 = vpop.f32.mrb[0].mxu0
        %v1077 = vadd.f32 0.0, %v1076
        %v1078 = vpop.f32.mrb[0].mxu0
        %v1079 = vadd.f32 0.0, %v1078
        %v1080 = vpop.f32.mrb[0].mxu0
        %v1081 = vadd.f32 0.0, %v1080
        %1082 = vdwg.mxu0
        %1083 = vmatprep.subr.bf16.mxu0 %v983
        %1084 = vmatpush1.bf16.msra.mxu0 %v982
        %1085 = vmatprep.subr.bf16.mxu0 0
        %1086 = vmatpush1.bf16.msra.mxu0 0
        %1087 = vmatprep.subr.bf16.mxu0 0
        %1088 = vmatpush1.bf16.msra.mxu0 0
        %1089 = vmatprep.subr.bf16.mxu0 0
        %1090 = vmatpush1.bf16.msra.mxu0 0
        %1091 = vmatprep.subr.bf16.mxu0 0
        %1092 = vmatpush1.bf16.msra.mxu0 0
        %1093 = vmatprep.subr.bf16.mxu0 0
        %1094 = vmatpush1.bf16.msra.mxu0 0
        %1095 = vmatprep.subr.bf16.mxu0 0
        %1096 = vmatpush1.bf16.msra.mxu0 0
        %1097 = vmatprep.subr.bf16.mxu0 0
        %1098 = vmatpush1.bf16.msra.mxu0 0
        %1099 = vmatprep.subr.bf16.mxu0 0
        %1100 = vmatpush1.bf16.msra.mxu0 0
        %1101 = vmatprep.subr.bf16.mxu0 0
        %1102 = vmatpush1.bf16.msra.mxu0 0
        %1103 = vmatprep.subr.bf16.mxu0 0
        %1104 = vmatpush1.bf16.msra.mxu0 0
        %1105 = vmatprep.subr.bf16.mxu0 0
        %1106 = vmatpush1.bf16.msra.mxu0 0
        %1107 = vmatprep.subr.bf16.mxu0 0
        %1108 = vmatpush1.bf16.msra.mxu0 0
        %1109 = vmatprep.subr.bf16.mxu0 0
        %1110 = vmatpush1.bf16.msra.mxu0 0
        %1111 = vmatprep.subr.bf16.mxu0 0
        %1112 = vmatpush1.bf16.msra.mxu0 0
        %1113 = vmatprep.subr.bf16.mxu0 0
        %1114 = vmatpush1.bf16.msra.mxu0 0
        %1115 = vmatprep.mubr.bf16.mxu0 0
        %1116 = vmatmul.mubr.bf16.gmra.mrb[0].mxu0 %v995
        %v1117 = vpop.f32.mrb[0].mxu0
        %v1118 = vadd.f32 0.0, %v1117
        %v1119 = vpop.f32.mrb[0].mxu0
        %v1120 = vadd.f32 0.0, %v1119
        %v1121 = vpop.f32.mrb[0].mxu0
        %v1122 = vadd.f32 0.0, %v1121
        %v1123 = vpop.f32.mrb[0].mxu0
        %v1124 = vadd.f32 0.0, %v1123
        %1125 = vdwg.mxu0
        %1126 = vmatprep.subr.bf16.mxu0 %v985
        %1127 = vmatpush1.bf16.msra.mxu0 %v984
        %1128 = vmatprep.subr.bf16.mxu0 0
        %1129 = vmatpush1.bf16.msra.mxu0 0
        %1130 = vmatprep.subr.bf16.mxu0 0
        %1131 = vmatpush1.bf16.msra.mxu0 0
        %1132 = vmatprep.subr.bf16.mxu0 0
        %1133 = vmatpush1.bf16.msra.mxu0 0
        %1134 = vmatprep.subr.bf16.mxu0 0
        %1135 = vmatpush1.bf16.msra.mxu0 0
        %1136 = vmatprep.subr.bf16.mxu0 0
        %1137 = vmatpush1.bf16.msra.mxu0 0
        %1138 = vmatprep.subr.bf16.mxu0 0
        %1139 = vmatpush1.bf16.msra.mxu0 0
        %1140 = vmatprep.subr.bf16.mxu0 0
        %1141 = vmatpush1.bf16.msra.mxu0 0
        %1142 = vmatprep.subr.bf16.mxu0 0
        %1143 = vmatpush1.bf16.msra.mxu0 0
        %1144 = vmatprep.subr.bf16.mxu0 0
        %1145 = vmatpush1.bf16.msra.mxu0 0
        %1146 = vmatprep.subr.bf16.mxu0 0
        %1147 = vmatpush1.bf16.msra.mxu0 0
        %1148 = vmatprep.subr.bf16.mxu0 0
        %1149 = vmatpush1.bf16.msra.mxu0 0
        %1150 = vmatprep.subr.bf16.mxu0 0
        %1151 = vmatpush1.bf16.msra.mxu0 0
        %1152 = vmatprep.subr.bf16.mxu0 0
        %1153 = vmatpush1.bf16.msra.mxu0 0
        %1154 = vmatprep.subr.bf16.mxu0 0
        %1155 = vmatpush1.bf16.msra.mxu0 0
        %1156 = vmatprep.subr.bf16.mxu0 0
        %1157 = vmatpush1.bf16.msra.mxu0 0
        %1158 = vmatprep.mubr.bf16.mxu0 0
        %1159 = vmatmul.mubr.bf16.gmra.mrb[0].mxu0 %v995
        %v1160 = vpop.f32.mrb[0].mxu0
        %v1161 = vadd.f32 0.0, %v1160
        %v1162 = vpop.f32.mrb[0].mxu0
        %v1163 = vadd.f32 0.0, %v1162
        %v1164 = vpop.f32.mrb[0].mxu0
        %v1165 = vadd.f32 0.0, %v1164
        %v1166 = vpop.f32.mrb[0].mxu0
        %v1167 = vadd.f32 0.0, %v1166
        %1168 = vdwg.mxu0
        %v1169 = vadd.f32 %v935, %v1032
        %v1170 = vadd.f32 %v936, %v1034
        %v1171 = vadd.f32 %v937, %v1075
        %v1172 = vadd.f32 %v938, %v1077
        %v1173 = vadd.f32 %v939, %v1118
        %v1174 = vadd.f32 %v940, %v1120
        %v1175 = vadd.f32 %v941, %v1161
        %v1176 = vadd.f32 %v942, %v1163
        %v1177 = vadd.f32 %v943, %v1036
        %v1178 = vadd.f32 %v944, %v1038
        %v1179 = vadd.f32 %v945, %v1079
        %v1180 = vadd.f32 %v946, %v1081
        %v1181 = vadd.f32 %v947, %v1122
        %v1182 = vadd.f32 %v948, %v1124
        %v1183 = vadd.f32 %v949, %v1165
        %v1184 = vadd.f32 %v950, %v1167
        %s1185 = scalar_lea.vmem %s0, 32
        %v1186 = vld [vmem:[%s1185] sm:$0xf]
        %v1187 = vld [vmem:[%s1185 + $0x4] sm:$0xf]
        %v1190 = vunpack.c.l.b16 %v1186
        %v1191 = vunpack.c.l.b16 %v1187
        %v1192 = vpack.c.b16 %v1191, %v1190
        %1193 = vrot.lane.b32.xlu0 %v265, 68
        %v1194 = vpop.permute.xlu0 %1193
        %1195 = vrot.lane.b32.xlu0 %v266, 68
        %v1196 = vpop.permute.xlu0 %1195
        %1197 = vrot.lane.b32.xlu0 %v267, 68
        %v1198 = vpop.permute.xlu0 %1197
        %1199 = vrot.lane.b32.xlu0 %v268, 68
        %v1200 = vpop.permute.xlu0 %1199
        %1201 = vrot.lane.b32.xlu0 %v269, 68
        %v1202 = vpop.permute.xlu0 %1201
        %1203 = vrot.lane.b32.xlu0 %v270, 68
        %v1204 = vpop.permute.xlu0 %1203
        %1205 = vrot.lane.b32.xlu0 %v271, 68
        %v1206 = vpop.permute.xlu0 %1205
        %1207 = vrot.lane.b32.xlu0 %v272, 68
        %v1208 = vpop.permute.xlu0 %1207
        %1209 = vrot.lane.b32.xlu0 %v273, 68
        %v1210 = vpop.permute.xlu0 %1209
        %vm1211 = vcmask 556032
        %v1212 = vsel %vm1211, %v1194, %v1196
        %v1213 = vsel %vm1211, %v1196, %v1198
        %v1214 = vsel %vm1211, %v1198, %v1200
        %v1215 = vsel %vm1211, %v1200, %v1202
        %v1216 = vsel %vm1211, %v1202, %v1204
        %v1217 = vsel %vm1211, %v1204, %v1206
        %v1218 = vsel %vm1211, %v1206, %v1208
        %v1219 = vsel %vm1211, %v1208, %v1210
        %v1229 = vsel %vm326, %v1192, 0
        %1231 = vmatprep.subr.bf16.mxu0 %v1213
        %1232 = vmatpush1.bf16.msra.mxu0 %v1212
        %1233 = vmatprep.subr.bf16.mxu0 0
        %1234 = vmatpush1.bf16.msra.mxu0 0
        %1235 = vmatprep.subr.bf16.mxu0 0
        %1236 = vmatpush1.bf16.msra.mxu0 0
        %1237 = vmatprep.subr.bf16.mxu0 0
        %1238 = vmatpush1.bf16.msra.mxu0 0
        %1239 = vmatprep.subr.bf16.mxu0 0
        %1240 = vmatpush1.bf16.msra.mxu0 0
        %1241 = vmatprep.subr.bf16.mxu0 0
        %1242 = vmatpush1.bf16.msra.mxu0 0
        %1243 = vmatprep.subr.bf16.mxu0 0
        %1244 = vmatpush1.bf16.msra.mxu0 0
        %1245 = vmatprep.subr.bf16.mxu0 0
        %1246 = vmatpush1.bf16.msra.mxu0 0
        %1247 = vmatprep.subr.bf16.mxu0 0
        %1248 = vmatpush1.bf16.msra.mxu0 0
        %1249 = vmatprep.subr.bf16.mxu0 0
        %1250 = vmatpush1.bf16.msra.mxu0 0
        %1251 = vmatprep.subr.bf16.mxu0 0
        %1252 = vmatpush1.bf16.msra.mxu0 0
        %1253 = vmatprep.subr.bf16.mxu0 0
        %1254 = vmatpush1.bf16.msra.mxu0 0
        %1255 = vmatprep.subr.bf16.mxu0 0
        %1256 = vmatpush1.bf16.msra.mxu0 0
        %1257 = vmatprep.subr.bf16.mxu0 0
        %1258 = vmatpush1.bf16.msra.mxu0 0
        %1259 = vmatprep.subr.bf16.mxu0 0
        %1260 = vmatpush1.bf16.msra.mxu0 0
        %1261 = vmatprep.subr.bf16.mxu0 0
        %1262 = vmatpush1.bf16.msra.mxu0 0
        %1263 = vmatprep.mubr.bf16.mxu0 0
        %1264 = vmatmul.mubr.bf16.gmra.mrb[0].mxu0 %v1229
        %v1265 = vpop.f32.mrb[0].mxu0
        %v1266 = vadd.f32 0.0, %v1265
        %v1267 = vpop.f32.mrb[0].mxu0
        %v1268 = vadd.f32 0.0, %v1267
        %v1269 = vpop.f32.mrb[0].mxu0
        %v1270 = vadd.f32 0.0, %v1269
        %v1271 = vpop.f32.mrb[0].mxu0
        %v1272 = vadd.f32 0.0, %v1271
        %1273 = vdwg.mxu0
        %1274 = vmatprep.subr.bf16.mxu0 %v1215
        %1275 = vmatpush1.bf16.msra.mxu0 %v1214
        %1276 = vmatprep.subr.bf16.mxu0 0
        %1277 = vmatpush1.bf16.msra.mxu0 0
        %1278 = vmatprep.subr.bf16.mxu0 0
        %1279 = vmatpush1.bf16.msra.mxu0 0
        %1280 = vmatprep.subr.bf16.mxu0 0
        %1281 = vmatpush1.bf16.msra.mxu0 0
        %1282 = vmatprep.subr.bf16.mxu0 0
        %1283 = vmatpush1.bf16.msra.mxu0 0
        %1284 = vmatprep.subr.bf16.mxu0 0
        %1285 = vmatpush1.bf16.msra.mxu0 0
        %1286 = vmatprep.subr.bf16.mxu0 0
        %1287 = vmatpush1.bf16.msra.mxu0 0
        %1288 = vmatprep.subr.bf16.mxu0 0
        %1289 = vmatpush1.bf16.msra.mxu0 0
        %1290 = vmatprep.subr.bf16.mxu0 0
        %1291 = vmatpush1.bf16.msra.mxu0 0
        %1292 = vmatprep.subr.bf16.mxu0 0
        %1293 = vmatpush1.bf16.msra.mxu0 0
        %1294 = vmatprep.subr.bf16.mxu0 0
        %1295 = vmatpush1.bf16.msra.mxu0 0
        %1296 = vmatprep.subr.bf16.mxu0 0
        %1297 = vmatpush1.bf16.msra.mxu0 0
        %1298 = vmatprep.subr.bf16.mxu0 0
        %1299 = vmatpush1.bf16.msra.mxu0 0
        %1300 = vmatprep.subr.bf16.mxu0 0
        %1301 = vmatpush1.bf16.msra.mxu0 0
        %1302 = vmatprep.subr.bf16.mxu0 0
        %1303 = vmatpush1.bf16.msra.mxu0 0
        %1304 = vmatprep.subr.bf16.mxu0 0
        %1305 = vmatpush1.bf16.msra.mxu0 0
        %1306 = vmatprep.mubr.bf16.mxu0 0
        %1307 = vmatmul.mubr.bf16.gmra.mrb[0].mxu0 %v1229
        %v1308 = vpop.f32.mrb[0].mxu0
        %v1309 = vadd.f32 0.0, %v1308
        %v1310 = vpop.f32.mrb[0].mxu0
        %v1311 = vadd.f32 0.0, %v1310
        %v1312 = vpop.f32.mrb[0].mxu0
        %v1313 = vadd.f32 0.0, %v1312
        %v1314 = vpop.f32.mrb[0].mxu0
        %v1315 = vadd.f32 0.0, %v1314
        %1316 = vdwg.mxu0
        %1317 = vmatprep.subr.bf16.mxu0 %v1217
        %1318 = vmatpush1.bf16.msra.mxu0 %v1216
        %1319 = vmatprep.subr.bf16.mxu0 0
        %1320 = vmatpush1.bf16.msra.mxu0 0
        %1321 = vmatprep.subr.bf16.mxu0 0
        %1322 = vmatpush1.bf16.msra.mxu0 0
        %1323 = vmatprep.subr.bf16.mxu0 0
        %1324 = vmatpush1.bf16.msra.mxu0 0
        %1325 = vmatprep.subr.bf16.mxu0 0
        %1326 = vmatpush1.bf16.msra.mxu0 0
        %1327 = vmatprep.subr.bf16.mxu0 0
        %1328 = vmatpush1.bf16.msra.mxu0 0
        %1329 = vmatprep.subr.bf16.mxu0 0
        %1330 = vmatpush1.bf16.msra.mxu0 0
        %1331 = vmatprep.subr.bf16.mxu0 0
        %1332 = vmatpush1.bf16.msra.mxu0 0
        %1333 = vmatprep.subr.bf16.mxu0 0
        %1334 = vmatpush1.bf16.msra.mxu0 0
        %1335 = vmatprep.subr.bf16.mxu0 0
        %1336 = vmatpush1.bf16.msra.mxu0 0
        %1337 = vmatprep.subr.bf16.mxu0 0
        %1338 = vmatpush1.bf16.msra.mxu0 0
        %1339 = vmatprep.subr.bf16.mxu0 0
        %1340 = vmatpush1.bf16.msra.mxu0 0
        %1341 = vmatprep.subr.bf16.mxu0 0
        %1342 = vmatpush1.bf16.msra.mxu0 0
        %1343 = vmatprep.subr.bf16.mxu0 0
        %1344 = vmatpush1.bf16.msra.mxu0 0
        %1345 = vmatprep.subr.bf16.mxu0 0
        %1346 = vmatpush1.bf16.msra.mxu0 0
        %1347 = vmatprep.subr.bf16.mxu0 0
        %1348 = vmatpush1.bf16.msra.mxu0 0
        %1349 = vmatprep.mubr.bf16.mxu0 0
        %1350 = vmatmul.mubr.bf16.gmra.mrb[0].mxu0 %v1229
        %v1351 = vpop.f32.mrb[0].mxu0
        %v1352 = vadd.f32 0.0, %v1351
        %v1353 = vpop.f32.mrb[0].mxu0
        %v1354 = vadd.f32 0.0, %v1353
        %v1355 = vpop.f32.mrb[0].mxu0
        %v1356 = vadd.f32 0.0, %v1355
        %v1357 = vpop.f32.mrb[0].mxu0
        %v1358 = vadd.f32 0.0, %v1357
        %1359 = vdwg.mxu0
        %1360 = vmatprep.subr.bf16.mxu0 %v1219
        %1361 = vmatpush1.bf16.msra.mxu0 %v1218
        %1362 = vmatprep.subr.bf16.mxu0 0
        %1363 = vmatpush1.bf16.msra.mxu0 0
        %1364 = vmatprep.subr.bf16.mxu0 0
        %1365 = vmatpush1.bf16.msra.mxu0 0
        %1366 = vmatprep.subr.bf16.mxu0 0
        %1367 = vmatpush1.bf16.msra.mxu0 0
        %1368 = vmatprep.subr.bf16.mxu0 0
        %1369 = vmatpush1.bf16.msra.mxu0 0
        %1370 = vmatprep.subr.bf16.mxu0 0
        %1371 = vmatpush1.bf16.msra.mxu0 0
        %1372 = vmatprep.subr.bf16.mxu0 0
        %1373 = vmatpush1.bf16.msra.mxu0 0
        %1374 = vmatprep.subr.bf16.mxu0 0
        %1375 = vmatpush1.bf16.msra.mxu0 0
        %1376 = vmatprep.subr.bf16.mxu0 0
        %1377 = vmatpush1.bf16.msra.mxu0 0
        %1378 = vmatprep.subr.bf16.mxu0 0
        %1379 = vmatpush1.bf16.msra.mxu0 0
        %1380 = vmatprep.subr.bf16.mxu0 0
        %1381 = vmatpush1.bf16.msra.mxu0 0
        %1382 = vmatprep.subr.bf16.mxu0 0
        %1383 = vmatpush1.bf16.msra.mxu0 0
        %1384 = vmatprep.subr.bf16.mxu0 0
        %1385 = vmatpush1.bf16.msra.mxu0 0
        %1386 = vmatprep.subr.bf16.mxu0 0
        %1387 = vmatpush1.bf16.msra.mxu0 0
        %1388 = vmatprep.subr.bf16.mxu0 0
        %1389 = vmatpush1.bf16.msra.mxu0 0
        %1390 = vmatprep.subr.bf16.mxu0 0
        %1391 = vmatpush1.bf16.msra.mxu0 0
        %1392 = vmatprep.mubr.bf16.mxu0 0
        %1393 = vmatmul.mubr.bf16.gmra.mrb[0].mxu0 %v1229
        %v1394 = vpop.f32.mrb[0].mxu0
        %v1395 = vadd.f32 0.0, %v1394
        %v1396 = vpop.f32.mrb[0].mxu0
        %v1397 = vadd.f32 0.0, %v1396
        %v1398 = vpop.f32.mrb[0].mxu0
        %v1399 = vadd.f32 0.0, %v1398
        %v1400 = vpop.f32.mrb[0].mxu0
        %v1401 = vadd.f32 0.0, %v1400
        %1402 = vdwg.mxu0
        %v1403 = vadd.f32 %v1169, %v1266
        %v1404 = vadd.f32 %v1170, %v1268
        %v1405 = vadd.f32 %v1171, %v1309
        %v1406 = vadd.f32 %v1172, %v1311
        %v1407 = vadd.f32 %v1173, %v1352
        %v1408 = vadd.f32 %v1174, %v1354
        %v1409 = vadd.f32 %v1175, %v1395
        %v1410 = vadd.f32 %v1176, %v1397
        %v1411 = vadd.f32 %v1177, %v1270
        %v1412 = vadd.f32 %v1178, %v1272
        %v1413 = vadd.f32 %v1179, %v1313
        %v1414 = vadd.f32 %v1180, %v1315
        %v1415 = vadd.f32 %v1181, %v1356
        %v1416 = vadd.f32 %v1182, %v1358
        %v1417 = vadd.f32 %v1183, %v1399
        %v1418 = vadd.f32 %v1184, %v1401
        %s1419 = scalar_lea.vmem %s0, 40
        %v1420 = vld [vmem:[%s1419] sm:$0xf]
        %v1421 = vld [vmem:[%s1419 + $0x4] sm:$0xf]
        %v1424 = vunpack.c.l.b16 %v1420
        %v1425 = vunpack.c.l.b16 %v1421
        %v1426 = vpack.c.b16 %v1425, %v1424
        %1427 = vrot.lane.b32.xlu0 %v265, 67
        %v1428 = vpop.permute.xlu0 %1427
        %1429 = vrot.lane.b32.xlu0 %v266, 67
        %v1430 = vpop.permute.xlu0 %1429
        %1431 = vrot.lane.b32.xlu0 %v267, 67
        %v1432 = vpop.permute.xlu0 %1431
        %1433 = vrot.lane.b32.xlu0 %v268, 67
        %v1434 = vpop.permute.xlu0 %1433
        %1435 = vrot.lane.b32.xlu0 %v269, 67
        %v1436 = vpop.permute.xlu0 %1435
        %1437 = vrot.lane.b32.xlu0 %v270, 67
        %v1438 = vpop.permute.xlu0 %1437
        %1439 = vrot.lane.b32.xlu0 %v271, 67
        %v1440 = vpop.permute.xlu0 %1439
        %1441 = vrot.lane.b32.xlu0 %v272, 67
        %v1442 = vpop.permute.xlu0 %1441
        %1443 = vrot.lane.b32.xlu0 %v273, 67
        %v1444 = vpop.permute.xlu0 %1443
        %vm1445 = vcmask 547840
        %v1446 = vsel %vm1445, %v1428, %v1430
        %v1447 = vsel %vm1445, %v1430, %v1432
        %v1448 = vsel %vm1445, %v1432, %v1434
        %v1449 = vsel %vm1445, %v1434, %v1436
        %v1450 = vsel %vm1445, %v1436, %v1438
        %v1451 = vsel %vm1445, %v1438, %v1440
        %v1452 = vsel %vm1445, %v1440, %v1442
        %v1453 = vsel %vm1445, %v1442, %v1444
        %v1463 = vsel %vm326, %v1426, 0
        %1465 = vmatprep.subr.bf16.mxu0 %v1447
        %1466 = vmatpush1.bf16.msra.mxu0 %v1446
        %1467 = vmatprep.subr.bf16.mxu0 0
        %1468 = vmatpush1.bf16.msra.mxu0 0
        %1469 = vmatprep.subr.bf16.mxu0 0
        %1470 = vmatpush1.bf16.msra.mxu0 0
        %1471 = vmatprep.subr.bf16.mxu0 0
        %1472 = vmatpush1.bf16.msra.mxu0 0
        %1473 = vmatprep.subr.bf16.mxu0 0
        %1474 = vmatpush1.bf16.msra.mxu0 0
        %1475 = vmatprep.subr.bf16.mxu0 0
        %1476 = vmatpush1.bf16.msra.mxu0 0
        %1477 = vmatprep.subr.bf16.mxu0 0
        %1478 = vmatpush1.bf16.msra.mxu0 0
        %1479 = vmatprep.subr.bf16.mxu0 0
        %1480 = vmatpush1.bf16.msra.mxu0 0
        %1481 = vmatprep.subr.bf16.mxu0 0
        %1482 = vmatpush1.bf16.msra.mxu0 0
        %1483 = vmatprep.subr.bf16.mxu0 0
        %1484 = vmatpush1.bf16.msra.mxu0 0
        %1485 = vmatprep.subr.bf16.mxu0 0
        %1486 = vmatpush1.bf16.msra.mxu0 0
        %1487 = vmatprep.subr.bf16.mxu0 0
        %1488 = vmatpush1.bf16.msra.mxu0 0
        %1489 = vmatprep.subr.bf16.mxu0 0
        %1490 = vmatpush1.bf16.msra.mxu0 0
        %1491 = vmatprep.subr.bf16.mxu0 0
        %1492 = vmatpush1.bf16.msra.mxu0 0
        %1493 = vmatprep.subr.bf16.mxu0 0
        %1494 = vmatpush1.bf16.msra.mxu0 0
        %1495 = vmatprep.subr.bf16.mxu0 0
        %1496 = vmatpush1.bf16.msra.mxu0 0
        %1497 = vmatprep.mubr.bf16.mxu0 0
        %1498 = vmatmul.mubr.bf16.gmra.mrb[0].mxu0 %v1463
        %v1499 = vpop.f32.mrb[0].mxu0
        %v1500 = vadd.f32 0.0, %v1499
        %v1501 = vpop.f32.mrb[0].mxu0
        %v1502 = vadd.f32 0.0, %v1501
        %v1503 = vpop.f32.mrb[0].mxu0
        %v1504 = vadd.f32 0.0, %v1503
        %v1505 = vpop.f32.mrb[0].mxu0
        %v1506 = vadd.f32 0.0, %v1505
        %1507 = vdwg.mxu0
        %1508 = vmatprep.subr.bf16.mxu0 %v1449
        %1509 = vmatpush1.bf16.msra.mxu0 %v1448
        %1510 = vmatprep.subr.bf16.mxu0 0
        %1511 = vmatpush1.bf16.msra.mxu0 0
        %1512 = vmatprep.subr.bf16.mxu0 0
        %1513 = vmatpush1.bf16.msra.mxu0 0
        %1514 = vmatprep.subr.bf16.mxu0 0
        %1515 = vmatpush1.bf16.msra.mxu0 0
        %1516 = vmatprep.subr.bf16.mxu0 0
        %1517 = vmatpush1.bf16.msra.mxu0 0
        %1518 = vmatprep.subr.bf16.mxu0 0
        %1519 = vmatpush1.bf16.msra.mxu0 0
        %1520 = vmatprep.subr.bf16.mxu0 0
        %1521 = vmatpush1.bf16.msra.mxu0 0
        %1522 = vmatprep.subr.bf16.mxu0 0
        %1523 = vmatpush1.bf16.msra.mxu0 0
        %1524 = vmatprep.subr.bf16.mxu0 0
        %1525 = vmatpush1.bf16.msra.mxu0 0
        %1526 = vmatprep.subr.bf16.mxu0 0
        %1527 = vmatpush1.bf16.msra.mxu0 0
        %1528 = vmatprep.subr.bf16.mxu0 0
        %1529 = vmatpush1.bf16.msra.mxu0 0
        %1530 = vmatprep.subr.bf16.mxu0 0
        %1531 = vmatpush1.bf16.msra.mxu0 0
        %1532 = vmatprep.subr.bf16.mxu0 0
        %1533 = vmatpush1.bf16.msra.mxu0 0
        %1534 = vmatprep.subr.bf16.mxu0 0
        %1535 = vmatpush1.bf16.msra.mxu0 0
        %1536 = vmatprep.subr.bf16.mxu0 0
        %1537 = vmatpush1.bf16.msra.mxu0 0
        %1538 = vmatprep.subr.bf16.mxu0 0
        %1539 = vmatpush1.bf16.msra.mxu0 0
        %1540 = vmatprep.mubr.bf16.mxu0 0
        %1541 = vmatmul.mubr.bf16.gmra.mrb[0].mxu0 %v1463
        %v1542 = vpop.f32.mrb[0].mxu0
        %v1543 = vadd.f32 0.0, %v1542
        %v1544 = vpop.f32.mrb[0].mxu0
        %v1545 = vadd.f32 0.0, %v1544
        %v1546 = vpop.f32.mrb[0].mxu0
        %v1547 = vadd.f32 0.0, %v1546
        %v1548 = vpop.f32.mrb[0].mxu0
        %v1549 = vadd.f32 0.0, %v1548
        %1550 = vdwg.mxu0
        %1551 = vmatprep.subr.bf16.mxu0 %v1451
        %1552 = vmatpush1.bf16.msra.mxu0 %v1450
        %1553 = vmatprep.subr.bf16.mxu0 0
        %1554 = vmatpush1.bf16.msra.mxu0 0
        %1555 = vmatprep.subr.bf16.mxu0 0
        %1556 = vmatpush1.bf16.msra.mxu0 0
        %1557 = vmatprep.subr.bf16.mxu0 0
        %1558 = vmatpush1.bf16.msra.mxu0 0
        %1559 = vmatprep.subr.bf16.mxu0 0
        %1560 = vmatpush1.bf16.msra.mxu0 0
        %1561 = vmatprep.subr.bf16.mxu0 0
        %1562 = vmatpush1.bf16.msra.mxu0 0
        %1563 = vmatprep.subr.bf16.mxu0 0
        %1564 = vmatpush1.bf16.msra.mxu0 0
        %1565 = vmatprep.subr.bf16.mxu0 0
        %1566 = vmatpush1.bf16.msra.mxu0 0
        %1567 = vmatprep.subr.bf16.mxu0 0
        %1568 = vmatpush1.bf16.msra.mxu0 0
        %1569 = vmatprep.subr.bf16.mxu0 0
        %1570 = vmatpush1.bf16.msra.mxu0 0
        %1571 = vmatprep.subr.bf16.mxu0 0
        %1572 = vmatpush1.bf16.msra.mxu0 0
        %1573 = vmatprep.subr.bf16.mxu0 0
        %1574 = vmatpush1.bf16.msra.mxu0 0
        %1575 = vmatprep.subr.bf16.mxu0 0
        %1576 = vmatpush1.bf16.msra.mxu0 0
        %1577 = vmatprep.subr.bf16.mxu0 0
        %1578 = vmatpush1.bf16.msra.mxu0 0
        %1579 = vmatprep.subr.bf16.mxu0 0
        %1580 = vmatpush1.bf16.msra.mxu0 0
        %1581 = vmatprep.subr.bf16.mxu0 0
        %1582 = vmatpush1.bf16.msra.mxu0 0
        %1583 = vmatprep.mubr.bf16.mxu0 0
        %1584 = vmatmul.mubr.bf16.gmra.mrb[0].mxu0 %v1463
        %v1585 = vpop.f32.mrb[0].mxu0
        %v1586 = vadd.f32 0.0, %v1585
        %v1587 = vpop.f32.mrb[0].mxu0
        %v1588 = vadd.f32 0.0, %v1587
        %v1589 = vpop.f32.mrb[0].mxu0
        %v1590 = vadd.f32 0.0, %v1589
        %v1591 = vpop.f32.mrb[0].mxu0
        %v1592 = vadd.f32 0.0, %v1591
        %1593 = vdwg.mxu0
        %1594 = vmatprep.subr.bf16.mxu0 %v1453
        %1595 = vmatpush1.bf16.msra.mxu0 %v1452
        %1596 = vmatprep.subr.bf16.mxu0 0
        %1597 = vmatpush1.bf16.msra.mxu0 0
        %1598 = vmatprep.subr.bf16.mxu0 0
        %1599 = vmatpush1.bf16.msra.mxu0 0
        %1600 = vmatprep.subr.bf16.mxu0 0
        %1601 = vmatpush1.bf16.msra.mxu0 0
        %1602 = vmatprep.subr.bf16.mxu0 0
        %1603 = vmatpush1.bf16.msra.mxu0 0
        %1604 = vmatprep.subr.bf16.mxu0 0
        %1605 = vmatpush1.bf16.msra.mxu0 0
        %1606 = vmatprep.subr.bf16.mxu0 0
        %1607 = vmatpush1.bf16.msra.mxu0 0
        %1608 = vmatprep.subr.bf16.mxu0 0
        %1609 = vmatpush1.bf16.msra.mxu0 0
        %1610 = vmatprep.subr.bf16.mxu0 0
        %1611 = vmatpush1.bf16.msra.mxu0 0
        %1612 = vmatprep.subr.bf16.mxu0 0
        %1613 = vmatpush1.bf16.msra.mxu0 0
        %1614 = vmatprep.subr.bf16.mxu0 0
        %1615 = vmatpush1.bf16.msra.mxu0 0
        %1616 = vmatprep.subr.bf16.mxu0 0
        %1617 = vmatpush1.bf16.msra.mxu0 0
        %1618 = vmatprep.subr.bf16.mxu0 0
        %1619 = vmatpush1.bf16.msra.mxu0 0
        %1620 = vmatprep.subr.bf16.mxu0 0
        %1621 = vmatpush1.bf16.msra.mxu0 0
        %1622 = vmatprep.subr.bf16.mxu0 0
        %1623 = vmatpush1.bf16.msra.mxu0 0
        %1624 = vmatprep.subr.bf16.mxu0 0
        %1625 = vmatpush1.bf16.msra.mxu0 0
        %1626 = vmatprep.mubr.bf16.mxu0 0
        %1627 = vmatmul.mubr.bf16.gmra.mrb[0].mxu0 %v1463
        %v1628 = vpop.f32.mrb[0].mxu0
        %v1629 = vadd.f32 0.0, %v1628
        %v1630 = vpop.f32.mrb[0].mxu0
        %v1631 = vadd.f32 0.0, %v1630
        %v1632 = vpop.f32.mrb[0].mxu0
        %v1633 = vadd.f32 0.0, %v1632
        %v1634 = vpop.f32.mrb[0].mxu0
        %v1635 = vadd.f32 0.0, %v1634
        %1636 = vdwg.mxu0
        %v1637 = vadd.f32 %v1403, %v1500
        %v1638 = vadd.f32 %v1404, %v1502
        %v1639 = vadd.f32 %v1405, %v1543
        %v1640 = vadd.f32 %v1406, %v1545
        %v1641 = vadd.f32 %v1407, %v1586
        %v1642 = vadd.f32 %v1408, %v1588
        %v1643 = vadd.f32 %v1409, %v1629
        %v1644 = vadd.f32 %v1410, %v1631
        %v1645 = vadd.f32 %v1411, %v1504
        %v1646 = vadd.f32 %v1412, %v1506
        %v1647 = vadd.f32 %v1413, %v1547
        %v1648 = vadd.f32 %v1414, %v1549
        %v1649 = vadd.f32 %v1415, %v1590
        %v1650 = vadd.f32 %v1416, %v1592
        %v1651 = vadd.f32 %v1417, %v1633
        %v1652 = vadd.f32 %v1418, %v1635
        %s1653 = scalar_lea.vmem %s0, 48
        %v1654 = vld [vmem:[%s1653] sm:$0xf]
        %v1655 = vld [vmem:[%s1653 + $0x4] sm:$0xf]
        %v1658 = vunpack.c.l.b16 %v1654
        %v1659 = vunpack.c.l.b16 %v1655
        %v1660 = vpack.c.b16 %v1659, %v1658
        %1661 = vrot.lane.b32.xlu0 %v265, 51
        %v1662 = vpop.permute.xlu0 %1661
        %1663 = vrot.lane.b32.xlu0 %v266, 51
        %v1664 = vpop.permute.xlu0 %1663
        %1665 = vrot.lane.b32.xlu0 %v267, 51
        %v1666 = vpop.permute.xlu0 %1665
        %1667 = vrot.lane.b32.xlu0 %v268, 51
        %v1668 = vpop.permute.xlu0 %1667
        %1669 = vrot.lane.b32.xlu0 %v269, 51
        %v1670 = vpop.permute.xlu0 %1669
        %1671 = vrot.lane.b32.xlu0 %v270, 51
        %v1672 = vpop.permute.xlu0 %1671
        %1673 = vrot.lane.b32.xlu0 %v271, 51
        %v1674 = vpop.permute.xlu0 %1673
        %1675 = vrot.lane.b32.xlu0 %v272, 51
        %v1676 = vpop.permute.xlu0 %1675
        %1677 = vrot.lane.b32.xlu0 %v273, 51
        %v1678 = vpop.permute.xlu0 %1677
        %vm1679 = vcmask 416768
        %v1680 = vsel %vm1679, %v1662, %v1664
        %v1681 = vsel %vm1679, %v1664, %v1666
        %v1682 = vsel %vm1679, %v1666, %v1668
        %v1683 = vsel %vm1679, %v1668, %v1670
        %v1684 = vsel %vm1679, %v1670, %v1672
        %v1685 = vsel %vm1679, %v1672, %v1674
        %v1686 = vsel %vm1679, %v1674, %v1676
        %v1687 = vsel %vm1679, %v1676, %v1678
        %v1697 = vsel %vm326, %v1660, 0
        %1699 = vmatprep.subr.bf16.mxu0 %v1681
        %1700 = vmatpush1.bf16.msra.mxu0 %v1680
        %1701 = vmatprep.subr.bf16.mxu0 0
        %1702 = vmatpush1.bf16.msra.mxu0 0
        %1703 = vmatprep.subr.bf16.mxu0 0
        %1704 = vmatpush1.bf16.msra.mxu0 0
        %1705 = vmatprep.subr.bf16.mxu0 0
        %1706 = vmatpush1.bf16.msra.mxu0 0
        %1707 = vmatprep.subr.bf16.mxu0 0
        %1708 = vmatpush1.bf16.msra.mxu0 0
        %1709 = vmatprep.subr.bf16.mxu0 0
        %1710 = vmatpush1.bf16.msra.mxu0 0
        %1711 = vmatprep.subr.bf16.mxu0 0
        %1712 = vmatpush1.bf16.msra.mxu0 0
        %1713 = vmatprep.subr.bf16.mxu0 0
        %1714 = vmatpush1.bf16.msra.mxu0 0
        %1715 = vmatprep.subr.bf16.mxu0 0
        %1716 = vmatpush1.bf16.msra.mxu0 0
        %1717 = vmatprep.subr.bf16.mxu0 0
        %1718 = vmatpush1.bf16.msra.mxu0 0
        %1719 = vmatprep.subr.bf16.mxu0 0
        %1720 = vmatpush1.bf16.msra.mxu0 0
        %1721 = vmatprep.subr.bf16.mxu0 0
        %1722 = vmatpush1.bf16.msra.mxu0 0
        %1723 = vmatprep.subr.bf16.mxu0 0
        %1724 = vmatpush1.bf16.msra.mxu0 0
        %1725 = vmatprep.subr.bf16.mxu0 0
        %1726 = vmatpush1.bf16.msra.mxu0 0
        %1727 = vmatprep.subr.bf16.mxu0 0
        %1728 = vmatpush1.bf16.msra.mxu0 0
        %1729 = vmatprep.subr.bf16.mxu0 0
        %1730 = vmatpush1.bf16.msra.mxu0 0
        %1731 = vmatprep.mubr.bf16.mxu0 0
        %1732 = vmatmul.mubr.bf16.gmra.mrb[0].mxu0 %v1697
        %v1733 = vpop.f32.mrb[0].mxu0
        %v1734 = vadd.f32 0.0, %v1733
        %v1735 = vpop.f32.mrb[0].mxu0
        %v1736 = vadd.f32 0.0, %v1735
        %v1737 = vpop.f32.mrb[0].mxu0
        %v1738 = vadd.f32 0.0, %v1737
        %v1739 = vpop.f32.mrb[0].mxu0
        %v1740 = vadd.f32 0.0, %v1739
        %1741 = vdwg.mxu0
        %1742 = vmatprep.subr.bf16.mxu0 %v1683
        %1743 = vmatpush1.bf16.msra.mxu0 %v1682
        %1744 = vmatprep.subr.bf16.mxu0 0
        %1745 = vmatpush1.bf16.msra.mxu0 0
        %1746 = vmatprep.subr.bf16.mxu0 0
        %1747 = vmatpush1.bf16.msra.mxu0 0
        %1748 = vmatprep.subr.bf16.mxu0 0
        %1749 = vmatpush1.bf16.msra.mxu0 0
        %1750 = vmatprep.subr.bf16.mxu0 0
        %1751 = vmatpush1.bf16.msra.mxu0 0
        %1752 = vmatprep.subr.bf16.mxu0 0
        %1753 = vmatpush1.bf16.msra.mxu0 0
        %1754 = vmatprep.subr.bf16.mxu0 0
        %1755 = vmatpush1.bf16.msra.mxu0 0
        %1756 = vmatprep.subr.bf16.mxu0 0
        %1757 = vmatpush1.bf16.msra.mxu0 0
        %1758 = vmatprep.subr.bf16.mxu0 0
        %1759 = vmatpush1.bf16.msra.mxu0 0
        %1760 = vmatprep.subr.bf16.mxu0 0
        %1761 = vmatpush1.bf16.msra.mxu0 0
        %1762 = vmatprep.subr.bf16.mxu0 0
        %1763 = vmatpush1.bf16.msra.mxu0 0
        %1764 = vmatprep.subr.bf16.mxu0 0
        %1765 = vmatpush1.bf16.msra.mxu0 0
        %1766 = vmatprep.subr.bf16.mxu0 0
        %1767 = vmatpush1.bf16.msra.mxu0 0
        %1768 = vmatprep.subr.bf16.mxu0 0
        %1769 = vmatpush1.bf16.msra.mxu0 0
        %1770 = vmatprep.subr.bf16.mxu0 0
        %1771 = vmatpush1.bf16.msra.mxu0 0
        %1772 = vmatprep.subr.bf16.mxu0 0
        %1773 = vmatpush1.bf16.msra.mxu0 0
        %1774 = vmatprep.mubr.bf16.mxu0 0
        %1775 = vmatmul.mubr.bf16.gmra.mrb[0].mxu0 %v1697
        %v1776 = vpop.f32.mrb[0].mxu0
        %v1777 = vadd.f32 0.0, %v1776
        %v1778 = vpop.f32.mrb[0].mxu0
        %v1779 = vadd.f32 0.0, %v1778
        %v1780 = vpop.f32.mrb[0].mxu0
        %v1781 = vadd.f32 0.0, %v1780
        %v1782 = vpop.f32.mrb[0].mxu0
        %v1783 = vadd.f32 0.0, %v1782
        %1784 = vdwg.mxu0
        %1785 = vmatprep.subr.bf16.mxu0 %v1685
        %1786 = vmatpush1.bf16.msra.mxu0 %v1684
        %1787 = vmatprep.subr.bf16.mxu0 0
        %1788 = vmatpush1.bf16.msra.mxu0 0
        %1789 = vmatprep.subr.bf16.mxu0 0
        %1790 = vmatpush1.bf16.msra.mxu0 0
        %1791 = vmatprep.subr.bf16.mxu0 0
        %1792 = vmatpush1.bf16.msra.mxu0 0
        %1793 = vmatprep.subr.bf16.mxu0 0
        %1794 = vmatpush1.bf16.msra.mxu0 0
        %1795 = vmatprep.subr.bf16.mxu0 0
        %1796 = vmatpush1.bf16.msra.mxu0 0
        %1797 = vmatprep.subr.bf16.mxu0 0
        %1798 = vmatpush1.bf16.msra.mxu0 0
        %1799 = vmatprep.subr.bf16.mxu0 0
        %1800 = vmatpush1.bf16.msra.mxu0 0
        %1801 = vmatprep.subr.bf16.mxu0 0
        %1802 = vmatpush1.bf16.msra.mxu0 0
        %1803 = vmatprep.subr.bf16.mxu0 0
        %1804 = vmatpush1.bf16.msra.mxu0 0
        %1805 = vmatprep.subr.bf16.mxu0 0
        %1806 = vmatpush1.bf16.msra.mxu0 0
        %1807 = vmatprep.subr.bf16.mxu0 0
        %1808 = vmatpush1.bf16.msra.mxu0 0
        %1809 = vmatprep.subr.bf16.mxu0 0
        %1810 = vmatpush1.bf16.msra.mxu0 0
        %1811 = vmatprep.subr.bf16.mxu0 0
        %1812 = vmatpush1.bf16.msra.mxu0 0
        %1813 = vmatprep.subr.bf16.mxu0 0
        %1814 = vmatpush1.bf16.msra.mxu0 0
        %1815 = vmatprep.subr.bf16.mxu0 0
        %1816 = vmatpush1.bf16.msra.mxu0 0
        %1817 = vmatprep.mubr.bf16.mxu0 0
        %1818 = vmatmul.mubr.bf16.gmra.mrb[0].mxu0 %v1697
        %v1819 = vpop.f32.mrb[0].mxu0
        %v1820 = vadd.f32 0.0, %v1819
        %v1821 = vpop.f32.mrb[0].mxu0
        %v1822 = vadd.f32 0.0, %v1821
        %v1823 = vpop.f32.mrb[0].mxu0
        %v1824 = vadd.f32 0.0, %v1823
        %v1825 = vpop.f32.mrb[0].mxu0
        %v1826 = vadd.f32 0.0, %v1825
        %1827 = vdwg.mxu0
        %1828 = vmatprep.subr.bf16.mxu0 %v1687
        %1829 = vmatpush1.bf16.msra.mxu0 %v1686
        %1830 = vmatprep.subr.bf16.mxu0 0
        %1831 = vmatpush1.bf16.msra.mxu0 0
        %1832 = vmatprep.subr.bf16.mxu0 0
        %1833 = vmatpush1.bf16.msra.mxu0 0
        %1834 = vmatprep.subr.bf16.mxu0 0
        %1835 = vmatpush1.bf16.msra.mxu0 0
        %1836 = vmatprep.subr.bf16.mxu0 0
        %1837 = vmatpush1.bf16.msra.mxu0 0
        %1838 = vmatprep.subr.bf16.mxu0 0
        %1839 = vmatpush1.bf16.msra.mxu0 0
        %1840 = vmatprep.subr.bf16.mxu0 0
        %1841 = vmatpush1.bf16.msra.mxu0 0
        %1842 = vmatprep.subr.bf16.mxu0 0
        %1843 = vmatpush1.bf16.msra.mxu0 0
        %1844 = vmatprep.subr.bf16.mxu0 0
        %1845 = vmatpush1.bf16.msra.mxu0 0
        %1846 = vmatprep.subr.bf16.mxu0 0
        %1847 = vmatpush1.bf16.msra.mxu0 0
        %1848 = vmatprep.subr.bf16.mxu0 0
        %1849 = vmatpush1.bf16.msra.mxu0 0
        %1850 = vmatprep.subr.bf16.mxu0 0
        %1851 = vmatpush1.bf16.msra.mxu0 0
        %1852 = vmatprep.subr.bf16.mxu0 0
        %1853 = vmatpush1.bf16.msra.mxu0 0
        %1854 = vmatprep.subr.bf16.mxu0 0
        %1855 = vmatpush1.bf16.msra.mxu0 0
        %1856 = vmatprep.subr.bf16.mxu0 0
        %1857 = vmatpush1.bf16.msra.mxu0 0
        %1858 = vmatprep.subr.bf16.mxu0 0
        %1859 = vmatpush1.bf16.msra.mxu0 0
        %1860 = vmatprep.mubr.bf16.mxu0 0
        %1861 = vmatmul.mubr.bf16.gmra.mrb[0].mxu0 %v1697
        %v1862 = vpop.f32.mrb[0].mxu0
        %v1863 = vadd.f32 0.0, %v1862
        %v1864 = vpop.f32.mrb[0].mxu0
        %v1865 = vadd.f32 0.0, %v1864
        %v1866 = vpop.f32.mrb[0].mxu0
        %v1867 = vadd.f32 0.0, %v1866
        %v1868 = vpop.f32.mrb[0].mxu0
        %v1869 = vadd.f32 0.0, %v1868
        %1870 = vdwg.mxu0
        %v1871 = vadd.f32 %v1637, %v1734
        %v1872 = vadd.f32 %v1638, %v1736
        %v1873 = vadd.f32 %v1639, %v1777
        %v1874 = vadd.f32 %v1640, %v1779
        %v1875 = vadd.f32 %v1641, %v1820
        %v1876 = vadd.f32 %v1642, %v1822
        %v1877 = vadd.f32 %v1643, %v1863
        %v1878 = vadd.f32 %v1644, %v1865
        %v1879 = vadd.f32 %v1645, %v1738
        %v1880 = vadd.f32 %v1646, %v1740
        %v1881 = vadd.f32 %v1647, %v1781
        %v1882 = vadd.f32 %v1648, %v1783
        %v1883 = vadd.f32 %v1649, %v1824
        %v1884 = vadd.f32 %v1650, %v1826
        %v1885 = vadd.f32 %v1651, %v1867
        %v1886 = vadd.f32 %v1652, %v1869
        %s1887 = scalar_lea.vmem %s0, 56
        %v1888 = vld [vmem:[%s1887] sm:$0xf]
        %v1889 = vld [vmem:[%s1887 + $0x4] sm:$0xf]
        %v1892 = vunpack.c.l.b16 %v1888
        %v1893 = vunpack.c.l.b16 %v1889
        %v1894 = vpack.c.b16 %v1893, %v1892
        %1895 = vrot.lane.b32.xlu0 %v265, 50
        %v1896 = vpop.permute.xlu0 %1895
        %1897 = vrot.lane.b32.xlu0 %v266, 50
        %v1898 = vpop.permute.xlu0 %1897
        %1899 = vrot.lane.b32.xlu0 %v267, 50
        %v1900 = vpop.permute.xlu0 %1899
        %1901 = vrot.lane.b32.xlu0 %v268, 50
        %v1902 = vpop.permute.xlu0 %1901
        %1903 = vrot.lane.b32.xlu0 %v269, 50
        %v1904 = vpop.permute.xlu0 %1903
        %1905 = vrot.lane.b32.xlu0 %v270, 50
        %v1906 = vpop.permute.xlu0 %1905
        %1907 = vrot.lane.b32.xlu0 %v271, 50
        %v1908 = vpop.permute.xlu0 %1907
        %1909 = vrot.lane.b32.xlu0 %v272, 50
        %v1910 = vpop.permute.xlu0 %1909
        %1911 = vrot.lane.b32.xlu0 %v273, 50
        %v1912 = vpop.permute.xlu0 %1911
        %vm1913 = vcmask 408576
        %v1914 = vsel %vm1913, %v1896, %v1898
        %v1915 = vsel %vm1913, %v1898, %v1900
        %v1916 = vsel %vm1913, %v1900, %v1902
        %v1917 = vsel %vm1913, %v1902, %v1904
        %v1918 = vsel %vm1913, %v1904, %v1906
        %v1919 = vsel %vm1913, %v1906, %v1908
        %v1920 = vsel %vm1913, %v1908, %v1910
        %v1921 = vsel %vm1913, %v1910, %v1912
        %v1931 = vsel %vm326, %v1894, 0
        %1933 = vmatprep.subr.bf16.mxu0 %v1915
        %1934 = vmatpush1.bf16.msra.mxu0 %v1914
        %1935 = vmatprep.subr.bf16.mxu0 0
        %1936 = vmatpush1.bf16.msra.mxu0 0
        %1937 = vmatprep.subr.bf16.mxu0 0
        %1938 = vmatpush1.bf16.msra.mxu0 0
        %1939 = vmatprep.subr.bf16.mxu0 0
        %1940 = vmatpush1.bf16.msra.mxu0 0
        %1941 = vmatprep.subr.bf16.mxu0 0
        %1942 = vmatpush1.bf16.msra.mxu0 0
        %1943 = vmatprep.subr.bf16.mxu0 0
        %1944 = vmatpush1.bf16.msra.mxu0 0
        %1945 = vmatprep.subr.bf16.mxu0 0
        %1946 = vmatpush1.bf16.msra.mxu0 0
        %1947 = vmatprep.subr.bf16.mxu0 0
        %1948 = vmatpush1.bf16.msra.mxu0 0
        %1949 = vmatprep.subr.bf16.mxu0 0
        %1950 = vmatpush1.bf16.msra.mxu0 0
        %1951 = vmatprep.subr.bf16.mxu0 0
        %1952 = vmatpush1.bf16.msra.mxu0 0
        %1953 = vmatprep.subr.bf16.mxu0 0
        %1954 = vmatpush1.bf16.msra.mxu0 0
        %1955 = vmatprep.subr.bf16.mxu0 0
        %1956 = vmatpush1.bf16.msra.mxu0 0
        %1957 = vmatprep.subr.bf16.mxu0 0
        %1958 = vmatpush1.bf16.msra.mxu0 0
        %1959 = vmatprep.subr.bf16.mxu0 0
        %1960 = vmatpush1.bf16.msra.mxu0 0
        %1961 = vmatprep.subr.bf16.mxu0 0
        %1962 = vmatpush1.bf16.msra.mxu0 0
        %1963 = vmatprep.subr.bf16.mxu0 0
        %1964 = vmatpush1.bf16.msra.mxu0 0
        %1965 = vmatprep.mubr.bf16.mxu0 0
        %1966 = vmatmul.mubr.bf16.gmra.mrb[0].mxu0 %v1931
        %v1967 = vpop.f32.mrb[0].mxu0
        %v1968 = vadd.f32 0.0, %v1967
        %v1969 = vpop.f32.mrb[0].mxu0
        %v1970 = vadd.f32 0.0, %v1969
        %v1971 = vpop.f32.mrb[0].mxu0
        %v1972 = vadd.f32 0.0, %v1971
        %v1973 = vpop.f32.mrb[0].mxu0
        %v1974 = vadd.f32 0.0, %v1973
        %1975 = vdwg.mxu0
        %1976 = vmatprep.subr.bf16.mxu0 %v1917
        %1977 = vmatpush1.bf16.msra.mxu0 %v1916
        %1978 = vmatprep.subr.bf16.mxu0 0
        %1979 = vmatpush1.bf16.msra.mxu0 0
        %1980 = vmatprep.subr.bf16.mxu0 0
        %1981 = vmatpush1.bf16.msra.mxu0 0
        %1982 = vmatprep.subr.bf16.mxu0 0
        %1983 = vmatpush1.bf16.msra.mxu0 0
        %1984 = vmatprep.subr.bf16.mxu0 0
        %1985 = vmatpush1.bf16.msra.mxu0 0
        %1986 = vmatprep.subr.bf16.mxu0 0
        %1987 = vmatpush1.bf16.msra.mxu0 0
        %1988 = vmatprep.subr.bf16.mxu0 0
        %1989 = vmatpush1.bf16.msra.mxu0 0
        %1990 = vmatprep.subr.bf16.mxu0 0
        %1991 = vmatpush1.bf16.msra.mxu0 0
        %1992 = vmatprep.subr.bf16.mxu0 0
        %1993 = vmatpush1.bf16.msra.mxu0 0
        %1994 = vmatprep.subr.bf16.mxu0 0
        %1995 = vmatpush1.bf16.msra.mxu0 0
        %1996 = vmatprep.subr.bf16.mxu0 0
        %1997 = vmatpush1.bf16.msra.mxu0 0
        %1998 = vmatprep.subr.bf16.mxu0 0
        %1999 = vmatpush1.bf16.msra.mxu0 0
        %2000 = vmatprep.subr.bf16.mxu0 0
        %2001 = vmatpush1.bf16.msra.mxu0 0
        %2002 = vmatprep.subr.bf16.mxu0 0
        %2003 = vmatpush1.bf16.msra.mxu0 0
        %2004 = vmatprep.subr.bf16.mxu0 0
        %2005 = vmatpush1.bf16.msra.mxu0 0
        %2006 = vmatprep.subr.bf16.mxu0 0
        %2007 = vmatpush1.bf16.msra.mxu0 0
        %2008 = vmatprep.mubr.bf16.mxu0 0
        %2009 = vmatmul.mubr.bf16.gmra.mrb[0].mxu0 %v1931
        %v2010 = vpop.f32.mrb[0].mxu0
        %v2011 = vadd.f32 0.0, %v2010
        %v2012 = vpop.f32.mrb[0].mxu0
        %v2013 = vadd.f32 0.0, %v2012
        %v2014 = vpop.f32.mrb[0].mxu0
        %v2015 = vadd.f32 0.0, %v2014
        %v2016 = vpop.f32.mrb[0].mxu0
        %v2017 = vadd.f32 0.0, %v2016
        %2018 = vdwg.mxu0
        %2019 = vmatprep.subr.bf16.mxu0 %v1919
        %2020 = vmatpush1.bf16.msra.mxu0 %v1918
        %2021 = vmatprep.subr.bf16.mxu0 0
        %2022 = vmatpush1.bf16.msra.mxu0 0
        %2023 = vmatprep.subr.bf16.mxu0 0
        %2024 = vmatpush1.bf16.msra.mxu0 0
        %2025 = vmatprep.subr.bf16.mxu0 0
        %2026 = vmatpush1.bf16.msra.mxu0 0
        %2027 = vmatprep.subr.bf16.mxu0 0
        %2028 = vmatpush1.bf16.msra.mxu0 0
        %2029 = vmatprep.subr.bf16.mxu0 0
        %2030 = vmatpush1.bf16.msra.mxu0 0
        %2031 = vmatprep.subr.bf16.mxu0 0
        %2032 = vmatpush1.bf16.msra.mxu0 0
        %2033 = vmatprep.subr.bf16.mxu0 0
        %2034 = vmatpush1.bf16.msra.mxu0 0
        %2035 = vmatprep.subr.bf16.mxu0 0
        %2036 = vmatpush1.bf16.msra.mxu0 0
        %2037 = vmatprep.subr.bf16.mxu0 0
        %2038 = vmatpush1.bf16.msra.mxu0 0
        %2039 = vmatprep.subr.bf16.mxu0 0
        %2040 = vmatpush1.bf16.msra.mxu0 0
        %2041 = vmatprep.subr.bf16.mxu0 0
        %2042 = vmatpush1.bf16.msra.mxu0 0
        %2043 = vmatprep.subr.bf16.mxu0 0
        %2044 = vmatpush1.bf16.msra.mxu0 0
        %2045 = vmatprep.subr.bf16.mxu0 0
        %2046 = vmatpush1.bf16.msra.mxu0 0
        %2047 = vmatprep.subr.bf16.mxu0 0
        %2048 = vmatpush1.bf16.msra.mxu0 0
        %2049 = vmatprep.subr.bf16.mxu0 0
        %2050 = vmatpush1.bf16.msra.mxu0 0
        %2051 = vmatprep.mubr.bf16.mxu0 0
        %2052 = vmatmul.mubr.bf16.gmra.mrb[0].mxu0 %v1931
        %v2053 = vpop.f32.mrb[0].mxu0
        %v2054 = vadd.f32 0.0, %v2053
        %v2055 = vpop.f32.mrb[0].mxu0
        %v2056 = vadd.f32 0.0, %v2055
        %v2057 = vpop.f32.mrb[0].mxu0
        %v2058 = vadd.f32 0.0, %v2057
        %v2059 = vpop.f32.mrb[0].mxu0
        %v2060 = vadd.f32 0.0, %v2059
        %2061 = vdwg.mxu0
        %2062 = vmatprep.subr.bf16.mxu0 %v1921
        %2063 = vmatpush1.bf16.msra.mxu0 %v1920
        %2064 = vmatprep.subr.bf16.mxu0 0
        %2065 = vmatpush1.bf16.msra.mxu0 0
        %2066 = vmatprep.subr.bf16.mxu0 0
        %2067 = vmatpush1.bf16.msra.mxu0 0
        %2068 = vmatprep.subr.bf16.mxu0 0
        %2069 = vmatpush1.bf16.msra.mxu0 0
        %2070 = vmatprep.subr.bf16.mxu0 0
        %2071 = vmatpush1.bf16.msra.mxu0 0
        %2072 = vmatprep.subr.bf16.mxu0 0
        %2073 = vmatpush1.bf16.msra.mxu0 0
        %2074 = vmatprep.subr.bf16.mxu0 0
        %2075 = vmatpush1.bf16.msra.mxu0 0
        %2076 = vmatprep.subr.bf16.mxu0 0
        %2077 = vmatpush1.bf16.msra.mxu0 0
        %2078 = vmatprep.subr.bf16.mxu0 0
        %2079 = vmatpush1.bf16.msra.mxu0 0
        %2080 = vmatprep.subr.bf16.mxu0 0
        %2081 = vmatpush1.bf16.msra.mxu0 0
        %2082 = vmatprep.subr.bf16.mxu0 0
        %2083 = vmatpush1.bf16.msra.mxu0 0
        %2084 = vmatprep.subr.bf16.mxu0 0
        %2085 = vmatpush1.bf16.msra.mxu0 0
        %2086 = vmatprep.subr.bf16.mxu0 0
        %2087 = vmatpush1.bf16.msra.mxu0 0
        %2088 = vmatprep.subr.bf16.mxu0 0
        %2089 = vmatpush1.bf16.msra.mxu0 0
        %2090 = vmatprep.subr.bf16.mxu0 0
        %2091 = vmatpush1.bf16.msra.mxu0 0
        %2092 = vmatprep.subr.bf16.mxu0 0
        %2093 = vmatpush1.bf16.msra.mxu0 0
        %2094 = vmatprep.mubr.bf16.mxu0 0
        %2095 = vmatmul.mubr.bf16.gmra.mrb[0].mxu0 %v1931
        %v2096 = vpop.f32.mrb[0].mxu0
        %v2097 = vadd.f32 0.0, %v2096
        %v2098 = vpop.f32.mrb[0].mxu0
        %v2099 = vadd.f32 0.0, %v2098
        %v2100 = vpop.f32.mrb[0].mxu0
        %v2101 = vadd.f32 0.0, %v2100
        %v2102 = vpop.f32.mrb[0].mxu0
        %v2103 = vadd.f32 0.0, %v2102
        %2104 = vdwg.mxu0
        %v2105 = vadd.f32 %v1871, %v1968
        %v2106 = vadd.f32 %v1872, %v1970
        %v2107 = vadd.f32 %v1873, %v2011
        %v2108 = vadd.f32 %v1874, %v2013
        %v2109 = vadd.f32 %v1875, %v2054
        %v2110 = vadd.f32 %v1876, %v2056
        %v2111 = vadd.f32 %v1877, %v2097
        %v2112 = vadd.f32 %v1878, %v2099
        %v2113 = vadd.f32 %v1879, %v1972
        %v2114 = vadd.f32 %v1880, %v1974
        %v2115 = vadd.f32 %v1881, %v2015
        %v2116 = vadd.f32 %v1882, %v2017
        %v2117 = vadd.f32 %v1883, %v2058
        %v2118 = vadd.f32 %v1884, %v2060
        %v2119 = vadd.f32 %v1885, %v2101
        %v2120 = vadd.f32 %v1886, %v2103
        %s2121 = scalar_lea.vmem %s0, 64
        %v2122 = vld [vmem:[%s2121] sm:$0xf]
        %v2123 = vld [vmem:[%s2121 + $0x4] sm:$0xf]
        %v2126 = vunpack.c.l.b16 %v2122
        %v2127 = vunpack.c.l.b16 %v2123
        %v2128 = vpack.c.b16 %v2127, %v2126
        %2129 = vrot.lane.b32.xlu0 %v265, 49
        %v2130 = vpop.permute.xlu0 %2129
        %2131 = vrot.lane.b32.xlu0 %v266, 49
        %v2132 = vpop.permute.xlu0 %2131
        %2133 = vrot.lane.b32.xlu0 %v267, 49
        %v2134 = vpop.permute.xlu0 %2133
        %2135 = vrot.lane.b32.xlu0 %v268, 49
        %v2136 = vpop.permute.xlu0 %2135
        %2137 = vrot.lane.b32.xlu0 %v269, 49
        %v2138 = vpop.permute.xlu0 %2137
        %2139 = vrot.lane.b32.xlu0 %v270, 49
        %v2140 = vpop.permute.xlu0 %2139
        %2141 = vrot.lane.b32.xlu0 %v271, 49
        %v2142 = vpop.permute.xlu0 %2141
        %2143 = vrot.lane.b32.xlu0 %v272, 49
        %v2144 = vpop.permute.xlu0 %2143
        %2145 = vrot.lane.b32.xlu0 %v273, 49
        %v2146 = vpop.permute.xlu0 %2145
        %vm2147 = vcmask 400384
        %v2148 = vsel %vm2147, %v2130, %v2132
        %v2149 = vsel %vm2147, %v2132, %v2134
        %v2150 = vsel %vm2147, %v2134, %v2136
        %v2151 = vsel %vm2147, %v2136, %v2138
        %v2152 = vsel %vm2147, %v2138, %v2140
        %v2153 = vsel %vm2147, %v2140, %v2142
        %v2154 = vsel %vm2147, %v2142, %v2144
        %v2155 = vsel %vm2147, %v2144, %v2146
        %v2165 = vsel %vm326, %v2128, 0
        %2167 = vmatprep.subr.bf16.mxu0 %v2149
        %2168 = vmatpush1.bf16.msra.mxu0 %v2148
        %2169 = vmatprep.subr.bf16.mxu0 0
        %2170 = vmatpush1.bf16.msra.mxu0 0
        %2171 = vmatprep.subr.bf16.mxu0 0
        %2172 = vmatpush1.bf16.msra.mxu0 0
        %2173 = vmatprep.subr.bf16.mxu0 0
        %2174 = vmatpush1.bf16.msra.mxu0 0
        %2175 = vmatprep.subr.bf16.mxu0 0
        %2176 = vmatpush1.bf16.msra.mxu0 0
        %2177 = vmatprep.subr.bf16.mxu0 0
        %2178 = vmatpush1.bf16.msra.mxu0 0
        %2179 = vmatprep.subr.bf16.mxu0 0
        %2180 = vmatpush1.bf16.msra.mxu0 0
        %2181 = vmatprep.subr.bf16.mxu0 0
        %2182 = vmatpush1.bf16.msra.mxu0 0
        %2183 = vmatprep.subr.bf16.mxu0 0
        %2184 = vmatpush1.bf16.msra.mxu0 0
        %2185 = vmatprep.subr.bf16.mxu0 0
        %2186 = vmatpush1.bf16.msra.mxu0 0
        %2187 = vmatprep.subr.bf16.mxu0 0
        %2188 = vmatpush1.bf16.msra.mxu0 0
        %2189 = vmatprep.subr.bf16.mxu0 0
        %2190 = vmatpush1.bf16.msra.mxu0 0
        %2191 = vmatprep.subr.bf16.mxu0 0
        %2192 = vmatpush1.bf16.msra.mxu0 0
        %2193 = vmatprep.subr.bf16.mxu0 0
        %2194 = vmatpush1.bf16.msra.mxu0 0
        %2195 = vmatprep.subr.bf16.mxu0 0
        %2196 = vmatpush1.bf16.msra.mxu0 0
        %2197 = vmatprep.subr.bf16.mxu0 0
        %2198 = vmatpush1.bf16.msra.mxu0 0
        %2199 = vmatprep.mubr.bf16.mxu0 0
        %2200 = vmatmul.mubr.bf16.gmra.mrb[0].mxu0 %v2165
        %v2201 = vpop.f32.mrb[0].mxu0
        %v2202 = vadd.f32 0.0, %v2201
        %v2203 = vpop.f32.mrb[0].mxu0
        %v2204 = vadd.f32 0.0, %v2203
        %v2205 = vpop.f32.mrb[0].mxu0
        %v2206 = vadd.f32 0.0, %v2205
        %v2207 = vpop.f32.mrb[0].mxu0
        %v2208 = vadd.f32 0.0, %v2207
        %2209 = vdwg.mxu0
        %2210 = vmatprep.subr.bf16.mxu0 %v2151
        %2211 = vmatpush1.bf16.msra.mxu0 %v2150
        %2212 = vmatprep.subr.bf16.mxu0 0
        %2213 = vmatpush1.bf16.msra.mxu0 0
        %2214 = vmatprep.subr.bf16.mxu0 0
        %2215 = vmatpush1.bf16.msra.mxu0 0
        %2216 = vmatprep.subr.bf16.mxu0 0
        %2217 = vmatpush1.bf16.msra.mxu0 0
        %2218 = vmatprep.subr.bf16.mxu0 0
        %2219 = vmatpush1.bf16.msra.mxu0 0
        %2220 = vmatprep.subr.bf16.mxu0 0
        %2221 = vmatpush1.bf16.msra.mxu0 0
        %2222 = vmatprep.subr.bf16.mxu0 0
        %2223 = vmatpush1.bf16.msra.mxu0 0
        %2224 = vmatprep.subr.bf16.mxu0 0
        %2225 = vmatpush1.bf16.msra.mxu0 0
        %2226 = vmatprep.subr.bf16.mxu0 0
        %2227 = vmatpush1.bf16.msra.mxu0 0
        %2228 = vmatprep.subr.bf16.mxu0 0
        %2229 = vmatpush1.bf16.msra.mxu0 0
        %2230 = vmatprep.subr.bf16.mxu0 0
        %2231 = vmatpush1.bf16.msra.mxu0 0
        %2232 = vmatprep.subr.bf16.mxu0 0
        %2233 = vmatpush1.bf16.msra.mxu0 0
        %2234 = vmatprep.subr.bf16.mxu0 0
        %2235 = vmatpush1.bf16.msra.mxu0 0
        %2236 = vmatprep.subr.bf16.mxu0 0
        %2237 = vmatpush1.bf16.msra.mxu0 0
        %2238 = vmatprep.subr.bf16.mxu0 0
        %2239 = vmatpush1.bf16.msra.mxu0 0
        %2240 = vmatprep.subr.bf16.mxu0 0
        %2241 = vmatpush1.bf16.msra.mxu0 0
        %2242 = vmatprep.mubr.bf16.mxu0 0
        %2243 = vmatmul.mubr.bf16.gmra.mrb[0].mxu0 %v2165
        %v2244 = vpop.f32.mrb[0].mxu0
        %v2245 = vadd.f32 0.0, %v2244
        %v2246 = vpop.f32.mrb[0].mxu0
        %v2247 = vadd.f32 0.0, %v2246
        %v2248 = vpop.f32.mrb[0].mxu0
        %v2249 = vadd.f32 0.0, %v2248
        %v2250 = vpop.f32.mrb[0].mxu0
        %v2251 = vadd.f32 0.0, %v2250
        %2252 = vdwg.mxu0
        %2253 = vmatprep.subr.bf16.mxu0 %v2153
        %2254 = vmatpush1.bf16.msra.mxu0 %v2152
        %2255 = vmatprep.subr.bf16.mxu0 0
        %2256 = vmatpush1.bf16.msra.mxu0 0
        %2257 = vmatprep.subr.bf16.mxu0 0
        %2258 = vmatpush1.bf16.msra.mxu0 0
        %2259 = vmatprep.subr.bf16.mxu0 0
        %2260 = vmatpush1.bf16.msra.mxu0 0
        %2261 = vmatprep.subr.bf16.mxu0 0
        %2262 = vmatpush1.bf16.msra.mxu0 0
        %2263 = vmatprep.subr.bf16.mxu0 0
        %2264 = vmatpush1.bf16.msra.mxu0 0
        %2265 = vmatprep.subr.bf16.mxu0 0
        %2266 = vmatpush1.bf16.msra.mxu0 0
        %2267 = vmatprep.subr.bf16.mxu0 0
        %2268 = vmatpush1.bf16.msra.mxu0 0
        %2269 = vmatprep.subr.bf16.mxu0 0
        %2270 = vmatpush1.bf16.msra.mxu0 0
        %2271 = vmatprep.subr.bf16.mxu0 0
        %2272 = vmatpush1.bf16.msra.mxu0 0
        %2273 = vmatprep.subr.bf16.mxu0 0
        %2274 = vmatpush1.bf16.msra.mxu0 0
        %2275 = vmatprep.subr.bf16.mxu0 0
        %2276 = vmatpush1.bf16.msra.mxu0 0
        %2277 = vmatprep.subr.bf16.mxu0 0
        %2278 = vmatpush1.bf16.msra.mxu0 0
        %2279 = vmatprep.subr.bf16.mxu0 0
        %2280 = vmatpush1.bf16.msra.mxu0 0
        %2281 = vmatprep.subr.bf16.mxu0 0
        %2282 = vmatpush1.bf16.msra.mxu0 0
        %2283 = vmatprep.subr.bf16.mxu0 0
        %2284 = vmatpush1.bf16.msra.mxu0 0
        %2285 = vmatprep.mubr.bf16.mxu0 0
        %2286 = vmatmul.mubr.bf16.gmra.mrb[0].mxu0 %v2165
        %v2287 = vpop.f32.mrb[0].mxu0
        %v2288 = vadd.f32 0.0, %v2287
        %v2289 = vpop.f32.mrb[0].mxu0
        %v2290 = vadd.f32 0.0, %v2289
        %v2291 = vpop.f32.mrb[0].mxu0
        %v2292 = vadd.f32 0.0, %v2291
        %v2293 = vpop.f32.mrb[0].mxu0
        %v2294 = vadd.f32 0.0, %v2293
        %2295 = vdwg.mxu0
        %2296 = vmatprep.subr.bf16.mxu0 %v2155
        %2297 = vmatpush1.bf16.msra.mxu0 %v2154
        %2298 = vmatprep.subr.bf16.mxu0 0
        %2299 = vmatpush1.bf16.msra.mxu0 0
        %2300 = vmatprep.subr.bf16.mxu0 0
        %2301 = vmatpush1.bf16.msra.mxu0 0
        %2302 = vmatprep.subr.bf16.mxu0 0
        %2303 = vmatpush1.bf16.msra.mxu0 0
        %2304 = vmatprep.subr.bf16.mxu0 0
        %2305 = vmatpush1.bf16.msra.mxu0 0
        %2306 = vmatprep.subr.bf16.mxu0 0
        %2307 = vmatpush1.bf16.msra.mxu0 0
        %2308 = vmatprep.subr.bf16.mxu0 0
        %2309 = vmatpush1.bf16.msra.mxu0 0
        %2310 = vmatprep.subr.bf16.mxu0 0
        %2311 = vmatpush1.bf16.msra.mxu0 0
        %2312 = vmatprep.subr.bf16.mxu0 0
        %2313 = vmatpush1.bf16.msra.mxu0 0
        %2314 = vmatprep.subr.bf16.mxu0 0
        %2315 = vmatpush1.bf16.msra.mxu0 0
        %2316 = vmatprep.subr.bf16.mxu0 0
        %2317 = vmatpush1.bf16.msra.mxu0 0
        %2318 = vmatprep.subr.bf16.mxu0 0
        %2319 = vmatpush1.bf16.msra.mxu0 0
        %2320 = vmatprep.subr.bf16.mxu0 0
        %2321 = vmatpush1.bf16.msra.mxu0 0
        %2322 = vmatprep.subr.bf16.mxu0 0
        %2323 = vmatpush1.bf16.msra.mxu0 0
        %2324 = vmatprep.subr.bf16.mxu0 0
        %2325 = vmatpush1.bf16.msra.mxu0 0
        %2326 = vmatprep.subr.bf16.mxu0 0
        %2327 = vmatpush1.bf16.msra.mxu0 0
        %2328 = vmatprep.mubr.bf16.mxu0 0
        %2329 = vmatmul.mubr.bf16.gmra.mrb[0].mxu0 %v2165
        %v2330 = vpop.f32.mrb[0].mxu0
        %v2331 = vadd.f32 0.0, %v2330
        %v2332 = vpop.f32.mrb[0].mxu0
        %v2333 = vadd.f32 0.0, %v2332
        %v2334 = vpop.f32.mrb[0].mxu0
        %v2335 = vadd.f32 0.0, %v2334
        %v2336 = vpop.f32.mrb[0].mxu0
        %v2337 = vadd.f32 0.0, %v2336
        %2338 = vdwg.mxu0
        %v2339 = vadd.f32 %v2105, %v2202
        %v2340 = vadd.f32 %v2106, %v2204
        %v2341 = vadd.f32 %v2107, %v2245
        %v2342 = vadd.f32 %v2108, %v2247
        %v2343 = vadd.f32 %v2109, %v2288
        %v2344 = vadd.f32 %v2110, %v2290
        %v2345 = vadd.f32 %v2111, %v2331
        %v2346 = vadd.f32 %v2112, %v2333
        %v2347 = vadd.f32 %v2113, %v2206
        %v2348 = vadd.f32 %v2114, %v2208
        %v2349 = vadd.f32 %v2115, %v2249
        %v2350 = vadd.f32 %v2116, %v2251
        %v2351 = vadd.f32 %v2117, %v2292
        %v2352 = vadd.f32 %v2118, %v2294
        %v2353 = vadd.f32 %v2119, %v2335
        %v2354 = vadd.f32 %v2120, %v2337
        %s2355 = scalar_lea.vmem %s0, 72
        %v2356 = vld [vmem:[%s2355] sm:$0xf]
        %v2357 = vld [vmem:[%s2355 + $0x4] sm:$0xf]
        %v2358 = vld [vmem:[#allocation2 + $0x10] sm:$0xff]
        %v2359 = vld [vmem:[#allocation2 + $0x18] sm:$0xff]
        %v2360 = vld [vmem:[#allocation2 + $0x20] sm:$0xff]
        %v2361 = vld [vmem:[#allocation2 + $0x28] sm:$0xff]
        %v2362 = vld [vmem:[#allocation2 + $0x30] sm:$0xff]
        %v2363 = vld [vmem:[#allocation2 + $0x38] sm:$0xff]
        %v2364 = vld [vmem:[#allocation2 + $0x40] sm:$0xff]
        %v2365 = vld [vmem:[#allocation2 + $0x48] sm:$0xff]
        %v2366 = vld [vmem:[#allocation2 + $0x50] sm:$0xff]
        %v2369 = vunpack.c.l.b16 %v2356
        %v2370 = vunpack.c.l.b16 %v2357
        %v2371 = vpack.c.b16 %v2370, %v2369
        %2381 = vrot.lane.b32.xlu0 %v2358, 19
        %v2382 = vpop.permute.xlu0 %2381
        %2383 = vrot.lane.b32.xlu0 %v2359, 19
        %v2384 = vpop.permute.xlu0 %2383
        %2385 = vrot.lane.b32.xlu0 %v2360, 19
        %v2386 = vpop.permute.xlu0 %2385
        %2387 = vrot.lane.b32.xlu0 %v2361, 19
        %v2388 = vpop.permute.xlu0 %2387
        %2389 = vrot.lane.b32.xlu0 %v2362, 19
        %v2390 = vpop.permute.xlu0 %2389
        %2391 = vrot.lane.b32.xlu0 %v2363, 19
        %v2392 = vpop.permute.xlu0 %2391
        %2393 = vrot.lane.b32.xlu0 %v2364, 19
        %v2394 = vpop.permute.xlu0 %2393
        %2395 = vrot.lane.b32.xlu0 %v2365, 19
        %v2396 = vpop.permute.xlu0 %2395
        %2397 = vrot.lane.b32.xlu0 %v2366, 19
        %v2398 = vpop.permute.xlu0 %2397
        %vm2399 = vcmask 154624
        %v2400 = vsel %vm2399, %v2382, %v2384
        %v2401 = vsel %vm2399, %v2384, %v2386
        %v2402 = vsel %vm2399, %v2386, %v2388
        %v2403 = vsel %vm2399, %v2388, %v2390
        %v2404 = vsel %vm2399, %v2390, %v2392
        %v2405 = vsel %vm2399, %v2392, %v2394
        %v2406 = vsel %vm2399, %v2394, %v2396
        %v2407 = vsel %vm2399, %v2396, %v2398
        %v2417 = vsel %vm326, %v2371, 0
        %2419 = vmatprep.subr.bf16.mxu0 %v2401
        %2420 = vmatpush1.bf16.msra.mxu0 %v2400
        %2421 = vmatprep.subr.bf16.mxu0 0
        %2422 = vmatpush1.bf16.msra.mxu0 0
        %2423 = vmatprep.subr.bf16.mxu0 0
        %2424 = vmatpush1.bf16.msra.mxu0 0
        %2425 = vmatprep.subr.bf16.mxu0 0
        %2426 = vmatpush1.bf16.msra.mxu0 0
        %2427 = vmatprep.subr.bf16.mxu0 0
        %2428 = vmatpush1.bf16.msra.mxu0 0
        %2429 = vmatprep.subr.bf16.mxu0 0
        %2430 = vmatpush1.bf16.msra.mxu0 0
        %2431 = vmatprep.subr.bf16.mxu0 0
        %2432 = vmatpush1.bf16.msra.mxu0 0
        %2433 = vmatprep.subr.bf16.mxu0 0
        %2434 = vmatpush1.bf16.msra.mxu0 0
        %2435 = vmatprep.subr.bf16.mxu0 0
        %2436 = vmatpush1.bf16.msra.mxu0 0
        %2437 = vmatprep.subr.bf16.mxu0 0
        %2438 = vmatpush1.bf16.msra.mxu0 0
        %2439 = vmatprep.subr.bf16.mxu0 0
        %2440 = vmatpush1.bf16.msra.mxu0 0
        %2441 = vmatprep.subr.bf16.mxu0 0
        %2442 = vmatpush1.bf16.msra.mxu0 0
        %2443 = vmatprep.subr.bf16.mxu0 0
        %2444 = vmatpush1.bf16.msra.mxu0 0
        %2445 = vmatprep.subr.bf16.mxu0 0
        %2446 = vmatpush1.bf16.msra.mxu0 0
        %2447 = vmatprep.subr.bf16.mxu0 0
        %2448 = vmatpush1.bf16.msra.mxu0 0
        %2449 = vmatprep.subr.bf16.mxu0 0
        %2450 = vmatpush1.bf16.msra.mxu0 0
        %2451 = vmatprep.mubr.bf16.mxu0 0
        %2452 = vmatmul.mubr.bf16.gmra.mrb[0].mxu0 %v2417
        %v2453 = vpop.f32.mrb[0].mxu0
        %v2454 = vadd.f32 0.0, %v2453
        %v2455 = vpop.f32.mrb[0].mxu0
        %v2456 = vadd.f32 0.0, %v2455
        %v2457 = vpop.f32.mrb[0].mxu0
        %v2458 = vadd.f32 0.0, %v2457
        %v2459 = vpop.f32.mrb[0].mxu0
        %v2460 = vadd.f32 0.0, %v2459
        %2461 = vdwg.mxu0
        %2462 = vmatprep.subr.bf16.mxu0 %v2403
        %2463 = vmatpush1.bf16.msra.mxu0 %v2402
        %2464 = vmatprep.subr.bf16.mxu0 0
        %2465 = vmatpush1.bf16.msra.mxu0 0
        %2466 = vmatprep.subr.bf16.mxu0 0
        %2467 = vmatpush1.bf16.msra.mxu0 0
        %2468 = vmatprep.subr.bf16.mxu0 0
        %2469 = vmatpush1.bf16.msra.mxu0 0
        %2470 = vmatprep.subr.bf16.mxu0 0
        %2471 = vmatpush1.bf16.msra.mxu0 0
        %2472 = vmatprep.subr.bf16.mxu0 0
        %2473 = vmatpush1.bf16.msra.mxu0 0
        %2474 = vmatprep.subr.bf16.mxu0 0
        %2475 = vmatpush1.bf16.msra.mxu0 0
        %2476 = vmatprep.subr.bf16.mxu0 0
        %2477 = vmatpush1.bf16.msra.mxu0 0
        %2478 = vmatprep.subr.bf16.mxu0 0
        %2479 = vmatpush1.bf16.msra.mxu0 0
        %2480 = vmatprep.subr.bf16.mxu0 0
        %2481 = vmatpush1.bf16.msra.mxu0 0
        %2482 = vmatprep.subr.bf16.mxu0 0
        %2483 = vmatpush1.bf16.msra.mxu0 0
        %2484 = vmatprep.subr.bf16.mxu0 0
        %2485 = vmatpush1.bf16.msra.mxu0 0
        %2486 = vmatprep.subr.bf16.mxu0 0
        %2487 = vmatpush1.bf16.msra.mxu0 0
        %2488 = vmatprep.subr.bf16.mxu0 0
        %2489 = vmatpush1.bf16.msra.mxu0 0
        %2490 = vmatprep.subr.bf16.mxu0 0
        %2491 = vmatpush1.bf16.msra.mxu0 0
        %2492 = vmatprep.subr.bf16.mxu0 0
        %2493 = vmatpush1.bf16.msra.mxu0 0
        %2494 = vmatprep.mubr.bf16.mxu0 0
        %2495 = vmatmul.mubr.bf16.gmra.mrb[0].mxu0 %v2417
        %v2496 = vpop.f32.mrb[0].mxu0
        %v2497 = vadd.f32 0.0, %v2496
        %v2498 = vpop.f32.mrb[0].mxu0
        %v2499 = vadd.f32 0.0, %v2498
        %v2500 = vpop.f32.mrb[0].mxu0
        %v2501 = vadd.f32 0.0, %v2500
        %v2502 = vpop.f32.mrb[0].mxu0
        %v2503 = vadd.f32 0.0, %v2502
        %2504 = vdwg.mxu0
        %2505 = vmatprep.subr.bf16.mxu0 %v2405
        %2506 = vmatpush1.bf16.msra.mxu0 %v2404
        %2507 = vmatprep.subr.bf16.mxu0 0
        %2508 = vmatpush1.bf16.msra.mxu0 0
        %2509 = vmatprep.subr.bf16.mxu0 0
        %2510 = vmatpush1.bf16.msra.mxu0 0
        %2511 = vmatprep.subr.bf16.mxu0 0
        %2512 = vmatpush1.bf16.msra.mxu0 0
        %2513 = vmatprep.subr.bf16.mxu0 0
        %2514 = vmatpush1.bf16.msra.mxu0 0
        %2515 = vmatprep.subr.bf16.mxu0 0
        %2516 = vmatpush1.bf16.msra.mxu0 0
        %2517 = vmatprep.subr.bf16.mxu0 0
        %2518 = vmatpush1.bf16.msra.mxu0 0
        %2519 = vmatprep.subr.bf16.mxu0 0
        %2520 = vmatpush1.bf16.msra.mxu0 0
        %2521 = vmatprep.subr.bf16.mxu0 0
        %2522 = vmatpush1.bf16.msra.mxu0 0
        %2523 = vmatprep.subr.bf16.mxu0 0
        %2524 = vmatpush1.bf16.msra.mxu0 0
        %2525 = vmatprep.subr.bf16.mxu0 0
        %2526 = vmatpush1.bf16.msra.mxu0 0
        %2527 = vmatprep.subr.bf16.mxu0 0
        %2528 = vmatpush1.bf16.msra.mxu0 0
        %2529 = vmatprep.subr.bf16.mxu0 0
        %2530 = vmatpush1.bf16.msra.mxu0 0
        %2531 = vmatprep.subr.bf16.mxu0 0
        %2532 = vmatpush1.bf16.msra.mxu0 0
        %2533 = vmatprep.subr.bf16.mxu0 0
        %2534 = vmatpush1.bf16.msra.mxu0 0
        %2535 = vmatprep.subr.bf16.mxu0 0
        %2536 = vmatpush1.bf16.msra.mxu0 0
        %2537 = vmatprep.mubr.bf16.mxu0 0
        %2538 = vmatmul.mubr.bf16.gmra.mrb[0].mxu0 %v2417
        %v2539 = vpop.f32.mrb[0].mxu0
        %v2540 = vadd.f32 0.0, %v2539
        %v2541 = vpop.f32.mrb[0].mxu0
        %v2542 = vadd.f32 0.0, %v2541
        %v2543 = vpop.f32.mrb[0].mxu0
        %v2544 = vadd.f32 0.0, %v2543
        %v2545 = vpop.f32.mrb[0].mxu0
        %v2546 = vadd.f32 0.0, %v2545
        %2547 = vdwg.mxu0
        %2548 = vmatprep.subr.bf16.mxu0 %v2407
        %2549 = vmatpush1.bf16.msra.mxu0 %v2406
        %2550 = vmatprep.subr.bf16.mxu0 0
        %2551 = vmatpush1.bf16.msra.mxu0 0
        %2552 = vmatprep.subr.bf16.mxu0 0
        %2553 = vmatpush1.bf16.msra.mxu0 0
        %2554 = vmatprep.subr.bf16.mxu0 0
        %2555 = vmatpush1.bf16.msra.mxu0 0
        %2556 = vmatprep.subr.bf16.mxu0 0
        %2557 = vmatpush1.bf16.msra.mxu0 0
        %2558 = vmatprep.subr.bf16.mxu0 0
        %2559 = vmatpush1.bf16.msra.mxu0 0
        %2560 = vmatprep.subr.bf16.mxu0 0
        %2561 = vmatpush1.bf16.msra.mxu0 0
        %2562 = vmatprep.subr.bf16.mxu0 0
        %2563 = vmatpush1.bf16.msra.mxu0 0
        %2564 = vmatprep.subr.bf16.mxu0 0
        %2565 = vmatpush1.bf16.msra.mxu0 0
        %2566 = vmatprep.subr.bf16.mxu0 0
        %2567 = vmatpush1.bf16.msra.mxu0 0
        %2568 = vmatprep.subr.bf16.mxu0 0
        %2569 = vmatpush1.bf16.msra.mxu0 0
        %2570 = vmatprep.subr.bf16.mxu0 0
        %2571 = vmatpush1.bf16.msra.mxu0 0
        %2572 = vmatprep.subr.bf16.mxu0 0
        %2573 = vmatpush1.bf16.msra.mxu0 0
        %2574 = vmatprep.subr.bf16.mxu0 0
        %2575 = vmatpush1.bf16.msra.mxu0 0
        %2576 = vmatprep.subr.bf16.mxu0 0
        %2577 = vmatpush1.bf16.msra.mxu0 0
        %2578 = vmatprep.subr.bf16.mxu0 0
        %2579 = vmatpush1.bf16.msra.mxu0 0
        %2580 = vmatprep.mubr.bf16.mxu0 0
        %2581 = vmatmul.mubr.bf16.gmra.mrb[0].mxu0 %v2417
        %v2582 = vpop.f32.mrb[0].mxu0
        %v2583 = vadd.f32 0.0, %v2582
        %v2584 = vpop.f32.mrb[0].mxu0
        %v2585 = vadd.f32 0.0, %v2584
        %v2586 = vpop.f32.mrb[0].mxu0
        %v2587 = vadd.f32 0.0, %v2586
        %v2588 = vpop.f32.mrb[0].mxu0
        %v2589 = vadd.f32 0.0, %v2588
        %2590 = vdwg.mxu0
        %v2591 = vadd.f32 %v2339, %v2454
        %v2592 = vadd.f32 %v2340, %v2456
        %v2593 = vadd.f32 %v2341, %v2497
        %v2594 = vadd.f32 %v2342, %v2499
        %v2595 = vadd.f32 %v2343, %v2540
        %v2596 = vadd.f32 %v2344, %v2542
        %v2597 = vadd.f32 %v2345, %v2583
        %v2598 = vadd.f32 %v2346, %v2585
        %v2599 = vadd.f32 %v2347, %v2458
        %v2600 = vadd.f32 %v2348, %v2460
        %v2601 = vadd.f32 %v2349, %v2501
        %v2602 = vadd.f32 %v2350, %v2503
        %v2603 = vadd.f32 %v2351, %v2544
        %v2604 = vadd.f32 %v2352, %v2546
        %v2605 = vadd.f32 %v2353, %v2587
        %v2606 = vadd.f32 %v2354, %v2589
        %s2607 = scalar_lea.vmem %s0, 80
        %v2608 = vld [vmem:[%s2607] sm:$0xf]
        %v2609 = vld [vmem:[%s2607 + $0x4] sm:$0xf]
        %v2612 = vunpack.c.l.b16 %v2608
        %v2613 = vunpack.c.l.b16 %v2609
        %v2614 = vpack.c.b16 %v2613, %v2612
        %2615 = vrot.lane.b32.xlu0 %v2358, 18
        %v2616 = vpop.permute.xlu0 %2615
        %2617 = vrot.lane.b32.xlu0 %v2359, 18
        %v2618 = vpop.permute.xlu0 %2617
        %2619 = vrot.lane.b32.xlu0 %v2360, 18
        %v2620 = vpop.permute.xlu0 %2619
        %2621 = vrot.lane.b32.xlu0 %v2361, 18
        %v2622 = vpop.permute.xlu0 %2621
        %2623 = vrot.lane.b32.xlu0 %v2362, 18
        %v2624 = vpop.permute.xlu0 %2623
        %2625 = vrot.lane.b32.xlu0 %v2363, 18
        %v2626 = vpop.permute.xlu0 %2625
        %2627 = vrot.lane.b32.xlu0 %v2364, 18
        %v2628 = vpop.permute.xlu0 %2627
        %2629 = vrot.lane.b32.xlu0 %v2365, 18
        %v2630 = vpop.permute.xlu0 %2629
        %2631 = vrot.lane.b32.xlu0 %v2366, 18
        %v2632 = vpop.permute.xlu0 %2631
        %vm2633 = vcmask 146432
        %v2634 = vsel %vm2633, %v2616, %v2618
        %v2635 = vsel %vm2633, %v2618, %v2620
        %v2636 = vsel %vm2633, %v2620, %v2622
        %v2637 = vsel %vm2633, %v2622, %v2624
        %v2638 = vsel %vm2633, %v2624, %v2626
        %v2639 = vsel %vm2633, %v2626, %v2628
        %v2640 = vsel %vm2633, %v2628, %v2630
        %v2641 = vsel %vm2633, %v2630, %v2632
        %v2651 = vsel %vm326, %v2614, 0
        %2653 = vmatprep.subr.bf16.mxu0 %v2635
        %2654 = vmatpush1.bf16.msra.mxu0 %v2634
        %2655 = vmatprep.subr.bf16.mxu0 0
        %2656 = vmatpush1.bf16.msra.mxu0 0
        %2657 = vmatprep.subr.bf16.mxu0 0
        %2658 = vmatpush1.bf16.msra.mxu0 0
        %2659 = vmatprep.subr.bf16.mxu0 0
        %2660 = vmatpush1.bf16.msra.mxu0 0
        %2661 = vmatprep.subr.bf16.mxu0 0
        %2662 = vmatpush1.bf16.msra.mxu0 0
        %2663 = vmatprep.subr.bf16.mxu0 0
        %2664 = vmatpush1.bf16.msra.mxu0 0
        %2665 = vmatprep.subr.bf16.mxu0 0
        %2666 = vmatpush1.bf16.msra.mxu0 0
        %2667 = vmatprep.subr.bf16.mxu0 0
        %2668 = vmatpush1.bf16.msra.mxu0 0
        %2669 = vmatprep.subr.bf16.mxu0 0
        %2670 = vmatpush1.bf16.msra.mxu0 0
        %2671 = vmatprep.subr.bf16.mxu0 0
        %2672 = vmatpush1.bf16.msra.mxu0 0
        %2673 = vmatprep.subr.bf16.mxu0 0
        %2674 = vmatpush1.bf16.msra.mxu0 0
        %2675 = vmatprep.subr.bf16.mxu0 0
        %2676 = vmatpush1.bf16.msra.mxu0 0
        %2677 = vmatprep.subr.bf16.mxu0 0
        %2678 = vmatpush1.bf16.msra.mxu0 0
        %2679 = vmatprep.subr.bf16.mxu0 0
        %2680 = vmatpush1.bf16.msra.mxu0 0
        %2681 = vmatprep.subr.bf16.mxu0 0
        %2682 = vmatpush1.bf16.msra.mxu0 0
        %2683 = vmatprep.subr.bf16.mxu0 0
        %2684 = vmatpush1.bf16.msra.mxu0 0
        %2685 = vmatprep.mubr.bf16.mxu0 0
        %2686 = vmatmul.mubr.bf16.gmra.mrb[0].mxu0 %v2651
        %v2687 = vpop.f32.mrb[0].mxu0
        %v2688 = vadd.f32 0.0, %v2687
        %v2689 = vpop.f32.mrb[0].mxu0
        %v2690 = vadd.f32 0.0, %v2689
        %v2691 = vpop.f32.mrb[0].mxu0
        %v2692 = vadd.f32 0.0, %v2691
        %v2693 = vpop.f32.mrb[0].mxu0
        %v2694 = vadd.f32 0.0, %v2693
        %2695 = vdwg.mxu0
        %2696 = vmatprep.subr.bf16.mxu0 %v2637
        %2697 = vmatpush1.bf16.msra.mxu0 %v2636
        %2698 = vmatprep.subr.bf16.mxu0 0
        %2699 = vmatpush1.bf16.msra.mxu0 0
        %2700 = vmatprep.subr.bf16.mxu0 0
        %2701 = vmatpush1.bf16.msra.mxu0 0
        %2702 = vmatprep.subr.bf16.mxu0 0
        %2703 = vmatpush1.bf16.msra.mxu0 0
        %2704 = vmatprep.subr.bf16.mxu0 0
        %2705 = vmatpush1.bf16.msra.mxu0 0
        %2706 = vmatprep.subr.bf16.mxu0 0
        %2707 = vmatpush1.bf16.msra.mxu0 0
        %2708 = vmatprep.subr.bf16.mxu0 0
        %2709 = vmatpush1.bf16.msra.mxu0 0
        %2710 = vmatprep.subr.bf16.mxu0 0
        %2711 = vmatpush1.bf16.msra.mxu0 0
        %2712 = vmatprep.subr.bf16.mxu0 0
        %2713 = vmatpush1.bf16.msra.mxu0 0
        %2714 = vmatprep.subr.bf16.mxu0 0
        %2715 = vmatpush1.bf16.msra.mxu0 0
        %2716 = vmatprep.subr.bf16.mxu0 0
        %2717 = vmatpush1.bf16.msra.mxu0 0
        %2718 = vmatprep.subr.bf16.mxu0 0
        %2719 = vmatpush1.bf16.msra.mxu0 0
        %2720 = vmatprep.subr.bf16.mxu0 0
        %2721 = vmatpush1.bf16.msra.mxu0 0
        %2722 = vmatprep.subr.bf16.mxu0 0
        %2723 = vmatpush1.bf16.msra.mxu0 0
        %2724 = vmatprep.subr.bf16.mxu0 0
        %2725 = vmatpush1.bf16.msra.mxu0 0
        %2726 = vmatprep.subr.bf16.mxu0 0
        %2727 = vmatpush1.bf16.msra.mxu0 0
        %2728 = vmatprep.mubr.bf16.mxu0 0
        %2729 = vmatmul.mubr.bf16.gmra.mrb[0].mxu0 %v2651
        %v2730 = vpop.f32.mrb[0].mxu0
        %v2731 = vadd.f32 0.0, %v2730
        %v2732 = vpop.f32.mrb[0].mxu0
        %v2733 = vadd.f32 0.0, %v2732
        %v2734 = vpop.f32.mrb[0].mxu0
        %v2735 = vadd.f32 0.0, %v2734
        %v2736 = vpop.f32.mrb[0].mxu0
        %v2737 = vadd.f32 0.0, %v2736
        %2738 = vdwg.mxu0
        %2739 = vmatprep.subr.bf16.mxu0 %v2639
        %2740 = vmatpush1.bf16.msra.mxu0 %v2638
        %2741 = vmatprep.subr.bf16.mxu0 0
        %2742 = vmatpush1.bf16.msra.mxu0 0
        %2743 = vmatprep.subr.bf16.mxu0 0
        %2744 = vmatpush1.bf16.msra.mxu0 0
        %2745 = vmatprep.subr.bf16.mxu0 0
        %2746 = vmatpush1.bf16.msra.mxu0 0
        %2747 = vmatprep.subr.bf16.mxu0 0
        %2748 = vmatpush1.bf16.msra.mxu0 0
        %2749 = vmatprep.subr.bf16.mxu0 0
        %2750 = vmatpush1.bf16.msra.mxu0 0
        %2751 = vmatprep.subr.bf16.mxu0 0
        %2752 = vmatpush1.bf16.msra.mxu0 0
        %2753 = vmatprep.subr.bf16.mxu0 0
        %2754 = vmatpush1.bf16.msra.mxu0 0
        %2755 = vmatprep.subr.bf16.mxu0 0
        %2756 = vmatpush1.bf16.msra.mxu0 0
        %2757 = vmatprep.subr.bf16.mxu0 0
        %2758 = vmatpush1.bf16.msra.mxu0 0
        %2759 = vmatprep.subr.bf16.mxu0 0
        %2760 = vmatpush1.bf16.msra.mxu0 0
        %2761 = vmatprep.subr.bf16.mxu0 0
        %2762 = vmatpush1.bf16.msra.mxu0 0
        %2763 = vmatprep.subr.bf16.mxu0 0
        %2764 = vmatpush1.bf16.msra.mxu0 0
        %2765 = vmatprep.subr.bf16.mxu0 0
        %2766 = vmatpush1.bf16.msra.mxu0 0
        %2767 = vmatprep.subr.bf16.mxu0 0
        %2768 = vmatpush1.bf16.msra.mxu0 0
        %2769 = vmatprep.subr.bf16.mxu0 0
        %2770 = vmatpush1.bf16.msra.mxu0 0
        %2771 = vmatprep.mubr.bf16.mxu0 0
        %2772 = vmatmul.mubr.bf16.gmra.mrb[0].mxu0 %v2651
        %v2773 = vpop.f32.mrb[0].mxu0
        %v2774 = vadd.f32 0.0, %v2773
        %v2775 = vpop.f32.mrb[0].mxu0
        %v2776 = vadd.f32 0.0, %v2775
        %v2777 = vpop.f32.mrb[0].mxu0
        %v2778 = vadd.f32 0.0, %v2777
        %v2779 = vpop.f32.mrb[0].mxu0
        %v2780 = vadd.f32 0.0, %v2779
        %2781 = vdwg.mxu0
        %2782 = vmatprep.subr.bf16.mxu0 %v2641
        %2783 = vmatpush1.bf16.msra.mxu0 %v2640
        %2784 = vmatprep.subr.bf16.mxu0 0
        %2785 = vmatpush1.bf16.msra.mxu0 0
        %2786 = vmatprep.subr.bf16.mxu0 0
        %2787 = vmatpush1.bf16.msra.mxu0 0
        %2788 = vmatprep.subr.bf16.mxu0 0
        %2789 = vmatpush1.bf16.msra.mxu0 0
        %2790 = vmatprep.subr.bf16.mxu0 0
        %2791 = vmatpush1.bf16.msra.mxu0 0
        %2792 = vmatprep.subr.bf16.mxu0 0
        %2793 = vmatpush1.bf16.msra.mxu0 0
        %2794 = vmatprep.subr.bf16.mxu0 0
        %2795 = vmatpush1.bf16.msra.mxu0 0
        %2796 = vmatprep.subr.bf16.mxu0 0
        %2797 = vmatpush1.bf16.msra.mxu0 0
        %2798 = vmatprep.subr.bf16.mxu0 0
        %2799 = vmatpush1.bf16.msra.mxu0 0
        %2800 = vmatprep.subr.bf16.mxu0 0
        %2801 = vmatpush1.bf16.msra.mxu0 0
        %2802 = vmatprep.subr.bf16.mxu0 0
        %2803 = vmatpush1.bf16.msra.mxu0 0
        %2804 = vmatprep.subr.bf16.mxu0 0
        %2805 = vmatpush1.bf16.msra.mxu0 0
        %2806 = vmatprep.subr.bf16.mxu0 0
        %2807 = vmatpush1.bf16.msra.mxu0 0
        %2808 = vmatprep.subr.bf16.mxu0 0
        %2809 = vmatpush1.bf16.msra.mxu0 0
        %2810 = vmatprep.subr.bf16.mxu0 0
        %2811 = vmatpush1.bf16.msra.mxu0 0
        %2812 = vmatprep.subr.bf16.mxu0 0
        %2813 = vmatpush1.bf16.msra.mxu0 0
        %2814 = vmatprep.mubr.bf16.mxu0 0
        %2815 = vmatmul.mubr.bf16.gmra.mrb[0].mxu0 %v2651
        %v2816 = vpop.f32.mrb[0].mxu0
        %v2817 = vadd.f32 0.0, %v2816
        %v2818 = vpop.f32.mrb[0].mxu0
        %v2819 = vadd.f32 0.0, %v2818
        %v2820 = vpop.f32.mrb[0].mxu0
        %v2821 = vadd.f32 0.0, %v2820
        %v2822 = vpop.f32.mrb[0].mxu0
        %v2823 = vadd.f32 0.0, %v2822
        %2824 = vdwg.mxu0
        %v2825 = vadd.f32 %v2591, %v2688
        %v2826 = vadd.f32 %v2592, %v2690
        %v2827 = vadd.f32 %v2593, %v2731
        %v2828 = vadd.f32 %v2594, %v2733
        %v2829 = vadd.f32 %v2595, %v2774
        %v2830 = vadd.f32 %v2596, %v2776
        %v2831 = vadd.f32 %v2597, %v2817
        %v2832 = vadd.f32 %v2598, %v2819
        %v2833 = vadd.f32 %v2599, %v2692
        %v2834 = vadd.f32 %v2600, %v2694
        %v2835 = vadd.f32 %v2601, %v2735
        %v2836 = vadd.f32 %v2602, %v2737
        %v2837 = vadd.f32 %v2603, %v2778
        %v2838 = vadd.f32 %v2604, %v2780
        %v2839 = vadd.f32 %v2605, %v2821
        %v2840 = vadd.f32 %v2606, %v2823
        %s2841 = scalar_lea.vmem %s0, 88
        %v2842 = vld [vmem:[%s2841] sm:$0xf]
        %v2843 = vld [vmem:[%s2841 + $0x4] sm:$0xf]
        %v2846 = vunpack.c.l.b16 %v2842
        %v2847 = vunpack.c.l.b16 %v2843
        %v2848 = vpack.c.b16 %v2847, %v2846
        %2849 = vrot.lane.b32.xlu0 %v2358, 17
        %v2850 = vpop.permute.xlu0 %2849
        %2851 = vrot.lane.b32.xlu0 %v2359, 17
        %v2852 = vpop.permute.xlu0 %2851
        %2853 = vrot.lane.b32.xlu0 %v2360, 17
        %v2854 = vpop.permute.xlu0 %2853
        %2855 = vrot.lane.b32.xlu0 %v2361, 17
        %v2856 = vpop.permute.xlu0 %2855
        %2857 = vrot.lane.b32.xlu0 %v2362, 17
        %v2858 = vpop.permute.xlu0 %2857
        %2859 = vrot.lane.b32.xlu0 %v2363, 17
        %v2860 = vpop.permute.xlu0 %2859
        %2861 = vrot.lane.b32.xlu0 %v2364, 17
        %v2862 = vpop.permute.xlu0 %2861
        %2863 = vrot.lane.b32.xlu0 %v2365, 17
        %v2864 = vpop.permute.xlu0 %2863
        %2865 = vrot.lane.b32.xlu0 %v2366, 17
        %v2866 = vpop.permute.xlu0 %2865
        %vm2867 = vcmask 138240
        %v2868 = vsel %vm2867, %v2850, %v2852
        %v2869 = vsel %vm2867, %v2852, %v2854
        %v2870 = vsel %vm2867, %v2854, %v2856
        %v2871 = vsel %vm2867, %v2856, %v2858
        %v2872 = vsel %vm2867, %v2858, %v2860
        %v2873 = vsel %vm2867, %v2860, %v2862
        %v2874 = vsel %vm2867, %v2862, %v2864
        %v2875 = vsel %vm2867, %v2864, %v2866
        %v2885 = vsel %vm326, %v2848, 0
        %2887 = vmatprep.subr.bf16.mxu0 %v2869
        %2888 = vmatpush1.bf16.msra.mxu0 %v2868
        %2889 = vmatprep.subr.bf16.mxu0 0
        %2890 = vmatpush1.bf16.msra.mxu0 0
        %2891 = vmatprep.subr.bf16.mxu0 0
        %2892 = vmatpush1.bf16.msra.mxu0 0
        %2893 = vmatprep.subr.bf16.mxu0 0
        %2894 = vmatpush1.bf16.msra.mxu0 0
        %2895 = vmatprep.subr.bf16.mxu0 0
        %2896 = vmatpush1.bf16.msra.mxu0 0
        %2897 = vmatprep.subr.bf16.mxu0 0
        %2898 = vmatpush1.bf16.msra.mxu0 0
        %2899 = vmatprep.subr.bf16.mxu0 0
        %2900 = vmatpush1.bf16.msra.mxu0 0
        %2901 = vmatprep.subr.bf16.mxu0 0
        %2902 = vmatpush1.bf16.msra.mxu0 0
        %2903 = vmatprep.subr.bf16.mxu0 0
        %2904 = vmatpush1.bf16.msra.mxu0 0
        %2905 = vmatprep.subr.bf16.mxu0 0
        %2906 = vmatpush1.bf16.msra.mxu0 0
        %2907 = vmatprep.subr.bf16.mxu0 0
        %2908 = vmatpush1.bf16.msra.mxu0 0
        %2909 = vmatprep.subr.bf16.mxu0 0
        %2910 = vmatpush1.bf16.msra.mxu0 0
        %2911 = vmatprep.subr.bf16.mxu0 0
        %2912 = vmatpush1.bf16.msra.mxu0 0
        %2913 = vmatprep.subr.bf16.mxu0 0
        %2914 = vmatpush1.bf16.msra.mxu0 0
        %2915 = vmatprep.subr.bf16.mxu0 0
        %2916 = vmatpush1.bf16.msra.mxu0 0
        %2917 = vmatprep.subr.bf16.mxu0 0
        %2918 = vmatpush1.bf16.msra.mxu0 0
        %2919 = vmatprep.mubr.bf16.mxu0 0
        %2920 = vmatmul.mubr.bf16.gmra.mrb[0].mxu0 %v2885
        %v2921 = vpop.f32.mrb[0].mxu0
        %v2922 = vadd.f32 0.0, %v2921
        %v2923 = vpop.f32.mrb[0].mxu0
        %v2924 = vadd.f32 0.0, %v2923
        %v2925 = vpop.f32.mrb[0].mxu0
        %v2926 = vadd.f32 0.0, %v2925
        %v2927 = vpop.f32.mrb[0].mxu0
        %v2928 = vadd.f32 0.0, %v2927
        %2929 = vdwg.mxu0
        %2930 = vmatprep.subr.bf16.mxu0 %v2871
        %2931 = vmatpush1.bf16.msra.mxu0 %v2870
        %2932 = vmatprep.subr.bf16.mxu0 0
        %2933 = vmatpush1.bf16.msra.mxu0 0
        %2934 = vmatprep.subr.bf16.mxu0 0
        %2935 = vmatpush1.bf16.msra.mxu0 0
        %2936 = vmatprep.subr.bf16.mxu0 0
        %2937 = vmatpush1.bf16.msra.mxu0 0
        %2938 = vmatprep.subr.bf16.mxu0 0
        %2939 = vmatpush1.bf16.msra.mxu0 0
        %2940 = vmatprep.subr.bf16.mxu0 0
        %2941 = vmatpush1.bf16.msra.mxu0 0
        %2942 = vmatprep.subr.bf16.mxu0 0
        %2943 = vmatpush1.bf16.msra.mxu0 0
        %2944 = vmatprep.subr.bf16.mxu0 0
        %2945 = vmatpush1.bf16.msra.mxu0 0
        %2946 = vmatprep.subr.bf16.mxu0 0
        %2947 = vmatpush1.bf16.msra.mxu0 0
        %2948 = vmatprep.subr.bf16.mxu0 0
        %2949 = vmatpush1.bf16.msra.mxu0 0
        %2950 = vmatprep.subr.bf16.mxu0 0
        %2951 = vmatpush1.bf16.msra.mxu0 0
        %2952 = vmatprep.subr.bf16.mxu0 0
        %2953 = vmatpush1.bf16.msra.mxu0 0
        %2954 = vmatprep.subr.bf16.mxu0 0
        %2955 = vmatpush1.bf16.msra.mxu0 0
        %2956 = vmatprep.subr.bf16.mxu0 0
        %2957 = vmatpush1.bf16.msra.mxu0 0
        %2958 = vmatprep.subr.bf16.mxu0 0
        %2959 = vmatpush1.bf16.msra.mxu0 0
        %2960 = vmatprep.subr.bf16.mxu0 0
        %2961 = vmatpush1.bf16.msra.mxu0 0
        %2962 = vmatprep.mubr.bf16.mxu0 0
        %2963 = vmatmul.mubr.bf16.gmra.mrb[0].mxu0 %v2885
        %v2964 = vpop.f32.mrb[0].mxu0
        %v2965 = vadd.f32 0.0, %v2964
        %v2966 = vpop.f32.mrb[0].mxu0
        %v2967 = vadd.f32 0.0, %v2966
        %v2968 = vpop.f32.mrb[0].mxu0
        %v2969 = vadd.f32 0.0, %v2968
        %v2970 = vpop.f32.mrb[0].mxu0
        %v2971 = vadd.f32 0.0, %v2970
        %2972 = vdwg.mxu0
        %2973 = vmatprep.subr.bf16.mxu0 %v2873
        %2974 = vmatpush1.bf16.msra.mxu0 %v2872
        %2975 = vmatprep.subr.bf16.mxu0 0
        %2976 = vmatpush1.bf16.msra.mxu0 0
        %2977 = vmatprep.subr.bf16.mxu0 0
        %2978 = vmatpush1.bf16.msra.mxu0 0
        %2979 = vmatprep.subr.bf16.mxu0 0
        %2980 = vmatpush1.bf16.msra.mxu0 0
        %2981 = vmatprep.subr.bf16.mxu0 0
        %2982 = vmatpush1.bf16.msra.mxu0 0
        %2983 = vmatprep.subr.bf16.mxu0 0
        %2984 = vmatpush1.bf16.msra.mxu0 0
        %2985 = vmatprep.subr.bf16.mxu0 0
        %2986 = vmatpush1.bf16.msra.mxu0 0
        %2987 = vmatprep.subr.bf16.mxu0 0
        %2988 = vmatpush1.bf16.msra.mxu0 0
        %2989 = vmatprep.subr.bf16.mxu0 0
        %2990 = vmatpush1.bf16.msra.mxu0 0
        %2991 = vmatprep.subr.bf16.mxu0 0
        %2992 = vmatpush1.bf16.msra.mxu0 0
        %2993 = vmatprep.subr.bf16.mxu0 0
        %2994 = vmatpush1.bf16.msra.mxu0 0
        %2995 = vmatprep.subr.bf16.mxu0 0
        %2996 = vmatpush1.bf16.msra.mxu0 0
        %2997 = vmatprep.subr.bf16.mxu0 0
        %2998 = vmatpush1.bf16.msra.mxu0 0
        %2999 = vmatprep.subr.bf16.mxu0 0
        %3000 = vmatpush1.bf16.msra.mxu0 0
        %3001 = vmatprep.subr.bf16.mxu0 0
        %3002 = vmatpush1.bf16.msra.mxu0 0
        %3003 = vmatprep.subr.bf16.mxu0 0
        %3004 = vmatpush1.bf16.msra.mxu0 0
        %3005 = vmatprep.mubr.bf16.mxu0 0
        %3006 = vmatmul.mubr.bf16.gmra.mrb[0].mxu0 %v2885
        %v3007 = vpop.f32.mrb[0].mxu0
        %v3008 = vadd.f32 0.0, %v3007
        %v3009 = vpop.f32.mrb[0].mxu0
        %v3010 = vadd.f32 0.0, %v3009
        %v3011 = vpop.f32.mrb[0].mxu0
        %v3012 = vadd.f32 0.0, %v3011
        %v3013 = vpop.f32.mrb[0].mxu0
        %v3014 = vadd.f32 0.0, %v3013
        %3015 = vdwg.mxu0
        %3016 = vmatprep.subr.bf16.mxu0 %v2875
        %3017 = vmatpush1.bf16.msra.mxu0 %v2874
        %3018 = vmatprep.subr.bf16.mxu0 0
        %3019 = vmatpush1.bf16.msra.mxu0 0
        %3020 = vmatprep.subr.bf16.mxu0 0
        %3021 = vmatpush1.bf16.msra.mxu0 0
        %3022 = vmatprep.subr.bf16.mxu0 0
        %3023 = vmatpush1.bf16.msra.mxu0 0
        %3024 = vmatprep.subr.bf16.mxu0 0
        %3025 = vmatpush1.bf16.msra.mxu0 0
        %3026 = vmatprep.subr.bf16.mxu0 0
        %3027 = vmatpush1.bf16.msra.mxu0 0
        %3028 = vmatprep.subr.bf16.mxu0 0
        %3029 = vmatpush1.bf16.msra.mxu0 0
        %3030 = vmatprep.subr.bf16.mxu0 0
        %3031 = vmatpush1.bf16.msra.mxu0 0
        %3032 = vmatprep.subr.bf16.mxu0 0
        %3033 = vmatpush1.bf16.msra.mxu0 0
        %3034 = vmatprep.subr.bf16.mxu0 0
        %3035 = vmatpush1.bf16.msra.mxu0 0
        %3036 = vmatprep.subr.bf16.mxu0 0
        %3037 = vmatpush1.bf16.msra.mxu0 0
        %3038 = vmatprep.subr.bf16.mxu0 0
        %3039 = vmatpush1.bf16.msra.mxu0 0
        %3040 = vmatprep.subr.bf16.mxu0 0
        %3041 = vmatpush1.bf16.msra.mxu0 0
        %3042 = vmatprep.subr.bf16.mxu0 0
        %3043 = vmatpush1.bf16.msra.mxu0 0
        %3044 = vmatprep.subr.bf16.mxu0 0
        %3045 = vmatpush1.bf16.msra.mxu0 0
        %3046 = vmatprep.subr.bf16.mxu0 0
        %3047 = vmatpush1.bf16.msra.mxu0 0
        %3048 = vmatprep.mubr.bf16.mxu0 0
        %3049 = vmatmul.mubr.bf16.gmra.mrb[0].mxu0 %v2885
        %v3050 = vpop.f32.mrb[0].mxu0
        %v3051 = vadd.f32 0.0, %v3050
        %v3052 = vpop.f32.mrb[0].mxu0
        %v3053 = vadd.f32 0.0, %v3052
        %v3054 = vpop.f32.mrb[0].mxu0
        %v3055 = vadd.f32 0.0, %v3054
        %v3056 = vpop.f32.mrb[0].mxu0
        %v3057 = vadd.f32 0.0, %v3056
        %3058 = vdwg.mxu0
        %v3059 = vadd.f32 %v2825, %v2922
        %v3060 = vadd.f32 %v2826, %v2924
        %v3061 = vadd.f32 %v2827, %v2965
        %v3062 = vadd.f32 %v2828, %v2967
        %v3063 = vadd.f32 %v2829, %v3008
        %v3064 = vadd.f32 %v2830, %v3010
        %v3065 = vadd.f32 %v2831, %v3051
        %v3066 = vadd.f32 %v2832, %v3053
        %v3067 = vadd.f32 %v2833, %v2926
        %v3068 = vadd.f32 %v2834, %v2928
        %v3069 = vadd.f32 %v2835, %v2969
        %v3070 = vadd.f32 %v2836, %v2971
        %v3071 = vadd.f32 %v2837, %v3012
        %v3072 = vadd.f32 %v2838, %v3014
        %v3073 = vadd.f32 %v2839, %v3055
        %v3074 = vadd.f32 %v2840, %v3057
        %s3075 = scalar_lea.vmem %s0, 96
        %v3076 = vld [vmem:[%s3075] sm:$0xf]
        %v3077 = vld [vmem:[%s3075 + $0x4] sm:$0xf]
        %v3080 = vunpack.c.l.b16 %v3076
        %v3081 = vunpack.c.l.b16 %v3077
        %v3082 = vpack.c.b16 %v3081, %v3080
        %3083 = vrot.lane.b32.xlu0 %v2358, 1
        %v3084 = vpop.permute.xlu0 %3083
        %3085 = vrot.lane.b32.xlu0 %v2359, 1
        %v3086 = vpop.permute.xlu0 %3085
        %3087 = vrot.lane.b32.xlu0 %v2360, 1
        %v3088 = vpop.permute.xlu0 %3087
        %3089 = vrot.lane.b32.xlu0 %v2361, 1
        %v3090 = vpop.permute.xlu0 %3089
        %3091 = vrot.lane.b32.xlu0 %v2362, 1
        %v3092 = vpop.permute.xlu0 %3091
        %3093 = vrot.lane.b32.xlu0 %v2363, 1
        %v3094 = vpop.permute.xlu0 %3093
        %3095 = vrot.lane.b32.xlu0 %v2364, 1
        %v3096 = vpop.permute.xlu0 %3095
        %3097 = vrot.lane.b32.xlu0 %v2365, 1
        %v3098 = vpop.permute.xlu0 %3097
        %3099 = vrot.lane.b32.xlu0 %v2366, 1
        %v3100 = vpop.permute.xlu0 %3099
        %vm3101 = vcmask 7168
        %v3102 = vsel %vm3101, %v3084, %v3086
        %v3103 = vsel %vm3101, %v3086, %v3088
        %v3104 = vsel %vm3101, %v3088, %v3090
        %v3105 = vsel %vm3101, %v3090, %v3092
        %v3106 = vsel %vm3101, %v3092, %v3094
        %v3107 = vsel %vm3101, %v3094, %v3096
        %v3108 = vsel %vm3101, %v3096, %v3098
        %v3109 = vsel %vm3101, %v3098, %v3100
        %v3119 = vsel %vm326, %v3082, 0
        %3121 = vmatprep.subr.bf16.mxu0 %v3103
        %3122 = vmatpush1.bf16.msra.mxu0 %v3102
        %3123 = vmatprep.subr.bf16.mxu0 0
        %3124 = vmatpush1.bf16.msra.mxu0 0
        %3125 = vmatprep.subr.bf16.mxu0 0
        %3126 = vmatpush1.bf16.msra.mxu0 0
        %3127 = vmatprep.subr.bf16.mxu0 0
        %3128 = vmatpush1.bf16.msra.mxu0 0
        %3129 = vmatprep.subr.bf16.mxu0 0
        %3130 = vmatpush1.bf16.msra.mxu0 0
        %3131 = vmatprep.subr.bf16.mxu0 0
        %3132 = vmatpush1.bf16.msra.mxu0 0
        %3133 = vmatprep.subr.bf16.mxu0 0
        %3134 = vmatpush1.bf16.msra.mxu0 0
        %3135 = vmatprep.subr.bf16.mxu0 0
        %3136 = vmatpush1.bf16.msra.mxu0 0
        %3137 = vmatprep.subr.bf16.mxu0 0
        %3138 = vmatpush1.bf16.msra.mxu0 0
        %3139 = vmatprep.subr.bf16.mxu0 0
        %3140 = vmatpush1.bf16.msra.mxu0 0
        %3141 = vmatprep.subr.bf16.mxu0 0
        %3142 = vmatpush1.bf16.msra.mxu0 0
        %3143 = vmatprep.subr.bf16.mxu0 0
        %3144 = vmatpush1.bf16.msra.mxu0 0
        %3145 = vmatprep.subr.bf16.mxu0 0
        %3146 = vmatpush1.bf16.msra.mxu0 0
        %3147 = vmatprep.subr.bf16.mxu0 0
        %3148 = vmatpush1.bf16.msra.mxu0 0
        %3149 = vmatprep.subr.bf16.mxu0 0
        %3150 = vmatpush1.bf16.msra.mxu0 0
        %3151 = vmatprep.subr.bf16.mxu0 0
        %3152 = vmatpush1.bf16.msra.mxu0 0
        %3153 = vmatprep.mubr.bf16.mxu0 0
        %3154 = vmatmul.mubr.bf16.gmra.mrb[0].mxu0 %v3119
        %v3155 = vpop.f32.mrb[0].mxu0
        %v3156 = vadd.f32 0.0, %v3155
        %v3157 = vpop.f32.mrb[0].mxu0
        %v3158 = vadd.f32 0.0, %v3157
        %v3159 = vpop.f32.mrb[0].mxu0
        %v3160 = vadd.f32 0.0, %v3159
        %v3161 = vpop.f32.mrb[0].mxu0
        %v3162 = vadd.f32 0.0, %v3161
        %3163 = vdwg.mxu0
        %3164 = vmatprep.subr.bf16.mxu0 %v3105
        %3165 = vmatpush1.bf16.msra.mxu0 %v3104
        %3166 = vmatprep.subr.bf16.mxu0 0
        %3167 = vmatpush1.bf16.msra.mxu0 0
        %3168 = vmatprep.subr.bf16.mxu0 0
        %3169 = vmatpush1.bf16.msra.mxu0 0
        %3170 = vmatprep.subr.bf16.mxu0 0
        %3171 = vmatpush1.bf16.msra.mxu0 0
        %3172 = vmatprep.subr.bf16.mxu0 0
        %3173 = vmatpush1.bf16.msra.mxu0 0
        %3174 = vmatprep.subr.bf16.mxu0 0
        %3175 = vmatpush1.bf16.msra.mxu0 0
        %3176 = vmatprep.subr.bf16.mxu0 0
        %3177 = vmatpush1.bf16.msra.mxu0 0
        %3178 = vmatprep.subr.bf16.mxu0 0
        %3179 = vmatpush1.bf16.msra.mxu0 0
        %3180 = vmatprep.subr.bf16.mxu0 0
        %3181 = vmatpush1.bf16.msra.mxu0 0
        %3182 = vmatprep.subr.bf16.mxu0 0
        %3183 = vmatpush1.bf16.msra.mxu0 0
        %3184 = vmatprep.subr.bf16.mxu0 0
        %3185 = vmatpush1.bf16.msra.mxu0 0
        %3186 = vmatprep.subr.bf16.mxu0 0
        %3187 = vmatpush1.bf16.msra.mxu0 0
        %3188 = vmatprep.subr.bf16.mxu0 0
        %3189 = vmatpush1.bf16.msra.mxu0 0
        %3190 = vmatprep.subr.bf16.mxu0 0
        %3191 = vmatpush1.bf16.msra.mxu0 0
        %3192 = vmatprep.subr.bf16.mxu0 0
        %3193 = vmatpush1.bf16.msra.mxu0 0
        %3194 = vmatprep.subr.bf16.mxu0 0
        %3195 = vmatpush1.bf16.msra.mxu0 0
        %3196 = vmatprep.mubr.bf16.mxu0 0
        %3197 = vmatmul.mubr.bf16.gmra.mrb[0].mxu0 %v3119
        %v3198 = vpop.f32.mrb[0].mxu0
        %v3199 = vadd.f32 0.0, %v3198
        %v3200 = vpop.f32.mrb[0].mxu0
        %v3201 = vadd.f32 0.0, %v3200
        %v3202 = vpop.f32.mrb[0].mxu0
        %v3203 = vadd.f32 0.0, %v3202
        %v3204 = vpop.f32.mrb[0].mxu0
        %v3205 = vadd.f32 0.0, %v3204
        %3206 = vdwg.mxu0
        %3207 = vmatprep.subr.bf16.mxu0 %v3107
        %3208 = vmatpush1.bf16.msra.mxu0 %v3106
        %3209 = vmatprep.subr.bf16.mxu0 0
        %3210 = vmatpush1.bf16.msra.mxu0 0
        %3211 = vmatprep.subr.bf16.mxu0 0
        %3212 = vmatpush1.bf16.msra.mxu0 0
        %3213 = vmatprep.subr.bf16.mxu0 0
        %3214 = vmatpush1.bf16.msra.mxu0 0
        %3215 = vmatprep.subr.bf16.mxu0 0
        %3216 = vmatpush1.bf16.msra.mxu0 0
        %3217 = vmatprep.subr.bf16.mxu0 0
        %3218 = vmatpush1.bf16.msra.mxu0 0
        %3219 = vmatprep.subr.bf16.mxu0 0
        %3220 = vmatpush1.bf16.msra.mxu0 0
        %3221 = vmatprep.subr.bf16.mxu0 0
        %3222 = vmatpush1.bf16.msra.mxu0 0
        %3223 = vmatprep.subr.bf16.mxu0 0
        %3224 = vmatpush1.bf16.msra.mxu0 0
        %3225 = vmatprep.subr.bf16.mxu0 0
        %3226 = vmatpush1.bf16.msra.mxu0 0
        %3227 = vmatprep.subr.bf16.mxu0 0
        %3228 = vmatpush1.bf16.msra.mxu0 0
        %3229 = vmatprep.subr.bf16.mxu0 0
        %3230 = vmatpush1.bf16.msra.mxu0 0
        %3231 = vmatprep.subr.bf16.mxu0 0
        %3232 = vmatpush1.bf16.msra.mxu0 0
        %3233 = vmatprep.subr.bf16.mxu0 0
        %3234 = vmatpush1.bf16.msra.mxu0 0
        %3235 = vmatprep.subr.bf16.mxu0 0
        %3236 = vmatpush1.bf16.msra.mxu0 0
        %3237 = vmatprep.subr.bf16.mxu0 0
        %3238 = vmatpush1.bf16.msra.mxu0 0
        %3239 = vmatprep.mubr.bf16.mxu0 0
        %3240 = vmatmul.mubr.bf16.gmra.mrb[0].mxu0 %v3119
        %v3241 = vpop.f32.mrb[0].mxu0
        %v3242 = vadd.f32 0.0, %v3241
        %v3243 = vpop.f32.mrb[0].mxu0
        %v3244 = vadd.f32 0.0, %v3243
        %v3245 = vpop.f32.mrb[0].mxu0
        %v3246 = vadd.f32 0.0, %v3245
        %v3247 = vpop.f32.mrb[0].mxu0
        %v3248 = vadd.f32 0.0, %v3247
        %3249 = vdwg.mxu0
        %3250 = vmatprep.subr.bf16.mxu0 %v3109
        %3251 = vmatpush1.bf16.msra.mxu0 %v3108
        %3252 = vmatprep.subr.bf16.mxu0 0
        %3253 = vmatpush1.bf16.msra.mxu0 0
        %3254 = vmatprep.subr.bf16.mxu0 0
        %3255 = vmatpush1.bf16.msra.mxu0 0
        %3256 = vmatprep.subr.bf16.mxu0 0
        %3257 = vmatpush1.bf16.msra.mxu0 0
        %3258 = vmatprep.subr.bf16.mxu0 0
        %3259 = vmatpush1.bf16.msra.mxu0 0
        %3260 = vmatprep.subr.bf16.mxu0 0
        %3261 = vmatpush1.bf16.msra.mxu0 0
        %3262 = vmatprep.subr.bf16.mxu0 0
        %3263 = vmatpush1.bf16.msra.mxu0 0
        %3264 = vmatprep.subr.bf16.mxu0 0
        %3265 = vmatpush1.bf16.msra.mxu0 0
        %3266 = vmatprep.subr.bf16.mxu0 0
        %3267 = vmatpush1.bf16.msra.mxu0 0
        %3268 = vmatprep.subr.bf16.mxu0 0
        %3269 = vmatpush1.bf16.msra.mxu0 0
        %3270 = vmatprep.subr.bf16.mxu0 0
        %3271 = vmatpush1.bf16.msra.mxu0 0
        %3272 = vmatprep.subr.bf16.mxu0 0
        %3273 = vmatpush1.bf16.msra.mxu0 0
        %3274 = vmatprep.subr.bf16.mxu0 0
        %3275 = vmatpush1.bf16.msra.mxu0 0
        %3276 = vmatprep.subr.bf16.mxu0 0
        %3277 = vmatpush1.bf16.msra.mxu0 0
        %3278 = vmatprep.subr.bf16.mxu0 0
        %3279 = vmatpush1.bf16.msra.mxu0 0
        %3280 = vmatprep.subr.bf16.mxu0 0
        %3281 = vmatpush1.bf16.msra.mxu0 0
        %3282 = vmatprep.mubr.bf16.mxu0 0
        %3283 = vmatmul.mubr.bf16.gmra.mrb[0].mxu0 %v3119
        %v3284 = vpop.f32.mrb[0].mxu0
        %v3285 = vadd.f32 0.0, %v3284
        %v3286 = vpop.f32.mrb[0].mxu0
        %v3287 = vadd.f32 0.0, %v3286
        %v3288 = vpop.f32.mrb[0].mxu0
        %v3289 = vadd.f32 0.0, %v3288
        %v3290 = vpop.f32.mrb[0].mxu0
        %v3291 = vadd.f32 0.0, %v3290
        %3292 = vdwg.mxu0
        %v3293 = vadd.f32 %v3059, %v3156
        %v3294 = vadd.f32 %v3060, %v3158
        %v3295 = vadd.f32 %v3061, %v3199
        %v3296 = vadd.f32 %v3062, %v3201
        %v3297 = vadd.f32 %v3063, %v3242
        %v3298 = vadd.f32 %v3064, %v3244
        %v3299 = vadd.f32 %v3065, %v3285
        %v3300 = vadd.f32 %v3066, %v3287
        %v3301 = vadd.f32 %v3067, %v3160
        %v3302 = vadd.f32 %v3068, %v3162
        %v3303 = vadd.f32 %v3069, %v3203
        %v3304 = vadd.f32 %v3070, %v3205
        %v3305 = vadd.f32 %v3071, %v3246
        %v3306 = vadd.f32 %v3072, %v3248
        %v3307 = vadd.f32 %v3073, %v3289
        %v3308 = vadd.f32 %v3074, %v3291
        %s3309 = scalar_lea.vmem %s0, 104
        %v3310 = vld [vmem:[%s3309] sm:$0xf]
        %v3311 = vld [vmem:[%s3309 + $0x4] sm:$0xf]
        %v3314 = vunpack.c.l.b16 %v3310
        %v3315 = vunpack.c.l.b16 %v3311
        %v3316 = vpack.c.b16 %v3315, %v3314
        %v3318 = vsel %vm326, %v3316, 0
        %3320 = vmatprep.subr.bf16.mxu0 %v2360
        %3321 = vmatpush1.bf16.msra.mxu0 %v2359
        %3322 = vmatprep.subr.bf16.mxu0 0
        %3323 = vmatpush1.bf16.msra.mxu0 0
        %3324 = vmatprep.subr.bf16.mxu0 0
        %3325 = vmatpush1.bf16.msra.mxu0 0
        %3326 = vmatprep.subr.bf16.mxu0 0
        %3327 = vmatpush1.bf16.msra.mxu0 0
        %3328 = vmatprep.subr.bf16.mxu0 0
        %3329 = vmatpush1.bf16.msra.mxu0 0
        %3330 = vmatprep.subr.bf16.mxu0 0
        %3331 = vmatpush1.bf16.msra.mxu0 0
        %3332 = vmatprep.subr.bf16.mxu0 0
        %3333 = vmatpush1.bf16.msra.mxu0 0
        %3334 = vmatprep.subr.bf16.mxu0 0
        %3335 = vmatpush1.bf16.msra.mxu0 0
        %3336 = vmatprep.subr.bf16.mxu0 0
        %3337 = vmatpush1.bf16.msra.mxu0 0
        %3338 = vmatprep.subr.bf16.mxu0 0
        %3339 = vmatpush1.bf16.msra.mxu0 0
        %3340 = vmatprep.subr.bf16.mxu0 0
        %3341 = vmatpush1.bf16.msra.mxu0 0
        %3342 = vmatprep.subr.bf16.mxu0 0
        %3343 = vmatpush1.bf16.msra.mxu0 0
        %3344 = vmatprep.subr.bf16.mxu0 0
        %3345 = vmatpush1.bf16.msra.mxu0 0
        %3346 = vmatprep.subr.bf16.mxu0 0
        %3347 = vmatpush1.bf16.msra.mxu0 0
        %3348 = vmatprep.subr.bf16.mxu0 0
        %3349 = vmatpush1.bf16.msra.mxu0 0
        %3350 = vmatprep.subr.bf16.mxu0 0
        %3351 = vmatpush1.bf16.msra.mxu0 0
        %3352 = vmatprep.mubr.bf16.mxu0 0
        %3353 = vmatmul.mubr.bf16.gmra.mrb[0].mxu0 %v3318
        %v3354 = vpop.f32.mrb[0].mxu0
        %v3355 = vadd.f32 0.0, %v3354
        %v3356 = vpop.f32.mrb[0].mxu0
        %v3357 = vadd.f32 0.0, %v3356
        %v3358 = vpop.f32.mrb[0].mxu0
        %v3359 = vadd.f32 0.0, %v3358
        %v3360 = vpop.f32.mrb[0].mxu0
        %v3361 = vadd.f32 0.0, %v3360
        %3362 = vdwg.mxu0
        %3363 = vmatprep.subr.bf16.mxu0 %v2362
        %3364 = vmatpush1.bf16.msra.mxu0 %v2361
        %3365 = vmatprep.subr.bf16.mxu0 0
        %3366 = vmatpush1.bf16.msra.mxu0 0
        %3367 = vmatprep.subr.bf16.mxu0 0
        %3368 = vmatpush1.bf16.msra.mxu0 0
        %3369 = vmatprep.subr.bf16.mxu0 0
        %3370 = vmatpush1.bf16.msra.mxu0 0
        %3371 = vmatprep.subr.bf16.mxu0 0
        %3372 = vmatpush1.bf16.msra.mxu0 0
        %3373 = vmatprep.subr.bf16.mxu0 0
        %3374 = vmatpush1.bf16.msra.mxu0 0
        %3375 = vmatprep.subr.bf16.mxu0 0
        %3376 = vmatpush1.bf16.msra.mxu0 0
        %3377 = vmatprep.subr.bf16.mxu0 0
        %3378 = vmatpush1.bf16.msra.mxu0 0
        %3379 = vmatprep.subr.bf16.mxu0 0
        %3380 = vmatpush1.bf16.msra.mxu0 0
        %3381 = vmatprep.subr.bf16.mxu0 0
        %3382 = vmatpush1.bf16.msra.mxu0 0
        %3383 = vmatprep.subr.bf16.mxu0 0
        %3384 = vmatpush1.bf16.msra.mxu0 0
        %3385 = vmatprep.subr.bf16.mxu0 0
        %3386 = vmatpush1.bf16.msra.mxu0 0
        %3387 = vmatprep.subr.bf16.mxu0 0
        %3388 = vmatpush1.bf16.msra.mxu0 0
        %3389 = vmatprep.subr.bf16.mxu0 0
        %3390 = vmatpush1.bf16.msra.mxu0 0
        %3391 = vmatprep.subr.bf16.mxu0 0
        %3392 = vmatpush1.bf16.msra.mxu0 0
        %3393 = vmatprep.subr.bf16.mxu0 0
        %3394 = vmatpush1.bf16.msra.mxu0 0
        %3395 = vmatprep.mubr.bf16.mxu0 0
        %3396 = vmatmul.mubr.bf16.gmra.mrb[0].mxu0 %v3318
        %v3397 = vpop.f32.mrb[0].mxu0
        %v3398 = vadd.f32 0.0, %v3397
        %v3399 = vpop.f32.mrb[0].mxu0
        %v3400 = vadd.f32 0.0, %v3399
        %v3401 = vpop.f32.mrb[0].mxu0
        %v3402 = vadd.f32 0.0, %v3401
        %v3403 = vpop.f32.mrb[0].mxu0
        %v3404 = vadd.f32 0.0, %v3403
        %3405 = vdwg.mxu0
        %3406 = vmatprep.subr.bf16.mxu0 %v2364
        %3407 = vmatpush1.bf16.msra.mxu0 %v2363
        %3408 = vmatprep.subr.bf16.mxu0 0
        %3409 = vmatpush1.bf16.msra.mxu0 0
        %3410 = vmatprep.subr.bf16.mxu0 0
        %3411 = vmatpush1.bf16.msra.mxu0 0
        %3412 = vmatprep.subr.bf16.mxu0 0
        %3413 = vmatpush1.bf16.msra.mxu0 0
        %3414 = vmatprep.subr.bf16.mxu0 0
        %3415 = vmatpush1.bf16.msra.mxu0 0
        %3416 = vmatprep.subr.bf16.mxu0 0
        %3417 = vmatpush1.bf16.msra.mxu0 0
        %3418 = vmatprep.subr.bf16.mxu0 0
        %3419 = vmatpush1.bf16.msra.mxu0 0
        %3420 = vmatprep.subr.bf16.mxu0 0
        %3421 = vmatpush1.bf16.msra.mxu0 0
        %3422 = vmatprep.subr.bf16.mxu0 0
        %3423 = vmatpush1.bf16.msra.mxu0 0
        %3424 = vmatprep.subr.bf16.mxu0 0
        %3425 = vmatpush1.bf16.msra.mxu0 0
        %3426 = vmatprep.subr.bf16.mxu0 0
        %3427 = vmatpush1.bf16.msra.mxu0 0
        %3428 = vmatprep.subr.bf16.mxu0 0
        %3429 = vmatpush1.bf16.msra.mxu0 0
        %3430 = vmatprep.subr.bf16.mxu0 0
        %3431 = vmatpush1.bf16.msra.mxu0 0
        %3432 = vmatprep.subr.bf16.mxu0 0
        %3433 = vmatpush1.bf16.msra.mxu0 0
        %3434 = vmatprep.subr.bf16.mxu0 0
        %3435 = vmatpush1.bf16.msra.mxu0 0
        %3436 = vmatprep.subr.bf16.mxu0 0
        %3437 = vmatpush1.bf16.msra.mxu0 0
        %3438 = vmatprep.mubr.bf16.mxu0 0
        %3439 = vmatmul.mubr.bf16.gmra.mrb[0].mxu0 %v3318
        %v3440 = vpop.f32.mrb[0].mxu0
        %v3441 = vadd.f32 0.0, %v3440
        %v3442 = vpop.f32.mrb[0].mxu0
        %v3443 = vadd.f32 0.0, %v3442
        %v3444 = vpop.f32.mrb[0].mxu0
        %v3445 = vadd.f32 0.0, %v3444
        %v3446 = vpop.f32.mrb[0].mxu0
        %v3447 = vadd.f32 0.0, %v3446
        %3448 = vdwg.mxu0
        %3449 = vmatprep.subr.bf16.mxu0 %v2366
        %3450 = vmatpush1.bf16.msra.mxu0 %v2365
        %3451 = vmatprep.subr.bf16.mxu0 0
        %3452 = vmatpush1.bf16.msra.mxu0 0
        %3453 = vmatprep.subr.bf16.mxu0 0
        %3454 = vmatpush1.bf16.msra.mxu0 0
        %3455 = vmatprep.subr.bf16.mxu0 0
        %3456 = vmatpush1.bf16.msra.mxu0 0
        %3457 = vmatprep.subr.bf16.mxu0 0
        %3458 = vmatpush1.bf16.msra.mxu0 0
        %3459 = vmatprep.subr.bf16.mxu0 0
        %3460 = vmatpush1.bf16.msra.mxu0 0
        %3461 = vmatprep.subr.bf16.mxu0 0
        %3462 = vmatpush1.bf16.msra.mxu0 0
        %3463 = vmatprep.subr.bf16.mxu0 0
        %3464 = vmatpush1.bf16.msra.mxu0 0
        %3465 = vmatprep.subr.bf16.mxu0 0
        %3466 = vmatpush1.bf16.msra.mxu0 0
        %3467 = vmatprep.subr.bf16.mxu0 0
        %3468 = vmatpush1.bf16.msra.mxu0 0
        %3469 = vmatprep.subr.bf16.mxu0 0
        %3470 = vmatpush1.bf16.msra.mxu0 0
        %3471 = vmatprep.subr.bf16.mxu0 0
        %3472 = vmatpush1.bf16.msra.mxu0 0
        %3473 = vmatprep.subr.bf16.mxu0 0
        %3474 = vmatpush1.bf16.msra.mxu0 0
        %3475 = vmatprep.subr.bf16.mxu0 0
        %3476 = vmatpush1.bf16.msra.mxu0 0
        %3477 = vmatprep.subr.bf16.mxu0 0
        %3478 = vmatpush1.bf16.msra.mxu0 0
        %3479 = vmatprep.subr.bf16.mxu0 0
        %3480 = vmatpush1.bf16.msra.mxu0 0
        %3481 = vmatprep.mubr.bf16.mxu0 0
        %3482 = vmatmul.mubr.bf16.gmra.mrb[0].mxu0 %v3318
        %v3483 = vpop.f32.mrb[0].mxu0
        %v3484 = vadd.f32 0.0, %v3483
        %v3485 = vpop.f32.mrb[0].mxu0
        %v3486 = vadd.f32 0.0, %v3485
        %v3487 = vpop.f32.mrb[0].mxu0
        %v3488 = vadd.f32 0.0, %v3487
        %v3489 = vpop.f32.mrb[0].mxu0
        %v3490 = vadd.f32 0.0, %v3489
        %3491 = vdwg.mxu0
        %v3492 = vadd.f32 %v3293, %v3355
        %v3493 = vadd.f32 %v3294, %v3357
        %v3494 = vadd.f32 %v3295, %v3398
        %v3495 = vadd.f32 %v3296, %v3400
        %v3496 = vadd.f32 %v3297, %v3441
        %v3497 = vadd.f32 %v3298, %v3443
        %v3498 = vadd.f32 %v3299, %v3484
        %v3499 = vadd.f32 %v3300, %v3486
        %v3500 = vadd.f32 %v3301, %v3359
        %v3501 = vadd.f32 %v3302, %v3361
        %v3502 = vadd.f32 %v3303, %v3402
        %v3503 = vadd.f32 %v3304, %v3404
        %v3504 = vadd.f32 %v3305, %v3445
        %v3505 = vadd.f32 %v3306, %v3447
        %v3506 = vadd.f32 %v3307, %v3488
        %v3507 = vadd.f32 %v3308, %v3490
        %s3508 = scalar_lea.vmem %s0, 112
        %v3509 = vld [vmem:[%s3508] sm:$0xf]
        %v3510 = vld [vmem:[%s3508 + $0x4] sm:$0xf]
        %v3511 = vld [vmem:[#allocation2 + $0x18] sm:$0xff]
        %v3512 = vld [vmem:[#allocation2 + $0x20] sm:$0xff]
        %v3513 = vld [vmem:[#allocation2 + $0x28] sm:$0xff]
        %v3514 = vld [vmem:[#allocation2 + $0x30] sm:$0xff]
        %v3515 = vld [vmem:[#allocation2 + $0x38] sm:$0xff]
        %v3516 = vld [vmem:[#allocation2 + $0x40] sm:$0xff]
        %v3517 = vld [vmem:[#allocation2 + $0x48] sm:$0xff]
        %v3518 = vld [vmem:[#allocation2 + $0x50] sm:$0xff]
        %v3519 = vld [vmem:[#allocation2 + $0x58] sm:$0xff]
        %v3522 = vunpack.c.l.b16 %v3509
        %v3523 = vunpack.c.l.b16 %v3510
        %v3524 = vpack.c.b16 %v3523, %v3522
        %3534 = vrot.lane.b32.xlu0 %v3511, 127
        %v3535 = vpop.permute.xlu0 %3534
        %3536 = vrot.lane.b32.xlu0 %v3512, 127
        %v3537 = vpop.permute.xlu0 %3536
        %3538 = vrot.lane.b32.xlu0 %v3513, 127
        %v3539 = vpop.permute.xlu0 %3538
        %3540 = vrot.lane.b32.xlu0 %v3514, 127
        %v3541 = vpop.permute.xlu0 %3540
        %3542 = vrot.lane.b32.xlu0 %v3515, 127
        %v3543 = vpop.permute.xlu0 %3542
        %3544 = vrot.lane.b32.xlu0 %v3516, 127
        %v3545 = vpop.permute.xlu0 %3544
        %3546 = vrot.lane.b32.xlu0 %v3517, 127
        %v3547 = vpop.permute.xlu0 %3546
        %3548 = vrot.lane.b32.xlu0 %v3518, 127
        %v3549 = vpop.permute.xlu0 %3548
        %3550 = vrot.lane.b32.xlu0 %v3519, 127
        %v3551 = vpop.permute.xlu0 %3550
        %vm3552 = vcmask 1039360
        %v3553 = vsel %vm3552, %v3535, %v3537
        %v3554 = vsel %vm3552, %v3537, %v3539
        %v3555 = vsel %vm3552, %v3539, %v3541
        %v3556 = vsel %vm3552, %v3541, %v3543
        %v3557 = vsel %vm3552, %v3543, %v3545
        %v3558 = vsel %vm3552, %v3545, %v3547
        %v3559 = vsel %vm3552, %v3547, %v3549
        %v3560 = vsel %vm3552, %v3549, %v3551
        %v3570 = vsel %vm326, %v3524, 0
        %3572 = vmatprep.subr.bf16.mxu0 %v3554
        %3573 = vmatpush1.bf16.msra.mxu0 %v3553
        %3574 = vmatprep.subr.bf16.mxu0 0
        %3575 = vmatpush1.bf16.msra.mxu0 0
        %3576 = vmatprep.subr.bf16.mxu0 0
        %3577 = vmatpush1.bf16.msra.mxu0 0
        %3578 = vmatprep.subr.bf16.mxu0 0
        %3579 = vmatpush1.bf16.msra.mxu0 0
        %3580 = vmatprep.subr.bf16.mxu0 0
        %3581 = vmatpush1.bf16.msra.mxu0 0
        %3582 = vmatprep.subr.bf16.mxu0 0
        %3583 = vmatpush1.bf16.msra.mxu0 0
        %3584 = vmatprep.subr.bf16.mxu0 0
        %3585 = vmatpush1.bf16.msra.mxu0 0
        %3586 = vmatprep.subr.bf16.mxu0 0
        %3587 = vmatpush1.bf16.msra.mxu0 0
        %3588 = vmatprep.subr.bf16.mxu0 0
        %3589 = vmatpush1.bf16.msra.mxu0 0
        %3590 = vmatprep.subr.bf16.mxu0 0
        %3591 = vmatpush1.bf16.msra.mxu0 0
        %3592 = vmatprep.subr.bf16.mxu0 0
        %3593 = vmatpush1.bf16.msra.mxu0 0
        %3594 = vmatprep.subr.bf16.mxu0 0
        %3595 = vmatpush1.bf16.msra.mxu0 0
        %3596 = vmatprep.subr.bf16.mxu0 0
        %3597 = vmatpush1.bf16.msra.mxu0 0
        %3598 = vmatprep.subr.bf16.mxu0 0
        %3599 = vmatpush1.bf16.msra.mxu0 0
        %3600 = vmatprep.subr.bf16.mxu0 0
        %3601 = vmatpush1.bf16.msra.mxu0 0
        %3602 = vmatprep.subr.bf16.mxu0 0
        %3603 = vmatpush1.bf16.msra.mxu0 0
        %3604 = vmatprep.mubr.bf16.mxu0 0
        %3605 = vmatmul.mubr.bf16.gmra.mrb[0].mxu0 %v3570
        %v3606 = vpop.f32.mrb[0].mxu0
        %v3607 = vadd.f32 0.0, %v3606
        %v3608 = vpop.f32.mrb[0].mxu0
        %v3609 = vadd.f32 0.0, %v3608
        %v3610 = vpop.f32.mrb[0].mxu0
        %v3611 = vadd.f32 0.0, %v3610
        %v3612 = vpop.f32.mrb[0].mxu0
        %v3613 = vadd.f32 0.0, %v3612
        %3614 = vdwg.mxu0
        %3615 = vmatprep.subr.bf16.mxu0 %v3556
        %3616 = vmatpush1.bf16.msra.mxu0 %v3555
        %3617 = vmatprep.subr.bf16.mxu0 0
        %3618 = vmatpush1.bf16.msra.mxu0 0
        %3619 = vmatprep.subr.bf16.mxu0 0
        %3620 = vmatpush1.bf16.msra.mxu0 0
        %3621 = vmatprep.subr.bf16.mxu0 0
        %3622 = vmatpush1.bf16.msra.mxu0 0
        %3623 = vmatprep.subr.bf16.mxu0 0
        %3624 = vmatpush1.bf16.msra.mxu0 0
        %3625 = vmatprep.subr.bf16.mxu0 0
        %3626 = vmatpush1.bf16.msra.mxu0 0
        %3627 = vmatprep.subr.bf16.mxu0 0
        %3628 = vmatpush1.bf16.msra.mxu0 0
        %3629 = vmatprep.subr.bf16.mxu0 0
        %3630 = vmatpush1.bf16.msra.mxu0 0
        %3631 = vmatprep.subr.bf16.mxu0 0
        %3632 = vmatpush1.bf16.msra.mxu0 0
        %3633 = vmatprep.subr.bf16.mxu0 0
        %3634 = vmatpush1.bf16.msra.mxu0 0
        %3635 = vmatprep.subr.bf16.mxu0 0
        %3636 = vmatpush1.bf16.msra.mxu0 0
        %3637 = vmatprep.subr.bf16.mxu0 0
        %3638 = vmatpush1.bf16.msra.mxu0 0
        %3639 = vmatprep.subr.bf16.mxu0 0
        %3640 = vmatpush1.bf16.msra.mxu0 0
        %3641 = vmatprep.subr.bf16.mxu0 0
        %3642 = vmatpush1.bf16.msra.mxu0 0
        %3643 = vmatprep.subr.bf16.mxu0 0
        %3644 = vmatpush1.bf16.msra.mxu0 0
        %3645 = vmatprep.subr.bf16.mxu0 0
        %3646 = vmatpush1.bf16.msra.mxu0 0
        %3647 = vmatprep.mubr.bf16.mxu0 0
        %3648 = vmatmul.mubr.bf16.gmra.mrb[0].mxu0 %v3570
        %v3649 = vpop.f32.mrb[0].mxu0
        %v3650 = vadd.f32 0.0, %v3649
        %v3651 = vpop.f32.mrb[0].mxu0
        %v3652 = vadd.f32 0.0, %v3651
        %v3653 = vpop.f32.mrb[0].mxu0
        %v3654 = vadd.f32 0.0, %v3653
        %v3655 = vpop.f32.mrb[0].mxu0
        %v3656 = vadd.f32 0.0, %v3655
        %3657 = vdwg.mxu0
        %3658 = vmatprep.subr.bf16.mxu0 %v3558
        %3659 = vmatpush1.bf16.msra.mxu0 %v3557
        %3660 = vmatprep.subr.bf16.mxu0 0
        %3661 = vmatpush1.bf16.msra.mxu0 0
        %3662 = vmatprep.subr.bf16.mxu0 0
        %3663 = vmatpush1.bf16.msra.mxu0 0
        %3664 = vmatprep.subr.bf16.mxu0 0
        %3665 = vmatpush1.bf16.msra.mxu0 0
        %3666 = vmatprep.subr.bf16.mxu0 0
        %3667 = vmatpush1.bf16.msra.mxu0 0
        %3668 = vmatprep.subr.bf16.mxu0 0
        %3669 = vmatpush1.bf16.msra.mxu0 0
        %3670 = vmatprep.subr.bf16.mxu0 0
        %3671 = vmatpush1.bf16.msra.mxu0 0
        %3672 = vmatprep.subr.bf16.mxu0 0
        %3673 = vmatpush1.bf16.msra.mxu0 0
        %3674 = vmatprep.subr.bf16.mxu0 0
        %3675 = vmatpush1.bf16.msra.mxu0 0
        %3676 = vmatprep.subr.bf16.mxu0 0
        %3677 = vmatpush1.bf16.msra.mxu0 0
        %3678 = vmatprep.subr.bf16.mxu0 0
        %3679 = vmatpush1.bf16.msra.mxu0 0
        %3680 = vmatprep.subr.bf16.mxu0 0
        %3681 = vmatpush1.bf16.msra.mxu0 0
        %3682 = vmatprep.subr.bf16.mxu0 0
        %3683 = vmatpush1.bf16.msra.mxu0 0
        %3684 = vmatprep.subr.bf16.mxu0 0
        %3685 = vmatpush1.bf16.msra.mxu0 0
        %3686 = vmatprep.subr.bf16.mxu0 0
        %3687 = vmatpush1.bf16.msra.mxu0 0
        %3688 = vmatprep.subr.bf16.mxu0 0
        %3689 = vmatpush1.bf16.msra.mxu0 0
        %3690 = vmatprep.mubr.bf16.mxu0 0
        %3691 = vmatmul.mubr.bf16.gmra.mrb[0].mxu0 %v3570
        %v3692 = vpop.f32.mrb[0].mxu0
        %v3693 = vadd.f32 0.0, %v3692
        %v3694 = vpop.f32.mrb[0].mxu0
        %v3695 = vadd.f32 0.0, %v3694
        %v3696 = vpop.f32.mrb[0].mxu0
        %v3697 = vadd.f32 0.0, %v3696
        %v3698 = vpop.f32.mrb[0].mxu0
        %v3699 = vadd.f32 0.0, %v3698
        %3700 = vdwg.mxu0
        %3701 = vmatprep.subr.bf16.mxu0 %v3560
        %3702 = vmatpush1.bf16.msra.mxu0 %v3559
        %3703 = vmatprep.subr.bf16.mxu0 0
        %3704 = vmatpush1.bf16.msra.mxu0 0
        %3705 = vmatprep.subr.bf16.mxu0 0
        %3706 = vmatpush1.bf16.msra.mxu0 0
        %3707 = vmatprep.subr.bf16.mxu0 0
        %3708 = vmatpush1.bf16.msra.mxu0 0
        %3709 = vmatprep.subr.bf16.mxu0 0
        %3710 = vmatpush1.bf16.msra.mxu0 0
        %3711 = vmatprep.subr.bf16.mxu0 0
        %3712 = vmatpush1.bf16.msra.mxu0 0
        %3713 = vmatprep.subr.bf16.mxu0 0
        %3714 = vmatpush1.bf16.msra.mxu0 0
        %3715 = vmatprep.subr.bf16.mxu0 0
        %3716 = vmatpush1.bf16.msra.mxu0 0
        %3717 = vmatprep.subr.bf16.mxu0 0
        %3718 = vmatpush1.bf16.msra.mxu0 0
        %3719 = vmatprep.subr.bf16.mxu0 0
        %3720 = vmatpush1.bf16.msra.mxu0 0
        %3721 = vmatprep.subr.bf16.mxu0 0
        %3722 = vmatpush1.bf16.msra.mxu0 0
        %3723 = vmatprep.subr.bf16.mxu0 0
        %3724 = vmatpush1.bf16.msra.mxu0 0
        %3725 = vmatprep.subr.bf16.mxu0 0
        %3726 = vmatpush1.bf16.msra.mxu0 0
        %3727 = vmatprep.subr.bf16.mxu0 0
        %3728 = vmatpush1.bf16.msra.mxu0 0
        %3729 = vmatprep.subr.bf16.mxu0 0
        %3730 = vmatpush1.bf16.msra.mxu0 0
        %3731 = vmatprep.subr.bf16.mxu0 0
        %3732 = vmatpush1.bf16.msra.mxu0 0
        %3733 = vmatprep.mubr.bf16.mxu0 0
        %3734 = vmatmul.mubr.bf16.gmra.mrb[0].mxu0 %v3570
        %v3735 = vpop.f32.mrb[0].mxu0
        %v3736 = vadd.f32 0.0, %v3735
        %v3737 = vpop.f32.mrb[0].mxu0
        %v3738 = vadd.f32 0.0, %v3737
        %v3739 = vpop.f32.mrb[0].mxu0
        %v3740 = vadd.f32 0.0, %v3739
        %v3741 = vpop.f32.mrb[0].mxu0
        %v3742 = vadd.f32 0.0, %v3741
        %3743 = vdwg.mxu0
        %v3744 = vadd.f32 %v3492, %v3607
        %v3745 = vadd.f32 %v3493, %v3609
        %v3746 = vadd.f32 %v3494, %v3650
        %v3747 = vadd.f32 %v3495, %v3652
        %v3748 = vadd.f32 %v3496, %v3693
        %v3749 = vadd.f32 %v3497, %v3695
        %v3750 = vadd.f32 %v3498, %v3736
        %v3751 = vadd.f32 %v3499, %v3738
        %v3752 = vadd.f32 %v3500, %v3611
        %v3753 = vadd.f32 %v3501, %v3613
        %v3754 = vadd.f32 %v3502, %v3654
        %v3755 = vadd.f32 %v3503, %v3656
        %v3756 = vadd.f32 %v3504, %v3697
        %v3757 = vadd.f32 %v3505, %v3699
        %v3758 = vadd.f32 %v3506, %v3740
        %v3759 = vadd.f32 %v3507, %v3742
        %s3760 = scalar_lea.vmem %s0, 120
        %v3761 = vld [vmem:[%s3760] sm:$0xf]
        %v3762 = vld [vmem:[%s3760 + $0x4] sm:$0xf]
        %v3765 = vunpack.c.l.b16 %v3761
        %v3766 = vunpack.c.l.b16 %v3762
        %v3767 = vpack.c.b16 %v3766, %v3765
        %3768 = vrot.lane.b32.xlu0 %v3511, 111
        %v3769 = vpop.permute.xlu0 %3768
        %3770 = vrot.lane.b32.xlu0 %v3512, 111
        %v3771 = vpop.permute.xlu0 %3770
        %3772 = vrot.lane.b32.xlu0 %v3513, 111
        %v3773 = vpop.permute.xlu0 %3772
        %3774 = vrot.lane.b32.xlu0 %v3514, 111
        %v3775 = vpop.permute.xlu0 %3774
        %3776 = vrot.lane.b32.xlu0 %v3515, 111
        %v3777 = vpop.permute.xlu0 %3776
        %3778 = vrot.lane.b32.xlu0 %v3516, 111
        %v3779 = vpop.permute.xlu0 %3778
        %3780 = vrot.lane.b32.xlu0 %v3517, 111
        %v3781 = vpop.permute.xlu0 %3780
        %3782 = vrot.lane.b32.xlu0 %v3518, 111
        %v3783 = vpop.permute.xlu0 %3782
        %3784 = vrot.lane.b32.xlu0 %v3519, 111
        %v3785 = vpop.permute.xlu0 %3784
        %vm3786 = vcmask 908288
        %v3787 = vsel %vm3786, %v3769, %v3771
        %v3788 = vsel %vm3786, %v3771, %v3773
        %v3789 = vsel %vm3786, %v3773, %v3775
        %v3790 = vsel %vm3786, %v3775, %v3777
        %v3791 = vsel %vm3786, %v3777, %v3779
        %v3792 = vsel %vm3786, %v3779, %v3781
        %v3793 = vsel %vm3786, %v3781, %v3783
        %v3794 = vsel %vm3786, %v3783, %v3785
        %v3804 = vsel %vm326, %v3767, 0
        %3806 = vmatprep.subr.bf16.mxu0 %v3788
        %3807 = vmatpush1.bf16.msra.mxu0 %v3787
        %3808 = vmatprep.subr.bf16.mxu0 0
        %3809 = vmatpush1.bf16.msra.mxu0 0
        %3810 = vmatprep.subr.bf16.mxu0 0
        %3811 = vmatpush1.bf16.msra.mxu0 0
        %3812 = vmatprep.subr.bf16.mxu0 0
        %3813 = vmatpush1.bf16.msra.mxu0 0
        %3814 = vmatprep.subr.bf16.mxu0 0
        %3815 = vmatpush1.bf16.msra.mxu0 0
        %3816 = vmatprep.subr.bf16.mxu0 0
        %3817 = vmatpush1.bf16.msra.mxu0 0
        %3818 = vmatprep.subr.bf16.mxu0 0
        %3819 = vmatpush1.bf16.msra.mxu0 0
        %3820 = vmatprep.subr.bf16.mxu0 0
        %3821 = vmatpush1.bf16.msra.mxu0 0
        %3822 = vmatprep.subr.bf16.mxu0 0
        %3823 = vmatpush1.bf16.msra.mxu0 0
        %3824 = vmatprep.subr.bf16.mxu0 0
        %3825 = vmatpush1.bf16.msra.mxu0 0
        %3826 = vmatprep.subr.bf16.mxu0 0
        %3827 = vmatpush1.bf16.msra.mxu0 0
        %3828 = vmatprep.subr.bf16.mxu0 0
        %3829 = vmatpush1.bf16.msra.mxu0 0
        %3830 = vmatprep.subr.bf16.mxu0 0
        %3831 = vmatpush1.bf16.msra.mxu0 0
        %3832 = vmatprep.subr.bf16.mxu0 0
        %3833 = vmatpush1.bf16.msra.mxu0 0
        %3834 = vmatprep.subr.bf16.mxu0 0
        %3835 = vmatpush1.bf16.msra.mxu0 0
        %3836 = vmatprep.subr.bf16.mxu0 0
        %3837 = vmatpush1.bf16.msra.mxu0 0
        %3838 = vmatprep.mubr.bf16.mxu0 0
        %3839 = vmatmul.mubr.bf16.gmra.mrb[0].mxu0 %v3804
        %v3840 = vpop.f32.mrb[0].mxu0
        %v3841 = vadd.f32 0.0, %v3840
        %v3842 = vpop.f32.mrb[0].mxu0
        %v3843 = vadd.f32 0.0, %v3842
        %v3844 = vpop.f32.mrb[0].mxu0
        %v3845 = vadd.f32 0.0, %v3844
        %v3846 = vpop.f32.mrb[0].mxu0
        %v3847 = vadd.f32 0.0, %v3846
        %3848 = vdwg.mxu0
        %3849 = vmatprep.subr.bf16.mxu0 %v3790
        %3850 = vmatpush1.bf16.msra.mxu0 %v3789
        %3851 = vmatprep.subr.bf16.mxu0 0
        %3852 = vmatpush1.bf16.msra.mxu0 0
        %3853 = vmatprep.subr.bf16.mxu0 0
        %3854 = vmatpush1.bf16.msra.mxu0 0
        %3855 = vmatprep.subr.bf16.mxu0 0
        %3856 = vmatpush1.bf16.msra.mxu0 0
        %3857 = vmatprep.subr.bf16.mxu0 0
        %3858 = vmatpush1.bf16.msra.mxu0 0
        %3859 = vmatprep.subr.bf16.mxu0 0
        %3860 = vmatpush1.bf16.msra.mxu0 0
        %3861 = vmatprep.subr.bf16.mxu0 0
        %3862 = vmatpush1.bf16.msra.mxu0 0
        %3863 = vmatprep.subr.bf16.mxu0 0
        %3864 = vmatpush1.bf16.msra.mxu0 0
        %3865 = vmatprep.subr.bf16.mxu0 0
        %3866 = vmatpush1.bf16.msra.mxu0 0
        %3867 = vmatprep.subr.bf16.mxu0 0
        %3868 = vmatpush1.bf16.msra.mxu0 0
        %3869 = vmatprep.subr.bf16.mxu0 0
        %3870 = vmatpush1.bf16.msra.mxu0 0
        %3871 = vmatprep.subr.bf16.mxu0 0
        %3872 = vmatpush1.bf16.msra.mxu0 0
        %3873 = vmatprep.subr.bf16.mxu0 0
        %3874 = vmatpush1.bf16.msra.mxu0 0
        %3875 = vmatprep.subr.bf16.mxu0 0
        %3876 = vmatpush1.bf16.msra.mxu0 0
        %3877 = vmatprep.subr.bf16.mxu0 0
        %3878 = vmatpush1.bf16.msra.mxu0 0
        %3879 = vmatprep.subr.bf16.mxu0 0
        %3880 = vmatpush1.bf16.msra.mxu0 0
        %3881 = vmatprep.mubr.bf16.mxu0 0
        %3882 = vmatmul.mubr.bf16.gmra.mrb[0].mxu0 %v3804
        %v3883 = vpop.f32.mrb[0].mxu0
        %v3884 = vadd.f32 0.0, %v3883
        %v3885 = vpop.f32.mrb[0].mxu0
        %v3886 = vadd.f32 0.0, %v3885
        %v3887 = vpop.f32.mrb[0].mxu0
        %v3888 = vadd.f32 0.0, %v3887
        %v3889 = vpop.f32.mrb[0].mxu0
        %v3890 = vadd.f32 0.0, %v3889
        %3891 = vdwg.mxu0
        %3892 = vmatprep.subr.bf16.mxu0 %v3792
        %3893 = vmatpush1.bf16.msra.mxu0 %v3791
        %3894 = vmatprep.subr.bf16.mxu0 0
        %3895 = vmatpush1.bf16.msra.mxu0 0
        %3896 = vmatprep.subr.bf16.mxu0 0
        %3897 = vmatpush1.bf16.msra.mxu0 0
        %3898 = vmatprep.subr.bf16.mxu0 0
        %3899 = vmatpush1.bf16.msra.mxu0 0
        %3900 = vmatprep.subr.bf16.mxu0 0
        %3901 = vmatpush1.bf16.msra.mxu0 0
        %3902 = vmatprep.subr.bf16.mxu0 0
        %3903 = vmatpush1.bf16.msra.mxu0 0
        %3904 = vmatprep.subr.bf16.mxu0 0
        %3905 = vmatpush1.bf16.msra.mxu0 0
        %3906 = vmatprep.subr.bf16.mxu0 0
        %3907 = vmatpush1.bf16.msra.mxu0 0
        %3908 = vmatprep.subr.bf16.mxu0 0
        %3909 = vmatpush1.bf16.msra.mxu0 0
        %3910 = vmatprep.subr.bf16.mxu0 0
        %3911 = vmatpush1.bf16.msra.mxu0 0
        %3912 = vmatprep.subr.bf16.mxu0 0
        %3913 = vmatpush1.bf16.msra.mxu0 0
        %3914 = vmatprep.subr.bf16.mxu0 0
        %3915 = vmatpush1.bf16.msra.mxu0 0
        %3916 = vmatprep.subr.bf16.mxu0 0
        %3917 = vmatpush1.bf16.msra.mxu0 0
        %3918 = vmatprep.subr.bf16.mxu0 0
        %3919 = vmatpush1.bf16.msra.mxu0 0
        %3920 = vmatprep.subr.bf16.mxu0 0
        %3921 = vmatpush1.bf16.msra.mxu0 0
        %3922 = vmatprep.subr.bf16.mxu0 0
        %3923 = vmatpush1.bf16.msra.mxu0 0
        %3924 = vmatprep.mubr.bf16.mxu0 0
        %3925 = vmatmul.mubr.bf16.gmra.mrb[0].mxu0 %v3804
        %v3926 = vpop.f32.mrb[0].mxu0
        %v3927 = vadd.f32 0.0, %v3926
        %v3928 = vpop.f32.mrb[0].mxu0
        %v3929 = vadd.f32 0.0, %v3928
        %v3930 = vpop.f32.mrb[0].mxu0
        %v3931 = vadd.f32 0.0, %v3930
        %v3932 = vpop.f32.mrb[0].mxu0
        %v3933 = vadd.f32 0.0, %v3932
        %3934 = vdwg.mxu0
        %3935 = vmatprep.subr.bf16.mxu0 %v3794
        %3936 = vmatpush1.bf16.msra.mxu0 %v3793
        %3937 = vmatprep.subr.bf16.mxu0 0
        %3938 = vmatpush1.bf16.msra.mxu0 0
        %3939 = vmatprep.subr.bf16.mxu0 0
        %3940 = vmatpush1.bf16.msra.mxu0 0
        %3941 = vmatprep.subr.bf16.mxu0 0
        %3942 = vmatpush1.bf16.msra.mxu0 0
        %3943 = vmatprep.subr.bf16.mxu0 0
        %3944 = vmatpush1.bf16.msra.mxu0 0
        %3945 = vmatprep.subr.bf16.mxu0 0
        %3946 = vmatpush1.bf16.msra.mxu0 0
        %3947 = vmatprep.subr.bf16.mxu0 0
        %3948 = vmatpush1.bf16.msra.mxu0 0
        %3949 = vmatprep.subr.bf16.mxu0 0
        %3950 = vmatpush1.bf16.msra.mxu0 0
        %3951 = vmatprep.subr.bf16.mxu0 0
        %3952 = vmatpush1.bf16.msra.mxu0 0
        %3953 = vmatprep.subr.bf16.mxu0 0
        %3954 = vmatpush1.bf16.msra.mxu0 0
        %3955 = vmatprep.subr.bf16.mxu0 0
        %3956 = vmatpush1.bf16.msra.mxu0 0
        %3957 = vmatprep.subr.bf16.mxu0 0
        %3958 = vmatpush1.bf16.msra.mxu0 0
        %3959 = vmatprep.subr.bf16.mxu0 0
        %3960 = vmatpush1.bf16.msra.mxu0 0
        %3961 = vmatprep.subr.bf16.mxu0 0
        %3962 = vmatpush1.bf16.msra.mxu0 0
        %3963 = vmatprep.subr.bf16.mxu0 0
        %3964 = vmatpush1.bf16.msra.mxu0 0
        %3965 = vmatprep.subr.bf16.mxu0 0
        %3966 = vmatpush1.bf16.msra.mxu0 0
        %3967 = vmatprep.mubr.bf16.mxu0 0
        %3968 = vmatmul.mubr.bf16.gmra.mrb[0].mxu0 %v3804
        %v3969 = vpop.f32.mrb[0].mxu0
        %v3970 = vadd.f32 0.0, %v3969
        %v3971 = vpop.f32.mrb[0].mxu0
        %v3972 = vadd.f32 0.0, %v3971
        %v3973 = vpop.f32.mrb[0].mxu0
        %v3974 = vadd.f32 0.0, %v3973
        %v3975 = vpop.f32.mrb[0].mxu0
        %v3976 = vadd.f32 0.0, %v3975
        %3977 = vdwg.mxu0
        %v3978 = vadd.f32 %v3744, %v3841
        %v3979 = vadd.f32 %v3745, %v3843
        %v3980 = vadd.f32 %v3746, %v3884
        %v3981 = vadd.f32 %v3747, %v3886
        %v3982 = vadd.f32 %v3748, %v3927
        %v3983 = vadd.f32 %v3749, %v3929
        %v3984 = vadd.f32 %v3750, %v3970
        %v3985 = vadd.f32 %v3751, %v3972
        %v3986 = vadd.f32 %v3752, %v3845
        %v3987 = vadd.f32 %v3753, %v3847
        %v3988 = vadd.f32 %v3754, %v3888
        %v3989 = vadd.f32 %v3755, %v3890
        %v3990 = vadd.f32 %v3756, %v3931
        %v3991 = vadd.f32 %v3757, %v3933
        %v3992 = vadd.f32 %v3758, %v3974
        %v3993 = vadd.f32 %v3759, %v3976
        %s3994 = scalar_lea.vmem %s0, 128
        %v3995 = vld [vmem:[%s3994] sm:$0xf]
        %v3996 = vld [vmem:[%s3994 + $0x4] sm:$0xf]
        %v3999 = vunpack.c.l.b16 %v3995
        %v4000 = vunpack.c.l.b16 %v3996
        %v4001 = vpack.c.b16 %v4000, %v3999
        %4002 = vrot.lane.b32.xlu0 %v3511, 110
        %v4003 = vpop.permute.xlu0 %4002
        %4004 = vrot.lane.b32.xlu0 %v3512, 110
        %v4005 = vpop.permute.xlu0 %4004
        %4006 = vrot.lane.b32.xlu0 %v3513, 110
        %v4007 = vpop.permute.xlu0 %4006
        %4008 = vrot.lane.b32.xlu0 %v3514, 110
        %v4009 = vpop.permute.xlu0 %4008
        %4010 = vrot.lane.b32.xlu0 %v3515, 110
        %v4011 = vpop.permute.xlu0 %4010
        %4012 = vrot.lane.b32.xlu0 %v3516, 110
        %v4013 = vpop.permute.xlu0 %4012
        %4014 = vrot.lane.b32.xlu0 %v3517, 110
        %v4015 = vpop.permute.xlu0 %4014
        %4016 = vrot.lane.b32.xlu0 %v3518, 110
        %v4017 = vpop.permute.xlu0 %4016
        %4018 = vrot.lane.b32.xlu0 %v3519, 110
        %v4019 = vpop.permute.xlu0 %4018
        %vm4020 = vcmask 900096
        %v4021 = vsel %vm4020, %v4003, %v4005
        %v4022 = vsel %vm4020, %v4005, %v4007
        %v4023 = vsel %vm4020, %v4007, %v4009
        %v4024 = vsel %vm4020, %v4009, %v4011
        %v4025 = vsel %vm4020, %v4011, %v4013
        %v4026 = vsel %vm4020, %v4013, %v4015
        %v4027 = vsel %vm4020, %v4015, %v4017
        %v4028 = vsel %vm4020, %v4017, %v4019
        %v4038 = vsel %vm326, %v4001, 0
        %4040 = vmatprep.subr.bf16.mxu0 %v4022
        %4041 = vmatpush1.bf16.msra.mxu0 %v4021
        %4042 = vmatprep.subr.bf16.mxu0 0
        %4043 = vmatpush1.bf16.msra.mxu0 0
        %4044 = vmatprep.subr.bf16.mxu0 0
        %4045 = vmatpush1.bf16.msra.mxu0 0
        %4046 = vmatprep.subr.bf16.mxu0 0
        %4047 = vmatpush1.bf16.msra.mxu0 0
        %4048 = vmatprep.subr.bf16.mxu0 0
        %4049 = vmatpush1.bf16.msra.mxu0 0
        %4050 = vmatprep.subr.bf16.mxu0 0
        %4051 = vmatpush1.bf16.msra.mxu0 0
        %4052 = vmatprep.subr.bf16.mxu0 0
        %4053 = vmatpush1.bf16.msra.mxu0 0
        %4054 = vmatprep.subr.bf16.mxu0 0
        %4055 = vmatpush1.bf16.msra.mxu0 0
        %4056 = vmatprep.subr.bf16.mxu0 0
        %4057 = vmatpush1.bf16.msra.mxu0 0
        %4058 = vmatprep.subr.bf16.mxu0 0
        %4059 = vmatpush1.bf16.msra.mxu0 0
        %4060 = vmatprep.subr.bf16.mxu0 0
        %4061 = vmatpush1.bf16.msra.mxu0 0
        %4062 = vmatprep.subr.bf16.mxu0 0
        %4063 = vmatpush1.bf16.msra.mxu0 0
        %4064 = vmatprep.subr.bf16.mxu0 0
        %4065 = vmatpush1.bf16.msra.mxu0 0
        %4066 = vmatprep.subr.bf16.mxu0 0
        %4067 = vmatpush1.bf16.msra.mxu0 0
        %4068 = vmatprep.subr.bf16.mxu0 0
        %4069 = vmatpush1.bf16.msra.mxu0 0
        %4070 = vmatprep.subr.bf16.mxu0 0
        %4071 = vmatpush1.bf16.msra.mxu0 0
        %4072 = vmatprep.mubr.bf16.mxu0 0
        %4073 = vmatmul.mubr.bf16.gmra.mrb[0].mxu0 %v4038
        %v4074 = vpop.f32.mrb[0].mxu0
        %v4075 = vadd.f32 0.0, %v4074
        %v4076 = vpop.f32.mrb[0].mxu0
        %v4077 = vadd.f32 0.0, %v4076
        %v4078 = vpop.f32.mrb[0].mxu0
        %v4079 = vadd.f32 0.0, %v4078
        %v4080 = vpop.f32.mrb[0].mxu0
        %v4081 = vadd.f32 0.0, %v4080
        %4082 = vdwg.mxu0
        %4083 = vmatprep.subr.bf16.mxu0 %v4024
        %4084 = vmatpush1.bf16.msra.mxu0 %v4023
        %4085 = vmatprep.subr.bf16.mxu0 0
        %4086 = vmatpush1.bf16.msra.mxu0 0
        %4087 = vmatprep.subr.bf16.mxu0 0
        %4088 = vmatpush1.bf16.msra.mxu0 0
        %4089 = vmatprep.subr.bf16.mxu0 0
        %4090 = vmatpush1.bf16.msra.mxu0 0
        %4091 = vmatprep.subr.bf16.mxu0 0
        %4092 = vmatpush1.bf16.msra.mxu0 0
        %4093 = vmatprep.subr.bf16.mxu0 0
        %4094 = vmatpush1.bf16.msra.mxu0 0
        %4095 = vmatprep.subr.bf16.mxu0 0
        %4096 = vmatpush1.bf16.msra.mxu0 0
        %4097 = vmatprep.subr.bf16.mxu0 0
        %4098 = vmatpush1.bf16.msra.mxu0 0
        %4099 = vmatprep.subr.bf16.mxu0 0
        %4100 = vmatpush1.bf16.msra.mxu0 0
        %4101 = vmatprep.subr.bf16.mxu0 0
        %4102 = vmatpush1.bf16.msra.mxu0 0
        %4103 = vmatprep.subr.bf16.mxu0 0
        %4104 = vmatpush1.bf16.msra.mxu0 0
        %4105 = vmatprep.subr.bf16.mxu0 0
        %4106 = vmatpush1.bf16.msra.mxu0 0
        %4107 = vmatprep.subr.bf16.mxu0 0
        %4108 = vmatpush1.bf16.msra.mxu0 0
        %4109 = vmatprep.subr.bf16.mxu0 0
        %4110 = vmatpush1.bf16.msra.mxu0 0
        %4111 = vmatprep.subr.bf16.mxu0 0
        %4112 = vmatpush1.bf16.msra.mxu0 0
        %4113 = vmatprep.subr.bf16.mxu0 0
        %4114 = vmatpush1.bf16.msra.mxu0 0
        %4115 = vmatprep.mubr.bf16.mxu0 0
        %4116 = vmatmul.mubr.bf16.gmra.mrb[0].mxu0 %v4038
        %v4117 = vpop.f32.mrb[0].mxu0
        %v4118 = vadd.f32 0.0, %v4117
        %v4119 = vpop.f32.mrb[0].mxu0
        %v4120 = vadd.f32 0.0, %v4119
        %v4121 = vpop.f32.mrb[0].mxu0
        %v4122 = vadd.f32 0.0, %v4121
        %v4123 = vpop.f32.mrb[0].mxu0
        %v4124 = vadd.f32 0.0, %v4123
        %4125 = vdwg.mxu0
        %4126 = vmatprep.subr.bf16.mxu0 %v4026
        %4127 = vmatpush1.bf16.msra.mxu0 %v4025
        %4128 = vmatprep.subr.bf16.mxu0 0
        %4129 = vmatpush1.bf16.msra.mxu0 0
        %4130 = vmatprep.subr.bf16.mxu0 0
        %4131 = vmatpush1.bf16.msra.mxu0 0
        %4132 = vmatprep.subr.bf16.mxu0 0
        %4133 = vmatpush1.bf16.msra.mxu0 0
        %4134 = vmatprep.subr.bf16.mxu0 0
        %4135 = vmatpush1.bf16.msra.mxu0 0
        %4136 = vmatprep.subr.bf16.mxu0 0
        %4137 = vmatpush1.bf16.msra.mxu0 0
        %4138 = vmatprep.subr.bf16.mxu0 0
        %4139 = vmatpush1.bf16.msra.mxu0 0
        %4140 = vmatprep.subr.bf16.mxu0 0
        %4141 = vmatpush1.bf16.msra.mxu0 0
        %4142 = vmatprep.subr.bf16.mxu0 0
        %4143 = vmatpush1.bf16.msra.mxu0 0
        %4144 = vmatprep.subr.bf16.mxu0 0
        %4145 = vmatpush1.bf16.msra.mxu0 0
        %4146 = vmatprep.subr.bf16.mxu0 0
        %4147 = vmatpush1.bf16.msra.mxu0 0
        %4148 = vmatprep.subr.bf16.mxu0 0
        %4149 = vmatpush1.bf16.msra.mxu0 0
        %4150 = vmatprep.subr.bf16.mxu0 0
        %4151 = vmatpush1.bf16.msra.mxu0 0
        %4152 = vmatprep.subr.bf16.mxu0 0
        %4153 = vmatpush1.bf16.msra.mxu0 0
        %4154 = vmatprep.subr.bf16.mxu0 0
        %4155 = vmatpush1.bf16.msra.mxu0 0
        %4156 = vmatprep.subr.bf16.mxu0 0
        %4157 = vmatpush1.bf16.msra.mxu0 0
        %4158 = vmatprep.mubr.bf16.mxu0 0
        %4159 = vmatmul.mubr.bf16.gmra.mrb[0].mxu0 %v4038
        %v4160 = vpop.f32.mrb[0].mxu0
        %v4161 = vadd.f32 0.0, %v4160
        %v4162 = vpop.f32.mrb[0].mxu0
        %v4163 = vadd.f32 0.0, %v4162
        %v4164 = vpop.f32.mrb[0].mxu0
        %v4165 = vadd.f32 0.0, %v4164
        %v4166 = vpop.f32.mrb[0].mxu0
        %v4167 = vadd.f32 0.0, %v4166
        %4168 = vdwg.mxu0
        %4169 = vmatprep.subr.bf16.mxu0 %v4028
        %4170 = vmatpush1.bf16.msra.mxu0 %v4027
        %4171 = vmatprep.subr.bf16.mxu0 0
        %4172 = vmatpush1.bf16.msra.mxu0 0
        %4173 = vmatprep.subr.bf16.mxu0 0
        %4174 = vmatpush1.bf16.msra.mxu0 0
        %4175 = vmatprep.subr.bf16.mxu0 0
        %4176 = vmatpush1.bf16.msra.mxu0 0
        %4177 = vmatprep.subr.bf16.mxu0 0
        %4178 = vmatpush1.bf16.msra.mxu0 0
        %4179 = vmatprep.subr.bf16.mxu0 0
        %4180 = vmatpush1.bf16.msra.mxu0 0
        %4181 = vmatprep.subr.bf16.mxu0 0
        %4182 = vmatpush1.bf16.msra.mxu0 0
        %4183 = vmatprep.subr.bf16.mxu0 0
        %4184 = vmatpush1.bf16.msra.mxu0 0
        %4185 = vmatprep.subr.bf16.mxu0 0
        %4186 = vmatpush1.bf16.msra.mxu0 0
        %4187 = vmatprep.subr.bf16.mxu0 0
        %4188 = vmatpush1.bf16.msra.mxu0 0
        %4189 = vmatprep.subr.bf16.mxu0 0
        %4190 = vmatpush1.bf16.msra.mxu0 0
        %4191 = vmatprep.subr.bf16.mxu0 0
        %4192 = vmatpush1.bf16.msra.mxu0 0
        %4193 = vmatprep.subr.bf16.mxu0 0
        %4194 = vmatpush1.bf16.msra.mxu0 0
        %4195 = vmatprep.subr.bf16.mxu0 0
        %4196 = vmatpush1.bf16.msra.mxu0 0
        %4197 = vmatprep.subr.bf16.mxu0 0
        %4198 = vmatpush1.bf16.msra.mxu0 0
        %4199 = vmatprep.subr.bf16.mxu0 0
        %4200 = vmatpush1.bf16.msra.mxu0 0
        %4201 = vmatprep.mubr.bf16.mxu0 0
        %4202 = vmatmul.mubr.bf16.gmra.mrb[0].mxu0 %v4038
        %v4203 = vpop.f32.mrb[0].mxu0
        %v4204 = vadd.f32 0.0, %v4203
        %v4205 = vpop.f32.mrb[0].mxu0
        %v4206 = vadd.f32 0.0, %v4205
        %v4207 = vpop.f32.mrb[0].mxu0
        %v4208 = vadd.f32 0.0, %v4207
        %v4209 = vpop.f32.mrb[0].mxu0
        %v4210 = vadd.f32 0.0, %v4209
        %4211 = vdwg.mxu0
        %v4212 = vadd.f32 %v3978, %v4075
        %v4213 = vadd.f32 %v3979, %v4077
        %v4214 = vadd.f32 %v3980, %v4118
        %v4215 = vadd.f32 %v3981, %v4120
        %v4216 = vadd.f32 %v3982, %v4161
        %v4217 = vadd.f32 %v3983, %v4163
        %v4218 = vadd.f32 %v3984, %v4204
        %v4219 = vadd.f32 %v3985, %v4206
        %v4220 = vadd.f32 %v3986, %v4079
        %v4221 = vadd.f32 %v3987, %v4081
        %v4222 = vadd.f32 %v3988, %v4122
        %v4223 = vadd.f32 %v3989, %v4124
        %v4224 = vadd.f32 %v3990, %v4165
        %v4225 = vadd.f32 %v3991, %v4167
        %v4226 = vadd.f32 %v3992, %v4208
        %v4227 = vadd.f32 %v3993, %v4210
        %s4228 = scalar_lea.vmem %s0, 136
        %v4229 = vld [vmem:[%s4228] sm:$0xf]
        %v4230 = vld [vmem:[%s4228 + $0x4] sm:$0xf]
        %v4233 = vunpack.c.l.b16 %v4229
        %v4234 = vunpack.c.l.b16 %v4230
        %v4235 = vpack.c.b16 %v4234, %v4233
        %4236 = vrot.lane.b32.xlu0 %v3511, 109
        %v4237 = vpop.permute.xlu0 %4236
        %4238 = vrot.lane.b32.xlu0 %v3512, 109
        %v4239 = vpop.permute.xlu0 %4238
        %4240 = vrot.lane.b32.xlu0 %v3513, 109
        %v4241 = vpop.permute.xlu0 %4240
        %4242 = vrot.lane.b32.xlu0 %v3514, 109
        %v4243 = vpop.permute.xlu0 %4242
        %4244 = vrot.lane.b32.xlu0 %v3515, 109
        %v4245 = vpop.permute.xlu0 %4244
        %4246 = vrot.lane.b32.xlu0 %v3516, 109
        %v4247 = vpop.permute.xlu0 %4246
        %4248 = vrot.lane.b32.xlu0 %v3517, 109
        %v4249 = vpop.permute.xlu0 %4248
        %4250 = vrot.lane.b32.xlu0 %v3518, 109
        %v4251 = vpop.permute.xlu0 %4250
        %4252 = vrot.lane.b32.xlu0 %v3519, 109
        %v4253 = vpop.permute.xlu0 %4252
        %vm4254 = vcmask 891904
        %v4255 = vsel %vm4254, %v4237, %v4239
        %v4256 = vsel %vm4254, %v4239, %v4241
        %v4257 = vsel %vm4254, %v4241, %v4243
        %v4258 = vsel %vm4254, %v4243, %v4245
        %v4259 = vsel %vm4254, %v4245, %v4247
        %v4260 = vsel %vm4254, %v4247, %v4249
        %v4261 = vsel %vm4254, %v4249, %v4251
        %v4262 = vsel %vm4254, %v4251, %v4253
        %v4272 = vsel %vm326, %v4235, 0
        %4274 = vmatprep.subr.bf16.mxu0 %v4256
        %4275 = vmatpush1.bf16.msra.mxu0 %v4255
        %4276 = vmatprep.subr.bf16.mxu0 0
        %4277 = vmatpush1.bf16.msra.mxu0 0
        %4278 = vmatprep.subr.bf16.mxu0 0
        %4279 = vmatpush1.bf16.msra.mxu0 0
        %4280 = vmatprep.subr.bf16.mxu0 0
        %4281 = vmatpush1.bf16.msra.mxu0 0
        %4282 = vmatprep.subr.bf16.mxu0 0
        %4283 = vmatpush1.bf16.msra.mxu0 0
        %4284 = vmatprep.subr.bf16.mxu0 0
        %4285 = vmatpush1.bf16.msra.mxu0 0
        %4286 = vmatprep.subr.bf16.mxu0 0
        %4287 = vmatpush1.bf16.msra.mxu0 0
        %4288 = vmatprep.subr.bf16.mxu0 0
        %4289 = vmatpush1.bf16.msra.mxu0 0
        %4290 = vmatprep.subr.bf16.mxu0 0
        %4291 = vmatpush1.bf16.msra.mxu0 0
        %4292 = vmatprep.subr.bf16.mxu0 0
        %4293 = vmatpush1.bf16.msra.mxu0 0
        %4294 = vmatprep.subr.bf16.mxu0 0
        %4295 = vmatpush1.bf16.msra.mxu0 0
        %4296 = vmatprep.subr.bf16.mxu0 0
        %4297 = vmatpush1.bf16.msra.mxu0 0
        %4298 = vmatprep.subr.bf16.mxu0 0
        %4299 = vmatpush1.bf16.msra.mxu0 0
        %4300 = vmatprep.subr.bf16.mxu0 0
        %4301 = vmatpush1.bf16.msra.mxu0 0
        %4302 = vmatprep.subr.bf16.mxu0 0
        %4303 = vmatpush1.bf16.msra.mxu0 0
        %4304 = vmatprep.subr.bf16.mxu0 0
        %4305 = vmatpush1.bf16.msra.mxu0 0
        %4306 = vmatprep.mubr.bf16.mxu0 0
        %4307 = vmatmul.mubr.bf16.gmra.mrb[0].mxu0 %v4272
        %v4308 = vpop.f32.mrb[0].mxu0
        %v4309 = vadd.f32 0.0, %v4308
        %v4310 = vpop.f32.mrb[0].mxu0
        %v4311 = vadd.f32 0.0, %v4310
        %v4312 = vpop.f32.mrb[0].mxu0
        %v4313 = vadd.f32 0.0, %v4312
        %v4314 = vpop.f32.mrb[0].mxu0
        %v4315 = vadd.f32 0.0, %v4314
        %4316 = vdwg.mxu0
        %4317 = vmatprep.subr.bf16.mxu0 %v4258
        %4318 = vmatpush1.bf16.msra.mxu0 %v4257
        %4319 = vmatprep.subr.bf16.mxu0 0
        %4320 = vmatpush1.bf16.msra.mxu0 0
        %4321 = vmatprep.subr.bf16.mxu0 0
        %4322 = vmatpush1.bf16.msra.mxu0 0
        %4323 = vmatprep.subr.bf16.mxu0 0
        %4324 = vmatpush1.bf16.msra.mxu0 0
        %4325 = vmatprep.subr.bf16.mxu0 0
        %4326 = vmatpush1.bf16.msra.mxu0 0
        %4327 = vmatprep.subr.bf16.mxu0 0
        %4328 = vmatpush1.bf16.msra.mxu0 0
        %4329 = vmatprep.subr.bf16.mxu0 0
        %4330 = vmatpush1.bf16.msra.mxu0 0
        %4331 = vmatprep.subr.bf16.mxu0 0
        %4332 = vmatpush1.bf16.msra.mxu0 0
        %4333 = vmatprep.subr.bf16.mxu0 0
        %4334 = vmatpush1.bf16.msra.mxu0 0
        %4335 = vmatprep.subr.bf16.mxu0 0
        %4336 = vmatpush1.bf16.msra.mxu0 0
        %4337 = vmatprep.subr.bf16.mxu0 0
        %4338 = vmatpush1.bf16.msra.mxu0 0
        %4339 = vmatprep.subr.bf16.mxu0 0
        %4340 = vmatpush1.bf16.msra.mxu0 0
        %4341 = vmatprep.subr.bf16.mxu0 0
        %4342 = vmatpush1.bf16.msra.mxu0 0
        %4343 = vmatprep.subr.bf16.mxu0 0
        %4344 = vmatpush1.bf16.msra.mxu0 0
        %4345 = vmatprep.subr.bf16.mxu0 0
        %4346 = vmatpush1.bf16.msra.mxu0 0
        %4347 = vmatprep.subr.bf16.mxu0 0
        %4348 = vmatpush1.bf16.msra.mxu0 0
        %4349 = vmatprep.mubr.bf16.mxu0 0
        %4350 = vmatmul.mubr.bf16.gmra.mrb[0].mxu0 %v4272
        %v4351 = vpop.f32.mrb[0].mxu0
        %v4352 = vadd.f32 0.0, %v4351
        %v4353 = vpop.f32.mrb[0].mxu0
        %v4354 = vadd.f32 0.0, %v4353
        %v4355 = vpop.f32.mrb[0].mxu0
        %v4356 = vadd.f32 0.0, %v4355
        %v4357 = vpop.f32.mrb[0].mxu0
        %v4358 = vadd.f32 0.0, %v4357
        %4359 = vdwg.mxu0
        %4360 = vmatprep.subr.bf16.mxu0 %v4260
        %4361 = vmatpush1.bf16.msra.mxu0 %v4259
        %4362 = vmatprep.subr.bf16.mxu0 0
        %4363 = vmatpush1.bf16.msra.mxu0 0
        %4364 = vmatprep.subr.bf16.mxu0 0
        %4365 = vmatpush1.bf16.msra.mxu0 0
        %4366 = vmatprep.subr.bf16.mxu0 0
        %4367 = vmatpush1.bf16.msra.mxu0 0
        %4368 = vmatprep.subr.bf16.mxu0 0
        %4369 = vmatpush1.bf16.msra.mxu0 0
        %4370 = vmatprep.subr.bf16.mxu0 0
        %4371 = vmatpush1.bf16.msra.mxu0 0
        %4372 = vmatprep.subr.bf16.mxu0 0
        %4373 = vmatpush1.bf16.msra.mxu0 0
        %4374 = vmatprep.subr.bf16.mxu0 0
        %4375 = vmatpush1.bf16.msra.mxu0 0
        %4376 = vmatprep.subr.bf16.mxu0 0
        %4377 = vmatpush1.bf16.msra.mxu0 0
        %4378 = vmatprep.subr.bf16.mxu0 0
        %4379 = vmatpush1.bf16.msra.mxu0 0
        %4380 = vmatprep.subr.bf16.mxu0 0
        %4381 = vmatpush1.bf16.msra.mxu0 0
        %4382 = vmatprep.subr.bf16.mxu0 0
        %4383 = vmatpush1.bf16.msra.mxu0 0
        %4384 = vmatprep.subr.bf16.mxu0 0
        %4385 = vmatpush1.bf16.msra.mxu0 0
        %4386 = vmatprep.subr.bf16.mxu0 0
        %4387 = vmatpush1.bf16.msra.mxu0 0
        %4388 = vmatprep.subr.bf16.mxu0 0
        %4389 = vmatpush1.bf16.msra.mxu0 0
        %4390 = vmatprep.subr.bf16.mxu0 0
        %4391 = vmatpush1.bf16.msra.mxu0 0
        %4392 = vmatprep.mubr.bf16.mxu0 0
        %4393 = vmatmul.mubr.bf16.gmra.mrb[0].mxu0 %v4272
        %v4394 = vpop.f32.mrb[0].mxu0
        %v4395 = vadd.f32 0.0, %v4394
        %v4396 = vpop.f32.mrb[0].mxu0
        %v4397 = vadd.f32 0.0, %v4396
        %v4398 = vpop.f32.mrb[0].mxu0
        %v4399 = vadd.f32 0.0, %v4398
        %v4400 = vpop.f32.mrb[0].mxu0
        %v4401 = vadd.f32 0.0, %v4400
        %4402 = vdwg.mxu0
        %4403 = vmatprep.subr.bf16.mxu0 %v4262
        %4404 = vmatpush1.bf16.msra.mxu0 %v4261
        %4405 = vmatprep.subr.bf16.mxu0 0
        %4406 = vmatpush1.bf16.msra.mxu0 0
        %4407 = vmatprep.subr.bf16.mxu0 0
        %4408 = vmatpush1.bf16.msra.mxu0 0
        %4409 = vmatprep.subr.bf16.mxu0 0
        %4410 = vmatpush1.bf16.msra.mxu0 0
        %4411 = vmatprep.subr.bf16.mxu0 0
        %4412 = vmatpush1.bf16.msra.mxu0 0
        %4413 = vmatprep.subr.bf16.mxu0 0
        %4414 = vmatpush1.bf16.msra.mxu0 0
        %4415 = vmatprep.subr.bf16.mxu0 0
        %4416 = vmatpush1.bf16.msra.mxu0 0
        %4417 = vmatprep.subr.bf16.mxu0 0
        %4418 = vmatpush1.bf16.msra.mxu0 0
        %4419 = vmatprep.subr.bf16.mxu0 0
        %4420 = vmatpush1.bf16.msra.mxu0 0
        %4421 = vmatprep.subr.bf16.mxu0 0
        %4422 = vmatpush1.bf16.msra.mxu0 0
        %4423 = vmatprep.subr.bf16.mxu0 0
        %4424 = vmatpush1.bf16.msra.mxu0 0
        %4425 = vmatprep.subr.bf16.mxu0 0
        %4426 = vmatpush1.bf16.msra.mxu0 0
        %4427 = vmatprep.subr.bf16.mxu0 0
        %4428 = vmatpush1.bf16.msra.mxu0 0
        %4429 = vmatprep.subr.bf16.mxu0 0
        %4430 = vmatpush1.bf16.msra.mxu0 0
        %4431 = vmatprep.subr.bf16.mxu0 0
        %4432 = vmatpush1.bf16.msra.mxu0 0
        %4433 = vmatprep.subr.bf16.mxu0 0
        %4434 = vmatpush1.bf16.msra.mxu0 0
        %4435 = vmatprep.mubr.bf16.mxu0 0
        %4436 = vmatmul.mubr.bf16.gmra.mrb[0].mxu0 %v4272
        %v4437 = vpop.f32.mrb[0].mxu0
        %v4438 = vadd.f32 0.0, %v4437
        %v4439 = vpop.f32.mrb[0].mxu0
        %v4440 = vadd.f32 0.0, %v4439
        %v4441 = vpop.f32.mrb[0].mxu0
        %v4442 = vadd.f32 0.0, %v4441
        %v4443 = vpop.f32.mrb[0].mxu0
        %v4444 = vadd.f32 0.0, %v4443
        %4445 = vdwg.mxu0
        %v4446 = vadd.f32 %v4212, %v4309
        %v4447 = vadd.f32 %v4213, %v4311
        %v4448 = vadd.f32 %v4214, %v4352
        %v4449 = vadd.f32 %v4215, %v4354
        %v4450 = vadd.f32 %v4216, %v4395
        %v4451 = vadd.f32 %v4217, %v4397
        %v4452 = vadd.f32 %v4218, %v4438
        %v4453 = vadd.f32 %v4219, %v4440
        %v4454 = vadd.f32 %v4220, %v4313
        %v4455 = vadd.f32 %v4221, %v4315
        %v4456 = vadd.f32 %v4222, %v4356
        %v4457 = vadd.f32 %v4223, %v4358
        %v4458 = vadd.f32 %v4224, %v4399
        %v4459 = vadd.f32 %v4225, %v4401
        %v4460 = vadd.f32 %v4226, %v4442
        %v4461 = vadd.f32 %v4227, %v4444
        %s4462 = scalar_lea.vmem %s0, 144
        %v4463 = vld [vmem:[%s4462] sm:$0xf]
        %v4464 = vld [vmem:[%s4462 + $0x4] sm:$0xf]
        %v4465 = vld [vmem:[#allocation2 + $0x28] sm:$0xff]
        %v4466 = vld [vmem:[#allocation2 + $0x30] sm:$0xff]
        %v4467 = vld [vmem:[#allocation2 + $0x38] sm:$0xff]
        %v4468 = vld [vmem:[#allocation2 + $0x40] sm:$0xff]
        %v4469 = vld [vmem:[#allocation2 + $0x48] sm:$0xff]
        %v4470 = vld [vmem:[#allocation2 + $0x50] sm:$0xff]
        %v4471 = vld [vmem:[#allocation2 + $0x58] sm:$0xff]
        %v4472 = vld [vmem:[#allocation2 + $0x60] sm:$0xff]
        %v4473 = vld [vmem:[#allocation2 + $0x68] sm:$0xff]
        %v4476 = vunpack.c.l.b16 %v4463
        %v4477 = vunpack.c.l.b16 %v4464
        %v4478 = vpack.c.b16 %v4477, %v4476
        %4488 = vrot.lane.b32.xlu0 %v4465, 79
        %v4489 = vpop.permute.xlu0 %4488
        %4490 = vrot.lane.b32.xlu0 %v4466, 79
        %v4491 = vpop.permute.xlu0 %4490
        %4492 = vrot.lane.b32.xlu0 %v4467, 79
        %v4493 = vpop.permute.xlu0 %4492
        %4494 = vrot.lane.b32.xlu0 %v4468, 79
        %v4495 = vpop.permute.xlu0 %4494
        %4496 = vrot.lane.b32.xlu0 %v4469, 79
        %v4497 = vpop.permute.xlu0 %4496
        %4498 = vrot.lane.b32.xlu0 %v4470, 79
        %v4499 = vpop.permute.xlu0 %4498
        %4500 = vrot.lane.b32.xlu0 %v4471, 79
        %v4501 = vpop.permute.xlu0 %4500
        %4502 = vrot.lane.b32.xlu0 %v4472, 79
        %v4503 = vpop.permute.xlu0 %4502
        %4504 = vrot.lane.b32.xlu0 %v4473, 79
        %v4505 = vpop.permute.xlu0 %4504
        %vm4506 = vcmask 646144
        %v4507 = vsel %vm4506, %v4489, %v4491
        %v4508 = vsel %vm4506, %v4491, %v4493
        %v4509 = vsel %vm4506, %v4493, %v4495
        %v4510 = vsel %vm4506, %v4495, %v4497
        %v4511 = vsel %vm4506, %v4497, %v4499
        %v4512 = vsel %vm4506, %v4499, %v4501
        %v4513 = vsel %vm4506, %v4501, %v4503
        %v4514 = vsel %vm4506, %v4503, %v4505
        %v4524 = vsel %vm326, %v4478, 0
        %4526 = vmatprep.subr.bf16.mxu0 %v4508
        %4527 = vmatpush1.bf16.msra.mxu0 %v4507
        %4528 = vmatprep.subr.bf16.mxu0 0
        %4529 = vmatpush1.bf16.msra.mxu0 0
        %4530 = vmatprep.subr.bf16.mxu0 0
        %4531 = vmatpush1.bf16.msra.mxu0 0
        %4532 = vmatprep.subr.bf16.mxu0 0
        %4533 = vmatpush1.bf16.msra.mxu0 0
        %4534 = vmatprep.subr.bf16.mxu0 0
        %4535 = vmatpush1.bf16.msra.mxu0 0
        %4536 = vmatprep.subr.bf16.mxu0 0
        %4537 = vmatpush1.bf16.msra.mxu0 0
        %4538 = vmatprep.subr.bf16.mxu0 0
        %4539 = vmatpush1.bf16.msra.mxu0 0
        %4540 = vmatprep.subr.bf16.mxu0 0
        %4541 = vmatpush1.bf16.msra.mxu0 0
        %4542 = vmatprep.subr.bf16.mxu0 0
        %4543 = vmatpush1.bf16.msra.mxu0 0
        %4544 = vmatprep.subr.bf16.mxu0 0
        %4545 = vmatpush1.bf16.msra.mxu0 0
        %4546 = vmatprep.subr.bf16.mxu0 0
        %4547 = vmatpush1.bf16.msra.mxu0 0
        %4548 = vmatprep.subr.bf16.mxu0 0
        %4549 = vmatpush1.bf16.msra.mxu0 0
        %4550 = vmatprep.subr.bf16.mxu0 0
        %4551 = vmatpush1.bf16.msra.mxu0 0
        %4552 = vmatprep.subr.bf16.mxu0 0
        %4553 = vmatpush1.bf16.msra.mxu0 0
        %4554 = vmatprep.subr.bf16.mxu0 0
        %4555 = vmatpush1.bf16.msra.mxu0 0
        %4556 = vmatprep.subr.bf16.mxu0 0
        %4557 = vmatpush1.bf16.msra.mxu0 0
        %4558 = vmatprep.mubr.bf16.mxu0 0
        %4559 = vmatmul.mubr.bf16.gmra.mrb[0].mxu0 %v4524
        %v4560 = vpop.f32.mrb[0].mxu0
        %v4561 = vadd.f32 0.0, %v4560
        %v4562 = vpop.f32.mrb[0].mxu0
        %v4563 = vadd.f32 0.0, %v4562
        %v4564 = vpop.f32.mrb[0].mxu0
        %v4565 = vadd.f32 0.0, %v4564
        %v4566 = vpop.f32.mrb[0].mxu0
        %v4567 = vadd.f32 0.0, %v4566
        %4568 = vdwg.mxu0
        %4569 = vmatprep.subr.bf16.mxu0 %v4510
        %4570 = vmatpush1.bf16.msra.mxu0 %v4509
        %4571 = vmatprep.subr.bf16.mxu0 0
        %4572 = vmatpush1.bf16.msra.mxu0 0
        %4573 = vmatprep.subr.bf16.mxu0 0
        %4574 = vmatpush1.bf16.msra.mxu0 0
        %4575 = vmatprep.subr.bf16.mxu0 0
        %4576 = vmatpush1.bf16.msra.mxu0 0
        %4577 = vmatprep.subr.bf16.mxu0 0
        %4578 = vmatpush1.bf16.msra.mxu0 0
        %4579 = vmatprep.subr.bf16.mxu0 0
        %4580 = vmatpush1.bf16.msra.mxu0 0
        %4581 = vmatprep.subr.bf16.mxu0 0
        %4582 = vmatpush1.bf16.msra.mxu0 0
        %4583 = vmatprep.subr.bf16.mxu0 0
        %4584 = vmatpush1.bf16.msra.mxu0 0
        %4585 = vmatprep.subr.bf16.mxu0 0
        %4586 = vmatpush1.bf16.msra.mxu0 0
        %4587 = vmatprep.subr.bf16.mxu0 0
        %4588 = vmatpush1.bf16.msra.mxu0 0
        %4589 = vmatprep.subr.bf16.mxu0 0
        %4590 = vmatpush1.bf16.msra.mxu0 0
        %4591 = vmatprep.subr.bf16.mxu0 0
        %4592 = vmatpush1.bf16.msra.mxu0 0
        %4593 = vmatprep.subr.bf16.mxu0 0
        %4594 = vmatpush1.bf16.msra.mxu0 0
        %4595 = vmatprep.subr.bf16.mxu0 0
        %4596 = vmatpush1.bf16.msra.mxu0 0
        %4597 = vmatprep.subr.bf16.mxu0 0
        %4598 = vmatpush1.bf16.msra.mxu0 0
        %4599 = vmatprep.subr.bf16.mxu0 0
        %4600 = vmatpush1.bf16.msra.mxu0 0
        %4601 = vmatprep.mubr.bf16.mxu0 0
        %4602 = vmatmul.mubr.bf16.gmra.mrb[0].mxu0 %v4524
        %v4603 = vpop.f32.mrb[0].mxu0
        %v4604 = vadd.f32 0.0, %v4603
        %v4605 = vpop.f32.mrb[0].mxu0
        %v4606 = vadd.f32 0.0, %v4605
        %v4607 = vpop.f32.mrb[0].mxu0
        %v4608 = vadd.f32 0.0, %v4607
        %v4609 = vpop.f32.mrb[0].mxu0
        %v4610 = vadd.f32 0.0, %v4609
        %4611 = vdwg.mxu0
        %4612 = vmatprep.subr.bf16.mxu0 %v4512
        %4613 = vmatpush1.bf16.msra.mxu0 %v4511
        %4614 = vmatprep.subr.bf16.mxu0 0
        %4615 = vmatpush1.bf16.msra.mxu0 0
        %4616 = vmatprep.subr.bf16.mxu0 0
        %4617 = vmatpush1.bf16.msra.mxu0 0
        %4618 = vmatprep.subr.bf16.mxu0 0
        %4619 = vmatpush1.bf16.msra.mxu0 0
        %4620 = vmatprep.subr.bf16.mxu0 0
        %4621 = vmatpush1.bf16.msra.mxu0 0
        %4622 = vmatprep.subr.bf16.mxu0 0
        %4623 = vmatpush1.bf16.msra.mxu0 0
        %4624 = vmatprep.subr.bf16.mxu0 0
        %4625 = vmatpush1.bf16.msra.mxu0 0
        %4626 = vmatprep.subr.bf16.mxu0 0
        %4627 = vmatpush1.bf16.msra.mxu0 0
        %4628 = vmatprep.subr.bf16.mxu0 0
        %4629 = vmatpush1.bf16.msra.mxu0 0
        %4630 = vmatprep.subr.bf16.mxu0 0
        %4631 = vmatpush1.bf16.msra.mxu0 0
        %4632 = vmatprep.subr.bf16.mxu0 0
        %4633 = vmatpush1.bf16.msra.mxu0 0
        %4634 = vmatprep.subr.bf16.mxu0 0
        %4635 = vmatpush1.bf16.msra.mxu0 0
        %4636 = vmatprep.subr.bf16.mxu0 0
        %4637 = vmatpush1.bf16.msra.mxu0 0
        %4638 = vmatprep.subr.bf16.mxu0 0
        %4639 = vmatpush1.bf16.msra.mxu0 0
        %4640 = vmatprep.subr.bf16.mxu0 0
        %4641 = vmatpush1.bf16.msra.mxu0 0
        %4642 = vmatprep.subr.bf16.mxu0 0
        %4643 = vmatpush1.bf16.msra.mxu0 0
        %4644 = vmatprep.mubr.bf16.mxu0 0
        %4645 = vmatmul.mubr.bf16.gmra.mrb[0].mxu0 %v4524
        %v4646 = vpop.f32.mrb[0].mxu0
        %v4647 = vadd.f32 0.0, %v4646
        %v4648 = vpop.f32.mrb[0].mxu0
        %v4649 = vadd.f32 0.0, %v4648
        %v4650 = vpop.f32.mrb[0].mxu0
        %v4651 = vadd.f32 0.0, %v4650
        %v4652 = vpop.f32.mrb[0].mxu0
        %v4653 = vadd.f32 0.0, %v4652
        %4654 = vdwg.mxu0
        %4655 = vmatprep.subr.bf16.mxu0 %v4514
        %4656 = vmatpush1.bf16.msra.mxu0 %v4513
        %4657 = vmatprep.subr.bf16.mxu0 0
        %4658 = vmatpush1.bf16.msra.mxu0 0
        %4659 = vmatprep.subr.bf16.mxu0 0
        %4660 = vmatpush1.bf16.msra.mxu0 0
        %4661 = vmatprep.subr.bf16.mxu0 0
        %4662 = vmatpush1.bf16.msra.mxu0 0
        %4663 = vmatprep.subr.bf16.mxu0 0
        %4664 = vmatpush1.bf16.msra.mxu0 0
        %4665 = vmatprep.subr.bf16.mxu0 0
        %4666 = vmatpush1.bf16.msra.mxu0 0
        %4667 = vmatprep.subr.bf16.mxu0 0
        %4668 = vmatpush1.bf16.msra.mxu0 0
        %4669 = vmatprep.subr.bf16.mxu0 0
        %4670 = vmatpush1.bf16.msra.mxu0 0
        %4671 = vmatprep.subr.bf16.mxu0 0
        %4672 = vmatpush1.bf16.msra.mxu0 0
        %4673 = vmatprep.subr.bf16.mxu0 0
        %4674 = vmatpush1.bf16.msra.mxu0 0
        %4675 = vmatprep.subr.bf16.mxu0 0
        %4676 = vmatpush1.bf16.msra.mxu0 0
        %4677 = vmatprep.subr.bf16.mxu0 0
        %4678 = vmatpush1.bf16.msra.mxu0 0
        %4679 = vmatprep.subr.bf16.mxu0 0
        %4680 = vmatpush1.bf16.msra.mxu0 0
        %4681 = vmatprep.subr.bf16.mxu0 0
        %4682 = vmatpush1.bf16.msra.mxu0 0
        %4683 = vmatprep.subr.bf16.mxu0 0
        %4684 = vmatpush1.bf16.msra.mxu0 0
        %4685 = vmatprep.subr.bf16.mxu0 0
        %4686 = vmatpush1.bf16.msra.mxu0 0
        %4687 = vmatprep.mubr.bf16.mxu0 0
        %4688 = vmatmul.mubr.bf16.gmra.mrb[0].mxu0 %v4524
        %v4689 = vpop.f32.mrb[0].mxu0
        %v4690 = vadd.f32 0.0, %v4689
        %v4691 = vpop.f32.mrb[0].mxu0
        %v4692 = vadd.f32 0.0, %v4691
        %v4693 = vpop.f32.mrb[0].mxu0
        %v4694 = vadd.f32 0.0, %v4693
        %v4695 = vpop.f32.mrb[0].mxu0
        %v4696 = vadd.f32 0.0, %v4695
        %4697 = vdwg.mxu0
        %v4698 = vadd.f32 %v4446, %v4561
        %v4699 = vadd.f32 %v4447, %v4563
        %v4700 = vadd.f32 %v4448, %v4604
        %v4701 = vadd.f32 %v4449, %v4606
        %v4702 = vadd.f32 %v4450, %v4647
        %v4703 = vadd.f32 %v4451, %v4649
        %v4704 = vadd.f32 %v4452, %v4690
        %v4705 = vadd.f32 %v4453, %v4692
        %v4706 = vadd.f32 %v4454, %v4565
        %v4707 = vadd.f32 %v4455, %v4567
        %v4708 = vadd.f32 %v4456, %v4608
        %v4709 = vadd.f32 %v4457, %v4610
        %v4710 = vadd.f32 %v4458, %v4651
        %v4711 = vadd.f32 %v4459, %v4653
        %v4712 = vadd.f32 %v4460, %v4694
        %v4713 = vadd.f32 %v4461, %v4696
        %s4714 = scalar_lea.vmem %s0, 152
        %v4715 = vld [vmem:[%s4714] sm:$0xf]
        %v4716 = vld [vmem:[%s4714 + $0x4] sm:$0xf]
        %v4719 = vunpack.c.l.b16 %v4715
        %v4720 = vunpack.c.l.b16 %v4716
        %v4721 = vpack.c.b16 %v4720, %v4719
        %4722 = vrot.lane.b32.xlu0 %v4465, 78
        %v4723 = vpop.permute.xlu0 %4722
        %4724 = vrot.lane.b32.xlu0 %v4466, 78
        %v4725 = vpop.permute.xlu0 %4724
        %4726 = vrot.lane.b32.xlu0 %v4467, 78
        %v4727 = vpop.permute.xlu0 %4726
        %4728 = vrot.lane.b32.xlu0 %v4468, 78
        %v4729 = vpop.permute.xlu0 %4728
        %4730 = vrot.lane.b32.xlu0 %v4469, 78
        %v4731 = vpop.permute.xlu0 %4730
        %4732 = vrot.lane.b32.xlu0 %v4470, 78
        %v4733 = vpop.permute.xlu0 %4732
        %4734 = vrot.lane.b32.xlu0 %v4471, 78
        %v4735 = vpop.permute.xlu0 %4734
        %4736 = vrot.lane.b32.xlu0 %v4472, 78
        %v4737 = vpop.permute.xlu0 %4736
        %4738 = vrot.lane.b32.xlu0 %v4473, 78
        %v4739 = vpop.permute.xlu0 %4738
        %vm4740 = vcmask 637952
        %v4741 = vsel %vm4740, %v4723, %v4725
        %v4742 = vsel %vm4740, %v4725, %v4727
        %v4743 = vsel %vm4740, %v4727, %v4729
        %v4744 = vsel %vm4740, %v4729, %v4731
        %v4745 = vsel %vm4740, %v4731, %v4733
        %v4746 = vsel %vm4740, %v4733, %v4735
        %v4747 = vsel %vm4740, %v4735, %v4737
        %v4748 = vsel %vm4740, %v4737, %v4739
        %v4758 = vsel %vm326, %v4721, 0
        %4760 = vmatprep.subr.bf16.mxu0 %v4742
        %4761 = vmatpush1.bf16.msra.mxu0 %v4741
        %4762 = vmatprep.subr.bf16.mxu0 0
        %4763 = vmatpush1.bf16.msra.mxu0 0
        %4764 = vmatprep.subr.bf16.mxu0 0
        %4765 = vmatpush1.bf16.msra.mxu0 0
        %4766 = vmatprep.subr.bf16.mxu0 0
        %4767 = vmatpush1.bf16.msra.mxu0 0
        %4768 = vmatprep.subr.bf16.mxu0 0
        %4769 = vmatpush1.bf16.msra.mxu0 0
        %4770 = vmatprep.subr.bf16.mxu0 0
        %4771 = vmatpush1.bf16.msra.mxu0 0
        %4772 = vmatprep.subr.bf16.mxu0 0
        %4773 = vmatpush1.bf16.msra.mxu0 0
        %4774 = vmatprep.subr.bf16.mxu0 0
        %4775 = vmatpush1.bf16.msra.mxu0 0
        %4776 = vmatprep.subr.bf16.mxu0 0
        %4777 = vmatpush1.bf16.msra.mxu0 0
        %4778 = vmatprep.subr.bf16.mxu0 0
        %4779 = vmatpush1.bf16.msra.mxu0 0
        %4780 = vmatprep.subr.bf16.mxu0 0
        %4781 = vmatpush1.bf16.msra.mxu0 0
        %4782 = vmatprep.subr.bf16.mxu0 0
        %4783 = vmatpush1.bf16.msra.mxu0 0
        %4784 = vmatprep.subr.bf16.mxu0 0
        %4785 = vmatpush1.bf16.msra.mxu0 0
        %4786 = vmatprep.subr.bf16.mxu0 0
        %4787 = vmatpush1.bf16.msra.mxu0 0
        %4788 = vmatprep.subr.bf16.mxu0 0
        %4789 = vmatpush1.bf16.msra.mxu0 0
        %4790 = vmatprep.subr.bf16.mxu0 0
        %4791 = vmatpush1.bf16.msra.mxu0 0
        %4792 = vmatprep.mubr.bf16.mxu0 0
        %4793 = vmatmul.mubr.bf16.gmra.mrb[0].mxu0 %v4758
        %v4794 = vpop.f32.mrb[0].mxu0
        %v4795 = vadd.f32 0.0, %v4794
        %v4796 = vpop.f32.mrb[0].mxu0
        %v4797 = vadd.f32 0.0, %v4796
        %v4798 = vpop.f32.mrb[0].mxu0
        %v4799 = vadd.f32 0.0, %v4798
        %v4800 = vpop.f32.mrb[0].mxu0
        %v4801 = vadd.f32 0.0, %v4800
        %4802 = vdwg.mxu0
        %4803 = vmatprep.subr.bf16.mxu0 %v4744
        %4804 = vmatpush1.bf16.msra.mxu0 %v4743
        %4805 = vmatprep.subr.bf16.mxu0 0
        %4806 = vmatpush1.bf16.msra.mxu0 0
        %4807 = vmatprep.subr.bf16.mxu0 0
        %4808 = vmatpush1.bf16.msra.mxu0 0
        %4809 = vmatprep.subr.bf16.mxu0 0
        %4810 = vmatpush1.bf16.msra.mxu0 0
        %4811 = vmatprep.subr.bf16.mxu0 0
        %4812 = vmatpush1.bf16.msra.mxu0 0
        %4813 = vmatprep.subr.bf16.mxu0 0
        %4814 = vmatpush1.bf16.msra.mxu0 0
        %4815 = vmatprep.subr.bf16.mxu0 0
        %4816 = vmatpush1.bf16.msra.mxu0 0
        %4817 = vmatprep.subr.bf16.mxu0 0
        %4818 = vmatpush1.bf16.msra.mxu0 0
        %4819 = vmatprep.subr.bf16.mxu0 0
        %4820 = vmatpush1.bf16.msra.mxu0 0
        %4821 = vmatprep.subr.bf16.mxu0 0
        %4822 = vmatpush1.bf16.msra.mxu0 0
        %4823 = vmatprep.subr.bf16.mxu0 0
        %4824 = vmatpush1.bf16.msra.mxu0 0
        %4825 = vmatprep.subr.bf16.mxu0 0
        %4826 = vmatpush1.bf16.msra.mxu0 0
        %4827 = vmatprep.subr.bf16.mxu0 0
        %4828 = vmatpush1.bf16.msra.mxu0 0
        %4829 = vmatprep.subr.bf16.mxu0 0
        %4830 = vmatpush1.bf16.msra.mxu0 0
        %4831 = vmatprep.subr.bf16.mxu0 0
        %4832 = vmatpush1.bf16.msra.mxu0 0
        %4833 = vmatprep.subr.bf16.mxu0 0
        %4834 = vmatpush1.bf16.msra.mxu0 0
        %4835 = vmatprep.mubr.bf16.mxu0 0
        %4836 = vmatmul.mubr.bf16.gmra.mrb[0].mxu0 %v4758
        %v4837 = vpop.f32.mrb[0].mxu0
        %v4838 = vadd.f32 0.0, %v4837
        %v4839 = vpop.f32.mrb[0].mxu0
        %v4840 = vadd.f32 0.0, %v4839
        %v4841 = vpop.f32.mrb[0].mxu0
        %v4842 = vadd.f32 0.0, %v4841
        %v4843 = vpop.f32.mrb[0].mxu0
        %v4844 = vadd.f32 0.0, %v4843
        %4845 = vdwg.mxu0
        %4846 = vmatprep.subr.bf16.mxu0 %v4746
        %4847 = vmatpush1.bf16.msra.mxu0 %v4745
        %4848 = vmatprep.subr.bf16.mxu0 0
        %4849 = vmatpush1.bf16.msra.mxu0 0
        %4850 = vmatprep.subr.bf16.mxu0 0
        %4851 = vmatpush1.bf16.msra.mxu0 0
        %4852 = vmatprep.subr.bf16.mxu0 0
        %4853 = vmatpush1.bf16.msra.mxu0 0
        %4854 = vmatprep.subr.bf16.mxu0 0
        %4855 = vmatpush1.bf16.msra.mxu0 0
        %4856 = vmatprep.subr.bf16.mxu0 0
        %4857 = vmatpush1.bf16.msra.mxu0 0
        %4858 = vmatprep.subr.bf16.mxu0 0
        %4859 = vmatpush1.bf16.msra.mxu0 0
        %4860 = vmatprep.subr.bf16.mxu0 0
        %4861 = vmatpush1.bf16.msra.mxu0 0
        %4862 = vmatprep.subr.bf16.mxu0 0
        %4863 = vmatpush1.bf16.msra.mxu0 0
        %4864 = vmatprep.subr.bf16.mxu0 0
        %4865 = vmatpush1.bf16.msra.mxu0 0
        %4866 = vmatprep.subr.bf16.mxu0 0
        %4867 = vmatpush1.bf16.msra.mxu0 0
        %4868 = vmatprep.subr.bf16.mxu0 0
        %4869 = vmatpush1.bf16.msra.mxu0 0
        %4870 = vmatprep.subr.bf16.mxu0 0
        %4871 = vmatpush1.bf16.msra.mxu0 0
        %4872 = vmatprep.subr.bf16.mxu0 0
        %4873 = vmatpush1.bf16.msra.mxu0 0
        %4874 = vmatprep.subr.bf16.mxu0 0
        %4875 = vmatpush1.bf16.msra.mxu0 0
        %4876 = vmatprep.subr.bf16.mxu0 0
        %4877 = vmatpush1.bf16.msra.mxu0 0
        %4878 = vmatprep.mubr.bf16.mxu0 0
        %4879 = vmatmul.mubr.bf16.gmra.mrb[0].mxu0 %v4758
        %v4880 = vpop.f32.mrb[0].mxu0
        %v4881 = vadd.f32 0.0, %v4880
        %v4882 = vpop.f32.mrb[0].mxu0
        %v4883 = vadd.f32 0.0, %v4882
        %v4884 = vpop.f32.mrb[0].mxu0
        %v4885 = vadd.f32 0.0, %v4884
        %v4886 = vpop.f32.mrb[0].mxu0
        %v4887 = vadd.f32 0.0, %v4886
        %4888 = vdwg.mxu0
        %4889 = vmatprep.subr.bf16.mxu0 %v4748
        %4890 = vmatpush1.bf16.msra.mxu0 %v4747
        %4891 = vmatprep.subr.bf16.mxu0 0
        %4892 = vmatpush1.bf16.msra.mxu0 0
        %4893 = vmatprep.subr.bf16.mxu0 0
        %4894 = vmatpush1.bf16.msra.mxu0 0
        %4895 = vmatprep.subr.bf16.mxu0 0
        %4896 = vmatpush1.bf16.msra.mxu0 0
        %4897 = vmatprep.subr.bf16.mxu0 0
        %4898 = vmatpush1.bf16.msra.mxu0 0
        %4899 = vmatprep.subr.bf16.mxu0 0
        %4900 = vmatpush1.bf16.msra.mxu0 0
        %4901 = vmatprep.subr.bf16.mxu0 0
        %4902 = vmatpush1.bf16.msra.mxu0 0
        %4903 = vmatprep.subr.bf16.mxu0 0
        %4904 = vmatpush1.bf16.msra.mxu0 0
        %4905 = vmatprep.subr.bf16.mxu0 0
        %4906 = vmatpush1.bf16.msra.mxu0 0
        %4907 = vmatprep.subr.bf16.mxu0 0
        %4908 = vmatpush1.bf16.msra.mxu0 0
        %4909 = vmatprep.subr.bf16.mxu0 0
        %4910 = vmatpush1.bf16.msra.mxu0 0
        %4911 = vmatprep.subr.bf16.mxu0 0
        %4912 = vmatpush1.bf16.msra.mxu0 0
        %4913 = vmatprep.subr.bf16.mxu0 0
        %4914 = vmatpush1.bf16.msra.mxu0 0
        %4915 = vmatprep.subr.bf16.mxu0 0
        %4916 = vmatpush1.bf16.msra.mxu0 0
        %4917 = vmatprep.subr.bf16.mxu0 0
        %4918 = vmatpush1.bf16.msra.mxu0 0
        %4919 = vmatprep.subr.bf16.mxu0 0
        %4920 = vmatpush1.bf16.msra.mxu0 0
        %4921 = vmatprep.mubr.bf16.mxu0 0
        %4922 = vmatmul.mubr.bf16.gmra.mrb[0].mxu0 %v4758
        %v4923 = vpop.f32.mrb[0].mxu0
        %v4924 = vadd.f32 0.0, %v4923
        %v4925 = vpop.f32.mrb[0].mxu0
        %v4926 = vadd.f32 0.0, %v4925
        %v4927 = vpop.f32.mrb[0].mxu0
        %v4928 = vadd.f32 0.0, %v4927
        %v4929 = vpop.f32.mrb[0].mxu0
        %v4930 = vadd.f32 0.0, %v4929
        %4931 = vdwg.mxu0
        %v4932 = vadd.f32 %v4698, %v4795
        %v4933 = vadd.f32 %v4699, %v4797
        %v4934 = vadd.f32 %v4700, %v4838
        %v4935 = vadd.f32 %v4701, %v4840
        %v4936 = vadd.f32 %v4702, %v4881
        %v4937 = vadd.f32 %v4703, %v4883
        %v4938 = vadd.f32 %v4704, %v4924
        %v4939 = vadd.f32 %v4705, %v4926
        %v4940 = vadd.f32 %v4706, %v4799
        %v4941 = vadd.f32 %v4707, %v4801
        %v4942 = vadd.f32 %v4708, %v4842
        %v4943 = vadd.f32 %v4709, %v4844
        %v4944 = vadd.f32 %v4710, %v4885
        %v4945 = vadd.f32 %v4711, %v4887
        %v4946 = vadd.f32 %v4712, %v4928
        %v4947 = vadd.f32 %v4713, %v4930
        %s4948 = scalar_lea.vmem %s0, 160
        %v4949 = vld [vmem:[%s4948] sm:$0xf]
        %v4950 = vld [vmem:[%s4948 + $0x4] sm:$0xf]
        %v4953 = vunpack.c.l.b16 %v4949
        %v4954 = vunpack.c.l.b16 %v4950
        %v4955 = vpack.c.b16 %v4954, %v4953
        %4956 = vrot.lane.b32.xlu0 %v4465, 77
        %v4957 = vpop.permute.xlu0 %4956
        %4958 = vrot.lane.b32.xlu0 %v4466, 77
        %v4959 = vpop.permute.xlu0 %4958
        %4960 = vrot.lane.b32.xlu0 %v4467, 77
        %v4961 = vpop.permute.xlu0 %4960
        %4962 = vrot.lane.b32.xlu0 %v4468, 77
        %v4963 = vpop.permute.xlu0 %4962
        %4964 = vrot.lane.b32.xlu0 %v4469, 77
        %v4965 = vpop.permute.xlu0 %4964
        %4966 = vrot.lane.b32.xlu0 %v4470, 77
        %v4967 = vpop.permute.xlu0 %4966
        %4968 = vrot.lane.b32.xlu0 %v4471, 77
        %v4969 = vpop.permute.xlu0 %4968
        %4970 = vrot.lane.b32.xlu0 %v4472, 77
        %v4971 = vpop.permute.xlu0 %4970
        %4972 = vrot.lane.b32.xlu0 %v4473, 77
        %v4973 = vpop.permute.xlu0 %4972
        %vm4974 = vcmask 629760
        %v4975 = vsel %vm4974, %v4957, %v4959
        %v4976 = vsel %vm4974, %v4959, %v4961
        %v4977 = vsel %vm4974, %v4961, %v4963
        %v4978 = vsel %vm4974, %v4963, %v4965
        %v4979 = vsel %vm4974, %v4965, %v4967
        %v4980 = vsel %vm4974, %v4967, %v4969
        %v4981 = vsel %vm4974, %v4969, %v4971
        %v4982 = vsel %vm4974, %v4971, %v4973
        %v4992 = vsel %vm326, %v4955, 0
        %4994 = vmatprep.subr.bf16.mxu0 %v4976
        %4995 = vmatpush1.bf16.msra.mxu0 %v4975
        %4996 = vmatprep.subr.bf16.mxu0 0
        %4997 = vmatpush1.bf16.msra.mxu0 0
        %4998 = vmatprep.subr.bf16.mxu0 0
        %4999 = vmatpush1.bf16.msra.mxu0 0
        %5000 = vmatprep.subr.bf16.mxu0 0
        %5001 = vmatpush1.bf16.msra.mxu0 0
        %5002 = vmatprep.subr.bf16.mxu0 0
        %5003 = vmatpush1.bf16.msra.mxu0 0
        %5004 = vmatprep.subr.bf16.mxu0 0
        %5005 = vmatpush1.bf16.msra.mxu0 0
        %5006 = vmatprep.subr.bf16.mxu0 0
        %5007 = vmatpush1.bf16.msra.mxu0 0
        %5008 = vmatprep.subr.bf16.mxu0 0
        %5009 = vmatpush1.bf16.msra.mxu0 0
        %5010 = vmatprep.subr.bf16.mxu0 0
        %5011 = vmatpush1.bf16.msra.mxu0 0
        %5012 = vmatprep.subr.bf16.mxu0 0
        %5013 = vmatpush1.bf16.msra.mxu0 0
        %5014 = vmatprep.subr.bf16.mxu0 0
        %5015 = vmatpush1.bf16.msra.mxu0 0
        %5016 = vmatprep.subr.bf16.mxu0 0
        %5017 = vmatpush1.bf16.msra.mxu0 0
        %5018 = vmatprep.subr.bf16.mxu0 0
        %5019 = vmatpush1.bf16.msra.mxu0 0
        %5020 = vmatprep.subr.bf16.mxu0 0
        %5021 = vmatpush1.bf16.msra.mxu0 0
        %5022 = vmatprep.subr.bf16.mxu0 0
        %5023 = vmatpush1.bf16.msra.mxu0 0
        %5024 = vmatprep.subr.bf16.mxu0 0
        %5025 = vmatpush1.bf16.msra.mxu0 0
        %5026 = vmatprep.mubr.bf16.mxu0 0
        %5027 = vmatmul.mubr.bf16.gmra.mrb[0].mxu0 %v4992
        %v5028 = vpop.f32.mrb[0].mxu0
        %v5029 = vadd.f32 0.0, %v5028
        %v5030 = vpop.f32.mrb[0].mxu0
        %v5031 = vadd.f32 0.0, %v5030
        %v5032 = vpop.f32.mrb[0].mxu0
        %v5033 = vadd.f32 0.0, %v5032
        %v5034 = vpop.f32.mrb[0].mxu0
        %v5035 = vadd.f32 0.0, %v5034
        %5036 = vdwg.mxu0
        %5037 = vmatprep.subr.bf16.mxu0 %v4978
        %5038 = vmatpush1.bf16.msra.mxu0 %v4977
        %5039 = vmatprep.subr.bf16.mxu0 0
        %5040 = vmatpush1.bf16.msra.mxu0 0
        %5041 = vmatprep.subr.bf16.mxu0 0
        %5042 = vmatpush1.bf16.msra.mxu0 0
        %5043 = vmatprep.subr.bf16.mxu0 0
        %5044 = vmatpush1.bf16.msra.mxu0 0
        %5045 = vmatprep.subr.bf16.mxu0 0
        %5046 = vmatpush1.bf16.msra.mxu0 0
        %5047 = vmatprep.subr.bf16.mxu0 0
        %5048 = vmatpush1.bf16.msra.mxu0 0
        %5049 = vmatprep.subr.bf16.mxu0 0
        %5050 = vmatpush1.bf16.msra.mxu0 0
        %5051 = vmatprep.subr.bf16.mxu0 0
        %5052 = vmatpush1.bf16.msra.mxu0 0
        %5053 = vmatprep.subr.bf16.mxu0 0
        %5054 = vmatpush1.bf16.msra.mxu0 0
        %5055 = vmatprep.subr.bf16.mxu0 0
        %5056 = vmatpush1.bf16.msra.mxu0 0
        %5057 = vmatprep.subr.bf16.mxu0 0
        %5058 = vmatpush1.bf16.msra.mxu0 0
        %5059 = vmatprep.subr.bf16.mxu0 0
        %5060 = vmatpush1.bf16.msra.mxu0 0
        %5061 = vmatprep.subr.bf16.mxu0 0
        %5062 = vmatpush1.bf16.msra.mxu0 0
        %5063 = vmatprep.subr.bf16.mxu0 0
        %5064 = vmatpush1.bf16.msra.mxu0 0
        %5065 = vmatprep.subr.bf16.mxu0 0
        %5066 = vmatpush1.bf16.msra.mxu0 0
        %5067 = vmatprep.subr.bf16.mxu0 0
        %5068 = vmatpush1.bf16.msra.mxu0 0
        %5069 = vmatprep.mubr.bf16.mxu0 0
        %5070 = vmatmul.mubr.bf16.gmra.mrb[0].mxu0 %v4992
        %v5071 = vpop.f32.mrb[0].mxu0
        %v5072 = vadd.f32 0.0, %v5071
        %v5073 = vpop.f32.mrb[0].mxu0
        %v5074 = vadd.f32 0.0, %v5073
        %v5075 = vpop.f32.mrb[0].mxu0
        %v5076 = vadd.f32 0.0, %v5075
        %v5077 = vpop.f32.mrb[0].mxu0
        %v5078 = vadd.f32 0.0, %v5077
        %5079 = vdwg.mxu0
        %5080 = vmatprep.subr.bf16.mxu0 %v4980
        %5081 = vmatpush1.bf16.msra.mxu0 %v4979
        %5082 = vmatprep.subr.bf16.mxu0 0
        %5083 = vmatpush1.bf16.msra.mxu0 0
        %5084 = vmatprep.subr.bf16.mxu0 0
        %5085 = vmatpush1.bf16.msra.mxu0 0
        %5086 = vmatprep.subr.bf16.mxu0 0
        %5087 = vmatpush1.bf16.msra.mxu0 0
        %5088 = vmatprep.subr.bf16.mxu0 0
        %5089 = vmatpush1.bf16.msra.mxu0 0
        %5090 = vmatprep.subr.bf16.mxu0 0
        %5091 = vmatpush1.bf16.msra.mxu0 0
        %5092 = vmatprep.subr.bf16.mxu0 0
        %5093 = vmatpush1.bf16.msra.mxu0 0
        %5094 = vmatprep.subr.bf16.mxu0 0
        %5095 = vmatpush1.bf16.msra.mxu0 0
        %5096 = vmatprep.subr.bf16.mxu0 0
        %5097 = vmatpush1.bf16.msra.mxu0 0
        %5098 = vmatprep.subr.bf16.mxu0 0
        %5099 = vmatpush1.bf16.msra.mxu0 0
        %5100 = vmatprep.subr.bf16.mxu0 0
        %5101 = vmatpush1.bf16.msra.mxu0 0
        %5102 = vmatprep.subr.bf16.mxu0 0
        %5103 = vmatpush1.bf16.msra.mxu0 0
        %5104 = vmatprep.subr.bf16.mxu0 0
        %5105 = vmatpush1.bf16.msra.mxu0 0
        %5106 = vmatprep.subr.bf16.mxu0 0
        %5107 = vmatpush1.bf16.msra.mxu0 0
        %5108 = vmatprep.subr.bf16.mxu0 0
        %5109 = vmatpush1.bf16.msra.mxu0 0
        %5110 = vmatprep.subr.bf16.mxu0 0
        %5111 = vmatpush1.bf16.msra.mxu0 0
        %5112 = vmatprep.mubr.bf16.mxu0 0
        %5113 = vmatmul.mubr.bf16.gmra.mrb[0].mxu0 %v4992
        %v5114 = vpop.f32.mrb[0].mxu0
        %v5115 = vadd.f32 0.0, %v5114
        %v5116 = vpop.f32.mrb[0].mxu0
        %v5117 = vadd.f32 0.0, %v5116
        %v5118 = vpop.f32.mrb[0].mxu0
        %v5119 = vadd.f32 0.0, %v5118
        %v5120 = vpop.f32.mrb[0].mxu0
        %v5121 = vadd.f32 0.0, %v5120
        %5122 = vdwg.mxu0
        %5123 = vmatprep.subr.bf16.mxu0 %v4982
        %5124 = vmatpush1.bf16.msra.mxu0 %v4981
        %5125 = vmatprep.subr.bf16.mxu0 0
        %5126 = vmatpush1.bf16.msra.mxu0 0
        %5127 = vmatprep.subr.bf16.mxu0 0
        %5128 = vmatpush1.bf16.msra.mxu0 0
        %5129 = vmatprep.subr.bf16.mxu0 0
        %5130 = vmatpush1.bf16.msra.mxu0 0
        %5131 = vmatprep.subr.bf16.mxu0 0
        %5132 = vmatpush1.bf16.msra.mxu0 0
        %5133 = vmatprep.subr.bf16.mxu0 0
        %5134 = vmatpush1.bf16.msra.mxu0 0
        %5135 = vmatprep.subr.bf16.mxu0 0
        %5136 = vmatpush1.bf16.msra.mxu0 0
        %5137 = vmatprep.subr.bf16.mxu0 0
        %5138 = vmatpush1.bf16.msra.mxu0 0
        %5139 = vmatprep.subr.bf16.mxu0 0
        %5140 = vmatpush1.bf16.msra.mxu0 0
        %5141 = vmatprep.subr.bf16.mxu0 0
        %5142 = vmatpush1.bf16.msra.mxu0 0
        %5143 = vmatprep.subr.bf16.mxu0 0
        %5144 = vmatpush1.bf16.msra.mxu0 0
        %5145 = vmatprep.subr.bf16.mxu0 0
        %5146 = vmatpush1.bf16.msra.mxu0 0
        %5147 = vmatprep.subr.bf16.mxu0 0
        %5148 = vmatpush1.bf16.msra.mxu0 0
        %5149 = vmatprep.subr.bf16.mxu0 0
        %5150 = vmatpush1.bf16.msra.mxu0 0
        %5151 = vmatprep.subr.bf16.mxu0 0
        %5152 = vmatpush1.bf16.msra.mxu0 0
        %5153 = vmatprep.subr.bf16.mxu0 0
        %5154 = vmatpush1.bf16.msra.mxu0 0
        %5155 = vmatprep.mubr.bf16.mxu0 0
        %5156 = vmatmul.mubr.bf16.gmra.mrb[0].mxu0 %v4992
        %v5157 = vpop.f32.mrb[0].mxu0
        %v5158 = vadd.f32 0.0, %v5157
        %v5159 = vpop.f32.mrb[0].mxu0
        %v5160 = vadd.f32 0.0, %v5159
        %v5161 = vpop.f32.mrb[0].mxu0
        %v5162 = vadd.f32 0.0, %v5161
        %v5163 = vpop.f32.mrb[0].mxu0
        %v5164 = vadd.f32 0.0, %v5163
        %5165 = vdwg.mxu0
        %v5166 = vadd.f32 %v4932, %v5029
        %v5167 = vadd.f32 %v4933, %v5031
        %v5168 = vadd.f32 %v4934, %v5072
        %v5169 = vadd.f32 %v4935, %v5074
        %v5170 = vadd.f32 %v4936, %v5115
        %v5171 = vadd.f32 %v4937, %v5117
        %v5172 = vadd.f32 %v4938, %v5158
        %v5173 = vadd.f32 %v4939, %v5160
        %v5174 = vadd.f32 %v4940, %v5033
        %v5175 = vadd.f32 %v4941, %v5035
        %v5176 = vadd.f32 %v4942, %v5076
        %v5177 = vadd.f32 %v4943, %v5078
        %v5178 = vadd.f32 %v4944, %v5119
        %v5179 = vadd.f32 %v4945, %v5121
        %v5180 = vadd.f32 %v4946, %v5162
        %v5181 = vadd.f32 %v4947, %v5164
        %s5182 = scalar_lea.vmem %s0, 168
        %v5183 = vld [vmem:[%s5182] sm:$0xf]
        %v5184 = vld [vmem:[%s5182 + $0x4] sm:$0xf]
        %v5187 = vunpack.c.l.b16 %v5183
        %v5188 = vunpack.c.l.b16 %v5184
        %v5189 = vpack.c.b16 %v5188, %v5187
        %5190 = vrot.lane.b32.xlu0 %v4465, 61
        %v5191 = vpop.permute.xlu0 %5190
        %5192 = vrot.lane.b32.xlu0 %v4466, 61
        %v5193 = vpop.permute.xlu0 %5192
        %5194 = vrot.lane.b32.xlu0 %v4467, 61
        %v5195 = vpop.permute.xlu0 %5194
        %5196 = vrot.lane.b32.xlu0 %v4468, 61
        %v5197 = vpop.permute.xlu0 %5196
        %5198 = vrot.lane.b32.xlu0 %v4469, 61
        %v5199 = vpop.permute.xlu0 %5198
        %5200 = vrot.lane.b32.xlu0 %v4470, 61
        %v5201 = vpop.permute.xlu0 %5200
        %5202 = vrot.lane.b32.xlu0 %v4471, 61
        %v5203 = vpop.permute.xlu0 %5202
        %5204 = vrot.lane.b32.xlu0 %v4472, 61
        %v5205 = vpop.permute.xlu0 %5204
        %5206 = vrot.lane.b32.xlu0 %v4473, 61
        %v5207 = vpop.permute.xlu0 %5206
        %vm5208 = vcmask 498688
        %v5209 = vsel %vm5208, %v5191, %v5193
        %v5210 = vsel %vm5208, %v5193, %v5195
        %v5211 = vsel %vm5208, %v5195, %v5197
        %v5212 = vsel %vm5208, %v5197, %v5199
        %v5213 = vsel %vm5208, %v5199, %v5201
        %v5214 = vsel %vm5208, %v5201, %v5203
        %v5215 = vsel %vm5208, %v5203, %v5205
        %v5216 = vsel %vm5208, %v5205, %v5207
        %v5226 = vsel %vm326, %v5189, 0
        %5228 = vmatprep.subr.bf16.mxu0 %v5210
        %5229 = vmatpush1.bf16.msra.mxu0 %v5209
        %5230 = vmatprep.subr.bf16.mxu0 0
        %5231 = vmatpush1.bf16.msra.mxu0 0
        %5232 = vmatprep.subr.bf16.mxu0 0
        %5233 = vmatpush1.bf16.msra.mxu0 0
        %5234 = vmatprep.subr.bf16.mxu0 0
        %5235 = vmatpush1.bf16.msra.mxu0 0
        %5236 = vmatprep.subr.bf16.mxu0 0
        %5237 = vmatpush1.bf16.msra.mxu0 0
        %5238 = vmatprep.subr.bf16.mxu0 0
        %5239 = vmatpush1.bf16.msra.mxu0 0
        %5240 = vmatprep.subr.bf16.mxu0 0
        %5241 = vmatpush1.bf16.msra.mxu0 0
        %5242 = vmatprep.subr.bf16.mxu0 0
        %5243 = vmatpush1.bf16.msra.mxu0 0
        %5244 = vmatprep.subr.bf16.mxu0 0
        %5245 = vmatpush1.bf16.msra.mxu0 0
        %5246 = vmatprep.subr.bf16.mxu0 0
        %5247 = vmatpush1.bf16.msra.mxu0 0
        %5248 = vmatprep.subr.bf16.mxu0 0
        %5249 = vmatpush1.bf16.msra.mxu0 0
        %5250 = vmatprep.subr.bf16.mxu0 0
        %5251 = vmatpush1.bf16.msra.mxu0 0
        %5252 = vmatprep.subr.bf16.mxu0 0
        %5253 = vmatpush1.bf16.msra.mxu0 0
        %5254 = vmatprep.subr.bf16.mxu0 0
        %5255 = vmatpush1.bf16.msra.mxu0 0
        %5256 = vmatprep.subr.bf16.mxu0 0
        %5257 = vmatpush1.bf16.msra.mxu0 0
        %5258 = vmatprep.subr.bf16.mxu0 0
        %5259 = vmatpush1.bf16.msra.mxu0 0
        %5260 = vmatprep.mubr.bf16.mxu0 0
        %5261 = vmatmul.mubr.bf16.gmra.mrb[0].mxu0 %v5226
        %v5262 = vpop.f32.mrb[0].mxu0
        %v5263 = vadd.f32 0.0, %v5262
        %v5264 = vpop.f32.mrb[0].mxu0
        %v5265 = vadd.f32 0.0, %v5264
        %v5266 = vpop.f32.mrb[0].mxu0
        %v5267 = vadd.f32 0.0, %v5266
        %v5268 = vpop.f32.mrb[0].mxu0
        %v5269 = vadd.f32 0.0, %v5268
        %5270 = vdwg.mxu0
        %5271 = vmatprep.subr.bf16.mxu0 %v5212
        %5272 = vmatpush1.bf16.msra.mxu0 %v5211
        %5273 = vmatprep.subr.bf16.mxu0 0
        %5274 = vmatpush1.bf16.msra.mxu0 0
        %5275 = vmatprep.subr.bf16.mxu0 0
        %5276 = vmatpush1.bf16.msra.mxu0 0
        %5277 = vmatprep.subr.bf16.mxu0 0
        %5278 = vmatpush1.bf16.msra.mxu0 0
        %5279 = vmatprep.subr.bf16.mxu0 0
        %5280 = vmatpush1.bf16.msra.mxu0 0
        %5281 = vmatprep.subr.bf16.mxu0 0
        %5282 = vmatpush1.bf16.msra.mxu0 0
        %5283 = vmatprep.subr.bf16.mxu0 0
        %5284 = vmatpush1.bf16.msra.mxu0 0
        %5285 = vmatprep.subr.bf16.mxu0 0
        %5286 = vmatpush1.bf16.msra.mxu0 0
        %5287 = vmatprep.subr.bf16.mxu0 0
        %5288 = vmatpush1.bf16.msra.mxu0 0
        %5289 = vmatprep.subr.bf16.mxu0 0
        %5290 = vmatpush1.bf16.msra.mxu0 0
        %5291 = vmatprep.subr.bf16.mxu0 0
        %5292 = vmatpush1.bf16.msra.mxu0 0
        %5293 = vmatprep.subr.bf16.mxu0 0
        %5294 = vmatpush1.bf16.msra.mxu0 0
        %5295 = vmatprep.subr.bf16.mxu0 0
        %5296 = vmatpush1.bf16.msra.mxu0 0
        %5297 = vmatprep.subr.bf16.mxu0 0
        %5298 = vmatpush1.bf16.msra.mxu0 0
        %5299 = vmatprep.subr.bf16.mxu0 0
        %5300 = vmatpush1.bf16.msra.mxu0 0
        %5301 = vmatprep.subr.bf16.mxu0 0
        %5302 = vmatpush1.bf16.msra.mxu0 0
        %5303 = vmatprep.mubr.bf16.mxu0 0
        %5304 = vmatmul.mubr.bf16.gmra.mrb[0].mxu0 %v5226
        %v5305 = vpop.f32.mrb[0].mxu0
        %v5306 = vadd.f32 0.0, %v5305
        %v5307 = vpop.f32.mrb[0].mxu0
        %v5308 = vadd.f32 0.0, %v5307
        %v5309 = vpop.f32.mrb[0].mxu0
        %v5310 = vadd.f32 0.0, %v5309
        %v5311 = vpop.f32.mrb[0].mxu0
        %v5312 = vadd.f32 0.0, %v5311
        %5313 = vdwg.mxu0
        %5314 = vmatprep.subr.bf16.mxu0 %v5214
        %5315 = vmatpush1.bf16.msra.mxu0 %v5213
        %5316 = vmatprep.subr.bf16.mxu0 0
        %5317 = vmatpush1.bf16.msra.mxu0 0
        %5318 = vmatprep.subr.bf16.mxu0 0
        %5319 = vmatpush1.bf16.msra.mxu0 0
        %5320 = vmatprep.subr.bf16.mxu0 0
        %5321 = vmatpush1.bf16.msra.mxu0 0
        %5322 = vmatprep.subr.bf16.mxu0 0
        %5323 = vmatpush1.bf16.msra.mxu0 0
        %5324 = vmatprep.subr.bf16.mxu0 0
        %5325 = vmatpush1.bf16.msra.mxu0 0
        %5326 = vmatprep.subr.bf16.mxu0 0
        %5327 = vmatpush1.bf16.msra.mxu0 0
        %5328 = vmatprep.subr.bf16.mxu0 0
        %5329 = vmatpush1.bf16.msra.mxu0 0
        %5330 = vmatprep.subr.bf16.mxu0 0
        %5331 = vmatpush1.bf16.msra.mxu0 0
        %5332 = vmatprep.subr.bf16.mxu0 0
        %5333 = vmatpush1.bf16.msra.mxu0 0
        %5334 = vmatprep.subr.bf16.mxu0 0
        %5335 = vmatpush1.bf16.msra.mxu0 0
        %5336 = vmatprep.subr.bf16.mxu0 0
        %5337 = vmatpush1.bf16.msra.mxu0 0
        %5338 = vmatprep.subr.bf16.mxu0 0
        %5339 = vmatpush1.bf16.msra.mxu0 0
        %5340 = vmatprep.subr.bf16.mxu0 0
        %5341 = vmatpush1.bf16.msra.mxu0 0
        %5342 = vmatprep.subr.bf16.mxu0 0
        %5343 = vmatpush1.bf16.msra.mxu0 0
        %5344 = vmatprep.subr.bf16.mxu0 0
        %5345 = vmatpush1.bf16.msra.mxu0 0
        %5346 = vmatprep.mubr.bf16.mxu0 0
        %5347 = vmatmul.mubr.bf16.gmra.mrb[0].mxu0 %v5226
        %v5348 = vpop.f32.mrb[0].mxu0
        %v5349 = vadd.f32 0.0, %v5348
        %v5350 = vpop.f32.mrb[0].mxu0
        %v5351 = vadd.f32 0.0, %v5350
        %v5352 = vpop.f32.mrb[0].mxu0
        %v5353 = vadd.f32 0.0, %v5352
        %v5354 = vpop.f32.mrb[0].mxu0
        %v5355 = vadd.f32 0.0, %v5354
        %5356 = vdwg.mxu0
        %5357 = vmatprep.subr.bf16.mxu0 %v5216
        %5358 = vmatpush1.bf16.msra.mxu0 %v5215
        %5359 = vmatprep.subr.bf16.mxu0 0
        %5360 = vmatpush1.bf16.msra.mxu0 0
        %5361 = vmatprep.subr.bf16.mxu0 0
        %5362 = vmatpush1.bf16.msra.mxu0 0
        %5363 = vmatprep.subr.bf16.mxu0 0
        %5364 = vmatpush1.bf16.msra.mxu0 0
        %5365 = vmatprep.subr.bf16.mxu0 0
        %5366 = vmatpush1.bf16.msra.mxu0 0
        %5367 = vmatprep.subr.bf16.mxu0 0
        %5368 = vmatpush1.bf16.msra.mxu0 0
        %5369 = vmatprep.subr.bf16.mxu0 0
        %5370 = vmatpush1.bf16.msra.mxu0 0
        %5371 = vmatprep.subr.bf16.mxu0 0
        %5372 = vmatpush1.bf16.msra.mxu0 0
        %5373 = vmatprep.subr.bf16.mxu0 0
        %5374 = vmatpush1.bf16.msra.mxu0 0
        %5375 = vmatprep.subr.bf16.mxu0 0
        %5376 = vmatpush1.bf16.msra.mxu0 0
        %5377 = vmatprep.subr.bf16.mxu0 0
        %5378 = vmatpush1.bf16.msra.mxu0 0
        %5379 = vmatprep.subr.bf16.mxu0 0
        %5380 = vmatpush1.bf16.msra.mxu0 0
        %5381 = vmatprep.subr.bf16.mxu0 0
        %5382 = vmatpush1.bf16.msra.mxu0 0
        %5383 = vmatprep.subr.bf16.mxu0 0
        %5384 = vmatpush1.bf16.msra.mxu0 0
        %5385 = vmatprep.subr.bf16.mxu0 0
        %5386 = vmatpush1.bf16.msra.mxu0 0
        %5387 = vmatprep.subr.bf16.mxu0 0
        %5388 = vmatpush1.bf16.msra.mxu0 0
        %5389 = vmatprep.mubr.bf16.mxu0 0
        %5390 = vmatmul.mubr.bf16.gmra.mrb[0].mxu0 %v5226
        %v5391 = vpop.f32.mrb[0].mxu0
        %v5392 = vadd.f32 0.0, %v5391
        %v5393 = vpop.f32.mrb[0].mxu0
        %v5394 = vadd.f32 0.0, %v5393
        %v5395 = vpop.f32.mrb[0].mxu0
        %v5396 = vadd.f32 0.0, %v5395
        %v5397 = vpop.f32.mrb[0].mxu0
        %v5398 = vadd.f32 0.0, %v5397
        %5399 = vdwg.mxu0
        %v5400 = vadd.f32 %v5166, %v5263
        %v5401 = vadd.f32 %v5167, %v5265
        %v5402 = vadd.f32 %v5168, %v5306
        %v5403 = vadd.f32 %v5169, %v5308
        %v5404 = vadd.f32 %v5170, %v5349
        %v5405 = vadd.f32 %v5171, %v5351
        %v5406 = vadd.f32 %v5172, %v5392
        %v5407 = vadd.f32 %v5173, %v5394
        %v5408 = vadd.f32 %v5174, %v5267
        %v5409 = vadd.f32 %v5175, %v5269
        %v5410 = vadd.f32 %v5176, %v5310
        %v5411 = vadd.f32 %v5177, %v5312
        %v5412 = vadd.f32 %v5178, %v5353
        %v5413 = vadd.f32 %v5179, %v5355
        %v5414 = vadd.f32 %v5180, %v5396
        %v5415 = vadd.f32 %v5181, %v5398
        %s5416 = scalar_lea.vmem %s0, 176
        %v5417 = vld [vmem:[%s5416] sm:$0xf]
        %v5418 = vld [vmem:[%s5416 + $0x4] sm:$0xf]
        %v5421 = vunpack.c.l.b16 %v5417
        %v5422 = vunpack.c.l.b16 %v5418
        %v5423 = vpack.c.b16 %v5422, %v5421
        %5424 = vrot.lane.b32.xlu0 %v4465, 60
        %v5425 = vpop.permute.xlu0 %5424
        %5426 = vrot.lane.b32.xlu0 %v4466, 60
        %v5427 = vpop.permute.xlu0 %5426
        %5428 = vrot.lane.b32.xlu0 %v4467, 60
        %v5429 = vpop.permute.xlu0 %5428
        %5430 = vrot.lane.b32.xlu0 %v4468, 60
        %v5431 = vpop.permute.xlu0 %5430
        %5432 = vrot.lane.b32.xlu0 %v4469, 60
        %v5433 = vpop.permute.xlu0 %5432
        %5434 = vrot.lane.b32.xlu0 %v4470, 60
        %v5435 = vpop.permute.xlu0 %5434
        %5436 = vrot.lane.b32.xlu0 %v4471, 60
        %v5437 = vpop.permute.xlu0 %5436
        %5438 = vrot.lane.b32.xlu0 %v4472, 60
        %v5439 = vpop.permute.xlu0 %5438
        %5440 = vrot.lane.b32.xlu0 %v4473, 60
        %v5441 = vpop.permute.xlu0 %5440
        %vm5442 = vcmask 490496
        %v5443 = vsel %vm5442, %v5425, %v5427
        %v5444 = vsel %vm5442, %v5427, %v5429
        %v5445 = vsel %vm5442, %v5429, %v5431
        %v5446 = vsel %vm5442, %v5431, %v5433
        %v5447 = vsel %vm5442, %v5433, %v5435
        %v5448 = vsel %vm5442, %v5435, %v5437
        %v5449 = vsel %vm5442, %v5437, %v5439
        %v5450 = vsel %vm5442, %v5439, %v5441
        %v5460 = vsel %vm326, %v5423, 0
        %5462 = vmatprep.subr.bf16.mxu0 %v5444
        %5463 = vmatpush1.bf16.msra.mxu0 %v5443
        %5464 = vmatprep.subr.bf16.mxu0 0
        %5465 = vmatpush1.bf16.msra.mxu0 0
        %5466 = vmatprep.subr.bf16.mxu0 0
        %5467 = vmatpush1.bf16.msra.mxu0 0
        %5468 = vmatprep.subr.bf16.mxu0 0
        %5469 = vmatpush1.bf16.msra.mxu0 0
        %5470 = vmatprep.subr.bf16.mxu0 0
        %5471 = vmatpush1.bf16.msra.mxu0 0
        %5472 = vmatprep.subr.bf16.mxu0 0
        %5473 = vmatpush1.bf16.msra.mxu0 0
        %5474 = vmatprep.subr.bf16.mxu0 0
        %5475 = vmatpush1.bf16.msra.mxu0 0
        %5476 = vmatprep.subr.bf16.mxu0 0
        %5477 = vmatpush1.bf16.msra.mxu0 0
        %5478 = vmatprep.subr.bf16.mxu0 0
        %5479 = vmatpush1.bf16.msra.mxu0 0
        %5480 = vmatprep.subr.bf16.mxu0 0
        %5481 = vmatpush1.bf16.msra.mxu0 0
        %5482 = vmatprep.subr.bf16.mxu0 0
        %5483 = vmatpush1.bf16.msra.mxu0 0
        %5484 = vmatprep.subr.bf16.mxu0 0
        %5485 = vmatpush1.bf16.msra.mxu0 0
        %5486 = vmatprep.subr.bf16.mxu0 0
        %5487 = vmatpush1.bf16.msra.mxu0 0
        %5488 = vmatprep.subr.bf16.mxu0 0
        %5489 = vmatpush1.bf16.msra.mxu0 0
        %5490 = vmatprep.subr.bf16.mxu0 0
        %5491 = vmatpush1.bf16.msra.mxu0 0
        %5492 = vmatprep.subr.bf16.mxu0 0
        %5493 = vmatpush1.bf16.msra.mxu0 0
        %5494 = vmatprep.mubr.bf16.mxu0 0
        %5495 = vmatmul.mubr.bf16.gmra.mrb[0].mxu0 %v5460
        %v5496 = vpop.f32.mrb[0].mxu0
        %v5497 = vadd.f32 0.0, %v5496
        %v5498 = vpop.f32.mrb[0].mxu0
        %v5499 = vadd.f32 0.0, %v5498
        %v5500 = vpop.f32.mrb[0].mxu0
        %v5501 = vadd.f32 0.0, %v5500
        %v5502 = vpop.f32.mrb[0].mxu0
        %v5503 = vadd.f32 0.0, %v5502
        %5504 = vdwg.mxu0
        %5505 = vmatprep.subr.bf16.mxu0 %v5446
        %5506 = vmatpush1.bf16.msra.mxu0 %v5445
        %5507 = vmatprep.subr.bf16.mxu0 0
        %5508 = vmatpush1.bf16.msra.mxu0 0
        %5509 = vmatprep.subr.bf16.mxu0 0
        %5510 = vmatpush1.bf16.msra.mxu0 0
        %5511 = vmatprep.subr.bf16.mxu0 0
        %5512 = vmatpush1.bf16.msra.mxu0 0
        %5513 = vmatprep.subr.bf16.mxu0 0
        %5514 = vmatpush1.bf16.msra.mxu0 0
        %5515 = vmatprep.subr.bf16.mxu0 0
        %5516 = vmatpush1.bf16.msra.mxu0 0
        %5517 = vmatprep.subr.bf16.mxu0 0
        %5518 = vmatpush1.bf16.msra.mxu0 0
        %5519 = vmatprep.subr.bf16.mxu0 0
        %5520 = vmatpush1.bf16.msra.mxu0 0
        %5521 = vmatprep.subr.bf16.mxu0 0
        %5522 = vmatpush1.bf16.msra.mxu0 0
        %5523 = vmatprep.subr.bf16.mxu0 0
        %5524 = vmatpush1.bf16.msra.mxu0 0
        %5525 = vmatprep.subr.bf16.mxu0 0
        %5526 = vmatpush1.bf16.msra.mxu0 0
        %5527 = vmatprep.subr.bf16.mxu0 0
        %5528 = vmatpush1.bf16.msra.mxu0 0
        %5529 = vmatprep.subr.bf16.mxu0 0
        %5530 = vmatpush1.bf16.msra.mxu0 0
        %5531 = vmatprep.subr.bf16.mxu0 0
        %5532 = vmatpush1.bf16.msra.mxu0 0
        %5533 = vmatprep.subr.bf16.mxu0 0
        %5534 = vmatpush1.bf16.msra.mxu0 0
        %5535 = vmatprep.subr.bf16.mxu0 0
        %5536 = vmatpush1.bf16.msra.mxu0 0
        %5537 = vmatprep.mubr.bf16.mxu0 0
        %5538 = vmatmul.mubr.bf16.gmra.mrb[0].mxu0 %v5460
        %v5539 = vpop.f32.mrb[0].mxu0
        %v5540 = vadd.f32 0.0, %v5539
        %v5541 = vpop.f32.mrb[0].mxu0
        %v5542 = vadd.f32 0.0, %v5541
        %v5543 = vpop.f32.mrb[0].mxu0
        %v5544 = vadd.f32 0.0, %v5543
        %v5545 = vpop.f32.mrb[0].mxu0
        %v5546 = vadd.f32 0.0, %v5545
        %5547 = vdwg.mxu0
        %5548 = vmatprep.subr.bf16.mxu0 %v5448
        %5549 = vmatpush1.bf16.msra.mxu0 %v5447
        %5550 = vmatprep.subr.bf16.mxu0 0
        %5551 = vmatpush1.bf16.msra.mxu0 0
        %5552 = vmatprep.subr.bf16.mxu0 0
        %5553 = vmatpush1.bf16.msra.mxu0 0
        %5554 = vmatprep.subr.bf16.mxu0 0
        %5555 = vmatpush1.bf16.msra.mxu0 0
        %5556 = vmatprep.subr.bf16.mxu0 0
        %5557 = vmatpush1.bf16.msra.mxu0 0
        %5558 = vmatprep.subr.bf16.mxu0 0
        %5559 = vmatpush1.bf16.msra.mxu0 0
        %5560 = vmatprep.subr.bf16.mxu0 0
        %5561 = vmatpush1.bf16.msra.mxu0 0
        %5562 = vmatprep.subr.bf16.mxu0 0
        %5563 = vmatpush1.bf16.msra.mxu0 0
        %5564 = vmatprep.subr.bf16.mxu0 0
        %5565 = vmatpush1.bf16.msra.mxu0 0
        %5566 = vmatprep.subr.bf16.mxu0 0
        %5567 = vmatpush1.bf16.msra.mxu0 0
        %5568 = vmatprep.subr.bf16.mxu0 0
        %5569 = vmatpush1.bf16.msra.mxu0 0
        %5570 = vmatprep.subr.bf16.mxu0 0
        %5571 = vmatpush1.bf16.msra.mxu0 0
        %5572 = vmatprep.subr.bf16.mxu0 0
        %5573 = vmatpush1.bf16.msra.mxu0 0
        %5574 = vmatprep.subr.bf16.mxu0 0
        %5575 = vmatpush1.bf16.msra.mxu0 0
        %5576 = vmatprep.subr.bf16.mxu0 0
        %5577 = vmatpush1.bf16.msra.mxu0 0
        %5578 = vmatprep.subr.bf16.mxu0 0
        %5579 = vmatpush1.bf16.msra.mxu0 0
        %5580 = vmatprep.mubr.bf16.mxu0 0
        %5581 = vmatmul.mubr.bf16.gmra.mrb[0].mxu0 %v5460
        %v5582 = vpop.f32.mrb[0].mxu0
        %v5583 = vadd.f32 0.0, %v5582
        %v5584 = vpop.f32.mrb[0].mxu0
        %v5585 = vadd.f32 0.0, %v5584
        %v5586 = vpop.f32.mrb[0].mxu0
        %v5587 = vadd.f32 0.0, %v5586
        %v5588 = vpop.f32.mrb[0].mxu0
        %v5589 = vadd.f32 0.0, %v5588
        %5590 = vdwg.mxu0
        %5591 = vmatprep.subr.bf16.mxu0 %v5450
        %5592 = vmatpush1.bf16.msra.mxu0 %v5449
        %5593 = vmatprep.subr.bf16.mxu0 0
        %5594 = vmatpush1.bf16.msra.mxu0 0
        %5595 = vmatprep.subr.bf16.mxu0 0
        %5596 = vmatpush1.bf16.msra.mxu0 0
        %5597 = vmatprep.subr.bf16.mxu0 0
        %5598 = vmatpush1.bf16.msra.mxu0 0
        %5599 = vmatprep.subr.bf16.mxu0 0
        %5600 = vmatpush1.bf16.msra.mxu0 0
        %5601 = vmatprep.subr.bf16.mxu0 0
        %5602 = vmatpush1.bf16.msra.mxu0 0
        %5603 = vmatprep.subr.bf16.mxu0 0
        %5604 = vmatpush1.bf16.msra.mxu0 0
        %5605 = vmatprep.subr.bf16.mxu0 0
        %5606 = vmatpush1.bf16.msra.mxu0 0
        %5607 = vmatprep.subr.bf16.mxu0 0
        %5608 = vmatpush1.bf16.msra.mxu0 0
        %5609 = vmatprep.subr.bf16.mxu0 0
        %5610 = vmatpush1.bf16.msra.mxu0 0
        %5611 = vmatprep.subr.bf16.mxu0 0
        %5612 = vmatpush1.bf16.msra.mxu0 0
        %5613 = vmatprep.subr.bf16.mxu0 0
        %5614 = vmatpush1.bf16.msra.mxu0 0
        %5615 = vmatprep.subr.bf16.mxu0 0
        %5616 = vmatpush1.bf16.msra.mxu0 0
        %5617 = vmatprep.subr.bf16.mxu0 0
        %5618 = vmatpush1.bf16.msra.mxu0 0
        %5619 = vmatprep.subr.bf16.mxu0 0
        %5620 = vmatpush1.bf16.msra.mxu0 0
        %5621 = vmatprep.subr.bf16.mxu0 0
        %5622 = vmatpush1.bf16.msra.mxu0 0
        %5623 = vmatprep.mubr.bf16.mxu0 0
        %5624 = vmatmul.mubr.bf16.gmra.mrb[0].mxu0 %v5460
        %v5625 = vpop.f32.mrb[0].mxu0
        %v5626 = vadd.f32 0.0, %v5625
        %v5627 = vpop.f32.mrb[0].mxu0
        %v5628 = vadd.f32 0.0, %v5627
        %v5629 = vpop.f32.mrb[0].mxu0
        %v5630 = vadd.f32 0.0, %v5629
        %v5631 = vpop.f32.mrb[0].mxu0
        %v5632 = vadd.f32 0.0, %v5631
        %5633 = vdwg.mxu0
        %v5634 = vadd.f32 %v5400, %v5497
        %v5635 = vadd.f32 %v5401, %v5499
        %v5636 = vadd.f32 %v5402, %v5540
        %v5637 = vadd.f32 %v5403, %v5542
        %v5638 = vadd.f32 %v5404, %v5583
        %v5639 = vadd.f32 %v5405, %v5585
        %v5640 = vadd.f32 %v5406, %v5626
        %v5641 = vadd.f32 %v5407, %v5628
        %v5642 = vadd.f32 %v5408, %v5501
        %v5643 = vadd.f32 %v5409, %v5503
        %v5644 = vadd.f32 %v5410, %v5544
        %v5645 = vadd.f32 %v5411, %v5546
        %v5646 = vadd.f32 %v5412, %v5587
        %v5647 = vadd.f32 %v5413, %v5589
        %v5648 = vadd.f32 %v5414, %v5630
        %v5649 = vadd.f32 %v5415, %v5632
        %s5650 = scalar_lea.vmem %s0, 184
        %v5651 = vld [vmem:[%s5650] sm:$0xf]
        %v5652 = vld [vmem:[%s5650 + $0x4] sm:$0xf]
        %v5655 = vunpack.c.l.b16 %v5651
        %v5656 = vunpack.c.l.b16 %v5652
        %v5657 = vpack.c.b16 %v5656, %v5655
        %5658 = vrot.lane.b32.xlu0 %v4465, 59
        %v5659 = vpop.permute.xlu0 %5658
        %5660 = vrot.lane.b32.xlu0 %v4466, 59
        %v5661 = vpop.permute.xlu0 %5660
        %5662 = vrot.lane.b32.xlu0 %v4467, 59
        %v5663 = vpop.permute.xlu0 %5662
        %5664 = vrot.lane.b32.xlu0 %v4468, 59
        %v5665 = vpop.permute.xlu0 %5664
        %5666 = vrot.lane.b32.xlu0 %v4469, 59
        %v5667 = vpop.permute.xlu0 %5666
        %5668 = vrot.lane.b32.xlu0 %v4470, 59
        %v5669 = vpop.permute.xlu0 %5668
        %5670 = vrot.lane.b32.xlu0 %v4471, 59
        %v5671 = vpop.permute.xlu0 %5670
        %5672 = vrot.lane.b32.xlu0 %v4472, 59
        %v5673 = vpop.permute.xlu0 %5672
        %5674 = vrot.lane.b32.xlu0 %v4473, 59
        %v5675 = vpop.permute.xlu0 %5674
        %vm5676 = vcmask 482304
        %v5677 = vsel %vm5676, %v5659, %v5661
        %v5678 = vsel %vm5676, %v5661, %v5663
        %v5679 = vsel %vm5676, %v5663, %v5665
        %v5680 = vsel %vm5676, %v5665, %v5667
        %v5681 = vsel %vm5676, %v5667, %v5669
        %v5682 = vsel %vm5676, %v5669, %v5671
        %v5683 = vsel %vm5676, %v5671, %v5673
        %v5684 = vsel %vm5676, %v5673, %v5675
        %v5694 = vsel %vm326, %v5657, 0
        %5696 = vmatprep.subr.bf16.mxu0 %v5678
        %5697 = vmatpush1.bf16.msra.mxu0 %v5677
        %5698 = vmatprep.subr.bf16.mxu0 0
        %5699 = vmatpush1.bf16.msra.mxu0 0
        %5700 = vmatprep.subr.bf16.mxu0 0
        %5701 = vmatpush1.bf16.msra.mxu0 0
        %5702 = vmatprep.subr.bf16.mxu0 0
        %5703 = vmatpush1.bf16.msra.mxu0 0
        %5704 = vmatprep.subr.bf16.mxu0 0
        %5705 = vmatpush1.bf16.msra.mxu0 0
        %5706 = vmatprep.subr.bf16.mxu0 0
        %5707 = vmatpush1.bf16.msra.mxu0 0
        %5708 = vmatprep.subr.bf16.mxu0 0
        %5709 = vmatpush1.bf16.msra.mxu0 0
        %5710 = vmatprep.subr.bf16.mxu0 0
        %5711 = vmatpush1.bf16.msra.mxu0 0
        %5712 = vmatprep.subr.bf16.mxu0 0
        %5713 = vmatpush1.bf16.msra.mxu0 0
        %5714 = vmatprep.subr.bf16.mxu0 0
        %5715 = vmatpush1.bf16.msra.mxu0 0
        %5716 = vmatprep.subr.bf16.mxu0 0
        %5717 = vmatpush1.bf16.msra.mxu0 0
        %5718 = vmatprep.subr.bf16.mxu0 0
        %5719 = vmatpush1.bf16.msra.mxu0 0
        %5720 = vmatprep.subr.bf16.mxu0 0
        %5721 = vmatpush1.bf16.msra.mxu0 0
        %5722 = vmatprep.subr.bf16.mxu0 0
        %5723 = vmatpush1.bf16.msra.mxu0 0
        %5724 = vmatprep.subr.bf16.mxu0 0
        %5725 = vmatpush1.bf16.msra.mxu0 0
        %5726 = vmatprep.subr.bf16.mxu0 0
        %5727 = vmatpush1.bf16.msra.mxu0 0
        %5728 = vmatprep.mubr.bf16.mxu0 0
        %5729 = vmatmul.mubr.bf16.gmra.mrb[0].mxu0 %v5694
        %v5730 = vpop.f32.mrb[0].mxu0
        %v5731 = vadd.f32 0.0, %v5730
        %v5732 = vpop.f32.mrb[0].mxu0
        %v5733 = vadd.f32 0.0, %v5732
        %v5734 = vpop.f32.mrb[0].mxu0
        %v5735 = vadd.f32 0.0, %v5734
        %v5736 = vpop.f32.mrb[0].mxu0
        %v5737 = vadd.f32 0.0, %v5736
        %5738 = vdwg.mxu0
        %5739 = vmatprep.subr.bf16.mxu0 %v5680
        %5740 = vmatpush1.bf16.msra.mxu0 %v5679
        %5741 = vmatprep.subr.bf16.mxu0 0
        %5742 = vmatpush1.bf16.msra.mxu0 0
        %5743 = vmatprep.subr.bf16.mxu0 0
        %5744 = vmatpush1.bf16.msra.mxu0 0
        %5745 = vmatprep.subr.bf16.mxu0 0
        %5746 = vmatpush1.bf16.msra.mxu0 0
        %5747 = vmatprep.subr.bf16.mxu0 0
        %5748 = vmatpush1.bf16.msra.mxu0 0
        %5749 = vmatprep.subr.bf16.mxu0 0
        %5750 = vmatpush1.bf16.msra.mxu0 0
        %5751 = vmatprep.subr.bf16.mxu0 0
        %5752 = vmatpush1.bf16.msra.mxu0 0
        %5753 = vmatprep.subr.bf16.mxu0 0
        %5754 = vmatpush1.bf16.msra.mxu0 0
        %5755 = vmatprep.subr.bf16.mxu0 0
        %5756 = vmatpush1.bf16.msra.mxu0 0
        %5757 = vmatprep.subr.bf16.mxu0 0
        %5758 = vmatpush1.bf16.msra.mxu0 0
        %5759 = vmatprep.subr.bf16.mxu0 0
        %5760 = vmatpush1.bf16.msra.mxu0 0
        %5761 = vmatprep.subr.bf16.mxu0 0
        %5762 = vmatpush1.bf16.msra.mxu0 0
        %5763 = vmatprep.subr.bf16.mxu0 0
        %5764 = vmatpush1.bf16.msra.mxu0 0
        %5765 = vmatprep.subr.bf16.mxu0 0
        %5766 = vmatpush1.bf16.msra.mxu0 0
        %5767 = vmatprep.subr.bf16.mxu0 0
        %5768 = vmatpush1.bf16.msra.mxu0 0
        %5769 = vmatprep.subr.bf16.mxu0 0
        %5770 = vmatpush1.bf16.msra.mxu0 0
        %5771 = vmatprep.mubr.bf16.mxu0 0
        %5772 = vmatmul.mubr.bf16.gmra.mrb[0].mxu0 %v5694
        %v5773 = vpop.f32.mrb[0].mxu0
        %v5774 = vadd.f32 0.0, %v5773
        %v5775 = vpop.f32.mrb[0].mxu0
        %v5776 = vadd.f32 0.0, %v5775
        %v5777 = vpop.f32.mrb[0].mxu0
        %v5778 = vadd.f32 0.0, %v5777
        %v5779 = vpop.f32.mrb[0].mxu0
        %v5780 = vadd.f32 0.0, %v5779
        %5781 = vdwg.mxu0
        %5782 = vmatprep.subr.bf16.mxu0 %v5682
        %5783 = vmatpush1.bf16.msra.mxu0 %v5681
        %5784 = vmatprep.subr.bf16.mxu0 0
        %5785 = vmatpush1.bf16.msra.mxu0 0
        %5786 = vmatprep.subr.bf16.mxu0 0
        %5787 = vmatpush1.bf16.msra.mxu0 0
        %5788 = vmatprep.subr.bf16.mxu0 0
        %5789 = vmatpush1.bf16.msra.mxu0 0
        %5790 = vmatprep.subr.bf16.mxu0 0
        %5791 = vmatpush1.bf16.msra.mxu0 0
        %5792 = vmatprep.subr.bf16.mxu0 0
        %5793 = vmatpush1.bf16.msra.mxu0 0
        %5794 = vmatprep.subr.bf16.mxu0 0
        %5795 = vmatpush1.bf16.msra.mxu0 0
        %5796 = vmatprep.subr.bf16.mxu0 0
        %5797 = vmatpush1.bf16.msra.mxu0 0
        %5798 = vmatprep.subr.bf16.mxu0 0
        %5799 = vmatpush1.bf16.msra.mxu0 0
        %5800 = vmatprep.subr.bf16.mxu0 0
        %5801 = vmatpush1.bf16.msra.mxu0 0
        %5802 = vmatprep.subr.bf16.mxu0 0
        %5803 = vmatpush1.bf16.msra.mxu0 0
        %5804 = vmatprep.subr.bf16.mxu0 0
        %5805 = vmatpush1.bf16.msra.mxu0 0
        %5806 = vmatprep.subr.bf16.mxu0 0
        %5807 = vmatpush1.bf16.msra.mxu0 0
        %5808 = vmatprep.subr.bf16.mxu0 0
        %5809 = vmatpush1.bf16.msra.mxu0 0
        %5810 = vmatprep.subr.bf16.mxu0 0
        %5811 = vmatpush1.bf16.msra.mxu0 0
        %5812 = vmatprep.subr.bf16.mxu0 0
        %5813 = vmatpush1.bf16.msra.mxu0 0
        %5814 = vmatprep.mubr.bf16.mxu0 0
        %5815 = vmatmul.mubr.bf16.gmra.mrb[0].mxu0 %v5694
        %v5816 = vpop.f32.mrb[0].mxu0
        %v5817 = vadd.f32 0.0, %v5816
        %v5818 = vpop.f32.mrb[0].mxu0
        %v5819 = vadd.f32 0.0, %v5818
        %v5820 = vpop.f32.mrb[0].mxu0
        %v5821 = vadd.f32 0.0, %v5820
        %v5822 = vpop.f32.mrb[0].mxu0
        %v5823 = vadd.f32 0.0, %v5822
        %5824 = vdwg.mxu0
        %5825 = vmatprep.subr.bf16.mxu0 %v5684
        %5826 = vmatpush1.bf16.msra.mxu0 %v5683
        %5827 = vmatprep.subr.bf16.mxu0 0
        %5828 = vmatpush1.bf16.msra.mxu0 0
        %5829 = vmatprep.subr.bf16.mxu0 0
        %5830 = vmatpush1.bf16.msra.mxu0 0
        %5831 = vmatprep.subr.bf16.mxu0 0
        %5832 = vmatpush1.bf16.msra.mxu0 0
        %5833 = vmatprep.subr.bf16.mxu0 0
        %5834 = vmatpush1.bf16.msra.mxu0 0
        %5835 = vmatprep.subr.bf16.mxu0 0
        %5836 = vmatpush1.bf16.msra.mxu0 0
        %5837 = vmatprep.subr.bf16.mxu0 0
        %5838 = vmatpush1.bf16.msra.mxu0 0
        %5839 = vmatprep.subr.bf16.mxu0 0
        %5840 = vmatpush1.bf16.msra.mxu0 0
        %5841 = vmatprep.subr.bf16.mxu0 0
        %5842 = vmatpush1.bf16.msra.mxu0 0
        %5843 = vmatprep.subr.bf16.mxu0 0
        %5844 = vmatpush1.bf16.msra.mxu0 0
        %5845 = vmatprep.subr.bf16.mxu0 0
        %5846 = vmatpush1.bf16.msra.mxu0 0
        %5847 = vmatprep.subr.bf16.mxu0 0
        %5848 = vmatpush1.bf16.msra.mxu0 0
        %5849 = vmatprep.subr.bf16.mxu0 0
        %5850 = vmatpush1.bf16.msra.mxu0 0
        %5851 = vmatprep.subr.bf16.mxu0 0
        %5852 = vmatpush1.bf16.msra.mxu0 0
        %5853 = vmatprep.subr.bf16.mxu0 0
        %5854 = vmatpush1.bf16.msra.mxu0 0
        %5855 = vmatprep.subr.bf16.mxu0 0
        %5856 = vmatpush1.bf16.msra.mxu0 0
        %5857 = vmatprep.mubr.bf16.mxu0 0
        %5858 = vmatmul.mubr.bf16.gmra.mrb[0].mxu0 %v5694
        %v5859 = vpop.f32.mrb[0].mxu0
        %v5860 = vadd.f32 0.0, %v5859
        %v5861 = vpop.f32.mrb[0].mxu0
        %v5862 = vadd.f32 0.0, %v5861
        %v5863 = vpop.f32.mrb[0].mxu0
        %v5864 = vadd.f32 0.0, %v5863
        %v5865 = vpop.f32.mrb[0].mxu0
        %v5866 = vadd.f32 0.0, %v5865
        %5867 = vdwg.mxu0
        %v5868 = vadd.f32 %v5634, %v5731
        %v5869 = vadd.f32 %v5635, %v5733
        %v5870 = vadd.f32 %v5636, %v5774
        %v5871 = vadd.f32 %v5637, %v5776
        %v5872 = vadd.f32 %v5638, %v5817
        %v5873 = vadd.f32 %v5639, %v5819
        %v5874 = vadd.f32 %v5640, %v5860
        %v5875 = vadd.f32 %v5641, %v5862
        %v5876 = vadd.f32 %v5642, %v5735
        %v5877 = vadd.f32 %v5643, %v5737
        %v5878 = vadd.f32 %v5644, %v5778
        %v5879 = vadd.f32 %v5645, %v5780
        %v5880 = vadd.f32 %v5646, %v5821
        %v5881 = vadd.f32 %v5647, %v5823
        %v5882 = vadd.f32 %v5648, %v5864
        %v5883 = vadd.f32 %v5649, %v5866
        %s5884 = scalar_lea.vmem %s0, 192
        %v5885 = vld [vmem:[%s5884] sm:$0xf]
        %v5886 = vld [vmem:[%s5884 + $0x4] sm:$0xf]
        %v5889 = vunpack.c.l.b16 %v5885
        %v5890 = vunpack.c.l.b16 %v5886
        %v5891 = vpack.c.b16 %v5890, %v5889
        %5892 = vrot.lane.b32.xlu0 %v4465, 43
        %v5893 = vpop.permute.xlu0 %5892
        %5894 = vrot.lane.b32.xlu0 %v4466, 43
        %v5895 = vpop.permute.xlu0 %5894
        %5896 = vrot.lane.b32.xlu0 %v4467, 43
        %v5897 = vpop.permute.xlu0 %5896
        %5898 = vrot.lane.b32.xlu0 %v4468, 43
        %v5899 = vpop.permute.xlu0 %5898
        %5900 = vrot.lane.b32.xlu0 %v4469, 43
        %v5901 = vpop.permute.xlu0 %5900
        %5902 = vrot.lane.b32.xlu0 %v4470, 43
        %v5903 = vpop.permute.xlu0 %5902
        %5904 = vrot.lane.b32.xlu0 %v4471, 43
        %v5905 = vpop.permute.xlu0 %5904
        %5906 = vrot.lane.b32.xlu0 %v4472, 43
        %v5907 = vpop.permute.xlu0 %5906
        %5908 = vrot.lane.b32.xlu0 %v4473, 43
        %v5909 = vpop.permute.xlu0 %5908
        %vm5910 = vcmask 351232
        %v5911 = vsel %vm5910, %v5893, %v5895
        %v5912 = vsel %vm5910, %v5895, %v5897
        %v5913 = vsel %vm5910, %v5897, %v5899
        %v5914 = vsel %vm5910, %v5899, %v5901
        %v5915 = vsel %vm5910, %v5901, %v5903
        %v5916 = vsel %vm5910, %v5903, %v5905
        %v5917 = vsel %vm5910, %v5905, %v5907
        %v5918 = vsel %vm5910, %v5907, %v5909
        %v5928 = vsel %vm326, %v5891, 0
        %5930 = vmatprep.subr.bf16.mxu0 %v5912
        %5931 = vmatpush1.bf16.msra.mxu0 %v5911
        %5932 = vmatprep.subr.bf16.mxu0 0
        %5933 = vmatpush1.bf16.msra.mxu0 0
        %5934 = vmatprep.subr.bf16.mxu0 0
        %5935 = vmatpush1.bf16.msra.mxu0 0
        %5936 = vmatprep.subr.bf16.mxu0 0
        %5937 = vmatpush1.bf16.msra.mxu0 0
        %5938 = vmatprep.subr.bf16.mxu0 0
        %5939 = vmatpush1.bf16.msra.mxu0 0
        %5940 = vmatprep.subr.bf16.mxu0 0
        %5941 = vmatpush1.bf16.msra.mxu0 0
        %5942 = vmatprep.subr.bf16.mxu0 0
        %5943 = vmatpush1.bf16.msra.mxu0 0
        %5944 = vmatprep.subr.bf16.mxu0 0
        %5945 = vmatpush1.bf16.msra.mxu0 0
        %5946 = vmatprep.subr.bf16.mxu0 0
        %5947 = vmatpush1.bf16.msra.mxu0 0
        %5948 = vmatprep.subr.bf16.mxu0 0
        %5949 = vmatpush1.bf16.msra.mxu0 0
        %5950 = vmatprep.subr.bf16.mxu0 0
        %5951 = vmatpush1.bf16.msra.mxu0 0
        %5952 = vmatprep.subr.bf16.mxu0 0
        %5953 = vmatpush1.bf16.msra.mxu0 0
        %5954 = vmatprep.subr.bf16.mxu0 0
        %5955 = vmatpush1.bf16.msra.mxu0 0
        %5956 = vmatprep.subr.bf16.mxu0 0
        %5957 = vmatpush1.bf16.msra.mxu0 0
        %5958 = vmatprep.subr.bf16.mxu0 0
        %5959 = vmatpush1.bf16.msra.mxu0 0
        %5960 = vmatprep.subr.bf16.mxu0 0
        %5961 = vmatpush1.bf16.msra.mxu0 0
        %5962 = vmatprep.mubr.bf16.mxu0 0
        %5963 = vmatmul.mubr.bf16.gmra.mrb[0].mxu0 %v5928
        %v5964 = vpop.f32.mrb[0].mxu0
        %v5965 = vadd.f32 0.0, %v5964
        %v5966 = vpop.f32.mrb[0].mxu0
        %v5967 = vadd.f32 0.0, %v5966
        %v5968 = vpop.f32.mrb[0].mxu0
        %v5969 = vadd.f32 0.0, %v5968
        %v5970 = vpop.f32.mrb[0].mxu0
        %v5971 = vadd.f32 0.0, %v5970
        %5972 = vdwg.mxu0
        %5973 = vmatprep.subr.bf16.mxu0 %v5914
        %5974 = vmatpush1.bf16.msra.mxu0 %v5913
        %5975 = vmatprep.subr.bf16.mxu0 0
        %5976 = vmatpush1.bf16.msra.mxu0 0
        %5977 = vmatprep.subr.bf16.mxu0 0
        %5978 = vmatpush1.bf16.msra.mxu0 0
        %5979 = vmatprep.subr.bf16.mxu0 0
        %5980 = vmatpush1.bf16.msra.mxu0 0
        %5981 = vmatprep.subr.bf16.mxu0 0
        %5982 = vmatpush1.bf16.msra.mxu0 0
        %5983 = vmatprep.subr.bf16.mxu0 0
        %5984 = vmatpush1.bf16.msra.mxu0 0
        %5985 = vmatprep.subr.bf16.mxu0 0
        %5986 = vmatpush1.bf16.msra.mxu0 0
        %5987 = vmatprep.subr.bf16.mxu0 0
        %5988 = vmatpush1.bf16.msra.mxu0 0
        %5989 = vmatprep.subr.bf16.mxu0 0
        %5990 = vmatpush1.bf16.msra.mxu0 0
        %5991 = vmatprep.subr.bf16.mxu0 0
        %5992 = vmatpush1.bf16.msra.mxu0 0
        %5993 = vmatprep.subr.bf16.mxu0 0
        %5994 = vmatpush1.bf16.msra.mxu0 0
        %5995 = vmatprep.subr.bf16.mxu0 0
        %5996 = vmatpush1.bf16.msra.mxu0 0
        %5997 = vmatprep.subr.bf16.mxu0 0
        %5998 = vmatpush1.bf16.msra.mxu0 0
        %5999 = vmatprep.subr.bf16.mxu0 0
        %6000 = vmatpush1.bf16.msra.mxu0 0
        %6001 = vmatprep.subr.bf16.mxu0 0
        %6002 = vmatpush1.bf16.msra.mxu0 0
        %6003 = vmatprep.subr.bf16.mxu0 0
        %6004 = vmatpush1.bf16.msra.mxu0 0
        %6005 = vmatprep.mubr.bf16.mxu0 0
        %6006 = vmatmul.mubr.bf16.gmra.mrb[0].mxu0 %v5928
        %v6007 = vpop.f32.mrb[0].mxu0
        %v6008 = vadd.f32 0.0, %v6007
        %v6009 = vpop.f32.mrb[0].mxu0
        %v6010 = vadd.f32 0.0, %v6009
        %v6011 = vpop.f32.mrb[0].mxu0
        %v6012 = vadd.f32 0.0, %v6011
        %v6013 = vpop.f32.mrb[0].mxu0
        %v6014 = vadd.f32 0.0, %v6013
        %6015 = vdwg.mxu0
        %6016 = vmatprep.subr.bf16.mxu0 %v5916
        %6017 = vmatpush1.bf16.msra.mxu0 %v5915
        %6018 = vmatprep.subr.bf16.mxu0 0
        %6019 = vmatpush1.bf16.msra.mxu0 0
        %6020 = vmatprep.subr.bf16.mxu0 0
        %6021 = vmatpush1.bf16.msra.mxu0 0
        %6022 = vmatprep.subr.bf16.mxu0 0
        %6023 = vmatpush1.bf16.msra.mxu0 0
        %6024 = vmatprep.subr.bf16.mxu0 0
        %6025 = vmatpush1.bf16.msra.mxu0 0
        %6026 = vmatprep.subr.bf16.mxu0 0
        %6027 = vmatpush1.bf16.msra.mxu0 0
        %6028 = vmatprep.subr.bf16.mxu0 0
        %6029 = vmatpush1.bf16.msra.mxu0 0
        %6030 = vmatprep.subr.bf16.mxu0 0
        %6031 = vmatpush1.bf16.msra.mxu0 0
        %6032 = vmatprep.subr.bf16.mxu0 0
        %6033 = vmatpush1.bf16.msra.mxu0 0
        %6034 = vmatprep.subr.bf16.mxu0 0
        %6035 = vmatpush1.bf16.msra.mxu0 0
        %6036 = vmatprep.subr.bf16.mxu0 0
        %6037 = vmatpush1.bf16.msra.mxu0 0
        %6038 = vmatprep.subr.bf16.mxu0 0
        %6039 = vmatpush1.bf16.msra.mxu0 0
        %6040 = vmatprep.subr.bf16.mxu0 0
        %6041 = vmatpush1.bf16.msra.mxu0 0
        %6042 = vmatprep.subr.bf16.mxu0 0
        %6043 = vmatpush1.bf16.msra.mxu0 0
        %6044 = vmatprep.subr.bf16.mxu0 0
        %6045 = vmatpush1.bf16.msra.mxu0 0
        %6046 = vmatprep.subr.bf16.mxu0 0
        %6047 = vmatpush1.bf16.msra.mxu0 0
        %6048 = vmatprep.mubr.bf16.mxu0 0
        %6049 = vmatmul.mubr.bf16.gmra.mrb[0].mxu0 %v5928
        %v6050 = vpop.f32.mrb[0].mxu0
        %v6051 = vadd.f32 0.0, %v6050
        %v6052 = vpop.f32.mrb[0].mxu0
        %v6053 = vadd.f32 0.0, %v6052
        %v6054 = vpop.f32.mrb[0].mxu0
        %v6055 = vadd.f32 0.0, %v6054
        %v6056 = vpop.f32.mrb[0].mxu0
        %v6057 = vadd.f32 0.0, %v6056
        %6058 = vdwg.mxu0
        %6059 = vmatprep.subr.bf16.mxu0 %v5918
        %6060 = vmatpush1.bf16.msra.mxu0 %v5917
        %6061 = vmatprep.subr.bf16.mxu0 0
        %6062 = vmatpush1.bf16.msra.mxu0 0
        %6063 = vmatprep.subr.bf16.mxu0 0
        %6064 = vmatpush1.bf16.msra.mxu0 0
        %6065 = vmatprep.subr.bf16.mxu0 0
        %6066 = vmatpush1.bf16.msra.mxu0 0
        %6067 = vmatprep.subr.bf16.mxu0 0
        %6068 = vmatpush1.bf16.msra.mxu0 0
        %6069 = vmatprep.subr.bf16.mxu0 0
        %6070 = vmatpush1.bf16.msra.mxu0 0
        %6071 = vmatprep.subr.bf16.mxu0 0
        %6072 = vmatpush1.bf16.msra.mxu0 0
        %6073 = vmatprep.subr.bf16.mxu0 0
        %6074 = vmatpush1.bf16.msra.mxu0 0
        %6075 = vmatprep.subr.bf16.mxu0 0
        %6076 = vmatpush1.bf16.msra.mxu0 0
        %6077 = vmatprep.subr.bf16.mxu0 0
        %6078 = vmatpush1.bf16.msra.mxu0 0
        %6079 = vmatprep.subr.bf16.mxu0 0
        %6080 = vmatpush1.bf16.msra.mxu0 0
        %6081 = vmatprep.subr.bf16.mxu0 0
        %6082 = vmatpush1.bf16.msra.mxu0 0
        %6083 = vmatprep.subr.bf16.mxu0 0
        %6084 = vmatpush1.bf16.msra.mxu0 0
        %6085 = vmatprep.subr.bf16.mxu0 0
        %6086 = vmatpush1.bf16.msra.mxu0 0
        %6087 = vmatprep.subr.bf16.mxu0 0
        %6088 = vmatpush1.bf16.msra.mxu0 0
        %6089 = vmatprep.subr.bf16.mxu0 0
        %6090 = vmatpush1.bf16.msra.mxu0 0
        %6091 = vmatprep.mubr.bf16.mxu0 0
        %6092 = vmatmul.mubr.bf16.gmra.mrb[0].mxu0 %v5928
        %v6093 = vpop.f32.mrb[0].mxu0
        %v6094 = vadd.f32 0.0, %v6093
        %v6095 = vpop.f32.mrb[0].mxu0
        %v6096 = vadd.f32 0.0, %v6095
        %v6097 = vpop.f32.mrb[0].mxu0
        %v6098 = vadd.f32 0.0, %v6097
        %v6099 = vpop.f32.mrb[0].mxu0
        %v6100 = vadd.f32 0.0, %v6099
        %6101 = vdwg.mxu0
        %v6102 = vadd.f32 %v5868, %v5965
        %v6103 = vadd.f32 %v5869, %v5967
        %v6104 = vadd.f32 %v5870, %v6008
        %v6105 = vadd.f32 %v5871, %v6010
        %v6106 = vadd.f32 %v5872, %v6051
        %v6107 = vadd.f32 %v5873, %v6053
        %v6108 = vadd.f32 %v5874, %v6094
        %v6109 = vadd.f32 %v5875, %v6096
        %v6110 = vadd.f32 %v5876, %v5969
        %v6111 = vadd.f32 %v5877, %v5971
        %v6112 = vadd.f32 %v5878, %v6012
        %v6113 = vadd.f32 %v5879, %v6014
        %v6114 = vadd.f32 %v5880, %v6055
        %v6115 = vadd.f32 %v5881, %v6057
        %v6116 = vadd.f32 %v5882, %v6098
        %v6117 = vadd.f32 %v5883, %v6100
        %s6118 = scalar_lea.vmem %s0, 200
        %v6119 = vld [vmem:[%s6118] sm:$0xf]
        %v6120 = vld [vmem:[%s6118 + $0x4] sm:$0xf]
        %v6123 = vunpack.c.l.b16 %v6119
        %v6124 = vunpack.c.l.b16 %v6120
        %v6125 = vpack.c.b16 %v6124, %v6123
        %6126 = vrot.lane.b32.xlu0 %v4465, 42
        %v6127 = vpop.permute.xlu0 %6126
        %6128 = vrot.lane.b32.xlu0 %v4466, 42
        %v6129 = vpop.permute.xlu0 %6128
        %6130 = vrot.lane.b32.xlu0 %v4467, 42
        %v6131 = vpop.permute.xlu0 %6130
        %6132 = vrot.lane.b32.xlu0 %v4468, 42
        %v6133 = vpop.permute.xlu0 %6132
        %6134 = vrot.lane.b32.xlu0 %v4469, 42
        %v6135 = vpop.permute.xlu0 %6134
        %6136 = vrot.lane.b32.xlu0 %v4470, 42
        %v6137 = vpop.permute.xlu0 %6136
        %6138 = vrot.lane.b32.xlu0 %v4471, 42
        %v6139 = vpop.permute.xlu0 %6138
        %6140 = vrot.lane.b32.xlu0 %v4472, 42
        %v6141 = vpop.permute.xlu0 %6140
        %6142 = vrot.lane.b32.xlu0 %v4473, 42
        %v6143 = vpop.permute.xlu0 %6142
        %vm6144 = vcmask 343040
        %v6145 = vsel %vm6144, %v6127, %v6129
        %v6146 = vsel %vm6144, %v6129, %v6131
        %v6147 = vsel %vm6144, %v6131, %v6133
        %v6148 = vsel %vm6144, %v6133, %v6135
        %v6149 = vsel %vm6144, %v6135, %v6137
        %v6150 = vsel %vm6144, %v6137, %v6139
        %v6151 = vsel %vm6144, %v6139, %v6141
        %v6152 = vsel %vm6144, %v6141, %v6143
        %v6162 = vsel %vm326, %v6125, 0
        %6164 = vmatprep.subr.bf16.mxu0 %v6146
        %6165 = vmatpush1.bf16.msra.mxu0 %v6145
        %6166 = vmatprep.subr.bf16.mxu0 0
        %6167 = vmatpush1.bf16.msra.mxu0 0
        %6168 = vmatprep.subr.bf16.mxu0 0
        %6169 = vmatpush1.bf16.msra.mxu0 0
        %6170 = vmatprep.subr.bf16.mxu0 0
        %6171 = vmatpush1.bf16.msra.mxu0 0
        %6172 = vmatprep.subr.bf16.mxu0 0
        %6173 = vmatpush1.bf16.msra.mxu0 0
        %6174 = vmatprep.subr.bf16.mxu0 0
        %6175 = vmatpush1.bf16.msra.mxu0 0
        %6176 = vmatprep.subr.bf16.mxu0 0
        %6177 = vmatpush1.bf16.msra.mxu0 0
        %6178 = vmatprep.subr.bf16.mxu0 0
        %6179 = vmatpush1.bf16.msra.mxu0 0
        %6180 = vmatprep.subr.bf16.mxu0 0
        %6181 = vmatpush1.bf16.msra.mxu0 0
        %6182 = vmatprep.subr.bf16.mxu0 0
        %6183 = vmatpush1.bf16.msra.mxu0 0
        %6184 = vmatprep.subr.bf16.mxu0 0
        %6185 = vmatpush1.bf16.msra.mxu0 0
        %6186 = vmatprep.subr.bf16.mxu0 0
        %6187 = vmatpush1.bf16.msra.mxu0 0
        %6188 = vmatprep.subr.bf16.mxu0 0
        %6189 = vmatpush1.bf16.msra.mxu0 0
        %6190 = vmatprep.subr.bf16.mxu0 0
        %6191 = vmatpush1.bf16.msra.mxu0 0
        %6192 = vmatprep.subr.bf16.mxu0 0
        %6193 = vmatpush1.bf16.msra.mxu0 0
        %6194 = vmatprep.subr.bf16.mxu0 0
        %6195 = vmatpush1.bf16.msra.mxu0 0
        %6196 = vmatprep.mubr.bf16.mxu0 0
        %6197 = vmatmul.mubr.bf16.gmra.mrb[0].mxu0 %v6162
        %v6198 = vpop.f32.mrb[0].mxu0
        %v6199 = vadd.f32 0.0, %v6198
        %v6200 = vpop.f32.mrb[0].mxu0
        %v6201 = vadd.f32 0.0, %v6200
        %v6202 = vpop.f32.mrb[0].mxu0
        %v6203 = vadd.f32 0.0, %v6202
        %v6204 = vpop.f32.mrb[0].mxu0
        %v6205 = vadd.f32 0.0, %v6204
        %6206 = vdwg.mxu0
        %6207 = vmatprep.subr.bf16.mxu0 %v6148
        %6208 = vmatpush1.bf16.msra.mxu0 %v6147
        %6209 = vmatprep.subr.bf16.mxu0 0
        %6210 = vmatpush1.bf16.msra.mxu0 0
        %6211 = vmatprep.subr.bf16.mxu0 0
        %6212 = vmatpush1.bf16.msra.mxu0 0
        %6213 = vmatprep.subr.bf16.mxu0 0
        %6214 = vmatpush1.bf16.msra.mxu0 0
        %6215 = vmatprep.subr.bf16.mxu0 0
        %6216 = vmatpush1.bf16.msra.mxu0 0
        %6217 = vmatprep.subr.bf16.mxu0 0
        %6218 = vmatpush1.bf16.msra.mxu0 0
        %6219 = vmatprep.subr.bf16.mxu0 0
        %6220 = vmatpush1.bf16.msra.mxu0 0
        %6221 = vmatprep.subr.bf16.mxu0 0
        %6222 = vmatpush1.bf16.msra.mxu0 0
        %6223 = vmatprep.subr.bf16.mxu0 0
        %6224 = vmatpush1.bf16.msra.mxu0 0
        %6225 = vmatprep.subr.bf16.mxu0 0
        %6226 = vmatpush1.bf16.msra.mxu0 0
        %6227 = vmatprep.subr.bf16.mxu0 0
        %6228 = vmatpush1.bf16.msra.mxu0 0
        %6229 = vmatprep.subr.bf16.mxu0 0
        %6230 = vmatpush1.bf16.msra.mxu0 0
        %6231 = vmatprep.subr.bf16.mxu0 0
        %6232 = vmatpush1.bf16.msra.mxu0 0
        %6233 = vmatprep.subr.bf16.mxu0 0
        %6234 = vmatpush1.bf16.msra.mxu0 0
        %6235 = vmatprep.subr.bf16.mxu0 0
        %6236 = vmatpush1.bf16.msra.mxu0 0
        %6237 = vmatprep.subr.bf16.mxu0 0
        %6238 = vmatpush1.bf16.msra.mxu0 0
        %6239 = vmatprep.mubr.bf16.mxu0 0
        %6240 = vmatmul.mubr.bf16.gmra.mrb[0].mxu0 %v6162
        %v6241 = vpop.f32.mrb[0].mxu0
        %v6242 = vadd.f32 0.0, %v6241
        %v6243 = vpop.f32.mrb[0].mxu0
        %v6244 = vadd.f32 0.0, %v6243
        %v6245 = vpop.f32.mrb[0].mxu0
        %v6246 = vadd.f32 0.0, %v6245
        %v6247 = vpop.f32.mrb[0].mxu0
        %v6248 = vadd.f32 0.0, %v6247
        %6249 = vdwg.mxu0
        %6250 = vmatprep.subr.bf16.mxu0 %v6150
        %6251 = vmatpush1.bf16.msra.mxu0 %v6149
        %6252 = vmatprep.subr.bf16.mxu0 0
        %6253 = vmatpush1.bf16.msra.mxu0 0
        %6254 = vmatprep.subr.bf16.mxu0 0
        %6255 = vmatpush1.bf16.msra.mxu0 0
        %6256 = vmatprep.subr.bf16.mxu0 0
        %6257 = vmatpush1.bf16.msra.mxu0 0
        %6258 = vmatprep.subr.bf16.mxu0 0
        %6259 = vmatpush1.bf16.msra.mxu0 0
        %6260 = vmatprep.subr.bf16.mxu0 0
        %6261 = vmatpush1.bf16.msra.mxu0 0
        %6262 = vmatprep.subr.bf16.mxu0 0
        %6263 = vmatpush1.bf16.msra.mxu0 0
        %6264 = vmatprep.subr.bf16.mxu0 0
        %6265 = vmatpush1.bf16.msra.mxu0 0
        %6266 = vmatprep.subr.bf16.mxu0 0
        %6267 = vmatpush1.bf16.msra.mxu0 0
        %6268 = vmatprep.subr.bf16.mxu0 0
        %6269 = vmatpush1.bf16.msra.mxu0 0
        %6270 = vmatprep.subr.bf16.mxu0 0
        %6271 = vmatpush1.bf16.msra.mxu0 0
        %6272 = vmatprep.subr.bf16.mxu0 0
        %6273 = vmatpush1.bf16.msra.mxu0 0
        %6274 = vmatprep.subr.bf16.mxu0 0
        %6275 = vmatpush1.bf16.msra.mxu0 0
        %6276 = vmatprep.subr.bf16.mxu0 0
        %6277 = vmatpush1.bf16.msra.mxu0 0
        %6278 = vmatprep.subr.bf16.mxu0 0
        %6279 = vmatpush1.bf16.msra.mxu0 0
        %6280 = vmatprep.subr.bf16.mxu0 0
        %6281 = vmatpush1.bf16.msra.mxu0 0
        %6282 = vmatprep.mubr.bf16.mxu0 0
        %6283 = vmatmul.mubr.bf16.gmra.mrb[0].mxu0 %v6162
        %v6284 = vpop.f32.mrb[0].mxu0
        %v6285 = vadd.f32 0.0, %v6284
        %v6286 = vpop.f32.mrb[0].mxu0
        %v6287 = vadd.f32 0.0, %v6286
        %v6288 = vpop.f32.mrb[0].mxu0
        %v6289 = vadd.f32 0.0, %v6288
        %v6290 = vpop.f32.mrb[0].mxu0
        %v6291 = vadd.f32 0.0, %v6290
        %6292 = vdwg.mxu0
        %6293 = vmatprep.subr.bf16.mxu0 %v6152
        %6294 = vmatpush1.bf16.msra.mxu0 %v6151
        %6295 = vmatprep.subr.bf16.mxu0 0
        %6296 = vmatpush1.bf16.msra.mxu0 0
        %6297 = vmatprep.subr.bf16.mxu0 0
        %6298 = vmatpush1.bf16.msra.mxu0 0
        %6299 = vmatprep.subr.bf16.mxu0 0
        %6300 = vmatpush1.bf16.msra.mxu0 0
        %6301 = vmatprep.subr.bf16.mxu0 0
        %6302 = vmatpush1.bf16.msra.mxu0 0
        %6303 = vmatprep.subr.bf16.mxu0 0
        %6304 = vmatpush1.bf16.msra.mxu0 0
        %6305 = vmatprep.subr.bf16.mxu0 0
        %6306 = vmatpush1.bf16.msra.mxu0 0
        %6307 = vmatprep.subr.bf16.mxu0 0
        %6308 = vmatpush1.bf16.msra.mxu0 0
        %6309 = vmatprep.subr.bf16.mxu0 0
        %6310 = vmatpush1.bf16.msra.mxu0 0
        %6311 = vmatprep.subr.bf16.mxu0 0
        %6312 = vmatpush1.bf16.msra.mxu0 0
        %6313 = vmatprep.subr.bf16.mxu0 0
        %6314 = vmatpush1.bf16.msra.mxu0 0
        %6315 = vmatprep.subr.bf16.mxu0 0
        %6316 = vmatpush1.bf16.msra.mxu0 0
        %6317 = vmatprep.subr.bf16.mxu0 0
        %6318 = vmatpush1.bf16.msra.mxu0 0
        %6319 = vmatprep.subr.bf16.mxu0 0
        %6320 = vmatpush1.bf16.msra.mxu0 0
        %6321 = vmatprep.subr.bf16.mxu0 0
        %6322 = vmatpush1.bf16.msra.mxu0 0
        %6323 = vmatprep.subr.bf16.mxu0 0
        %6324 = vmatpush1.bf16.msra.mxu0 0
        %6325 = vmatprep.mubr.bf16.mxu0 0
        %6326 = vmatmul.mubr.bf16.gmra.mrb[0].mxu0 %v6162
        %v6327 = vpop.f32.mrb[0].mxu0
        %v6328 = vadd.f32 0.0, %v6327
        %v6329 = vpop.f32.mrb[0].mxu0
        %v6330 = vadd.f32 0.0, %v6329
        %v6331 = vpop.f32.mrb[0].mxu0
        %v6332 = vadd.f32 0.0, %v6331
        %v6333 = vpop.f32.mrb[0].mxu0
        %v6334 = vadd.f32 0.0, %v6333
        %6335 = vdwg.mxu0
        %v6336 = vadd.f32 %v6102, %v6199
        %v6337 = vadd.f32 %v6103, %v6201
        %v6338 = vadd.f32 %v6104, %v6242
        %v6339 = vadd.f32 %v6105, %v6244
        %v6340 = vadd.f32 %v6106, %v6285
        %v6341 = vadd.f32 %v6107, %v6287
        %v6342 = vadd.f32 %v6108, %v6328
        %v6343 = vadd.f32 %v6109, %v6330
        %v6344 = vadd.f32 %v6110, %v6203
        %v6345 = vadd.f32 %v6111, %v6205
        %v6346 = vadd.f32 %v6112, %v6246
        %v6347 = vadd.f32 %v6113, %v6248
        %v6348 = vadd.f32 %v6114, %v6289
        %v6349 = vadd.f32 %v6115, %v6291
        %v6350 = vadd.f32 %v6116, %v6332
        %v6351 = vadd.f32 %v6117, %v6334
        %s6352 = scalar_lea.vmem %s0, 208
        %v6353 = vld [vmem:[%s6352] sm:$0xf]
        %v6354 = vld [vmem:[%s6352 + $0x4] sm:$0xf]
        %v6357 = vunpack.c.l.b16 %v6353
        %v6358 = vunpack.c.l.b16 %v6354
        %v6359 = vpack.c.b16 %v6358, %v6357
        %6360 = vrot.lane.b32.xlu0 %v4465, 41
        %v6361 = vpop.permute.xlu0 %6360
        %6362 = vrot.lane.b32.xlu0 %v4466, 41
        %v6363 = vpop.permute.xlu0 %6362
        %6364 = vrot.lane.b32.xlu0 %v4467, 41
        %v6365 = vpop.permute.xlu0 %6364
        %6366 = vrot.lane.b32.xlu0 %v4468, 41
        %v6367 = vpop.permute.xlu0 %6366
        %6368 = vrot.lane.b32.xlu0 %v4469, 41
        %v6369 = vpop.permute.xlu0 %6368
        %6370 = vrot.lane.b32.xlu0 %v4470, 41
        %v6371 = vpop.permute.xlu0 %6370
        %6372 = vrot.lane.b32.xlu0 %v4471, 41
        %v6373 = vpop.permute.xlu0 %6372
        %6374 = vrot.lane.b32.xlu0 %v4472, 41
        %v6375 = vpop.permute.xlu0 %6374
        %6376 = vrot.lane.b32.xlu0 %v4473, 41
        %v6377 = vpop.permute.xlu0 %6376
        %vm6378 = vcmask 334848
        %v6379 = vsel %vm6378, %v6361, %v6363
        %v6380 = vsel %vm6378, %v6363, %v6365
        %v6381 = vsel %vm6378, %v6365, %v6367
        %v6382 = vsel %vm6378, %v6367, %v6369
        %v6383 = vsel %vm6378, %v6369, %v6371
        %v6384 = vsel %vm6378, %v6371, %v6373
        %v6385 = vsel %vm6378, %v6373, %v6375
        %v6386 = vsel %vm6378, %v6375, %v6377
        %v6396 = vsel %vm326, %v6359, 0
        %6398 = vmatprep.subr.bf16.mxu0 %v6380
        %6399 = vmatpush1.bf16.msra.mxu0 %v6379
        %6400 = vmatprep.subr.bf16.mxu0 0
        %6401 = vmatpush1.bf16.msra.mxu0 0
        %6402 = vmatprep.subr.bf16.mxu0 0
        %6403 = vmatpush1.bf16.msra.mxu0 0
        %6404 = vmatprep.subr.bf16.mxu0 0
        %6405 = vmatpush1.bf16.msra.mxu0 0
        %6406 = vmatprep.subr.bf16.mxu0 0
        %6407 = vmatpush1.bf16.msra.mxu0 0
        %6408 = vmatprep.subr.bf16.mxu0 0
        %6409 = vmatpush1.bf16.msra.mxu0 0
        %6410 = vmatprep.subr.bf16.mxu0 0
        %6411 = vmatpush1.bf16.msra.mxu0 0
        %6412 = vmatprep.subr.bf16.mxu0 0
        %6413 = vmatpush1.bf16.msra.mxu0 0
        %6414 = vmatprep.subr.bf16.mxu0 0
        %6415 = vmatpush1.bf16.msra.mxu0 0
        %6416 = vmatprep.subr.bf16.mxu0 0
        %6417 = vmatpush1.bf16.msra.mxu0 0
        %6418 = vmatprep.subr.bf16.mxu0 0
        %6419 = vmatpush1.bf16.msra.mxu0 0
        %6420 = vmatprep.subr.bf16.mxu0 0
        %6421 = vmatpush1.bf16.msra.mxu0 0
        %6422 = vmatprep.subr.bf16.mxu0 0
        %6423 = vmatpush1.bf16.msra.mxu0 0
        %6424 = vmatprep.subr.bf16.mxu0 0
        %6425 = vmatpush1.bf16.msra.mxu0 0
        %6426 = vmatprep.subr.bf16.mxu0 0
        %6427 = vmatpush1.bf16.msra.mxu0 0
        %6428 = vmatprep.subr.bf16.mxu0 0
        %6429 = vmatpush1.bf16.msra.mxu0 0
        %6430 = vmatprep.mubr.bf16.mxu0 0
        %6431 = vmatmul.mubr.bf16.gmra.mrb[0].mxu0 %v6396
        %v6432 = vpop.f32.mrb[0].mxu0
        %v6433 = vadd.f32 0.0, %v6432
        %v6434 = vpop.f32.mrb[0].mxu0
        %v6435 = vadd.f32 0.0, %v6434
        %v6436 = vpop.f32.mrb[0].mxu0
        %v6437 = vadd.f32 0.0, %v6436
        %v6438 = vpop.f32.mrb[0].mxu0
        %v6439 = vadd.f32 0.0, %v6438
        %6440 = vdwg.mxu0
        %6441 = vmatprep.subr.bf16.mxu0 %v6382
        %6442 = vmatpush1.bf16.msra.mxu0 %v6381
        %6443 = vmatprep.subr.bf16.mxu0 0
        %6444 = vmatpush1.bf16.msra.mxu0 0
        %6445 = vmatprep.subr.bf16.mxu0 0
        %6446 = vmatpush1.bf16.msra.mxu0 0
        %6447 = vmatprep.subr.bf16.mxu0 0
        %6448 = vmatpush1.bf16.msra.mxu0 0
        %6449 = vmatprep.subr.bf16.mxu0 0
        %6450 = vmatpush1.bf16.msra.mxu0 0
        %6451 = vmatprep.subr.bf16.mxu0 0
        %6452 = vmatpush1.bf16.msra.mxu0 0
        %6453 = vmatprep.subr.bf16.mxu0 0
        %6454 = vmatpush1.bf16.msra.mxu0 0
        %6455 = vmatprep.subr.bf16.mxu0 0
        %6456 = vmatpush1.bf16.msra.mxu0 0
        %6457 = vmatprep.subr.bf16.mxu0 0
        %6458 = vmatpush1.bf16.msra.mxu0 0
        %6459 = vmatprep.subr.bf16.mxu0 0
        %6460 = vmatpush1.bf16.msra.mxu0 0
        %6461 = vmatprep.subr.bf16.mxu0 0
        %6462 = vmatpush1.bf16.msra.mxu0 0
        %6463 = vmatprep.subr.bf16.mxu0 0
        %6464 = vmatpush1.bf16.msra.mxu0 0
        %6465 = vmatprep.subr.bf16.mxu0 0
        %6466 = vmatpush1.bf16.msra.mxu0 0
        %6467 = vmatprep.subr.bf16.mxu0 0
        %6468 = vmatpush1.bf16.msra.mxu0 0
        %6469 = vmatprep.subr.bf16.mxu0 0
        %6470 = vmatpush1.bf16.msra.mxu0 0
        %6471 = vmatprep.subr.bf16.mxu0 0
        %6472 = vmatpush1.bf16.msra.mxu0 0
        %6473 = vmatprep.mubr.bf16.mxu0 0
        %6474 = vmatmul.mubr.bf16.gmra.mrb[0].mxu0 %v6396
        %v6475 = vpop.f32.mrb[0].mxu0
        %v6476 = vadd.f32 0.0, %v6475
        %v6477 = vpop.f32.mrb[0].mxu0
        %v6478 = vadd.f32 0.0, %v6477
        %v6479 = vpop.f32.mrb[0].mxu0
        %v6480 = vadd.f32 0.0, %v6479
        %v6481 = vpop.f32.mrb[0].mxu0
        %v6482 = vadd.f32 0.0, %v6481
        %6483 = vdwg.mxu0
        %6484 = vmatprep.subr.bf16.mxu0 %v6384
        %6485 = vmatpush1.bf16.msra.mxu0 %v6383
        %6486 = vmatprep.subr.bf16.mxu0 0
        %6487 = vmatpush1.bf16.msra.mxu0 0
        %6488 = vmatprep.subr.bf16.mxu0 0
        %6489 = vmatpush1.bf16.msra.mxu0 0
        %6490 = vmatprep.subr.bf16.mxu0 0
        %6491 = vmatpush1.bf16.msra.mxu0 0
        %6492 = vmatprep.subr.bf16.mxu0 0
        %6493 = vmatpush1.bf16.msra.mxu0 0
        %6494 = vmatprep.subr.bf16.mxu0 0
        %6495 = vmatpush1.bf16.msra.mxu0 0
        %6496 = vmatprep.subr.bf16.mxu0 0
        %6497 = vmatpush1.bf16.msra.mxu0 0
        %6498 = vmatprep.subr.bf16.mxu0 0
        %6499 = vmatpush1.bf16.msra.mxu0 0
        %6500 = vmatprep.subr.bf16.mxu0 0
        %6501 = vmatpush1.bf16.msra.mxu0 0
        %6502 = vmatprep.subr.bf16.mxu0 0
        %6503 = vmatpush1.bf16.msra.mxu0 0
        %6504 = vmatprep.subr.bf16.mxu0 0
        %6505 = vmatpush1.bf16.msra.mxu0 0
        %6506 = vmatprep.subr.bf16.mxu0 0
        %6507 = vmatpush1.bf16.msra.mxu0 0
        %6508 = vmatprep.subr.bf16.mxu0 0
        %6509 = vmatpush1.bf16.msra.mxu0 0
        %6510 = vmatprep.subr.bf16.mxu0 0
        %6511 = vmatpush1.bf16.msra.mxu0 0
        %6512 = vmatprep.subr.bf16.mxu0 0
        %6513 = vmatpush1.bf16.msra.mxu0 0
        %6514 = vmatprep.subr.bf16.mxu0 0
        %6515 = vmatpush1.bf16.msra.mxu0 0
        %6516 = vmatprep.mubr.bf16.mxu0 0
        %6517 = vmatmul.mubr.bf16.gmra.mrb[0].mxu0 %v6396
        %v6518 = vpop.f32.mrb[0].mxu0
        %v6519 = vadd.f32 0.0, %v6518
        %v6520 = vpop.f32.mrb[0].mxu0
        %v6521 = vadd.f32 0.0, %v6520
        %v6522 = vpop.f32.mrb[0].mxu0
        %v6523 = vadd.f32 0.0, %v6522
        %v6524 = vpop.f32.mrb[0].mxu0
        %v6525 = vadd.f32 0.0, %v6524
        %6526 = vdwg.mxu0
        %6527 = vmatprep.subr.bf16.mxu0 %v6386
        %6528 = vmatpush1.bf16.msra.mxu0 %v6385
        %6529 = vmatprep.subr.bf16.mxu0 0
        %6530 = vmatpush1.bf16.msra.mxu0 0
        %6531 = vmatprep.subr.bf16.mxu0 0
        %6532 = vmatpush1.bf16.msra.mxu0 0
        %6533 = vmatprep.subr.bf16.mxu0 0
        %6534 = vmatpush1.bf16.msra.mxu0 0
        %6535 = vmatprep.subr.bf16.mxu0 0
        %6536 = vmatpush1.bf16.msra.mxu0 0
        %6537 = vmatprep.subr.bf16.mxu0 0
        %6538 = vmatpush1.bf16.msra.mxu0 0
        %6539 = vmatprep.subr.bf16.mxu0 0
        %6540 = vmatpush1.bf16.msra.mxu0 0
        %6541 = vmatprep.subr.bf16.mxu0 0
        %6542 = vmatpush1.bf16.msra.mxu0 0
        %6543 = vmatprep.subr.bf16.mxu0 0
        %6544 = vmatpush1.bf16.msra.mxu0 0
        %6545 = vmatprep.subr.bf16.mxu0 0
        %6546 = vmatpush1.bf16.msra.mxu0 0
        %6547 = vmatprep.subr.bf16.mxu0 0
        %6548 = vmatpush1.bf16.msra.mxu0 0
        %6549 = vmatprep.subr.bf16.mxu0 0
        %6550 = vmatpush1.bf16.msra.mxu0 0
        %6551 = vmatprep.subr.bf16.mxu0 0
        %6552 = vmatpush1.bf16.msra.mxu0 0
        %6553 = vmatprep.subr.bf16.mxu0 0
        %6554 = vmatpush1.bf16.msra.mxu0 0
        %6555 = vmatprep.subr.bf16.mxu0 0
        %6556 = vmatpush1.bf16.msra.mxu0 0
        %6557 = vmatprep.subr.bf16.mxu0 0
        %6558 = vmatpush1.bf16.msra.mxu0 0
        %6559 = vmatprep.mubr.bf16.mxu0 0
        %6560 = vmatmul.mubr.bf16.gmra.mrb[0].mxu0 %v6396
        %v6561 = vpop.f32.mrb[0].mxu0
        %v6562 = vadd.f32 0.0, %v6561
        %v6563 = vpop.f32.mrb[0].mxu0
        %v6564 = vadd.f32 0.0, %v6563
        %v6565 = vpop.f32.mrb[0].mxu0
        %v6566 = vadd.f32 0.0, %v6565
        %v6567 = vpop.f32.mrb[0].mxu0
        %v6568 = vadd.f32 0.0, %v6567
        %6569 = vdwg.mxu0
        %v6570 = vadd.f32 %v6336, %v6433
        %v6571 = vadd.f32 %v6337, %v6435
        %v6572 = vadd.f32 %v6338, %v6476
        %v6573 = vadd.f32 %v6339, %v6478
        %v6574 = vadd.f32 %v6340, %v6519
        %v6575 = vadd.f32 %v6341, %v6521
        %v6576 = vadd.f32 %v6342, %v6562
        %v6577 = vadd.f32 %v6343, %v6564
        %v6578 = vadd.f32 %v6344, %v6437
        %v6579 = vadd.f32 %v6345, %v6439
        %v6580 = vadd.f32 %v6346, %v6480
        %v6581 = vadd.f32 %v6347, %v6482
        %v6582 = vadd.f32 %v6348, %v6523
        %v6583 = vadd.f32 %v6349, %v6525
        %v6584 = vadd.f32 %v6350, %v6566
        %v6585 = vadd.f32 %v6351, %v6568
        %v6586 = vpack.c.bf16 %v6578, %v6570
        %v6587 = vpack.c.bf16 %v6579, %v6571
        %v6588 = vpack.c.bf16 %v6580, %v6572
        %v6589 = vpack.c.bf16 %v6581, %v6573
        %v6590 = vpack.c.bf16 %v6582, %v6574
        %v6591 = vpack.c.bf16 %v6583, %v6575
        %v6592 = vpack.c.bf16 %v6584, %v6576
        %v6593 = vpack.c.bf16 %v6585, %v6577
        %v6602 = vunpack.c.l.b16 %v6586
        %v6603 = vunpack.c.l.b16 %v6587
        %v6604 = vunpack.c.l.b16 %v6588
        %v6605 = vunpack.c.l.b16 %v6589
        %v6606 = vunpack.c.l.b16 %v6590
        %v6607 = vunpack.c.l.b16 %v6591
        %v6608 = vunpack.c.l.b16 %v6592
        %v6609 = vunpack.c.l.b16 %v6593
        %v6610 = vunpack.c.h.b16 %v6586
        %v6611 = vunpack.c.h.b16 %v6587
        %v6612 = vunpack.c.h.b16 %v6588
        %v6613 = vunpack.c.h.b16 %v6589
        %v6614 = vunpack.c.h.b16 %v6590
        %v6615 = vunpack.c.h.b16 %v6591
        %v6616 = vunpack.c.h.b16 %v6592
        %v6617 = vunpack.c.h.b16 %v6593
        %v6618 = vpack.c.b16 %v6603, %v6602
        %v6619 = vpack.c.b16 %v6605, %v6604
        %v6620 = vpack.c.b16 %v6607, %v6606
        %v6621 = vpack.c.b16 %v6609, %v6608
        %v6622 = vpack.c.b16 %v6611, %v6610
        %v6623 = vpack.c.b16 %v6613, %v6612
        %v6624 = vpack.c.b16 %v6615, %v6614
        %v6625 = vpack.c.b16 %v6617, %v6616
        %6634 = vst [vmem:[%s91] sm:$0xff] %v6618
        %6635 = vst [vmem:[%s91 + $0x8] sm:$0xff] %v6619
        %6636 = vst [vmem:[%s91 + $0x10] sm:$0xff] %v6620
        %6637 = vst [vmem:[%s91 + $0x18] sm:$0xff] %v6621
        %6638 = vst [vmem:[%s91 + $0x20] sm:$0xff] %v6622
        %6639 = vst [vmem:[%s91 + $0x28] sm:$0xff] %v6623
        %6640 = vst [vmem:[%s91 + $0x30] sm:$0xff] %v6624
        %6641 = vst [vmem:[%s91 + $0x38] sm:$0xff] %v6625
        %s6642 = sand.u32 %s42, 1
        %s6643 = sand.u32 %s42, 1
        %s6644 = smul.addr %s6643, 64
        %s6645 = scalar_lea.vmem [#allocation4], %s6644
        // Predicated region
        $region62: #{sconv3d_forward.2} parent=23 // pred_check
          %p6646 = pneg %p52
        $region63: #{sconv3d_forward.2} parent=23 // pred_check_branch
          %6648 = sbr.rel (%p6646) target = $region65
        $region64: #{sconv3d_forward.2} parent=23 // pred_region
          %s6649 = smul.u32 8, %s13
          %s6650 = smul.addr %s6649, 4
          %s6651 = scalar_lea.vmem %s2, %s6650
          // Predicated region
          $region66: #{sconv3d_forward.2} parent=64 // pred_check
            _
          $region67: #{sconv3d_forward.2} parent=64 // pred_check_branch
            %6653 = sbr.rel (0) target = $region69
          $region68: #{sconv3d_forward.2} parent=64 // pred_region
            // Predicated region
            $region70: #{sconv3d_forward.2} parent=68 // pred_check
              _
            $region71: #{sconv3d_forward.2} parent=68 // pred_check_branch
              %6655 = sbr.rel (0) target = $region73
            $region72: #{sconv3d_forward.2} parent=68 // pred_region
              loop: start=0, step=1, limit=1
              $region74: #{sconv3d_forward.2} parent=72 // loop_pre_header
                _
              $region75: #{sconv3d_forward.2} parent=72 // loop_header
                %s6657 = sphi 0, %s6661
                %p6658 = scmp.ge.s32.totalorder %s6657, 1
                %s6662 = sphi %s6645, %s6645
                %s6663 = sphi %s6651, %s6651
              $region76: #{sconv3d_forward.2} parent=72 // loop_header_branch
                %6660 = sbr.rel (%p6658) target = $region80
              $region77: #{sconv3d_forward.2} parent=72 // loop_body
                %v6664 = vld [vmem:[%s6662] sm:$0xff]
                %6665 = vst [vmem:[%s6663] sm:$0xff] %v6664
                %v6666 = vld [vmem:[%s6662 + $0x8] sm:$0xff]
                %6667 = vst [vmem:[%s6663 + $0x8] sm:$0xff] %v6666
                %v6668 = vld [vmem:[%s6662 + $0x10] sm:$0xff]
                %6669 = vst [vmem:[%s6663 + $0x10] sm:$0xff] %v6668
                %v6670 = vld [vmem:[%s6662 + $0x18] sm:$0xff]
                %6671 = vst [vmem:[%s6663 + $0x18] sm:$0xff] %v6670
                %v6672 = vld [vmem:[%s6662 + $0x20] sm:$0xff]
                %6673 = vst [vmem:[%s6663 + $0xc0] sm:$0xff] %v6672
                %v6674 = vld [vmem:[%s6662 + $0x28] sm:$0xff]
                %6675 = vst [vmem:[%s6663 + $0xc8] sm:$0xff] %v6674
                %v6676 = vld [vmem:[%s6662 + $0x30] sm:$0xff]
                %6677 = vst [vmem:[%s6663 + $0xd0] sm:$0xff] %v6676
                %v6678 = vld [vmem:[%s6662 + $0x38] sm:$0xff]
                %6679 = vst [vmem:[%s6663 + $0xd8] sm:$0xff] %v6678
              $region78: #{sconv3d_forward.2} parent=72 // loop_footer
                %s6661 = sadd.s32 1, %s6657
              $region79: #{sconv3d_forward.2} parent=72 // loop_footer_branch
                %6656 = sbr.rel target = $region75
              $region80: #{sconv3d_forward.2} parent=72 // loop_exit
                _
            $region73: #{sconv3d_forward.2} parent=68 // pred_fallthru
              _
            // Predicated region
            $region81: #{sconv3d_forward.2} parent=68 // pred_check
              _
            $region82: #{sconv3d_forward.2} parent=68 // pred_check_branch
              %6681 = sbr.rel target = $region84
            $region83: #{sconv3d_forward.2} parent=68 // pred_region
              _
            $region84: #{sconv3d_forward.2} parent=68 // pred_fallthru
              _
          $region69: #{sconv3d_forward.2} parent=64 // pred_fallthru
            _
          %6682 = vnop
        $region65: #{sconv3d_forward.2} parent=23 // pred_fallthru
          _
      $region24: #{sconv3d_forward.2} parent=5 // pred_fallthru
        _
      %p6683 = scmp.le.s32.totalorder 2, %s8
      // Predicated region
      $region85: #{sconv3d_forward.2} parent=5 // pred_check
        %p6684 = pneg %p6683
      $region86: #{sconv3d_forward.2} parent=5 // pred_check_branch
        %6686 = sbr.rel (%p6684) target = $region88
      $region87: #{sconv3d_forward.2} parent=5 // pred_region
        %s6687 = ssub.s32 %s8, 2
        // Predicated region
        $region89: #{sconv3d_forward.2} parent=87 // pred_check
          %p6688 = pneg %p58
        $region90: #{sconv3d_forward.2} parent=87 // pred_check_branch
          %6690 = sbr.rel (%p6688) target = $region92
        $region91: #{sconv3d_forward.2} parent=87 // pred_region
          %s6691 = sand.u32 %s43, 1
          %s6692 = sand.u32 %s43, 1
          %s6693 = smul.addr %s6692, 64
          %s6694 = scalar_lea.vmem [#allocation4], %s6693
        $region92: #{sconv3d_forward.2} parent=87 // pred_fallthru
          _
      $region88: #{sconv3d_forward.2} parent=5 // pred_fallthru
        _
    $region6: #{sconv3d_forward.2} parent=1 // loop_footer
      %s12 = sadd.s32 1, %s8
    $region7: #{sconv3d_forward.2} parent=1 // loop_footer_branch
      %7 = sbr.rel target = $region3
    $region8: #{sconv3d_forward.2} parent=1 // loop_exit
      _
  %6695 = vsyncmov [#allocation3]
  %s6696 = vpop.sfrf %6695
  %p6697 = scmp.eq.s32.totalorder %s6696, 0
  %p6698 = pneg %p6697
  %6700 = shalt.err (%p6698)

// kernel: sconv3d_forward.3
$region0: #{sconv3d_forward.3}
  #allocation0 [shape = 'u32[]', space=smem, size = 0x4, offset = 0x4, fixed_abs, tag = 'smem constant byte address 0x4 - core index']
  #allocation1 [shape = 'u32[144,128]{1,0:T(1,128)}', space=vmem, size = 0x12000, scoped, tag = 'internal scratch']
  %s0 = inlined_call_operand.vmem [shape: bf16[16,16], index: 0, kind: input, shape index: {}]
  %s1 = inlined_call_operand.vmem [shape: f32[16,1], index: 1, kind: input, shape index: {}]
  %s2 = inlined_call_operand.vmem [shape: bf16[16,2048], index: 2, kind: input, shape index: {}]
  %s3 = inlined_call_operand.vmem [shape: bf16[16,2048], index: 3, kind: input, shape index: {}]
  %s4 = inlined_call_operand.hbm [shape: f32[16,2048], index: 4, kind: output, shape index: {}]
  %s5 = sld [smem:[#allocation0]]
  $region95: #{sconv3d_forward.3} parent=0
    _
  %s7 = ssub.s32 1, %s5
  %s8 = scalar_select 0, %s7, %s5
  $region1: #{sconv3d_forward.3} parent=0
    #allocation2 [shape = 'u8[32768]{0}', space=vmem, size = 0x8000, scoped, tag = 'input window, operand 2']
    #allocation3 [shape = 'u8[32768]{0}', space=vmem, size = 0x8000, scoped, tag = 'input window, operand 3']
    #allocation4 [shape = 'u8[65536]{0}', space=vmem, size = 0x10000, scoped, tag = 'output window, operand 0']
    #allocation5 [shape = 's32[2]{0}', space=sflag, size = 0x8, scoped, tag = 'scoped memory for sconv3d_forward.3']
    %9 = vsyncpa [#allocation5], 0
    %s10 = scalar_lea.sflag [#allocation5], 1
    %11 = vsyncpa %s10, 0
    loop: start=0, step=1, limit=6
    $region2: #{sconv3d_forward.3} parent=1 // loop_pre_header
      _
    $region3: #{sconv3d_forward.3} parent=1 // loop_header
      %s13 = sphi 0, %s17
      %p14 = scmp.ge.s32.totalorder %s13, 6
      %s21 = sphi 0, %s21
      %s23 = sphi 0, %s21
      %s24 = sphi 0, %s23
      %s38 = sphi 0, %s24
      %s42 = sphi 0, %s42
      %s44 = sphi 0, %s42
      %s45 = sphi 0, %s44
      %s59 = sphi 0, %s45
      %s65 = sphi 0, %s67
      %s68 = sphi 0, %s65
      %s69 = sphi 0, %s68
      %s85 = sphi 0, %s69
      %s91 = sphi 0, %s93
      %s94 = sphi 0, %s91
      %s95 = sphi 0, %s94
      %s111 = sphi 0, %s95
      %s117 = sphi 0, %s119
      %s120 = sphi 0, %s117
      %s121 = sphi 0, %s120
      %s137 = sphi 0, %s121
    $region4: #{sconv3d_forward.3} parent=1 // loop_header_branch
      %16 = sbr.rel (%p14) target = $region8
    $region5: #{sconv3d_forward.3} parent=1 // loop_body
      %s18 = ssub.s32 %s13, 1
      %s19 = ssub.s32 %s13, 2
      %s20 = sadd.s32 %s13, 1
      %s22 = sadd.s32 %s21, 1
      %p25 = scmp.eq.s32.totalorder %s13, 3
      %p26 = scmp.ne.s32.totalorder %s21, %s23
      %p27 = scmp.eq.s32.totalorder %s13, 0
      %p28 = por %p26, %p27
      %p29 = scmp.ne.s32.totalorder %s21, %s23
      %p30 = scmp.eq.s32.totalorder %s18, 3
      %p31 = por %p29, %p30
      %p32 = scmp.ne.s32.totalorder %s23, %s24
      %p33 = scmp.eq.s32.totalorder %s18, 0
      %p34 = por %p32, %p33
      %p35 = scmp.ne.s32.totalorder %s23, %s24
      %p36 = scmp.eq.s32.totalorder %s19, 3
      %p37 = por %p35, %p36
      %p39 = scmp.ne.s32.totalorder %s24, %s38
      %p40 = scmp.eq.s32.totalorder %s19, 0
      %p41 = por %p39, %p40
      %s43 = sadd.s32 %s42, 1
      %p46 = scmp.eq.s32.totalorder %s13, 3
      %p47 = scmp.ne.s32.totalorder %s42, %s44
      %p48 = scmp.eq.s32.totalorder %s13, 0
      %p49 = por %p47, %p48
      %p50 = scmp.ne.s32.totalorder %s42, %s44
      %p51 = scmp.eq.s32.totalorder %s18, 3
      %p52 = por %p50, %p51
      %p53 = scmp.ne.s32.totalorder %s44, %s45
      %p54 = scmp.eq.s32.totalorder %s18, 0
      %p55 = por %p53, %p54
      %p56 = scmp.ne.s32.totalorder %s44, %s45
      %p57 = scmp.eq.s32.totalorder %s19, 3
      %p58 = por %p56, %p57
      %p60 = scmp.ne.s32.totalorder %s45, %s59
      %p61 = scmp.eq.s32.totalorder %s19, 0
      %p62 = por %p60, %p61
      %s63 = ssub.s32 %s13, %s20
      %p64 = scmp.eq.s32.totalorder %s63, 0
      %s66 = sadd.s32 %s65, 1
      %s67 = scalar_select %p64, %s65, %s66
      %p70 = pneg %p64
      %p71 = scmp.eq.s32.totalorder %s13, 3
      %p72 = por %p70, %p71
      %p73 = scmp.ne.s32.totalorder %s65, %s68
      %p74 = scmp.eq.s32.totalorder %s13, 0
      %p75 = por %p73, %p74
      %p76 = scmp.ne.s32.totalorder %s65, %s68
      %p77 = scmp.eq.s32.totalorder %s18, 3
      %p78 = por %p76, %p77
      %p79 = scmp.ne.s32.totalorder %s68, %s69
      %p80 = scmp.eq.s32.totalorder %s18, 0
      %p81 = por %p79, %p80
      %p82 = scmp.ne.s32.totalorder %s68, %s69
      %p83 = scmp.eq.s32.totalorder %s19, 3
      %p84 = por %p82, %p83
      %p86 = scmp.ne.s32.totalorder %s69, %s85
      %p87 = scmp.eq.s32.totalorder %s19, 0
      %p88 = por %p86, %p87
      %s89 = ssub.s32 %s13, %s20
      %p90 = scmp.eq.s32.totalorder %s89, 0
      %s92 = sadd.s32 %s91, 1
      %s93 = scalar_select %p90, %s91, %s92
      %p96 = pneg %p90
      %p97 = scmp.eq.s32.totalorder %s13, 3
      %p98 = por %p96, %p97
      %p99 = scmp.ne.s32.totalorder %s91, %s94
      %p100 = scmp.eq.s32.totalorder %s13, 0
      %p101 = por %p99, %p100
      %p102 = scmp.ne.s32.totalorder %s91, %s94
      %p103 = scmp.eq.s32.totalorder %s18, 3
      %p104 = por %p102, %p103
      %p105 = scmp.ne.s32.totalorder %s94, %s95
      %p106 = scmp.eq.s32.totalorder %s18, 0
      %p107 = por %p105, %p106
      %p108 = scmp.ne.s32.totalorder %s94, %s95
      %p109 = scmp.eq.s32.totalorder %s19, 3
      %p110 = por %p108, %p109
      %p112 = scmp.ne.s32.totalorder %s95, %s111
      %p113 = scmp.eq.s32.totalorder %s19, 0
      %p114 = por %p112, %p113
      %s115 = ssub.s32 %s13, %s20
      %p116 = scmp.eq.s32.totalorder %s115, 0
      %s118 = sadd.s32 %s117, 1
      %s119 = scalar_select %p116, %s117, %s118
      %p122 = pneg %p116
      %p123 = scmp.eq.s32.totalorder %s13, 3
      %p124 = por %p122, %p123
      %p125 = scmp.ne.s32.totalorder %s117, %s120
      %p126 = scmp.eq.s32.totalorder %s13, 0
      %p127 = por %p125, %p126
      %p128 = scmp.ne.s32.totalorder %s117, %s120
      %p129 = scmp.eq.s32.totalorder %s18, 3
      %p130 = por %p128, %p129
      %p131 = scmp.ne.s32.totalorder %s120, %s121
      %p132 = scmp.eq.s32.totalorder %s18, 0
      %p133 = por %p131, %p132
      %p134 = scmp.ne.s32.totalorder %s120, %s121
      %p135 = scmp.eq.s32.totalorder %s19, 3
      %p136 = por %p134, %p135
      %p138 = scmp.ne.s32.totalorder %s121, %s137
      %p139 = scmp.eq.s32.totalorder %s19, 0
      %p140 = por %p138, %p139
      %p141 = scmp.le.s32.totalorder 1, %s13
      %p142 = scmp.lt.s32.totalorder %s13, 5
      %p143 = pnand %p141, %p142
      %p144 = pneg %p143
      // Predicated region
      $region9: #{sconv3d_forward.3} parent=5 // pred_check
        _
      $region10: #{sconv3d_forward.3} parent=5 // pred_check_branch
        %146 = sbr.rel (%p143) target = $region12
      $region11: #{sconv3d_forward.3} parent=5 // pred_region
        %s147 = ssub.s32 %s13, 1
        // Predicated region
        $region13: #{sconv3d_forward.3} parent=11 // pred_check
          %p148 = pneg %p34
        $region14: #{sconv3d_forward.3} parent=11 // pred_check_branch
          %150 = sbr.rel (%p148) target = $region16
        $region15: #{sconv3d_forward.3} parent=11 // pred_region
          _
        $region16: #{sconv3d_forward.3} parent=11 // pred_fallthru
          _
        // Predicated region
        $region17: #{sconv3d_forward.3} parent=11 // pred_check
          %p151 = pneg %p55
        $region18: #{sconv3d_forward.3} parent=11 // pred_check_branch
          %153 = sbr.rel (%p151) target = $region20
        $region19: #{sconv3d_forward.3} parent=11 // pred_region
          _
        $region20: #{sconv3d_forward.3} parent=11 // pred_fallthru
          _
      $region12: #{sconv3d_forward.3} parent=5 // pred_fallthru
        _
      %p154 = scmp.lt.s32.totalorder %s13, 4
      // Predicated region
      $region21: #{sconv3d_forward.3} parent=5 // pred_check
        %p155 = pneg %p154
      $region22: #{sconv3d_forward.3} parent=5 // pred_check_branch
        %157 = sbr.rel (%p155) target = $region24
      $region23: #{sconv3d_forward.3} parent=5 // pred_region
        // Predicated region
        $region25: #{sconv3d_forward.3} parent=23 // pred_check
          %p158 = pneg %p75
        $region26: #{sconv3d_forward.3} parent=23 // pred_check_branch
          %160 = sbr.rel (%p158) target = $region28
        $region27: #{sconv3d_forward.3} parent=23 // pred_region
          %s161 = sand.u32 %s65, 1
          %s162 = sand.u32 %s65, 1
          %s163 = smul.addr %s162, 32
          %s164 = scalar_lea.vmem [#allocation2], %s163
          %s165 = smul.u32 4, %s13
          %s166 = smul.addr %s165, 4
          %s167 = scalar_lea.vmem %s2, %s166
          // Predicated region
          $region29: #{sconv3d_forward.3} parent=27 // pred_check
            _
          $region30: #{sconv3d_forward.3} parent=27 // pred_check_branch
            %169 = sbr.rel (0) target = $region32
          $region31: #{sconv3d_forward.3} parent=27 // pred_region
            // Predicated region
            $region33: #{sconv3d_forward.3} parent=31 // pred_check
              _
            $region34: #{sconv3d_forward.3} parent=31 // pred_check_branch
              %171 = sbr.rel (0) target = $region36
            $region35: #{sconv3d_forward.3} parent=31 // pred_region
              loop: start=0, step=1, limit=1
              $region37: #{sconv3d_forward.3} parent=35 // loop_pre_header
                _
              $region38: #{sconv3d_forward.3} parent=35 // loop_header
                %s173 = sphi 0, %s177
                %p174 = scmp.ge.s32.totalorder %s173, 1
                %s178 = sphi %s167, %s167
                %s179 = sphi %s164, %s164
              $region39: #{sconv3d_forward.3} parent=35 // loop_header_branch
                %176 = sbr.rel (%p174) target = $region43
              $region40: #{sconv3d_forward.3} parent=35 // loop_body
                %v180 = vld [vmem:[%s178] sm:$0xff]
                %181 = vst [vmem:[%s179] sm:$0xff] %v180
                %v182 = vld [vmem:[%s178 + $0x8] sm:$0xff]
                %183 = vst [vmem:[%s179 + $0x8] sm:$0xff] %v182
                %v184 = vld [vmem:[%s178 + $0x40] sm:$0xff]
                %185 = vst [vmem:[%s179 + $0x10] sm:$0xff] %v184
                %v186 = vld [vmem:[%s178 + $0x48] sm:$0xff]
                %187 = vst [vmem:[%s179 + $0x18] sm:$0xff] %v186
              $region41: #{sconv3d_forward.3} parent=35 // loop_footer
                %s177 = sadd.s32 1, %s173
              $region42: #{sconv3d_forward.3} parent=35 // loop_footer_branch
                %172 = sbr.rel target = $region38
              $region43: #{sconv3d_forward.3} parent=35 // loop_exit
                _
            $region36: #{sconv3d_forward.3} parent=31 // pred_fallthru
              _
            // Predicated region
            $region44: #{sconv3d_forward.3} parent=31 // pred_check
              _
            $region45: #{sconv3d_forward.3} parent=31 // pred_check_branch
              %189 = sbr.rel target = $region47
            $region46: #{sconv3d_forward.3} parent=31 // pred_region
              _
            $region47: #{sconv3d_forward.3} parent=31 // pred_fallthru
              _
          $region32: #{sconv3d_forward.3} parent=27 // pred_fallthru
            _
          %190 = vnop
        $region28: #{sconv3d_forward.3} parent=23 // pred_fallthru
          _
        // Predicated region
        $region48: #{sconv3d_forward.3} parent=23 // pred_check
          %p191 = pneg %p101
        $region49: #{sconv3d_forward.3} parent=23 // pred_check_branch
          %193 = sbr.rel (%p191) target = $region51
        $region50: #{sconv3d_forward.3} parent=23 // pred_region
          %s194 = sand.u32 %s91, 1
          %s195 = sand.u32 %s91, 1
          %s196 = smul.addr %s195, 32
          %s197 = scalar_lea.vmem [#allocation3], %s196
          %s198 = smul.u32 4, %s13
          %s199 = smul.addr %s198, 4
          %s200 = scalar_lea.vmem %s3, %s199
          // Predicated region
          $region52: #{sconv3d_forward.3} parent=50 // pred_check
            _
          $region53: #{sconv3d_forward.3} parent=50 // pred_check_branch
            %202 = sbr.rel (0) target = $region55
          $region54: #{sconv3d_forward.3} parent=50 // pred_region
            // Predicated region
            $region56: #{sconv3d_forward.3} parent=54 // pred_check
              _
            $region57: #{sconv3d_forward.3} parent=54 // pred_check_branch
              %204 = sbr.rel (0) target = $region59
            $region58: #{sconv3d_forward.3} parent=54 // pred_region
              loop: start=0, step=1, limit=1
              $region60: #{sconv3d_forward.3} parent=58 // loop_pre_header
                _
              $region61: #{sconv3d_forward.3} parent=58 // loop_header
                %s206 = sphi 0, %s210
                %p207 = scmp.ge.s32.totalorder %s206, 1
                %s211 = sphi %s200, %s200
                %s212 = sphi %s197, %s197
              $region62: #{sconv3d_forward.3} parent=58 // loop_header_branch
                %209 = sbr.rel (%p207) target = $region66
              $region63: #{sconv3d_forward.3} parent=58 // loop_body
                %v213 = vld [vmem:[%s211] sm:$0xff]
                %214 = vst [vmem:[%s212] sm:$0xff] %v213
                %v215 = vld [vmem:[%s211 + $0x8] sm:$0xff]
                %216 = vst [vmem:[%s212 + $0x8] sm:$0xff] %v215
                %v217 = vld [vmem:[%s211 + $0x40] sm:$0xff]
                %218 = vst [vmem:[%s212 + $0x10] sm:$0xff] %v217
                %v219 = vld [vmem:[%s211 + $0x48] sm:$0xff]
                %220 = vst [vmem:[%s212 + $0x18] sm:$0xff] %v219
              $region64: #{sconv3d_forward.3} parent=58 // loop_footer
                %s210 = sadd.s32 1, %s206
              $region65: #{sconv3d_forward.3} parent=58 // loop_footer_branch
                %205 = sbr.rel target = $region61
              $region66: #{sconv3d_forward.3} parent=58 // loop_exit
                _
            $region59: #{sconv3d_forward.3} parent=54 // pred_fallthru
              _
            // Predicated region
            $region67: #{sconv3d_forward.3} parent=54 // pred_check
              _
            $region68: #{sconv3d_forward.3} parent=54 // pred_check_branch
              %222 = sbr.rel target = $region70
            $region69: #{sconv3d_forward.3} parent=54 // pred_region
              _
            $region70: #{sconv3d_forward.3} parent=54 // pred_fallthru
              _
          $region55: #{sconv3d_forward.3} parent=50 // pred_fallthru
            _
          %223 = vnop
        $region51: #{sconv3d_forward.3} parent=23 // pred_fallthru
          _
      $region24: #{sconv3d_forward.3} parent=5 // pred_fallthru
        _
      %p224 = scmp.le.s32.totalorder 1, %s13
      %p225 = scmp.lt.s32.totalorder %s13, 5
      %p226 = pnand %p224, %p225
      %p227 = pneg %p226
      // Predicated region
      $region71: #{sconv3d_forward.3} parent=5 // pred_check
        _
      $region72: #{sconv3d_forward.3} parent=5 // pred_check_branch
        %229 = sbr.rel (%p226) target = $region74
      $region73: #{sconv3d_forward.3} parent=5 // pred_region
        %s230 = ssub.s32 %s13, 1
        %s231 = sand.u32 %s68, 1
        %s232 = sand.u32 %s68, 1
        %s233 = smul.addr %s232, 32
        %s234 = scalar_lea.vmem [#allocation2], %s233
        // Predicated region
        $region75: #{sconv3d_forward.3} parent=73 // pred_check
          %p235 = pneg %p81
        $region76: #{sconv3d_forward.3} parent=73 // pred_check_branch
          %237 = sbr.rel (%p235) target = $region78
        $region77: #{sconv3d_forward.3} parent=73 // pred_region
          _
        $region78: #{sconv3d_forward.3} parent=73 // pred_fallthru
          _
        %s238 = sand.u32 %s94, 1
        %s239 = sand.u32 %s94, 1
        %s240 = smul.addr %s239, 32
        %s241 = scalar_lea.vmem [#allocation3], %s240
        // Predicated region
        $region79: #{sconv3d_forward.3} parent=73 // pred_check
          %p242 = pneg %p107
        $region80: #{sconv3d_forward.3} parent=73 // pred_check_branch
          %244 = sbr.rel (%p242) target = $region82
        $region81: #{sconv3d_forward.3} parent=73 // pred_region
          _
        $region82: #{sconv3d_forward.3} parent=73 // pred_fallthru
          _
        %p245 = pneg %p34
        %p246 = pneg %p31
        %p247 = pneg %p55
        %p248 = pneg %p52
        %s249 = sand.u32 %s68, 1
        %s250 = sand.u32 %s68, 1
        %s251 = smul.addr %s250, 32
        %s252 = scalar_lea.vmem [#allocation2], %s251
        %p253 = pneg %p81
        %p254 = pneg %p78
        %s255 = sand.u32 %s94, 1
        %s256 = sand.u32 %s94, 1
        %s257 = smul.addr %s256, 32
        %s258 = scalar_lea.vmem [#allocation3], %s257
        %p259 = pneg %p107
        %p260 = pneg %p104
        %p261 = pneg %p133
        %p262 = pneg %p130
        %s263 = sand.u32 %s120, 1
        %s264 = scalar_lea.sflag [#allocation5], %s263
        %s265 = sand.u32 %s120, 1
        %s266 = smul.addr %s265, 64
        %s267 = scalar_lea.vmem [#allocation4], %s266
        %s268 = smul.u32 4, %s18
        %s269 = smul.u32 4, %s18
        %s270 = smul.u32 4, %s18
        %v272 = vld [vmem:[%s0] sm:$0xf]
        %v273 = vld [vmem:[%s0 + $0x4] sm:$0xf]
        %v274 = vld [vmem:[%s234] sm:$0xff]
        %v275 = vld [vmem:[%s234 + $0x8] sm:$0xff]
        %v276 = vld [vmem:[%s234 + $0x10] sm:$0xff]
        %v277 = vld [vmem:[%s234 + $0x18] sm:$0xff]
        %v280 = vunpack.c.l.b16 %v272
        %v281 = vunpack.c.l.b16 %v273
        %v282 = vpack.c.b16 %v281, %v280
        %v287 = vunpack.c.l.b16 %v274
        %v288 = vunpack.c.h.b16 %v274
        %v289 = vunpack.c.l.b16 %v275
        %v290 = vunpack.c.h.b16 %v275
        %v291 = vunpack.c.l.b16 %v276
        %v292 = vunpack.c.h.b16 %v276
        %v293 = vunpack.c.l.b16 %v277
        %v294 = vunpack.c.h.b16 %v277
        %v295 = vpack.c.b16 %v291, %v287
        %v296 = vpack.c.b16 %v292, %v288
        %v297 = vpack.c.b16 %v293, %v289
        %v298 = vpack.c.b16 %v294, %v290
        %vm303 = vcmask 130048
        %v305 = vsel %vm303, %v282, 0
        %307 = vmatprep.subr.bf16.mxu0 %v296
        %308 = vmatpush1.bf16.msra.mxu0 %v295
        %309 = vmatprep.subr.bf16.mxu0 0
        %310 = vmatpush1.bf16.msra.mxu0 0
        %311 = vmatprep.subr.bf16.mxu0 0
        %312 = vmatpush1.bf16.msra.mxu0 0
        %313 = vmatprep.subr.bf16.mxu0 0
        %314 = vmatpush1.bf16.msra.mxu0 0
        %315 = vmatprep.subr.bf16.mxu0 0
        %316 = vmatpush1.bf16.msra.mxu0 0
        %317 = vmatprep.subr.bf16.mxu0 0
        %318 = vmatpush1.bf16.msra.mxu0 0
        %319 = vmatprep.subr.bf16.mxu0 0
        %320 = vmatpush1.bf16.msra.mxu0 0
        %321 = vmatprep.subr.bf16.mxu0 0
        %322 = vmatpush1.bf16.msra.mxu0 0
        %323 = vmatprep.subr.bf16.mxu0 0
        %324 = vmatpush1.bf16.msra.mxu0 0
        %325 = vmatprep.subr.bf16.mxu0 0
        %326 = vmatpush1.bf16.msra.mxu0 0
        %327 = vmatprep.subr.bf16.mxu0 0
        %328 = vmatpush1.bf16.msra.mxu0 0
        %329 = vmatprep.subr.bf16.mxu0 0
        %330 = vmatpush1.bf16.msra.mxu0 0
        %331 = vmatprep.subr.bf16.mxu0 0
        %332 = vmatpush1.bf16.msra.mxu0 0
        %333 = vmatprep.subr.bf16.mxu0 0
        %334 = vmatpush1.bf16.msra.mxu0 0
        %335 = vmatprep.subr.bf16.mxu0 0
        %336 = vmatpush1.bf16.msra.mxu0 0
        %337 = vmatprep.subr.bf16.mxu0 0
        %338 = vmatpush1.bf16.msra.mxu0 0
        %339 = vmatprep.mubr.bf16.mxu0 0
        %340 = vmatmul.mubr.bf16.gmra.mrb[0].mxu0 %v305
        %v341 = vpop.f32.mrb[0].mxu0
        %v342 = vadd.f32 0.0, %v341
        %v343 = vpop.f32.mrb[0].mxu0
        %v344 = vadd.f32 0.0, %v343
        %v345 = vpop.f32.mrb[0].mxu0
        %v346 = vadd.f32 0.0, %v345
        %v347 = vpop.f32.mrb[0].mxu0
        %v348 = vadd.f32 0.0, %v347
        %349 = vdwg.mxu0
        %350 = vmatprep.subr.bf16.mxu0 %v298
        %351 = vmatpush1.bf16.msra.mxu0 %v297
        %352 = vmatprep.subr.bf16.mxu0 0
        %353 = vmatpush1.bf16.msra.mxu0 0
        %354 = vmatprep.subr.bf16.mxu0 0
        %355 = vmatpush1.bf16.msra.mxu0 0
        %356 = vmatprep.subr.bf16.mxu0 0
        %357 = vmatpush1.bf16.msra.mxu0 0
        %358 = vmatprep.subr.bf16.mxu0 0
        %359 = vmatpush1.bf16.msra.mxu0 0
        %360 = vmatprep.subr.bf16.mxu0 0
        %361 = vmatpush1.bf16.msra.mxu0 0
        %362 = vmatprep.subr.bf16.mxu0 0
        %363 = vmatpush1.bf16.msra.mxu0 0
        %364 = vmatprep.subr.bf16.mxu0 0
        %365 = vmatpush1.bf16.msra.mxu0 0
        %366 = vmatprep.subr.bf16.mxu0 0
        %367 = vmatpush1.bf16.msra.mxu0 0
        %368 = vmatprep.subr.bf16.mxu0 0
        %369 = vmatpush1.bf16.msra.mxu0 0
        %370 = vmatprep.subr.bf16.mxu0 0
        %371 = vmatpush1.bf16.msra.mxu0 0
        %372 = vmatprep.subr.bf16.mxu0 0
        %373 = vmatpush1.bf16.msra.mxu0 0
        %374 = vmatprep.subr.bf16.mxu0 0
        %375 = vmatpush1.bf16.msra.mxu0 0
        %376 = vmatprep.subr.bf16.mxu0 0
        %377 = vmatpush1.bf16.msra.mxu0 0
        %378 = vmatprep.subr.bf16.mxu0 0
        %379 = vmatpush1.bf16.msra.mxu0 0
        %380 = vmatprep.subr.bf16.mxu0 0
        %381 = vmatpush1.bf16.msra.mxu0 0
        %382 = vmatprep.mubr.bf16.mxu0 0
        %383 = vmatmul.mubr.bf16.gmra.mrb[0].mxu0 %v305
        %v384 = vpop.f32.mrb[0].mxu0
        %v385 = vadd.f32 0.0, %v384
        %v386 = vpop.f32.mrb[0].mxu0
        %v387 = vadd.f32 0.0, %v386
        %v388 = vpop.f32.mrb[0].mxu0
        %v389 = vadd.f32 0.0, %v388
        %v390 = vpop.f32.mrb[0].mxu0
        %v391 = vadd.f32 0.0, %v390
        %392 = vdwg.mxu0
        %v393 = vld [vmem:[%s241] sm:$0xff]
        %v394 = vld [vmem:[%s241 + $0x8] sm:$0xff]
        %v395 = vld [vmem:[%s241 + $0x10] sm:$0xff]
        %v396 = vld [vmem:[%s241 + $0x18] sm:$0xff]
        %v397 = vunpack.c.l.bf16 %v393
        %v398 = vunpack.c.h.bf16 %v393
        %v399 = vunpack.c.l.bf16 %v394
        %v400 = vunpack.c.h.bf16 %v394
        %v401 = vunpack.c.l.bf16 %v395
        %v402 = vunpack.c.h.bf16 %v395
        %v403 = vunpack.c.l.bf16 %v396
        %v404 = vunpack.c.h.bf16 %v396
        %v405 = vadd.f32 %v397, %v342
        %v406 = vadd.f32 %v398, %v344
        %v407 = vadd.f32 %v399, %v385
        %v408 = vadd.f32 %v400, %v387
        %v409 = vadd.f32 %v401, %v346
        %v410 = vadd.f32 %v402, %v348
        %v411 = vadd.f32 %v403, %v389
        %v412 = vadd.f32 %v404, %v391
        %v413 = vld [vmem:[%s1] sm:$0xff]
        %v414 = vld [vmem:[%s1 + $0x8] sm:$0xff]
        %416 = vset.pattern.permute.xlu0 0
        %417 = vperm.xlu0 %416, %v413
        %v418 = vpop.permute.xlu0 %417
        %421 = vset.pattern.permute.xlu0 0
        %422 = vperm.xlu0 %421, %v414
        %v423 = vpop.permute.xlu0 %422
        %v425 = vadd.f32 %v405, %v418
        %v426 = vadd.f32 %v406, %v418
        %v427 = vadd.f32 %v407, %v418
        %v428 = vadd.f32 %v408, %v418
        %v429 = vadd.f32 %v409, %v423
        %v430 = vadd.f32 %v410, %v423
        %v431 = vadd.f32 %v411, %v423
        %v432 = vadd.f32 %v412, %v423
        %433 = vst [vmem:[%s267] sm:$0xff] %v425
        %434 = vst [vmem:[%s267 + $0x8] sm:$0xff] %v426
        %435 = vst [vmem:[%s267 + $0x10] sm:$0xff] %v427
        %436 = vst [vmem:[%s267 + $0x18] sm:$0xff] %v428
        %437 = vst [vmem:[%s267 + $0x20] sm:$0xff] %v429
        %438 = vst [vmem:[%s267 + $0x28] sm:$0xff] %v430
        %439 = vst [vmem:[%s267 + $0x30] sm:$0xff] %v431
        %440 = vst [vmem:[%s267 + $0x38] sm:$0xff] %v432
        %s441 = sand.u32 %s120, 1
        %s442 = scalar_lea.sflag [#allocation5], %s441
        %s443 = sand.u32 %s120, 1
        %s444 = smul.addr %s443, 64
        %s445 = scalar_lea.vmem [#allocation4], %s444
        // Predicated region
        $region83: #{sconv3d_forward.3} parent=73 // pred_check
          %p446 = pneg %p130
        $region84: #{sconv3d_forward.3} parent=73 // pred_check_branch
          %448 = sbr.rel (%p446) target = $region86
        $region85: #{sconv3d_forward.3} parent=73 // pred_region
          %s449 = smul.u32 4, %s18
          %s451 = ssub.s32 1024, 1024
          %452 = vsyncadd %s442, %s451
          %s453 = smul.addr %s449, 128
          %s454 = scalar_lea.hbm %s4, %s453
          %s455 = sshll.u32 %s445, 4
          %s456 = int_to_ptr.vmem [resolvable:$true] %s455
          %461 = dma.vmem_to_hbm [thread:$0]  %s456, 1024, %s454, %s442, 512, 2048, 32
        $region86: #{sconv3d_forward.3} parent=73 // pred_fallthru
          _
      $region74: #{sconv3d_forward.3} parent=5 // pred_fallthru
        _
      %p462 = scmp.le.s32.totalorder 2, %s13
      // Predicated region
      $region87: #{sconv3d_forward.3} parent=5 // pred_check
        %p463 = pneg %p462
      $region88: #{sconv3d_forward.3} parent=5 // pred_check_branch
        %465 = sbr.rel (%p463) target = $region90
      $region89: #{sconv3d_forward.3} parent=5 // pred_region
        %s466 = ssub.s32 %s13, 2
        // Predicated region
        $region91: #{sconv3d_forward.3} parent=89 // pred_check
          %p467 = pneg %p136
        $region92: #{sconv3d_forward.3} parent=89 // pred_check_branch
          %469 = sbr.rel (%p467) target = $region94
        $region93: #{sconv3d_forward.3} parent=89 // pred_region
          %s470 = sand.u32 %s121, 1
          %s471 = scalar_lea.sflag [#allocation5], %s470
          %s472 = sand.u32 %s121, 1
          %s473 = smul.addr %s472, 64
          %s474 = scalar_lea.vmem [#allocation4], %s473
          %475 = dma.done %s471, 1024
        $region94: #{sconv3d_forward.3} parent=89 // pred_fallthru
          _
      $region90: #{sconv3d_forward.3} parent=5 // pred_fallthru
        _
    $region6: #{sconv3d_forward.3} parent=1 // loop_footer
      %s17 = sadd.s32 1, %s13
    $region7: #{sconv3d_forward.3} parent=1 // loop_footer_branch
      %12 = sbr.rel target = $region3
    $region8: #{sconv3d_forward.3} parent=1 // loop_exit
      _
    %476 = vsyncpa [#allocation5], 1
    %s477 = scalar_lea.sflag [#allocation5], 1
    %478 = vsyncpa %s477, 1

</llo_original>
